<compile_context>
chip_gen: v6e
topology: v6e:2x2x1
jax: 0.10.0
libtpu: 0.0.40
codegen_flags: <defaults>
</compile_context>

<pallas_src>
import jax
import jax.numpy as jnp
from jax.experimental import pallas as pl
from jax.experimental.pallas import tpu as pltpu


def encoder_kernel(ids_ref, w_ref, table_ref, out_ref, rows_ref, sem_ref):
    """One grid step pools TB batch rows.

    ids_ref  : SMEM (B_pad*S,) int32 — flattened, clamped token ids (prefetch)
    w_ref    : VMEM (TB, S)   f32    — masked 1/L pooling weights for the block
    table_ref: HBM  (V, D)           — embedding table (memory_space=pl.ANY)
    out_ref  : VMEM (TB, D)   f32    — pooled embeddings for the block
    rows_ref : VMEM (2, TB*S, D)     — double-buffered gathered rows
    sem_ref  : DMA sems (2,)         — one semaphore per buffer slot
    """
    o = pl.program_id(0)
    i = pl.program_id(1)
    n_seq = pl.num_programs(1)
    TB, S = w_ref.shape
    TBS, D = rows_ref.shape[1], rows_ref.shape[2]

    nb = o * n_seq + i          # global batch-block index
    slot = i % 2                # double-buffer slot holding this block

    def start_gather(block, slot_):
        base = block * TBS
        for r in range(TBS):                        # trace-time unrolled
            tok = ids_ref[base + r]                 # dynamic SMEM scalar read
            pltpu.make_async_copy(
                table_ref.at[pl.ds(tok, 1), :],     # (1, D) HBM row
                rows_ref.at[slot_, pl.ds(r, 1), :], # (1, D) VMEM dest row
                sem_ref.at[slot_],
            ).start()

    # Pipeline prologue: the first sequential step of each outer chunk
    # gathers its own block (slot == 0 there).
    @pl.when(i == 0)
    def _():
        start_gather(nb, slot)

    # Prefetch the next block into the other slot *before* waiting, so those
    # DMAs overlap with this step's waits + compute.
    @pl.when(i + 1 < n_seq)
    def _():
        start_gather(nb + 1, 1 - slot)

    # Wait for the TBS row copies of the current block.  All copies of a slot
    # signal the same semaphore; each wait below accounts for exactly one
    # (1, D) row-sized transfer, so TBS waits drain the slot completely.
    for r in range(TBS):
        pltpu.make_async_copy(
            table_ref.at[pl.ds(0, 1), :],
            rows_ref.at[slot, pl.ds(r, 1), :],
            sem_ref.at[slot],
        ).wait()

    # Exact-f32 weighted prefix-mean on VPU/XLU (no MXU, no precision
    # emulation): out[t] = sum_s w[t, s] * rows[t, s, :],
    # where w[t, s] = 1/L_t for s < L_t else 0.
    rows = rows_ref[slot].astype(jnp.float32).reshape(TB, S, D)
    w = w_ref[...]                                   # (TB, S) f32
    out_ref[...] = jnp.sum(rows * w[:, :, None], axis=1).astype(out_ref.dtype)


def mlp_encoder_forward(table, tag_input_ids, tag_attention_mask, *, block_b=8):
    """Pallas-backed MLPEncoder.forward. Returns (B, D) float32."""
    B, S = tag_input_ids.shape
    V, D = table.shape
    TB = block_b

    nb_total = -(-B // TB)                 # number of TB-row blocks (ceil)
    B_pad = nb_total * TB
    pad = B_pad - B

    # Clamp ids so a bad id can never produce an out-of-bounds HBM DMA.
    ids = jnp.clip(tag_input_ids.astype(jnp.int32), 0, V - 1)

    # Prefix lengths and masked 1/L pooling weights (tiny, computed once).
    lengths = (tag_attention_mask == 1).sum(-1).astype(jnp.int32)        # (B,)
    inv_l = 1.0 / jnp.maximum(lengths, 1).astype(jnp.float32)            # clamp
    pos = jnp.arange(S, dtype=jnp.int32)[None, :]
    w = jnp.where(pos < lengths[:, None], inv_l[:, None], 0.0)           # (B, S)
    w = w.astype(jnp.float32)

    if pad:
        ids = jnp.concatenate([ids, jnp.zeros((pad, S), jnp.int32)], axis=0)
        w = jnp.concatenate([w, jnp.zeros((pad, S), jnp.float32)], axis=0)

    ids_flat = ids.reshape(-1)                                           # (B_pad*S,)

    # Two-level grid: outer axis is independent ("parallel", megacore-safe),
    # inner axis carries the sequential double-buffer pipeline ("arbitrary").
    g_par = 2 if (nb_total >= 2 and nb_total % 2 == 0) else 1
    g_seq = nb_total // g_par

    out = pl.pallas_call(
        encoder_kernel,
        out_shape=jax.ShapeDtypeStruct((B_pad, D), jnp.float32),
        grid_spec=pltpu.PrefetchScalarGridSpec(
            num_scalar_prefetch=1,                       # ids_flat
            grid=(g_par, g_seq),
            in_specs=[
                # Masked 1/L weights, auto-pipelined into VMEM per block.
                pl.BlockSpec((TB, S), lambda o, i, ids: (o * g_seq + i, 0)),
                # Embedding table stays in HBM; rows gathered manually by DMA.
                pl.BlockSpec(memory_space=pl.ANY),
            ],
            out_specs=pl.BlockSpec((TB, D), lambda o, i, ids: (o * g_seq + i, 0)),
            scratch_shapes=[
                pltpu.VMEM((2, TB * S, D), table.dtype),   # double-buffered rows
                pltpu.SemaphoreType.DMA((2,)),             # one sem per slot
            ],
        ),
        compiler_params=pltpu.CompilerParams(
            dimension_semantics=("parallel", "arbitrary")),
    )(ids_flat, w, table)

    return out[:B]


def _reference_forward(table, ids, mask):
    """Pure-JAX reference for the same forward (f32)."""
    emb = table[ids]                                                 # (B, S, D)
    L = (mask == 1).sum(-1)
    wm = (jnp.arange(ids.shape[1])[None, :] < L[:, None]).astype(jnp.float32)
    return (emb * wm[:, :, None]).sum(1) / jnp.maximum(L, 1)[:, None].astype(
        jnp.float32)


if __name__ == "__main__":
    B, S, V, D = 2, 8, 128, 768

    key = jax.random.PRNGKey(0)
    k_tbl, k_ids, k_ids2, k_len2, k_ids3, k_len3 = jax.random.split(key, 6)

    # Deterministic synthetic "nn.Embedding" weight (V, 768).
    table = 0.02 * jax.random.normal(k_tbl, (V, D), dtype=jnp.float32)

    # --- small case (B=2): single block -------------------------------------
    tag_input_ids = jax.random.randint(k_ids, (B, S), 0, V, dtype=jnp.int32)
    lengths = jnp.array([5, 8], dtype=jnp.int32)
    tag_attention_mask = (jnp.arange(S)[None, :] < lengths[:, None]).astype(
        jnp.int32)

    out = jax.block_until_ready(
        mlp_encoder_forward(table, tag_input_ids, tag_attention_mask))
    ref = _reference_forward(table, tag_input_ids, tag_attention_mask)
    assert out.shape == (B, D)
    assert jnp.allclose(out, ref, rtol=1e-5, atol=1e-5), "mismatch (B=2)"

    # --- ragged batch (B=20): 3 blocks, sequential pipeline + padding --------
    B2 = 20
    ids2 = jax.random.randint(k_ids2, (B2, S), 0, V, dtype=jnp.int32)
    len2 = jax.random.randint(k_len2, (B2,), 1, S + 1, dtype=jnp.int32)
    mask2 = (jnp.arange(S)[None, :] < len2[:, None]).astype(jnp.int32)
    out2 = jax.block_until_ready(mlp_encoder_forward(table, ids2, mask2))
    ref2 = _reference_forward(table, ids2, mask2)
    assert out2.shape == (B2, D)
    assert jnp.allclose(out2, ref2, rtol=1e-5, atol=1e-5), "mismatch (B=20)"

    # --- B=32: 4 blocks, exercises the parallel outer axis (2x2 grid) --------
    B3 = 32
    ids3 = jax.random.randint(k_ids3, (B3, S), 0, V, dtype=jnp.int32)
    len3 = jax.random.randint(k_len3, (B3,), 1, S + 1, dtype=jnp.int32)
    mask3 = (jnp.arange(S)[None, :] < len3[:, None]).astype(jnp.int32)
    out3 = jax.block_until_ready(mlp_encoder_forward(table, ids3, mask3))
    ref3 = _reference_forward(table, ids3, mask3)
    assert out3.shape == (B3, D)
    assert jnp.allclose(out3, ref3, rtol=1e-5, atol=1e-5), "mismatch (B=32)"

    print("KERNEL_OK")
</pallas_src>

<mosaic_0001>
module attributes {stable_mosaic.version = 11 : i64} {
  func.func @encoder_kernel(%arg0: i32, %arg1: i32, %arg2: memref<64xi32, #tpu.memory_space<smem>>, %arg3: memref<8x8xf32, #tpu.memory_space<vmem>>, %arg4: memref<128x768xf32, #tpu.memory_space<any>>, %arg5: memref<8x768xf32, #tpu.memory_space<vmem>>, %arg6: memref<2x64x768xf32, #tpu.memory_space<vmem>>, %arg7: memref<2x!tpu.dma_semaphore, #tpu.memory_space<semaphore_mem>>) attributes {dimension_semantics = [#tpu.dimension_semantics<parallel>, #tpu.dimension_semantics<arbitrary>], iteration_bounds = array<i64: 1, 1>, scalar_prefetch = 1 : i64, scratch_operands = 2 : i64, tpu.core_type = #tpu.core_type<tc>, window_params = [{transform_indices = @transform_0, window_bounds = array<i64: 8, 8>}, {}, {transform_indices = @transform_2, window_bounds = array<i64: 8, 768>}]} {
    %c1_i32 = arith.constant 1 : i32
    %0 = arith.muli %arg0, %c1_i32 : i32
    %1 = arith.addi %0, %arg1 : i32
    %c2_i32 = arith.constant 2 : i32
    %c0_i32 = arith.constant 0 : i32
    %2 = arith.cmpi eq, %c2_i32, %c0_i32 : i32
    %c1_i32_0 = arith.constant 1 : i32
    %3 = arith.select %2, %c1_i32_0, %c2_i32 : i32
    %4 = arith.remsi %arg1, %3 : i32
    %c0_i32_1 = arith.constant 0 : i32
    %5 = arith.cmpi ne, %4, %c0_i32_1 : i32
    %c0_i32_2 = arith.constant 0 : i32
    %6 = arith.cmpi slt, %4, %c0_i32_2 : i32
    %c0_i32_3 = arith.constant 0 : i32
    %7 = arith.cmpi slt, %3, %c0_i32_3 : i32
    %8 = arith.xori %6, %7 : i1
    %9 = arith.andi %8, %5 : i1
    %10 = arith.addi %4, %3 : i32
    %11 = arith.select %9, %10, %4 : i32
    %c0_i32_4 = arith.constant 0 : i32
    %12 = arith.cmpi eq, %arg1, %c0_i32_4 : i32
    %13 = arith.extui %12 : i1 to i32
    %c0_i32_5 = arith.constant 0 : i32
    %14 = arith.cmpi ne, %13, %c0_i32_5 : i32
    scf.if %14 {
      %c64_i32 = arith.constant 64 : i32
      %349 = arith.muli %1, %c64_i32 : i32
      %c0_i32_209 = arith.constant 0 : i32
      %350 = arith.addi %349, %c0_i32_209 : i32
      %351 = arith.index_cast %350 : i32 to index
      %352 = memref.load %arg2[%351] : memref<64xi32, #tpu.memory_space<smem>>
      %c0_i32_210 = arith.constant 0 : i32
      %353 = tpu.memref_slice %arg4[%352, %c0_i32_210] : memref<128x768xf32, #tpu.memory_space<any>> -> memref<1x768xf32, #tpu.memory_space<any>>
      %c0_i32_211 = arith.constant 0 : i32
      %c0_i32_212 = arith.constant 0 : i32
      %354 = tpu.memref_slice %arg6[%11, %c0_i32_211, %c0_i32_212] : memref<2x64x768xf32, #tpu.memory_space<vmem>> -> memref<1x1x768xf32, #tpu.memory_space<vmem>>
      %355 = tpu.memref_squeeze %354 : memref<1x1x768xf32, #tpu.memory_space<vmem>> -> memref<1x768xf32, #tpu.memory_space<vmem>>
      %356 = tpu.memref_slice %arg7[%11] : memref<2x!tpu.dma_semaphore, #tpu.memory_space<semaphore_mem>> -> memref<1x!tpu.dma_semaphore, #tpu.memory_space<semaphore_mem>>
      %357 = tpu.memref_squeeze %356 : memref<1x!tpu.dma_semaphore, #tpu.memory_space<semaphore_mem>> -> memref<!tpu.dma_semaphore, #tpu.memory_space<semaphore_mem>>
      tpu.enqueue_dma source(%353 : memref<1x768xf32, #tpu.memory_space<any>>) target(%355 : memref<1x768xf32, #tpu.memory_space<vmem>>) target_semaphore(%357 : memref<!tpu.dma_semaphore, #tpu.memory_space<semaphore_mem>>)
      %c1_i32_213 = arith.constant 1 : i32
      %358 = arith.addi %349, %c1_i32_213 : i32
      %359 = arith.index_cast %358 : i32 to index
      %360 = memref.load %arg2[%359] : memref<64xi32, #tpu.memory_space<smem>>
      %c0_i32_214 = arith.constant 0 : i32
      %361 = tpu.memref_slice %arg4[%360, %c0_i32_214] : memref<128x768xf32, #tpu.memory_space<any>> -> memref<1x768xf32, #tpu.memory_space<any>>
      %c1_i32_215 = arith.constant 1 : i32
      %c0_i32_216 = arith.constant 0 : i32
      %362 = tpu.memref_slice %arg6[%11, %c1_i32_215, %c0_i32_216] : memref<2x64x768xf32, #tpu.memory_space<vmem>> -> memref<1x1x768xf32, #tpu.memory_space<vmem>>
      %363 = tpu.memref_squeeze %362 : memref<1x1x768xf32, #tpu.memory_space<vmem>> -> memref<1x768xf32, #tpu.memory_space<vmem>>
      %364 = tpu.memref_slice %arg7[%11] : memref<2x!tpu.dma_semaphore, #tpu.memory_space<semaphore_mem>> -> memref<1x!tpu.dma_semaphore, #tpu.memory_space<semaphore_mem>>
      %365 = tpu.memref_squeeze %364 : memref<1x!tpu.dma_semaphore, #tpu.memory_space<semaphore_mem>> -> memref<!tpu.dma_semaphore, #tpu.memory_space<semaphore_mem>>
      tpu.enqueue_dma source(%361 : memref<1x768xf32, #tpu.memory_space<any>>) target(%363 : memref<1x768xf32, #tpu.memory_space<vmem>>) target_semaphore(%365 : memref<!tpu.dma_semaphore, #tpu.memory_space<semaphore_mem>>)
      %c2_i32_217 = arith.constant 2 : i32
      %366 = arith.addi %349, %c2_i32_217 : i32
      %367 = arith.index_cast %366 : i32 to index
      %368 = memref.load %arg2[%367] : memref<64xi32, #tpu.memory_space<smem>>
      %c0_i32_218 = arith.constant 0 : i32
      %369 = tpu.memref_slice %arg4[%368, %c0_i32_218] : memref<128x768xf32, #tpu.memory_space<any>> -> memref<1x768xf32, #tpu.memory_space<any>>
      %c2_i32_219 = arith.constant 2 : i32
      %c0_i32_220 = arith.constant 0 : i32
      %370 = tpu.memref_slice %arg6[%11, %c2_i32_219, %c0_i32_220] : memref<2x64x768xf32, #tpu.memory_space<vmem>> -> memref<1x1x768xf32, #tpu.memory_space<vmem>>
      %371 = tpu.memref_squeeze %370 : memref<1x1x768xf32, #tpu.memory_space<vmem>> -> memref<1x768xf32, #tpu.memory_space<vmem>>
      %372 = tpu.memref_slice %arg7[%11] : memref<2x!tpu.dma_semaphore, #tpu.memory_space<semaphore_mem>> -> memref<1x!tpu.dma_semaphore, #tpu.memory_space<semaphore_mem>>
      %373 = tpu.memref_squeeze %372 : memref<1x!tpu.dma_semaphore, #tpu.memory_space<semaphore_mem>> -> memref<!tpu.dma_semaphore, #tpu.memory_space<semaphore_mem>>
      tpu.enqueue_dma source(%369 : memref<1x768xf32, #tpu.memory_space<any>>) target(%371 : memref<1x768xf32, #tpu.memory_space<vmem>>) target_semaphore(%373 : memref<!tpu.dma_semaphore, #tpu.memory_space<semaphore_mem>>)
      %c3_i32_221 = arith.constant 3 : i32
      %374 = arith.addi %349, %c3_i32_221 : i32
      %375 = arith.index_cast %374 : i32 to index
      %376 = memref.load %arg2[%375] : memref<64xi32, #tpu.memory_space<smem>>
      %c0_i32_222 = arith.constant 0 : i32
      %377 = tpu.memref_slice %arg4[%376, %c0_i32_222] : memref<128x768xf32, #tpu.memory_space<any>> -> memref<1x768xf32, #tpu.memory_space<any>>
      %c3_i32_223 = arith.constant 3 : i32
      %c0_i32_224 = arith.constant 0 : i32
      %378 = tpu.memref_slice %arg6[%11, %c3_i32_223, %c0_i32_224] : memref<2x64x768xf32, #tpu.memory_space<vmem>> -> memref<1x1x768xf32, #tpu.memory_space<vmem>>
      %379 = tpu.memref_squeeze %378 : memref<1x1x768xf32, #tpu.memory_space<vmem>> -> memref<1x768xf32, #tpu.memory_space<vmem>>
      %380 = tpu.memref_slice %arg7[%11] : memref<2x!tpu.dma_semaphore, #tpu.memory_space<semaphore_mem>> -> memref<1x!tpu.dma_semaphore, #tpu.memory_space<semaphore_mem>>
      %381 = tpu.memref_squeeze %380 : memref<1x!tpu.dma_semaphore, #tpu.memory_space<semaphore_mem>> -> memref<!tpu.dma_semaphore, #tpu.memory_space<semaphore_mem>>
      tpu.enqueue_dma source(%377 : memref<1x768xf32, #tpu.memory_space<any>>) target(%379 : memref<1x768xf32, #tpu.memory_space<vmem>>) target_semaphore(%381 : memref<!tpu.dma_semaphore, #tpu.memory_space<semaphore_mem>>)
      %c4_i32_225 = arith.constant 4 : i32
      %382 = arith.addi %349, %c4_i32_225 : i32
      %383 = arith.index_cast %382 : i32 to index
      %384 = memref.load %arg2[%383] : memref<64xi32, #tpu.memory_space<smem>>
      %c0_i32_226 = arith.constant 0 : i32
      %385 = tpu.memref_slice %arg4[%384, %c0_i32_226] : memref<128x768xf32, #tpu.memory_space<any>> -> memref<1x768xf32, #tpu.memory_space<any>>
      %c4_i32_227 = arith.constant 4 : i32
      %c0_i32_228 = arith.constant 0 : i32
      %386 = tpu.memref_slice %arg6[%11, %c4_i32_227, %c0_i32_228] : memref<2x64x768xf32, #tpu.memory_space<vmem>> -> memref<1x1x768xf32, #tpu.memory_space<vmem>>
      %387 = tpu.memref_squeeze %386 : memref<1x1x768xf32, #tpu.memory_space<vmem>> -> memref<1x768xf32, #tpu.memory_space<vmem>>
      %388 = tpu.memref_slice %arg7[%11] : memref<2x!tpu.dma_semaphore, #tpu.memory_space<semaphore_mem>> -> memref<1x!tpu.dma_semaphore, #tpu.memory_space<semaphore_mem>>
      %389 = tpu.memref_squeeze %388 : memref<1x!tpu.dma_semaphore, #tpu.memory_space<semaphore_mem>> -> memref<!tpu.dma_semaphore, #tpu.memory_space<semaphore_mem>>
      tpu.enqueue_dma source(%385 : memref<1x768xf32, #tpu.memory_space<any>>) target(%387 : memref<1x768xf32, #tpu.memory_space<vmem>>) target_semaphore(%389 : memref<!tpu.dma_semaphore, #tpu.memory_space<semaphore_mem>>)
      %c5_i32_229 = arith.constant 5 : i32
      %390 = arith.addi %349, %c5_i32_229 : i32
      %391 = arith.index_cast %390 : i32 to index
      %392 = memref.load %arg2[%391] : memref<64xi32, #tpu.memory_space<smem>>
      %c0_i32_230 = arith.constant 0 : i32
      %393 = tpu.memref_slice %arg4[%392, %c0_i32_230] : memref<128x768xf32, #tpu.memory_space<any>> -> memref<1x768xf32, #tpu.memory_space<any>>
      %c5_i32_231 = arith.constant 5 : i32
      %c0_i32_232 = arith.constant 0 : i32
      %394 = tpu.memref_slice %arg6[%11, %c5_i32_231, %c0_i32_232] : memref<2x64x768xf32, #tpu.memory_space<vmem>> -> memref<1x1x768xf32, #tpu.memory_space<vmem>>
      %395 = tpu.memref_squeeze %394 : memref<1x1x768xf32, #tpu.memory_space<vmem>> -> memref<1x768xf32, #tpu.memory_space<vmem>>
      %396 = tpu.memref_slice %arg7[%11] : memref<2x!tpu.dma_semaphore, #tpu.memory_space<semaphore_mem>> -> memref<1x!tpu.dma_semaphore, #tpu.memory_space<semaphore_mem>>
      %397 = tpu.memref_squeeze %396 : memref<1x!tpu.dma_semaphore, #tpu.memory_space<semaphore_mem>> -> memref<!tpu.dma_semaphore, #tpu.memory_space<semaphore_mem>>
      tpu.enqueue_dma source(%393 : memref<1x768xf32, #tpu.memory_space<any>>) target(%395 : memref<1x768xf32, #tpu.memory_space<vmem>>) target_semaphore(%397 : memref<!tpu.dma_semaphore, #tpu.memory_space<semaphore_mem>>)
      %c6_i32_233 = arith.constant 6 : i32
      %398 = arith.addi %349, %c6_i32_233 : i32
      %399 = arith.index_cast %398 : i32 to index
      %400 = memref.load %arg2[%399] : memref<64xi32, #tpu.memory_space<smem>>
      %c0_i32_234 = arith.constant 0 : i32
      %401 = tpu.memref_slice %arg4[%400, %c0_i32_234] : memref<128x768xf32, #tpu.memory_space<any>> -> memref<1x768xf32, #tpu.memory_space<any>>
      %c6_i32_235 = arith.constant 6 : i32
      %c0_i32_236 = arith.constant 0 : i32
      %402 = tpu.memref_slice %arg6[%11, %c6_i32_235, %c0_i32_236] : memref<2x64x768xf32, #tpu.memory_space<vmem>> -> memref<1x1x768xf32, #tpu.memory_space<vmem>>
      %403 = tpu.memref_squeeze %402 : memref<1x1x768xf32, #tpu.memory_space<vmem>> -> memref<1x768xf32, #tpu.memory_space<vmem>>
      %404 = tpu.memref_slice %arg7[%11] : memref<2x!tpu.dma_semaphore, #tpu.memory_space<semaphore_mem>> -> memref<1x!tpu.dma_semaphore, #tpu.memory_space<semaphore_mem>>
      %405 = tpu.memref_squeeze %404 : memref<1x!tpu.dma_semaphore, #tpu.memory_space<semaphore_mem>> -> memref<!tpu.dma_semaphore, #tpu.memory_space<semaphore_mem>>
      tpu.enqueue_dma source(%401 : memref<1x768xf32, #tpu.memory_space<any>>) target(%403 : memref<1x768xf32, #tpu.memory_space<vmem>>) target_semaphore(%405 : memref<!tpu.dma_semaphore, #tpu.memory_space<semaphore_mem>>)
      %c7_i32_237 = arith.constant 7 : i32
      %406 = arith.addi %349, %c7_i32_237 : i32
      %407 = arith.index_cast %406 : i32 to index
      %408 = memref.load %arg2[%407] : memref<64xi32, #tpu.memory_space<smem>>
      %c0_i32_238 = arith.constant 0 : i32
      %409 = tpu.memref_slice %arg4[%408, %c0_i32_238] : memref<128x768xf32, #tpu.memory_space<any>> -> memref<1x768xf32, #tpu.memory_space<any>>
      %c7_i32_239 = arith.constant 7 : i32
      %c0_i32_240 = arith.constant 0 : i32
      %410 = tpu.memref_slice %arg6[%11, %c7_i32_239, %c0_i32_240] : memref<2x64x768xf32, #tpu.memory_space<vmem>> -> memref<1x1x768xf32, #tpu.memory_space<vmem>>
      %411 = tpu.memref_squeeze %410 : memref<1x1x768xf32, #tpu.memory_space<vmem>> -> memref<1x768xf32, #tpu.memory_space<vmem>>
      %412 = tpu.memref_slice %arg7[%11] : memref<2x!tpu.dma_semaphore, #tpu.memory_space<semaphore_mem>> -> memref<1x!tpu.dma_semaphore, #tpu.memory_space<semaphore_mem>>
      %413 = tpu.memref_squeeze %412 : memref<1x!tpu.dma_semaphore, #tpu.memory_space<semaphore_mem>> -> memref<!tpu.dma_semaphore, #tpu.memory_space<semaphore_mem>>
      tpu.enqueue_dma source(%409 : memref<1x768xf32, #tpu.memory_space<any>>) target(%411 : memref<1x768xf32, #tpu.memory_space<vmem>>) target_semaphore(%413 : memref<!tpu.dma_semaphore, #tpu.memory_space<semaphore_mem>>)
      %c8_i32_241 = arith.constant 8 : i32
      %414 = arith.addi %349, %c8_i32_241 : i32
      %415 = arith.index_cast %414 : i32 to index
      %416 = memref.load %arg2[%415] : memref<64xi32, #tpu.memory_space<smem>>
      %c0_i32_242 = arith.constant 0 : i32
      %417 = tpu.memref_slice %arg4[%416, %c0_i32_242] : memref<128x768xf32, #tpu.memory_space<any>> -> memref<1x768xf32, #tpu.memory_space<any>>
      %c8_i32_243 = arith.constant 8 : i32
      %c0_i32_244 = arith.constant 0 : i32
      %418 = tpu.memref_slice %arg6[%11, %c8_i32_243, %c0_i32_244] : memref<2x64x768xf32, #tpu.memory_space<vmem>> -> memref<1x1x768xf32, #tpu.memory_space<vmem>>
      %419 = tpu.memref_squeeze %418 : memref<1x1x768xf32, #tpu.memory_space<vmem>> -> memref<1x768xf32, #tpu.memory_space<vmem>>
      %420 = tpu.memref_slice %arg7[%11] : memref<2x!tpu.dma_semaphore, #tpu.memory_space<semaphore_mem>> -> memref<1x!tpu.dma_semaphore, #tpu.memory_space<semaphore_mem>>
      %421 = tpu.memref_squeeze %420 : memref<1x!tpu.dma_semaphore, #tpu.memory_space<semaphore_mem>> -> memref<!tpu.dma_semaphore, #tpu.memory_space<semaphore_mem>>
      tpu.enqueue_dma source(%417 : memref<1x768xf32, #tpu.memory_space<any>>) target(%419 : memref<1x768xf32, #tpu.memory_space<vmem>>) target_semaphore(%421 : memref<!tpu.dma_semaphore, #tpu.memory_space<semaphore_mem>>)
      %c9_i32_245 = arith.constant 9 : i32
      %422 = arith.addi %349, %c9_i32_245 : i32
      %423 = arith.index_cast %422 : i32 to index
      %424 = memref.load %arg2[%423] : memref<64xi32, #tpu.memory_space<smem>>
      %c0_i32_246 = arith.constant 0 : i32
      %425 = tpu.memref_slice %arg4[%424, %c0_i32_246] : memref<128x768xf32, #tpu.memory_space<any>> -> memref<1x768xf32, #tpu.memory_space<any>>
      %c9_i32_247 = arith.constant 9 : i32
      %c0_i32_248 = arith.constant 0 : i32
      %426 = tpu.memref_slice %arg6[%11, %c9_i32_247, %c0_i32_248] : memref<2x64x768xf32, #tpu.memory_space<vmem>> -> memref<1x1x768xf32, #tpu.memory_space<vmem>>
      %427 = tpu.memref_squeeze %426 : memref<1x1x768xf32, #tpu.memory_space<vmem>> -> memref<1x768xf32, #tpu.memory_space<vmem>>
      %428 = tpu.memref_slice %arg7[%11] : memref<2x!tpu.dma_semaphore, #tpu.memory_space<semaphore_mem>> -> memref<1x!tpu.dma_semaphore, #tpu.memory_space<semaphore_mem>>
      %429 = tpu.memref_squeeze %428 : memref<1x!tpu.dma_semaphore, #tpu.memory_space<semaphore_mem>> -> memref<!tpu.dma_semaphore, #tpu.memory_space<semaphore_mem>>
      tpu.enqueue_dma source(%425 : memref<1x768xf32, #tpu.memory_space<any>>) target(%427 : memref<1x768xf32, #tpu.memory_space<vmem>>) target_semaphore(%429 : memref<!tpu.dma_semaphore, #tpu.memory_space<semaphore_mem>>)
      %c10_i32_249 = arith.constant 10 : i32
      %430 = arith.addi %349, %c10_i32_249 : i32
      %431 = arith.index_cast %430 : i32 to index
      %432 = memref.load %arg2[%431] : memref<64xi32, #tpu.memory_space<smem>>
      %c0_i32_250 = arith.constant 0 : i32
      %433 = tpu.memref_slice %arg4[%432, %c0_i32_250] : memref<128x768xf32, #tpu.memory_space<any>> -> memref<1x768xf32, #tpu.memory_space<any>>
      %c10_i32_251 = arith.constant 10 : i32
      %c0_i32_252 = arith.constant 0 : i32
      %434 = tpu.memref_slice %arg6[%11, %c10_i32_251, %c0_i32_252] : memref<2x64x768xf32, #tpu.memory_space<vmem>> -> memref<1x1x768xf32, #tpu.memory_space<vmem>>
      %435 = tpu.memref_squeeze %434 : memref<1x1x768xf32, #tpu.memory_space<vmem>> -> memref<1x768xf32, #tpu.memory_space<vmem>>
      %436 = tpu.memref_slice %arg7[%11] : memref<2x!tpu.dma_semaphore, #tpu.memory_space<semaphore_mem>> -> memref<1x!tpu.dma_semaphore, #tpu.memory_space<semaphore_mem>>
      %437 = tpu.memref_squeeze %436 : memref<1x!tpu.dma_semaphore, #tpu.memory_space<semaphore_mem>> -> memref<!tpu.dma_semaphore, #tpu.memory_space<semaphore_mem>>
      tpu.enqueue_dma source(%433 : memref<1x768xf32, #tpu.memory_space<any>>) target(%435 : memref<1x768xf32, #tpu.memory_space<vmem>>) target_semaphore(%437 : memref<!tpu.dma_semaphore, #tpu.memory_space<semaphore_mem>>)
      %c11_i32_253 = arith.constant 11 : i32
      %438 = arith.addi %349, %c11_i32_253 : i32
      %439 = arith.index_cast %438 : i32 to index
      %440 = memref.load %arg2[%439] : memref<64xi32, #tpu.memory_space<smem>>
      %c0_i32_254 = arith.constant 0 : i32
      %441 = tpu.memref_slice %arg4[%440, %c0_i32_254] : memref<128x768xf32, #tpu.memory_space<any>> -> memref<1x768xf32, #tpu.memory_space<any>>
      %c11_i32_255 = arith.constant 11 : i32
      %c0_i32_256 = arith.constant 0 : i32
      %442 = tpu.memref_slice %arg6[%11, %c11_i32_255, %c0_i32_256] : memref<2x64x768xf32, #tpu.memory_space<vmem>> -> memref<1x1x768xf32, #tpu.memory_space<vmem>>
      %443 = tpu.memref_squeeze %442 : memref<1x1x768xf32, #tpu.memory_space<vmem>> -> memref<1x768xf32, #tpu.memory_space<vmem>>
      %444 = tpu.memref_slice %arg7[%11] : memref<2x!tpu.dma_semaphore, #tpu.memory_space<semaphore_mem>> -> memref<1x!tpu.dma_semaphore, #tpu.memory_space<semaphore_mem>>
      %445 = tpu.memref_squeeze %444 : memref<1x!tpu.dma_semaphore, #tpu.memory_space<semaphore_mem>> -> memref<!tpu.dma_semaphore, #tpu.memory_space<semaphore_mem>>
      tpu.enqueue_dma source(%441 : memref<1x768xf32, #tpu.memory_space<any>>) target(%443 : memref<1x768xf32, #tpu.memory_space<vmem>>) target_semaphore(%445 : memref<!tpu.dma_semaphore, #tpu.memory_space<semaphore_mem>>)
      %c12_i32_257 = arith.constant 12 : i32
      %446 = arith.addi %349, %c12_i32_257 : i32
      %447 = arith.index_cast %446 : i32 to index
      %448 = memref.load %arg2[%447] : memref<64xi32, #tpu.memory_space<smem>>
      %c0_i32_258 = arith.constant 0 : i32
      %449 = tpu.memref_slice %arg4[%448, %c0_i32_258] : memref<128x768xf32, #tpu.memory_space<any>> -> memref<1x768xf32, #tpu.memory_space<any>>
      %c12_i32_259 = arith.constant 12 : i32
      %c0_i32_260 = arith.constant 0 : i32
      %450 = tpu.memref_slice %arg6[%11, %c12_i32_259, %c0_i32_260] : memref<2x64x768xf32, #tpu.memory_space<vmem>> -> memref<1x1x768xf32, #tpu.memory_space<vmem>>
      %451 = tpu.memref_squeeze %450 : memref<1x1x768xf32, #tpu.memory_space<vmem>> -> memref<1x768xf32, #tpu.memory_space<vmem>>
      %452 = tpu.memref_slice %arg7[%11] : memref<2x!tpu.dma_semaphore, #tpu.memory_space<semaphore_mem>> -> memref<1x!tpu.dma_semaphore, #tpu.memory_space<semaphore_mem>>
      %453 = tpu.memref_squeeze %452 : memref<1x!tpu.dma_semaphore, #tpu.memory_space<semaphore_mem>> -> memref<!tpu.dma_semaphore, #tpu.memory_space<semaphore_mem>>
      tpu.enqueue_dma source(%449 : memref<1x768xf32, #tpu.memory_space<any>>) target(%451 : memref<1x768xf32, #tpu.memory_space<vmem>>) target_semaphore(%453 : memref<!tpu.dma_semaphore, #tpu.memory_space<semaphore_mem>>)
      %c13_i32_261 = arith.constant 13 : i32
      %454 = arith.addi %349, %c13_i32_261 : i32
      %455 = arith.index_cast %454 : i32 to index
      %456 = memref.load %arg2[%455] : memref<64xi32, #tpu.memory_space<smem>>
      %c0_i32_262 = arith.constant 0 : i32
      %457 = tpu.memref_slice %arg4[%456, %c0_i32_262] : memref<128x768xf32, #tpu.memory_space<any>> -> memref<1x768xf32, #tpu.memory_space<any>>
      %c13_i32_263 = arith.constant 13 : i32
      %c0_i32_264 = arith.constant 0 : i32
      %458 = tpu.memref_slice %arg6[%11, %c13_i32_263, %c0_i32_264] : memref<2x64x768xf32, #tpu.memory_space<vmem>> -> memref<1x1x768xf32, #tpu.memory_space<vmem>>
      %459 = tpu.memref_squeeze %458 : memref<1x1x768xf32, #tpu.memory_space<vmem>> -> memref<1x768xf32, #tpu.memory_space<vmem>>
      %460 = tpu.memref_slice %arg7[%11] : memref<2x!tpu.dma_semaphore, #tpu.memory_space<semaphore_mem>> -> memref<1x!tpu.dma_semaphore, #tpu.memory_space<semaphore_mem>>
      %461 = tpu.memref_squeeze %460 : memref<1x!tpu.dma_semaphore, #tpu.memory_space<semaphore_mem>> -> memref<!tpu.dma_semaphore, #tpu.memory_space<semaphore_mem>>
      tpu.enqueue_dma source(%457 : memref<1x768xf32, #tpu.memory_space<any>>) target(%459 : memref<1x768xf32, #tpu.memory_space<vmem>>) target_semaphore(%461 : memref<!tpu.dma_semaphore, #tpu.memory_space<semaphore_mem>>)
      %c14_i32_265 = arith.constant 14 : i32
      %462 = arith.addi %349, %c14_i32_265 : i32
      %463 = arith.index_cast %462 : i32 to index
      %464 = memref.load %arg2[%463] : memref<64xi32, #tpu.memory_space<smem>>
      %c0_i32_266 = arith.constant 0 : i32
      %465 = tpu.memref_slice %arg4[%464, %c0_i32_266] : memref<128x768xf32, #tpu.memory_space<any>> -> memref<1x768xf32, #tpu.memory_space<any>>
      %c14_i32_267 = arith.constant 14 : i32
      %c0_i32_268 = arith.constant 0 : i32
      %466 = tpu.memref_slice %arg6[%11, %c14_i32_267, %c0_i32_268] : memref<2x64x768xf32, #tpu.memory_space<vmem>> -> memref<1x1x768xf32, #tpu.memory_space<vmem>>
      %467 = tpu.memref_squeeze %466 : memref<1x1x768xf32, #tpu.memory_space<vmem>> -> memref<1x768xf32, #tpu.memory_space<vmem>>
      %468 = tpu.memref_slice %arg7[%11] : memref<2x!tpu.dma_semaphore, #tpu.memory_space<semaphore_mem>> -> memref<1x!tpu.dma_semaphore, #tpu.memory_space<semaphore_mem>>
      %469 = tpu.memref_squeeze %468 : memref<1x!tpu.dma_semaphore, #tpu.memory_space<semaphore_mem>> -> memref<!tpu.dma_semaphore, #tpu.memory_space<semaphore_mem>>
      tpu.enqueue_dma source(%465 : memref<1x768xf32, #tpu.memory_space<any>>) target(%467 : memref<1x768xf32, #tpu.memory_space<vmem>>) target_semaphore(%469 : memref<!tpu.dma_semaphore, #tpu.memory_space<semaphore_mem>>)
      %c15_i32_269 = arith.constant 15 : i32
      %470 = arith.addi %349, %c15_i32_269 : i32
      %471 = arith.index_cast %470 : i32 to index
      %472 = memref.load %arg2[%471] : memref<64xi32, #tpu.memory_space<smem>>
      %c0_i32_270 = arith.constant 0 : i32
      %473 = tpu.memref_slice %arg4[%472, %c0_i32_270] : memref<128x768xf32, #tpu.memory_space<any>> -> memref<1x768xf32, #tpu.memory_space<any>>
      %c15_i32_271 = arith.constant 15 : i32
      %c0_i32_272 = arith.constant 0 : i32
      %474 = tpu.memref_slice %arg6[%11, %c15_i32_271, %c0_i32_272] : memref<2x64x768xf32, #tpu.memory_space<vmem>> -> memref<1x1x768xf32, #tpu.memory_space<vmem>>
      %475 = tpu.memref_squeeze %474 : memref<1x1x768xf32, #tpu.memory_space<vmem>> -> memref<1x768xf32, #tpu.memory_space<vmem>>
      %476 = tpu.memref_slice %arg7[%11] : memref<2x!tpu.dma_semaphore, #tpu.memory_space<semaphore_mem>> -> memref<1x!tpu.dma_semaphore, #tpu.memory_space<semaphore_mem>>
      %477 = tpu.memref_squeeze %476 : memref<1x!tpu.dma_semaphore, #tpu.memory_space<semaphore_mem>> -> memref<!tpu.dma_semaphore, #tpu.memory_space<semaphore_mem>>
      tpu.enqueue_dma source(%473 : memref<1x768xf32, #tpu.memory_space<any>>) target(%475 : memref<1x768xf32, #tpu.memory_space<vmem>>) target_semaphore(%477 : memref<!tpu.dma_semaphore, #tpu.memory_space<semaphore_mem>>)
      %c16_i32_273 = arith.constant 16 : i32
      %478 = arith.addi %349, %c16_i32_273 : i32
      %479 = arith.index_cast %478 : i32 to index
      %480 = memref.load %arg2[%479] : memref<64xi32, #tpu.memory_space<smem>>
      %c0_i32_274 = arith.constant 0 : i32
      %481 = tpu.memref_slice %arg4[%480, %c0_i32_274] : memref<128x768xf32, #tpu.memory_space<any>> -> memref<1x768xf32, #tpu.memory_space<any>>
      %c16_i32_275 = arith.constant 16 : i32
      %c0_i32_276 = arith.constant 0 : i32
      %482 = tpu.memref_slice %arg6[%11, %c16_i32_275, %c0_i32_276] : memref<2x64x768xf32, #tpu.memory_space<vmem>> -> memref<1x1x768xf32, #tpu.memory_space<vmem>>
      %483 = tpu.memref_squeeze %482 : memref<1x1x768xf32, #tpu.memory_space<vmem>> -> memref<1x768xf32, #tpu.memory_space<vmem>>
      %484 = tpu.memref_slice %arg7[%11] : memref<2x!tpu.dma_semaphore, #tpu.memory_space<semaphore_mem>> -> memref<1x!tpu.dma_semaphore, #tpu.memory_space<semaphore_mem>>
      %485 = tpu.memref_squeeze %484 : memref<1x!tpu.dma_semaphore, #tpu.memory_space<semaphore_mem>> -> memref<!tpu.dma_semaphore, #tpu.memory_space<semaphore_mem>>
      tpu.enqueue_dma source(%481 : memref<1x768xf32, #tpu.memory_space<any>>) target(%483 : memref<1x768xf32, #tpu.memory_space<vmem>>) target_semaphore(%485 : memref<!tpu.dma_semaphore, #tpu.memory_space<semaphore_mem>>)
      %c17_i32_277 = arith.constant 17 : i32
      %486 = arith.addi %349, %c17_i32_277 : i32
      %487 = arith.index_cast %486 : i32 to index
      %488 = memref.load %arg2[%487] : memref<64xi32, #tpu.memory_space<smem>>
      %c0_i32_278 = arith.constant 0 : i32
      %489 = tpu.memref_slice %arg4[%488, %c0_i32_278] : memref<128x768xf32, #tpu.memory_space<any>> -> memref<1x768xf32, #tpu.memory_space<any>>
      %c17_i32_279 = arith.constant 17 : i32
      %c0_i32_280 = arith.constant 0 : i32
      %490 = tpu.memref_slice %arg6[%11, %c17_i32_279, %c0_i32_280] : memref<2x64x768xf32, #tpu.memory_space<vmem>> -> memref<1x1x768xf32, #tpu.memory_space<vmem>>
      %491 = tpu.memref_squeeze %490 : memref<1x1x768xf32, #tpu.memory_space<vmem>> -> memref<1x768xf32, #tpu.memory_space<vmem>>
      %492 = tpu.memref_slice %arg7[%11] : memref<2x!tpu.dma_semaphore, #tpu.memory_space<semaphore_mem>> -> memref<1x!tpu.dma_semaphore, #tpu.memory_space<semaphore_mem>>
      %493 = tpu.memref_squeeze %492 : memref<1x!tpu.dma_semaphore, #tpu.memory_space<semaphore_mem>> -> memref<!tpu.dma_semaphore, #tpu.memory_space<semaphore_mem>>
      tpu.enqueue_dma source(%489 : memref<1x768xf32, #tpu.memory_space<any>>) target(%491 : memref<1x768xf32, #tpu.memory_space<vmem>>) target_semaphore(%493 : memref<!tpu.dma_semaphore, #tpu.memory_space<semaphore_mem>>)
      %c18_i32_281 = arith.constant 18 : i32
      %494 = arith.addi %349, %c18_i32_281 : i32
      %495 = arith.index_cast %494 : i32 to index
      %496 = memref.load %arg2[%495] : memref<64xi32, #tpu.memory_space<smem>>
      %c0_i32_282 = arith.constant 0 : i32
      %497 = tpu.memref_slice %arg4[%496, %c0_i32_282] : memref<128x768xf32, #tpu.memory_space<any>> -> memref<1x768xf32, #tpu.memory_space<any>>
      %c18_i32_283 = arith.constant 18 : i32
      %c0_i32_284 = arith.constant 0 : i32
      %498 = tpu.memref_slice %arg6[%11, %c18_i32_283, %c0_i32_284] : memref<2x64x768xf32, #tpu.memory_space<vmem>> -> memref<1x1x768xf32, #tpu.memory_space<vmem>>
      %499 = tpu.memref_squeeze %498 : memref<1x1x768xf32, #tpu.memory_space<vmem>> -> memref<1x768xf32, #tpu.memory_space<vmem>>
      %500 = tpu.memref_slice %arg7[%11] : memref<2x!tpu.dma_semaphore, #tpu.memory_space<semaphore_mem>> -> memref<1x!tpu.dma_semaphore, #tpu.memory_space<semaphore_mem>>
      %501 = tpu.memref_squeeze %500 : memref<1x!tpu.dma_semaphore, #tpu.memory_space<semaphore_mem>> -> memref<!tpu.dma_semaphore, #tpu.memory_space<semaphore_mem>>
      tpu.enqueue_dma source(%497 : memref<1x768xf32, #tpu.memory_space<any>>) target(%499 : memref<1x768xf32, #tpu.memory_space<vmem>>) target_semaphore(%501 : memref<!tpu.dma_semaphore, #tpu.memory_space<semaphore_mem>>)
      %c19_i32_285 = arith.constant 19 : i32
      %502 = arith.addi %349, %c19_i32_285 : i32
      %503 = arith.index_cast %502 : i32 to index
      %504 = memref.load %arg2[%503] : memref<64xi32, #tpu.memory_space<smem>>
      %c0_i32_286 = arith.constant 0 : i32
      %505 = tpu.memref_slice %arg4[%504, %c0_i32_286] : memref<128x768xf32, #tpu.memory_space<any>> -> memref<1x768xf32, #tpu.memory_space<any>>
      %c19_i32_287 = arith.constant 19 : i32
      %c0_i32_288 = arith.constant 0 : i32
      %506 = tpu.memref_slice %arg6[%11, %c19_i32_287, %c0_i32_288] : memref<2x64x768xf32, #tpu.memory_space<vmem>> -> memref<1x1x768xf32, #tpu.memory_space<vmem>>
      %507 = tpu.memref_squeeze %506 : memref<1x1x768xf32, #tpu.memory_space<vmem>> -> memref<1x768xf32, #tpu.memory_space<vmem>>
      %508 = tpu.memref_slice %arg7[%11] : memref<2x!tpu.dma_semaphore, #tpu.memory_space<semaphore_mem>> -> memref<1x!tpu.dma_semaphore, #tpu.memory_space<semaphore_mem>>
      %509 = tpu.memref_squeeze %508 : memref<1x!tpu.dma_semaphore, #tpu.memory_space<semaphore_mem>> -> memref<!tpu.dma_semaphore, #tpu.memory_space<semaphore_mem>>
      tpu.enqueue_dma source(%505 : memref<1x768xf32, #tpu.memory_space<any>>) target(%507 : memref<1x768xf32, #tpu.memory_space<vmem>>) target_semaphore(%509 : memref<!tpu.dma_semaphore, #tpu.memory_space<semaphore_mem>>)
      %c20_i32_289 = arith.constant 20 : i32
      %510 = arith.addi %349, %c20_i32_289 : i32
      %511 = arith.index_cast %510 : i32 to index
      %512 = memref.load %arg2[%511] : memref<64xi32, #tpu.memory_space<smem>>
      %c0_i32_290 = arith.constant 0 : i32
      %513 = tpu.memref_slice %arg4[%512, %c0_i32_290] : memref<128x768xf32, #tpu.memory_space<any>> -> memref<1x768xf32, #tpu.memory_space<any>>
      %c20_i32_291 = arith.constant 20 : i32
      %c0_i32_292 = arith.constant 0 : i32
      %514 = tpu.memref_slice %arg6[%11, %c20_i32_291, %c0_i32_292] : memref<2x64x768xf32, #tpu.memory_space<vmem>> -> memref<1x1x768xf32, #tpu.memory_space<vmem>>
      %515 = tpu.memref_squeeze %514 : memref<1x1x768xf32, #tpu.memory_space<vmem>> -> memref<1x768xf32, #tpu.memory_space<vmem>>
      %516 = tpu.memref_slice %arg7[%11] : memref<2x!tpu.dma_semaphore, #tpu.memory_space<semaphore_mem>> -> memref<1x!tpu.dma_semaphore, #tpu.memory_space<semaphore_mem>>
      %517 = tpu.memref_squeeze %516 : memref<1x!tpu.dma_semaphore, #tpu.memory_space<semaphore_mem>> -> memref<!tpu.dma_semaphore, #tpu.memory_space<semaphore_mem>>
      tpu.enqueue_dma source(%513 : memref<1x768xf32, #tpu.memory_space<any>>) target(%515 : memref<1x768xf32, #tpu.memory_space<vmem>>) target_semaphore(%517 : memref<!tpu.dma_semaphore, #tpu.memory_space<semaphore_mem>>)
      %c21_i32_293 = arith.constant 21 : i32
      %518 = arith.addi %349, %c21_i32_293 : i32
      %519 = arith.index_cast %518 : i32 to index
      %520 = memref.load %arg2[%519] : memref<64xi32, #tpu.memory_space<smem>>
      %c0_i32_294 = arith.constant 0 : i32
      %521 = tpu.memref_slice %arg4[%520, %c0_i32_294] : memref<128x768xf32, #tpu.memory_space<any>> -> memref<1x768xf32, #tpu.memory_space<any>>
      %c21_i32_295 = arith.constant 21 : i32
      %c0_i32_296 = arith.constant 0 : i32
      %522 = tpu.memref_slice %arg6[%11, %c21_i32_295, %c0_i32_296] : memref<2x64x768xf32, #tpu.memory_space<vmem>> -> memref<1x1x768xf32, #tpu.memory_space<vmem>>
      %523 = tpu.memref_squeeze %522 : memref<1x1x768xf32, #tpu.memory_space<vmem>> -> memref<1x768xf32, #tpu.memory_space<vmem>>
      %524 = tpu.memref_slice %arg7[%11] : memref<2x!tpu.dma_semaphore, #tpu.memory_space<semaphore_mem>> -> memref<1x!tpu.dma_semaphore, #tpu.memory_space<semaphore_mem>>
      %525 = tpu.memref_squeeze %524 : memref<1x!tpu.dma_semaphore, #tpu.memory_space<semaphore_mem>> -> memref<!tpu.dma_semaphore, #tpu.memory_space<semaphore_mem>>
      tpu.enqueue_dma source(%521 : memref<1x768xf32, #tpu.memory_space<any>>) target(%523 : memref<1x768xf32, #tpu.memory_space<vmem>>) target_semaphore(%525 : memref<!tpu.dma_semaphore, #tpu.memory_space<semaphore_mem>>)
      %c22_i32_297 = arith.constant 22 : i32
      %526 = arith.addi %349, %c22_i32_297 : i32
      %527 = arith.index_cast %526 : i32 to index
      %528 = memref.load %arg2[%527] : memref<64xi32, #tpu.memory_space<smem>>
      %c0_i32_298 = arith.constant 0 : i32
      %529 = tpu.memref_slice %arg4[%528, %c0_i32_298] : memref<128x768xf32, #tpu.memory_space<any>> -> memref<1x768xf32, #tpu.memory_space<any>>
      %c22_i32_299 = arith.constant 22 : i32
      %c0_i32_300 = arith.constant 0 : i32
      %530 = tpu.memref_slice %arg6[%11, %c22_i32_299, %c0_i32_300] : memref<2x64x768xf32, #tpu.memory_space<vmem>> -> memref<1x1x768xf32, #tpu.memory_space<vmem>>
      %531 = tpu.memref_squeeze %530 : memref<1x1x768xf32, #tpu.memory_space<vmem>> -> memref<1x768xf32, #tpu.memory_space<vmem>>
      %532 = tpu.memref_slice %arg7[%11] : memref<2x!tpu.dma_semaphore, #tpu.memory_space<semaphore_mem>> -> memref<1x!tpu.dma_semaphore, #tpu.memory_space<semaphore_mem>>
      %533 = tpu.memref_squeeze %532 : memref<1x!tpu.dma_semaphore, #tpu.memory_space<semaphore_mem>> -> memref<!tpu.dma_semaphore, #tpu.memory_space<semaphore_mem>>
      tpu.enqueue_dma source(%529 : memref<1x768xf32, #tpu.memory_space<any>>) target(%531 : memref<1x768xf32, #tpu.memory_space<vmem>>) target_semaphore(%533 : memref<!tpu.dma_semaphore, #tpu.memory_space<semaphore_mem>>)
      %c23_i32_301 = arith.constant 23 : i32
      %534 = arith.addi %349, %c23_i32_301 : i32
      %535 = arith.index_cast %534 : i32 to index
      %536 = memref.load %arg2[%535] : memref<64xi32, #tpu.memory_space<smem>>
      %c0_i32_302 = arith.constant 0 : i32
      %537 = tpu.memref_slice %arg4[%536, %c0_i32_302] : memref<128x768xf32, #tpu.memory_space<any>> -> memref<1x768xf32, #tpu.memory_space<any>>
      %c23_i32_303 = arith.constant 23 : i32
      %c0_i32_304 = arith.constant 0 : i32
      %538 = tpu.memref_slice %arg6[%11, %c23_i32_303, %c0_i32_304] : memref<2x64x768xf32, #tpu.memory_space<vmem>> -> memref<1x1x768xf32, #tpu.memory_space<vmem>>
      %539 = tpu.memref_squeeze %538 : memref<1x1x768xf32, #tpu.memory_space<vmem>> -> memref<1x768xf32, #tpu.memory_space<vmem>>
      %540 = tpu.memref_slice %arg7[%11] : memref<2x!tpu.dma_semaphore, #tpu.memory_space<semaphore_mem>> -> memref<1x!tpu.dma_semaphore, #tpu.memory_space<semaphore_mem>>
      %541 = tpu.memref_squeeze %540 : memref<1x!tpu.dma_semaphore, #tpu.memory_space<semaphore_mem>> -> memref<!tpu.dma_semaphore, #tpu.memory_space<semaphore_mem>>
      tpu.enqueue_dma source(%537 : memref<1x768xf32, #tpu.memory_space<any>>) target(%539 : memref<1x768xf32, #tpu.memory_space<vmem>>) target_semaphore(%541 : memref<!tpu.dma_semaphore, #tpu.memory_space<semaphore_mem>>)
      %c24_i32_305 = arith.constant 24 : i32
      %542 = arith.addi %349, %c24_i32_305 : i32
      %543 = arith.index_cast %542 : i32 to index
      %544 = memref.load %arg2[%543] : memref<64xi32, #tpu.memory_space<smem>>
      %c0_i32_306 = arith.constant 0 : i32
      %545 = tpu.memref_slice %arg4[%544, %c0_i32_306] : memref<128x768xf32, #tpu.memory_space<any>> -> memref<1x768xf32, #tpu.memory_space<any>>
      %c24_i32_307 = arith.constant 24 : i32
      %c0_i32_308 = arith.constant 0 : i32
      %546 = tpu.memref_slice %arg6[%11, %c24_i32_307, %c0_i32_308] : memref<2x64x768xf32, #tpu.memory_space<vmem>> -> memref<1x1x768xf32, #tpu.memory_space<vmem>>
      %547 = tpu.memref_squeeze %546 : memref<1x1x768xf32, #tpu.memory_space<vmem>> -> memref<1x768xf32, #tpu.memory_space<vmem>>
      %548 = tpu.memref_slice %arg7[%11] : memref<2x!tpu.dma_semaphore, #tpu.memory_space<semaphore_mem>> -> memref<1x!tpu.dma_semaphore, #tpu.memory_space<semaphore_mem>>
      %549 = tpu.memref_squeeze %548 : memref<1x!tpu.dma_semaphore, #tpu.memory_space<semaphore_mem>> -> memref<!tpu.dma_semaphore, #tpu.memory_space<semaphore_mem>>
      tpu.enqueue_dma source(%545 : memref<1x768xf32, #tpu.memory_space<any>>) target(%547 : memref<1x768xf32, #tpu.memory_space<vmem>>) target_semaphore(%549 : memref<!tpu.dma_semaphore, #tpu.memory_space<semaphore_mem>>)
      %c25_i32_309 = arith.constant 25 : i32
      %550 = arith.addi %349, %c25_i32_309 : i32
      %551 = arith.index_cast %550 : i32 to index
      %552 = memref.load %arg2[%551] : memref<64xi32, #tpu.memory_space<smem>>
      %c0_i32_310 = arith.constant 0 : i32
      %553 = tpu.memref_slice %arg4[%552, %c0_i32_310] : memref<128x768xf32, #tpu.memory_space<any>> -> memref<1x768xf32, #tpu.memory_space<any>>
      %c25_i32_311 = arith.constant 25 : i32
      %c0_i32_312 = arith.constant 0 : i32
      %554 = tpu.memref_slice %arg6[%11, %c25_i32_311, %c0_i32_312] : memref<2x64x768xf32, #tpu.memory_space<vmem>> -> memref<1x1x768xf32, #tpu.memory_space<vmem>>
      %555 = tpu.memref_squeeze %554 : memref<1x1x768xf32, #tpu.memory_space<vmem>> -> memref<1x768xf32, #tpu.memory_space<vmem>>
      %556 = tpu.memref_slice %arg7[%11] : memref<2x!tpu.dma_semaphore, #tpu.memory_space<semaphore_mem>> -> memref<1x!tpu.dma_semaphore, #tpu.memory_space<semaphore_mem>>
      %557 = tpu.memref_squeeze %556 : memref<1x!tpu.dma_semaphore, #tpu.memory_space<semaphore_mem>> -> memref<!tpu.dma_semaphore, #tpu.memory_space<semaphore_mem>>
      tpu.enqueue_dma source(%553 : memref<1x768xf32, #tpu.memory_space<any>>) target(%555 : memref<1x768xf32, #tpu.memory_space<vmem>>) target_semaphore(%557 : memref<!tpu.dma_semaphore, #tpu.memory_space<semaphore_mem>>)
      %c26_i32_313 = arith.constant 26 : i32
      %558 = arith.addi %349, %c26_i32_313 : i32
      %559 = arith.index_cast %558 : i32 to index
      %560 = memref.load %arg2[%559] : memref<64xi32, #tpu.memory_space<smem>>
      %c0_i32_314 = arith.constant 0 : i32
      %561 = tpu.memref_slice %arg4[%560, %c0_i32_314] : memref<128x768xf32, #tpu.memory_space<any>> -> memref<1x768xf32, #tpu.memory_space<any>>
      %c26_i32_315 = arith.constant 26 : i32
      %c0_i32_316 = arith.constant 0 : i32
      %562 = tpu.memref_slice %arg6[%11, %c26_i32_315, %c0_i32_316] : memref<2x64x768xf32, #tpu.memory_space<vmem>> -> memref<1x1x768xf32, #tpu.memory_space<vmem>>
      %563 = tpu.memref_squeeze %562 : memref<1x1x768xf32, #tpu.memory_space<vmem>> -> memref<1x768xf32, #tpu.memory_space<vmem>>
      %564 = tpu.memref_slice %arg7[%11] : memref<2x!tpu.dma_semaphore, #tpu.memory_space<semaphore_mem>> -> memref<1x!tpu.dma_semaphore, #tpu.memory_space<semaphore_mem>>
      %565 = tpu.memref_squeeze %564 : memref<1x!tpu.dma_semaphore, #tpu.memory_space<semaphore_mem>> -> memref<!tpu.dma_semaphore, #tpu.memory_space<semaphore_mem>>
      tpu.enqueue_dma source(%561 : memref<1x768xf32, #tpu.memory_space<any>>) target(%563 : memref<1x768xf32, #tpu.memory_space<vmem>>) target_semaphore(%565 : memref<!tpu.dma_semaphore, #tpu.memory_space<semaphore_mem>>)
      %c27_i32_317 = arith.constant 27 : i32
      %566 = arith.addi %349, %c27_i32_317 : i32
      %567 = arith.index_cast %566 : i32 to index
      %568 = memref.load %arg2[%567] : memref<64xi32, #tpu.memory_space<smem>>
      %c0_i32_318 = arith.constant 0 : i32
      %569 = tpu.memref_slice %arg4[%568, %c0_i32_318] : memref<128x768xf32, #tpu.memory_space<any>> -> memref<1x768xf32, #tpu.memory_space<any>>
      %c27_i32_319 = arith.constant 27 : i32
      %c0_i32_320 = arith.constant 0 : i32
      %570 = tpu.memref_slice %arg6[%11, %c27_i32_319, %c0_i32_320] : memref<2x64x768xf32, #tpu.memory_space<vmem>> -> memref<1x1x768xf32, #tpu.memory_space<vmem>>
      %571 = tpu.memref_squeeze %570 : memref<1x1x768xf32, #tpu.memory_space<vmem>> -> memref<1x768xf32, #tpu.memory_space<vmem>>
      %572 = tpu.memref_slice %arg7[%11] : memref<2x!tpu.dma_semaphore, #tpu.memory_space<semaphore_mem>> -> memref<1x!tpu.dma_semaphore, #tpu.memory_space<semaphore_mem>>
      %573 = tpu.memref_squeeze %572 : memref<1x!tpu.dma_semaphore, #tpu.memory_space<semaphore_mem>> -> memref<!tpu.dma_semaphore, #tpu.memory_space<semaphore_mem>>
      tpu.enqueue_dma source(%569 : memref<1x768xf32, #tpu.memory_space<any>>) target(%571 : memref<1x768xf32, #tpu.memory_space<vmem>>) target_semaphore(%573 : memref<!tpu.dma_semaphore, #tpu.memory_space<semaphore_mem>>)
      %c28_i32_321 = arith.constant 28 : i32
      %574 = arith.addi %349, %c28_i32_321 : i32
      %575 = arith.index_cast %574 : i32 to index
      %576 = memref.load %arg2[%575] : memref<64xi32, #tpu.memory_space<smem>>
      %c0_i32_322 = arith.constant 0 : i32
      %577 = tpu.memref_slice %arg4[%576, %c0_i32_322] : memref<128x768xf32, #tpu.memory_space<any>> -> memref<1x768xf32, #tpu.memory_space<any>>
      %c28_i32_323 = arith.constant 28 : i32
      %c0_i32_324 = arith.constant 0 : i32
      %578 = tpu.memref_slice %arg6[%11, %c28_i32_323, %c0_i32_324] : memref<2x64x768xf32, #tpu.memory_space<vmem>> -> memref<1x1x768xf32, #tpu.memory_space<vmem>>
      %579 = tpu.memref_squeeze %578 : memref<1x1x768xf32, #tpu.memory_space<vmem>> -> memref<1x768xf32, #tpu.memory_space<vmem>>
      %580 = tpu.memref_slice %arg7[%11] : memref<2x!tpu.dma_semaphore, #tpu.memory_space<semaphore_mem>> -> memref<1x!tpu.dma_semaphore, #tpu.memory_space<semaphore_mem>>
      %581 = tpu.memref_squeeze %580 : memref<1x!tpu.dma_semaphore, #tpu.memory_space<semaphore_mem>> -> memref<!tpu.dma_semaphore, #tpu.memory_space<semaphore_mem>>
      tpu.enqueue_dma source(%577 : memref<1x768xf32, #tpu.memory_space<any>>) target(%579 : memref<1x768xf32, #tpu.memory_space<vmem>>) target_semaphore(%581 : memref<!tpu.dma_semaphore, #tpu.memory_space<semaphore_mem>>)
      %c29_i32_325 = arith.constant 29 : i32
      %582 = arith.addi %349, %c29_i32_325 : i32
      %583 = arith.index_cast %582 : i32 to index
      %584 = memref.load %arg2[%583] : memref<64xi32, #tpu.memory_space<smem>>
      %c0_i32_326 = arith.constant 0 : i32
      %585 = tpu.memref_slice %arg4[%584, %c0_i32_326] : memref<128x768xf32, #tpu.memory_space<any>> -> memref<1x768xf32, #tpu.memory_space<any>>
      %c29_i32_327 = arith.constant 29 : i32
      %c0_i32_328 = arith.constant 0 : i32
      %586 = tpu.memref_slice %arg6[%11, %c29_i32_327, %c0_i32_328] : memref<2x64x768xf32, #tpu.memory_space<vmem>> -> memref<1x1x768xf32, #tpu.memory_space<vmem>>
      %587 = tpu.memref_squeeze %586 : memref<1x1x768xf32, #tpu.memory_space<vmem>> -> memref<1x768xf32, #tpu.memory_space<vmem>>
      %588 = tpu.memref_slice %arg7[%11] : memref<2x!tpu.dma_semaphore, #tpu.memory_space<semaphore_mem>> -> memref<1x!tpu.dma_semaphore, #tpu.memory_space<semaphore_mem>>
      %589 = tpu.memref_squeeze %588 : memref<1x!tpu.dma_semaphore, #tpu.memory_space<semaphore_mem>> -> memref<!tpu.dma_semaphore, #tpu.memory_space<semaphore_mem>>
      tpu.enqueue_dma source(%585 : memref<1x768xf32, #tpu.memory_space<any>>) target(%587 : memref<1x768xf32, #tpu.memory_space<vmem>>) target_semaphore(%589 : memref<!tpu.dma_semaphore, #tpu.memory_space<semaphore_mem>>)
      %c30_i32_329 = arith.constant 30 : i32
      %590 = arith.addi %349, %c30_i32_329 : i32
      %591 = arith.index_cast %590 : i32 to index
      %592 = memref.load %arg2[%591] : memref<64xi32, #tpu.memory_space<smem>>
      %c0_i32_330 = arith.constant 0 : i32
      %593 = tpu.memref_slice %arg4[%592, %c0_i32_330] : memref<128x768xf32, #tpu.memory_space<any>> -> memref<1x768xf32, #tpu.memory_space<any>>
      %c30_i32_331 = arith.constant 30 : i32
      %c0_i32_332 = arith.constant 0 : i32
      %594 = tpu.memref_slice %arg6[%11, %c30_i32_331, %c0_i32_332] : memref<2x64x768xf32, #tpu.memory_space<vmem>> -> memref<1x1x768xf32, #tpu.memory_space<vmem>>
      %595 = tpu.memref_squeeze %594 : memref<1x1x768xf32, #tpu.memory_space<vmem>> -> memref<1x768xf32, #tpu.memory_space<vmem>>
      %596 = tpu.memref_slice %arg7[%11] : memref<2x!tpu.dma_semaphore, #tpu.memory_space<semaphore_mem>> -> memref<1x!tpu.dma_semaphore, #tpu.memory_space<semaphore_mem>>
      %597 = tpu.memref_squeeze %596 : memref<1x!tpu.dma_semaphore, #tpu.memory_space<semaphore_mem>> -> memref<!tpu.dma_semaphore, #tpu.memory_space<semaphore_mem>>
      tpu.enqueue_dma source(%593 : memref<1x768xf32, #tpu.memory_space<any>>) target(%595 : memref<1x768xf32, #tpu.memory_space<vmem>>) target_semaphore(%597 : memref<!tpu.dma_semaphore, #tpu.memory_space<semaphore_mem>>)
      %c31_i32_333 = arith.constant 31 : i32
      %598 = arith.addi %349, %c31_i32_333 : i32
      %599 = arith.index_cast %598 : i32 to index
      %600 = memref.load %arg2[%599] : memref<64xi32, #tpu.memory_space<smem>>
      %c0_i32_334 = arith.constant 0 : i32
      %601 = tpu.memref_slice %arg4[%600, %c0_i32_334] : memref<128x768xf32, #tpu.memory_space<any>> -> memref<1x768xf32, #tpu.memory_space<any>>
      %c31_i32_335 = arith.constant 31 : i32
      %c0_i32_336 = arith.constant 0 : i32
      %602 = tpu.memref_slice %arg6[%11, %c31_i32_335, %c0_i32_336] : memref<2x64x768xf32, #tpu.memory_space<vmem>> -> memref<1x1x768xf32, #tpu.memory_space<vmem>>
      %603 = tpu.memref_squeeze %602 : memref<1x1x768xf32, #tpu.memory_space<vmem>> -> memref<1x768xf32, #tpu.memory_space<vmem>>
      %604 = tpu.memref_slice %arg7[%11] : memref<2x!tpu.dma_semaphore, #tpu.memory_space<semaphore_mem>> -> memref<1x!tpu.dma_semaphore, #tpu.memory_space<semaphore_mem>>
      %605 = tpu.memref_squeeze %604 : memref<1x!tpu.dma_semaphore, #tpu.memory_space<semaphore_mem>> -> memref<!tpu.dma_semaphore, #tpu.memory_space<semaphore_mem>>
      tpu.enqueue_dma source(%601 : memref<1x768xf32, #tpu.memory_space<any>>) target(%603 : memref<1x768xf32, #tpu.memory_space<vmem>>) target_semaphore(%605 : memref<!tpu.dma_semaphore, #tpu.memory_space<semaphore_mem>>)
      %c32_i32_337 = arith.constant 32 : i32
      %606 = arith.addi %349, %c32_i32_337 : i32
      %607 = arith.index_cast %606 : i32 to index
      %608 = memref.load %arg2[%607] : memref<64xi32, #tpu.memory_space<smem>>
      %c0_i32_338 = arith.constant 0 : i32
      %609 = tpu.memref_slice %arg4[%608, %c0_i32_338] : memref<128x768xf32, #tpu.memory_space<any>> -> memref<1x768xf32, #tpu.memory_space<any>>
      %c32_i32_339 = arith.constant 32 : i32
      %c0_i32_340 = arith.constant 0 : i32
      %610 = tpu.memref_slice %arg6[%11, %c32_i32_339, %c0_i32_340] : memref<2x64x768xf32, #tpu.memory_space<vmem>> -> memref<1x1x768xf32, #tpu.memory_space<vmem>>
      %611 = tpu.memref_squeeze %610 : memref<1x1x768xf32, #tpu.memory_space<vmem>> -> memref<1x768xf32, #tpu.memory_space<vmem>>
      %612 = tpu.memref_slice %arg7[%11] : memref<2x!tpu.dma_semaphore, #tpu.memory_space<semaphore_mem>> -> memref<1x!tpu.dma_semaphore, #tpu.memory_space<semaphore_mem>>
      %613 = tpu.memref_squeeze %612 : memref<1x!tpu.dma_semaphore, #tpu.memory_space<semaphore_mem>> -> memref<!tpu.dma_semaphore, #tpu.memory_space<semaphore_mem>>
      tpu.enqueue_dma source(%609 : memref<1x768xf32, #tpu.memory_space<any>>) target(%611 : memref<1x768xf32, #tpu.memory_space<vmem>>) target_semaphore(%613 : memref<!tpu.dma_semaphore, #tpu.memory_space<semaphore_mem>>)
      %c33_i32_341 = arith.constant 33 : i32
      %614 = arith.addi %349, %c33_i32_341 : i32
      %615 = arith.index_cast %614 : i32 to index
      %616 = memref.load %arg2[%615] : memref<64xi32, #tpu.memory_space<smem>>
      %c0_i32_342 = arith.constant 0 : i32
      %617 = tpu.memref_slice %arg4[%616, %c0_i32_342] : memref<128x768xf32, #tpu.memory_space<any>> -> memref<1x768xf32, #tpu.memory_space<any>>
      %c33_i32_343 = arith.constant 33 : i32
      %c0_i32_344 = arith.constant 0 : i32
      %618 = tpu.memref_slice %arg6[%11, %c33_i32_343, %c0_i32_344] : memref<2x64x768xf32, #tpu.memory_space<vmem>> -> memref<1x1x768xf32, #tpu.memory_space<vmem>>
      %619 = tpu.memref_squeeze %618 : memref<1x1x768xf32, #tpu.memory_space<vmem>> -> memref<1x768xf32, #tpu.memory_space<vmem>>
      %620 = tpu.memref_slice %arg7[%11] : memref<2x!tpu.dma_semaphore, #tpu.memory_space<semaphore_mem>> -> memref<1x!tpu.dma_semaphore, #tpu.memory_space<semaphore_mem>>
      %621 = tpu.memref_squeeze %620 : memref<1x!tpu.dma_semaphore, #tpu.memory_space<semaphore_mem>> -> memref<!tpu.dma_semaphore, #tpu.memory_space<semaphore_mem>>
      tpu.enqueue_dma source(%617 : memref<1x768xf32, #tpu.memory_space<any>>) target(%619 : memref<1x768xf32, #tpu.memory_space<vmem>>) target_semaphore(%621 : memref<!tpu.dma_semaphore, #tpu.memory_space<semaphore_mem>>)
      %c34_i32_345 = arith.constant 34 : i32
      %622 = arith.addi %349, %c34_i32_345 : i32
      %623 = arith.index_cast %622 : i32 to index
      %624 = memref.load %arg2[%623] : memref<64xi32, #tpu.memory_space<smem>>
      %c0_i32_346 = arith.constant 0 : i32
      %625 = tpu.memref_slice %arg4[%624, %c0_i32_346] : memref<128x768xf32, #tpu.memory_space<any>> -> memref<1x768xf32, #tpu.memory_space<any>>
      %c34_i32_347 = arith.constant 34 : i32
      %c0_i32_348 = arith.constant 0 : i32
      %626 = tpu.memref_slice %arg6[%11, %c34_i32_347, %c0_i32_348] : memref<2x64x768xf32, #tpu.memory_space<vmem>> -> memref<1x1x768xf32, #tpu.memory_space<vmem>>
      %627 = tpu.memref_squeeze %626 : memref<1x1x768xf32, #tpu.memory_space<vmem>> -> memref<1x768xf32, #tpu.memory_space<vmem>>
      %628 = tpu.memref_slice %arg7[%11] : memref<2x!tpu.dma_semaphore, #tpu.memory_space<semaphore_mem>> -> memref<1x!tpu.dma_semaphore, #tpu.memory_space<semaphore_mem>>
      %629 = tpu.memref_squeeze %628 : memref<1x!tpu.dma_semaphore, #tpu.memory_space<semaphore_mem>> -> memref<!tpu.dma_semaphore, #tpu.memory_space<semaphore_mem>>
      tpu.enqueue_dma source(%625 : memref<1x768xf32, #tpu.memory_space<any>>) target(%627 : memref<1x768xf32, #tpu.memory_space<vmem>>) target_semaphore(%629 : memref<!tpu.dma_semaphore, #tpu.memory_space<semaphore_mem>>)
      %c35_i32_349 = arith.constant 35 : i32
      %630 = arith.addi %349, %c35_i32_349 : i32
      %631 = arith.index_cast %630 : i32 to index
      %632 = memref.load %arg2[%631] : memref<64xi32, #tpu.memory_space<smem>>
      %c0_i32_350 = arith.constant 0 : i32
      %633 = tpu.memref_slice %arg4[%632, %c0_i32_350] : memref<128x768xf32, #tpu.memory_space<any>> -> memref<1x768xf32, #tpu.memory_space<any>>
      %c35_i32_351 = arith.constant 35 : i32
      %c0_i32_352 = arith.constant 0 : i32
      %634 = tpu.memref_slice %arg6[%11, %c35_i32_351, %c0_i32_352] : memref<2x64x768xf32, #tpu.memory_space<vmem>> -> memref<1x1x768xf32, #tpu.memory_space<vmem>>
      %635 = tpu.memref_squeeze %634 : memref<1x1x768xf32, #tpu.memory_space<vmem>> -> memref<1x768xf32, #tpu.memory_space<vmem>>
      %636 = tpu.memref_slice %arg7[%11] : memref<2x!tpu.dma_semaphore, #tpu.memory_space<semaphore_mem>> -> memref<1x!tpu.dma_semaphore, #tpu.memory_space<semaphore_mem>>
      %637 = tpu.memref_squeeze %636 : memref<1x!tpu.dma_semaphore, #tpu.memory_space<semaphore_mem>> -> memref<!tpu.dma_semaphore, #tpu.memory_space<semaphore_mem>>
      tpu.enqueue_dma source(%633 : memref<1x768xf32, #tpu.memory_space<any>>) target(%635 : memref<1x768xf32, #tpu.memory_space<vmem>>) target_semaphore(%637 : memref<!tpu.dma_semaphore, #tpu.memory_space<semaphore_mem>>)
      %c36_i32_353 = arith.constant 36 : i32
      %638 = arith.addi %349, %c36_i32_353 : i32
      %639 = arith.index_cast %638 : i32 to index
      %640 = memref.load %arg2[%639] : memref<64xi32, #tpu.memory_space<smem>>
      %c0_i32_354 = arith.constant 0 : i32
      %641 = tpu.memref_slice %arg4[%640, %c0_i32_354] : memref<128x768xf32, #tpu.memory_space<any>> -> memref<1x768xf32, #tpu.memory_space<any>>
      %c36_i32_355 = arith.constant 36 : i32
      %c0_i32_356 = arith.constant 0 : i32
      %642 = tpu.memref_slice %arg6[%11, %c36_i32_355, %c0_i32_356] : memref<2x64x768xf32, #tpu.memory_space<vmem>> -> memref<1x1x768xf32, #tpu.memory_space<vmem>>
      %643 = tpu.memref_squeeze %642 : memref<1x1x768xf32, #tpu.memory_space<vmem>> -> memref<1x768xf32, #tpu.memory_space<vmem>>
      %644 = tpu.memref_slice %arg7[%11] : memref<2x!tpu.dma_semaphore, #tpu.memory_space<semaphore_mem>> -> memref<1x!tpu.dma_semaphore, #tpu.memory_space<semaphore_mem>>
      %645 = tpu.memref_squeeze %644 : memref<1x!tpu.dma_semaphore, #tpu.memory_space<semaphore_mem>> -> memref<!tpu.dma_semaphore, #tpu.memory_space<semaphore_mem>>
      tpu.enqueue_dma source(%641 : memref<1x768xf32, #tpu.memory_space<any>>) target(%643 : memref<1x768xf32, #tpu.memory_space<vmem>>) target_semaphore(%645 : memref<!tpu.dma_semaphore, #tpu.memory_space<semaphore_mem>>)
      %c37_i32_357 = arith.constant 37 : i32
      %646 = arith.addi %349, %c37_i32_357 : i32
      %647 = arith.index_cast %646 : i32 to index
      %648 = memref.load %arg2[%647] : memref<64xi32, #tpu.memory_space<smem>>
      %c0_i32_358 = arith.constant 0 : i32
      %649 = tpu.memref_slice %arg4[%648, %c0_i32_358] : memref<128x768xf32, #tpu.memory_space<any>> -> memref<1x768xf32, #tpu.memory_space<any>>
      %c37_i32_359 = arith.constant 37 : i32
      %c0_i32_360 = arith.constant 0 : i32
      %650 = tpu.memref_slice %arg6[%11, %c37_i32_359, %c0_i32_360] : memref<2x64x768xf32, #tpu.memory_space<vmem>> -> memref<1x1x768xf32, #tpu.memory_space<vmem>>
      %651 = tpu.memref_squeeze %650 : memref<1x1x768xf32, #tpu.memory_space<vmem>> -> memref<1x768xf32, #tpu.memory_space<vmem>>
      %652 = tpu.memref_slice %arg7[%11] : memref<2x!tpu.dma_semaphore, #tpu.memory_space<semaphore_mem>> -> memref<1x!tpu.dma_semaphore, #tpu.memory_space<semaphore_mem>>
      %653 = tpu.memref_squeeze %652 : memref<1x!tpu.dma_semaphore, #tpu.memory_space<semaphore_mem>> -> memref<!tpu.dma_semaphore, #tpu.memory_space<semaphore_mem>>
      tpu.enqueue_dma source(%649 : memref<1x768xf32, #tpu.memory_space<any>>) target(%651 : memref<1x768xf32, #tpu.memory_space<vmem>>) target_semaphore(%653 : memref<!tpu.dma_semaphore, #tpu.memory_space<semaphore_mem>>)
      %c38_i32_361 = arith.constant 38 : i32
      %654 = arith.addi %349, %c38_i32_361 : i32
      %655 = arith.index_cast %654 : i32 to index
      %656 = memref.load %arg2[%655] : memref<64xi32, #tpu.memory_space<smem>>
      %c0_i32_362 = arith.constant 0 : i32
      %657 = tpu.memref_slice %arg4[%656, %c0_i32_362] : memref<128x768xf32, #tpu.memory_space<any>> -> memref<1x768xf32, #tpu.memory_space<any>>
      %c38_i32_363 = arith.constant 38 : i32
      %c0_i32_364 = arith.constant 0 : i32
      %658 = tpu.memref_slice %arg6[%11, %c38_i32_363, %c0_i32_364] : memref<2x64x768xf32, #tpu.memory_space<vmem>> -> memref<1x1x768xf32, #tpu.memory_space<vmem>>
      %659 = tpu.memref_squeeze %658 : memref<1x1x768xf32, #tpu.memory_space<vmem>> -> memref<1x768xf32, #tpu.memory_space<vmem>>
      %660 = tpu.memref_slice %arg7[%11] : memref<2x!tpu.dma_semaphore, #tpu.memory_space<semaphore_mem>> -> memref<1x!tpu.dma_semaphore, #tpu.memory_space<semaphore_mem>>
      %661 = tpu.memref_squeeze %660 : memref<1x!tpu.dma_semaphore, #tpu.memory_space<semaphore_mem>> -> memref<!tpu.dma_semaphore, #tpu.memory_space<semaphore_mem>>
      tpu.enqueue_dma source(%657 : memref<1x768xf32, #tpu.memory_space<any>>) target(%659 : memref<1x768xf32, #tpu.memory_space<vmem>>) target_semaphore(%661 : memref<!tpu.dma_semaphore, #tpu.memory_space<semaphore_mem>>)
      %c39_i32_365 = arith.constant 39 : i32
      %662 = arith.addi %349, %c39_i32_365 : i32
      %663 = arith.index_cast %662 : i32 to index
      %664 = memref.load %arg2[%663] : memref<64xi32, #tpu.memory_space<smem>>
      %c0_i32_366 = arith.constant 0 : i32
      %665 = tpu.memref_slice %arg4[%664, %c0_i32_366] : memref<128x768xf32, #tpu.memory_space<any>> -> memref<1x768xf32, #tpu.memory_space<any>>
      %c39_i32_367 = arith.constant 39 : i32
      %c0_i32_368 = arith.constant 0 : i32
      %666 = tpu.memref_slice %arg6[%11, %c39_i32_367, %c0_i32_368] : memref<2x64x768xf32, #tpu.memory_space<vmem>> -> memref<1x1x768xf32, #tpu.memory_space<vmem>>
      %667 = tpu.memref_squeeze %666 : memref<1x1x768xf32, #tpu.memory_space<vmem>> -> memref<1x768xf32, #tpu.memory_space<vmem>>
      %668 = tpu.memref_slice %arg7[%11] : memref<2x!tpu.dma_semaphore, #tpu.memory_space<semaphore_mem>> -> memref<1x!tpu.dma_semaphore, #tpu.memory_space<semaphore_mem>>
      %669 = tpu.memref_squeeze %668 : memref<1x!tpu.dma_semaphore, #tpu.memory_space<semaphore_mem>> -> memref<!tpu.dma_semaphore, #tpu.memory_space<semaphore_mem>>
      tpu.enqueue_dma source(%665 : memref<1x768xf32, #tpu.memory_space<any>>) target(%667 : memref<1x768xf32, #tpu.memory_space<vmem>>) target_semaphore(%669 : memref<!tpu.dma_semaphore, #tpu.memory_space<semaphore_mem>>)
      %c40_i32_369 = arith.constant 40 : i32
      %670 = arith.addi %349, %c40_i32_369 : i32
      %671 = arith.index_cast %670 : i32 to index
      %672 = memref.load %arg2[%671] : memref<64xi32, #tpu.memory_space<smem>>
      %c0_i32_370 = arith.constant 0 : i32
      %673 = tpu.memref_slice %arg4[%672, %c0_i32_370] : memref<128x768xf32, #tpu.memory_space<any>> -> memref<1x768xf32, #tpu.memory_space<any>>
      %c40_i32_371 = arith.constant 40 : i32
      %c0_i32_372 = arith.constant 0 : i32
      %674 = tpu.memref_slice %arg6[%11, %c40_i32_371, %c0_i32_372] : memref<2x64x768xf32, #tpu.memory_space<vmem>> -> memref<1x1x768xf32, #tpu.memory_space<vmem>>
      %675 = tpu.memref_squeeze %674 : memref<1x1x768xf32, #tpu.memory_space<vmem>> -> memref<1x768xf32, #tpu.memory_space<vmem>>
      %676 = tpu.memref_slice %arg7[%11] : memref<2x!tpu.dma_semaphore, #tpu.memory_space<semaphore_mem>> -> memref<1x!tpu.dma_semaphore, #tpu.memory_space<semaphore_mem>>
      %677 = tpu.memref_squeeze %676 : memref<1x!tpu.dma_semaphore, #tpu.memory_space<semaphore_mem>> -> memref<!tpu.dma_semaphore, #tpu.memory_space<semaphore_mem>>
      tpu.enqueue_dma source(%673 : memref<1x768xf32, #tpu.memory_space<any>>) target(%675 : memref<1x768xf32, #tpu.memory_space<vmem>>) target_semaphore(%677 : memref<!tpu.dma_semaphore, #tpu.memory_space<semaphore_mem>>)
      %c41_i32_373 = arith.constant 41 : i32
      %678 = arith.addi %349, %c41_i32_373 : i32
      %679 = arith.index_cast %678 : i32 to index
      %680 = memref.load %arg2[%679] : memref<64xi32, #tpu.memory_space<smem>>
      %c0_i32_374 = arith.constant 0 : i32
      %681 = tpu.memref_slice %arg4[%680, %c0_i32_374] : memref<128x768xf32, #tpu.memory_space<any>> -> memref<1x768xf32, #tpu.memory_space<any>>
      %c41_i32_375 = arith.constant 41 : i32
      %c0_i32_376 = arith.constant 0 : i32
      %682 = tpu.memref_slice %arg6[%11, %c41_i32_375, %c0_i32_376] : memref<2x64x768xf32, #tpu.memory_space<vmem>> -> memref<1x1x768xf32, #tpu.memory_space<vmem>>
      %683 = tpu.memref_squeeze %682 : memref<1x1x768xf32, #tpu.memory_space<vmem>> -> memref<1x768xf32, #tpu.memory_space<vmem>>
      %684 = tpu.memref_slice %arg7[%11] : memref<2x!tpu.dma_semaphore, #tpu.memory_space<semaphore_mem>> -> memref<1x!tpu.dma_semaphore, #tpu.memory_space<semaphore_mem>>
      %685 = tpu.memref_squeeze %684 : memref<1x!tpu.dma_semaphore, #tpu.memory_space<semaphore_mem>> -> memref<!tpu.dma_semaphore, #tpu.memory_space<semaphore_mem>>
      tpu.enqueue_dma source(%681 : memref<1x768xf32, #tpu.memory_space<any>>) target(%683 : memref<1x768xf32, #tpu.memory_space<vmem>>) target_semaphore(%685 : memref<!tpu.dma_semaphore, #tpu.memory_space<semaphore_mem>>)
      %c42_i32_377 = arith.constant 42 : i32
      %686 = arith.addi %349, %c42_i32_377 : i32
      %687 = arith.index_cast %686 : i32 to index
      %688 = memref.load %arg2[%687] : memref<64xi32, #tpu.memory_space<smem>>
      %c0_i32_378 = arith.constant 0 : i32
      %689 = tpu.memref_slice %arg4[%688, %c0_i32_378] : memref<128x768xf32, #tpu.memory_space<any>> -> memref<1x768xf32, #tpu.memory_space<any>>
      %c42_i32_379 = arith.constant 42 : i32
      %c0_i32_380 = arith.constant 0 : i32
      %690 = tpu.memref_slice %arg6[%11, %c42_i32_379, %c0_i32_380] : memref<2x64x768xf32, #tpu.memory_space<vmem>> -> memref<1x1x768xf32, #tpu.memory_space<vmem>>
      %691 = tpu.memref_squeeze %690 : memref<1x1x768xf32, #tpu.memory_space<vmem>> -> memref<1x768xf32, #tpu.memory_space<vmem>>
      %692 = tpu.memref_slice %arg7[%11] : memref<2x!tpu.dma_semaphore, #tpu.memory_space<semaphore_mem>> -> memref<1x!tpu.dma_semaphore, #tpu.memory_space<semaphore_mem>>
      %693 = tpu.memref_squeeze %692 : memref<1x!tpu.dma_semaphore, #tpu.memory_space<semaphore_mem>> -> memref<!tpu.dma_semaphore, #tpu.memory_space<semaphore_mem>>
      tpu.enqueue_dma source(%689 : memref<1x768xf32, #tpu.memory_space<any>>) target(%691 : memref<1x768xf32, #tpu.memory_space<vmem>>) target_semaphore(%693 : memref<!tpu.dma_semaphore, #tpu.memory_space<semaphore_mem>>)
      %c43_i32_381 = arith.constant 43 : i32
      %694 = arith.addi %349, %c43_i32_381 : i32
      %695 = arith.index_cast %694 : i32 to index
      %696 = memref.load %arg2[%695] : memref<64xi32, #tpu.memory_space<smem>>
      %c0_i32_382 = arith.constant 0 : i32
      %697 = tpu.memref_slice %arg4[%696, %c0_i32_382] : memref<128x768xf32, #tpu.memory_space<any>> -> memref<1x768xf32, #tpu.memory_space<any>>
      %c43_i32_383 = arith.constant 43 : i32
      %c0_i32_384 = arith.constant 0 : i32
      %698 = tpu.memref_slice %arg6[%11, %c43_i32_383, %c0_i32_384] : memref<2x64x768xf32, #tpu.memory_space<vmem>> -> memref<1x1x768xf32, #tpu.memory_space<vmem>>
      %699 = tpu.memref_squeeze %698 : memref<1x1x768xf32, #tpu.memory_space<vmem>> -> memref<1x768xf32, #tpu.memory_space<vmem>>
      %700 = tpu.memref_slice %arg7[%11] : memref<2x!tpu.dma_semaphore, #tpu.memory_space<semaphore_mem>> -> memref<1x!tpu.dma_semaphore, #tpu.memory_space<semaphore_mem>>
      %701 = tpu.memref_squeeze %700 : memref<1x!tpu.dma_semaphore, #tpu.memory_space<semaphore_mem>> -> memref<!tpu.dma_semaphore, #tpu.memory_space<semaphore_mem>>
      tpu.enqueue_dma source(%697 : memref<1x768xf32, #tpu.memory_space<any>>) target(%699 : memref<1x768xf32, #tpu.memory_space<vmem>>) target_semaphore(%701 : memref<!tpu.dma_semaphore, #tpu.memory_space<semaphore_mem>>)
      %c44_i32_385 = arith.constant 44 : i32
      %702 = arith.addi %349, %c44_i32_385 : i32
      %703 = arith.index_cast %702 : i32 to index
      %704 = memref.load %arg2[%703] : memref<64xi32, #tpu.memory_space<smem>>
      %c0_i32_386 = arith.constant 0 : i32
      %705 = tpu.memref_slice %arg4[%704, %c0_i32_386] : memref<128x768xf32, #tpu.memory_space<any>> -> memref<1x768xf32, #tpu.memory_space<any>>
      %c44_i32_387 = arith.constant 44 : i32
      %c0_i32_388 = arith.constant 0 : i32
      %706 = tpu.memref_slice %arg6[%11, %c44_i32_387, %c0_i32_388] : memref<2x64x768xf32, #tpu.memory_space<vmem>> -> memref<1x1x768xf32, #tpu.memory_space<vmem>>
      %707 = tpu.memref_squeeze %706 : memref<1x1x768xf32, #tpu.memory_space<vmem>> -> memref<1x768xf32, #tpu.memory_space<vmem>>
      %708 = tpu.memref_slice %arg7[%11] : memref<2x!tpu.dma_semaphore, #tpu.memory_space<semaphore_mem>> -> memref<1x!tpu.dma_semaphore, #tpu.memory_space<semaphore_mem>>
      %709 = tpu.memref_squeeze %708 : memref<1x!tpu.dma_semaphore, #tpu.memory_space<semaphore_mem>> -> memref<!tpu.dma_semaphore, #tpu.memory_space<semaphore_mem>>
      tpu.enqueue_dma source(%705 : memref<1x768xf32, #tpu.memory_space<any>>) target(%707 : memref<1x768xf32, #tpu.memory_space<vmem>>) target_semaphore(%709 : memref<!tpu.dma_semaphore, #tpu.memory_space<semaphore_mem>>)
      %c45_i32_389 = arith.constant 45 : i32
      %710 = arith.addi %349, %c45_i32_389 : i32
      %711 = arith.index_cast %710 : i32 to index
      %712 = memref.load %arg2[%711] : memref<64xi32, #tpu.memory_space<smem>>
      %c0_i32_390 = arith.constant 0 : i32
      %713 = tpu.memref_slice %arg4[%712, %c0_i32_390] : memref<128x768xf32, #tpu.memory_space<any>> -> memref<1x768xf32, #tpu.memory_space<any>>
      %c45_i32_391 = arith.constant 45 : i32
      %c0_i32_392 = arith.constant 0 : i32
      %714 = tpu.memref_slice %arg6[%11, %c45_i32_391, %c0_i32_392] : memref<2x64x768xf32, #tpu.memory_space<vmem>> -> memref<1x1x768xf32, #tpu.memory_space<vmem>>
      %715 = tpu.memref_squeeze %714 : memref<1x1x768xf32, #tpu.memory_space<vmem>> -> memref<1x768xf32, #tpu.memory_space<vmem>>
      %716 = tpu.memref_slice %arg7[%11] : memref<2x!tpu.dma_semaphore, #tpu.memory_space<semaphore_mem>> -> memref<1x!tpu.dma_semaphore, #tpu.memory_space<semaphore_mem>>
      %717 = tpu.memref_squeeze %716 : memref<1x!tpu.dma_semaphore, #tpu.memory_space<semaphore_mem>> -> memref<!tpu.dma_semaphore, #tpu.memory_space<semaphore_mem>>
      tpu.enqueue_dma source(%713 : memref<1x768xf32, #tpu.memory_space<any>>) target(%715 : memref<1x768xf32, #tpu.memory_space<vmem>>) target_semaphore(%717 : memref<!tpu.dma_semaphore, #tpu.memory_space<semaphore_mem>>)
      %c46_i32_393 = arith.constant 46 : i32
      %718 = arith.addi %349, %c46_i32_393 : i32
      %719 = arith.index_cast %718 : i32 to index
      %720 = memref.load %arg2[%719] : memref<64xi32, #tpu.memory_space<smem>>
      %c0_i32_394 = arith.constant 0 : i32
      %721 = tpu.memref_slice %arg4[%720, %c0_i32_394] : memref<128x768xf32, #tpu.memory_space<any>> -> memref<1x768xf32, #tpu.memory_space<any>>
      %c46_i32_395 = arith.constant 46 : i32
      %c0_i32_396 = arith.constant 0 : i32
      %722 = tpu.memref_slice %arg6[%11, %c46_i32_395, %c0_i32_396] : memref<2x64x768xf32, #tpu.memory_space<vmem>> -> memref<1x1x768xf32, #tpu.memory_space<vmem>>
      %723 = tpu.memref_squeeze %722 : memref<1x1x768xf32, #tpu.memory_space<vmem>> -> memref<1x768xf32, #tpu.memory_space<vmem>>
      %724 = tpu.memref_slice %arg7[%11] : memref<2x!tpu.dma_semaphore, #tpu.memory_space<semaphore_mem>> -> memref<1x!tpu.dma_semaphore, #tpu.memory_space<semaphore_mem>>
      %725 = tpu.memref_squeeze %724 : memref<1x!tpu.dma_semaphore, #tpu.memory_space<semaphore_mem>> -> memref<!tpu.dma_semaphore, #tpu.memory_space<semaphore_mem>>
      tpu.enqueue_dma source(%721 : memref<1x768xf32, #tpu.memory_space<any>>) target(%723 : memref<1x768xf32, #tpu.memory_space<vmem>>) target_semaphore(%725 : memref<!tpu.dma_semaphore, #tpu.memory_space<semaphore_mem>>)
      %c47_i32_397 = arith.constant 47 : i32
      %726 = arith.addi %349, %c47_i32_397 : i32
      %727 = arith.index_cast %726 : i32 to index
      %728 = memref.load %arg2[%727] : memref<64xi32, #tpu.memory_space<smem>>
      %c0_i32_398 = arith.constant 0 : i32
      %729 = tpu.memref_slice %arg4[%728, %c0_i32_398] : memref<128x768xf32, #tpu.memory_space<any>> -> memref<1x768xf32, #tpu.memory_space<any>>
      %c47_i32_399 = arith.constant 47 : i32
      %c0_i32_400 = arith.constant 0 : i32
      %730 = tpu.memref_slice %arg6[%11, %c47_i32_399, %c0_i32_400] : memref<2x64x768xf32, #tpu.memory_space<vmem>> -> memref<1x1x768xf32, #tpu.memory_space<vmem>>
      %731 = tpu.memref_squeeze %730 : memref<1x1x768xf32, #tpu.memory_space<vmem>> -> memref<1x768xf32, #tpu.memory_space<vmem>>
      %732 = tpu.memref_slice %arg7[%11] : memref<2x!tpu.dma_semaphore, #tpu.memory_space<semaphore_mem>> -> memref<1x!tpu.dma_semaphore, #tpu.memory_space<semaphore_mem>>
      %733 = tpu.memref_squeeze %732 : memref<1x!tpu.dma_semaphore, #tpu.memory_space<semaphore_mem>> -> memref<!tpu.dma_semaphore, #tpu.memory_space<semaphore_mem>>
      tpu.enqueue_dma source(%729 : memref<1x768xf32, #tpu.memory_space<any>>) target(%731 : memref<1x768xf32, #tpu.memory_space<vmem>>) target_semaphore(%733 : memref<!tpu.dma_semaphore, #tpu.memory_space<semaphore_mem>>)
      %c48_i32_401 = arith.constant 48 : i32
      %734 = arith.addi %349, %c48_i32_401 : i32
      %735 = arith.index_cast %734 : i32 to index
      %736 = memref.load %arg2[%735] : memref<64xi32, #tpu.memory_space<smem>>
      %c0_i32_402 = arith.constant 0 : i32
      %737 = tpu.memref_slice %arg4[%736, %c0_i32_402] : memref<128x768xf32, #tpu.memory_space<any>> -> memref<1x768xf32, #tpu.memory_space<any>>
      %c48_i32_403 = arith.constant 48 : i32
      %c0_i32_404 = arith.constant 0 : i32
      %738 = tpu.memref_slice %arg6[%11, %c48_i32_403, %c0_i32_404] : memref<2x64x768xf32, #tpu.memory_space<vmem>> -> memref<1x1x768xf32, #tpu.memory_space<vmem>>
      %739 = tpu.memref_squeeze %738 : memref<1x1x768xf32, #tpu.memory_space<vmem>> -> memref<1x768xf32, #tpu.memory_space<vmem>>
      %740 = tpu.memref_slice %arg7[%11] : memref<2x!tpu.dma_semaphore, #tpu.memory_space<semaphore_mem>> -> memref<1x!tpu.dma_semaphore, #tpu.memory_space<semaphore_mem>>
      %741 = tpu.memref_squeeze %740 : memref<1x!tpu.dma_semaphore, #tpu.memory_space<semaphore_mem>> -> memref<!tpu.dma_semaphore, #tpu.memory_space<semaphore_mem>>
      tpu.enqueue_dma source(%737 : memref<1x768xf32, #tpu.memory_space<any>>) target(%739 : memref<1x768xf32, #tpu.memory_space<vmem>>) target_semaphore(%741 : memref<!tpu.dma_semaphore, #tpu.memory_space<semaphore_mem>>)
      %c49_i32_405 = arith.constant 49 : i32
      %742 = arith.addi %349, %c49_i32_405 : i32
      %743 = arith.index_cast %742 : i32 to index
      %744 = memref.load %arg2[%743] : memref<64xi32, #tpu.memory_space<smem>>
      %c0_i32_406 = arith.constant 0 : i32
      %745 = tpu.memref_slice %arg4[%744, %c0_i32_406] : memref<128x768xf32, #tpu.memory_space<any>> -> memref<1x768xf32, #tpu.memory_space<any>>
      %c49_i32_407 = arith.constant 49 : i32
      %c0_i32_408 = arith.constant 0 : i32
      %746 = tpu.memref_slice %arg6[%11, %c49_i32_407, %c0_i32_408] : memref<2x64x768xf32, #tpu.memory_space<vmem>> -> memref<1x1x768xf32, #tpu.memory_space<vmem>>
      %747 = tpu.memref_squeeze %746 : memref<1x1x768xf32, #tpu.memory_space<vmem>> -> memref<1x768xf32, #tpu.memory_space<vmem>>
      %748 = tpu.memref_slice %arg7[%11] : memref<2x!tpu.dma_semaphore, #tpu.memory_space<semaphore_mem>> -> memref<1x!tpu.dma_semaphore, #tpu.memory_space<semaphore_mem>>
      %749 = tpu.memref_squeeze %748 : memref<1x!tpu.dma_semaphore, #tpu.memory_space<semaphore_mem>> -> memref<!tpu.dma_semaphore, #tpu.memory_space<semaphore_mem>>
      tpu.enqueue_dma source(%745 : memref<1x768xf32, #tpu.memory_space<any>>) target(%747 : memref<1x768xf32, #tpu.memory_space<vmem>>) target_semaphore(%749 : memref<!tpu.dma_semaphore, #tpu.memory_space<semaphore_mem>>)
      %c50_i32_409 = arith.constant 50 : i32
      %750 = arith.addi %349, %c50_i32_409 : i32
      %751 = arith.index_cast %750 : i32 to index
      %752 = memref.load %arg2[%751] : memref<64xi32, #tpu.memory_space<smem>>
      %c0_i32_410 = arith.constant 0 : i32
      %753 = tpu.memref_slice %arg4[%752, %c0_i32_410] : memref<128x768xf32, #tpu.memory_space<any>> -> memref<1x768xf32, #tpu.memory_space<any>>
      %c50_i32_411 = arith.constant 50 : i32
      %c0_i32_412 = arith.constant 0 : i32
      %754 = tpu.memref_slice %arg6[%11, %c50_i32_411, %c0_i32_412] : memref<2x64x768xf32, #tpu.memory_space<vmem>> -> memref<1x1x768xf32, #tpu.memory_space<vmem>>
      %755 = tpu.memref_squeeze %754 : memref<1x1x768xf32, #tpu.memory_space<vmem>> -> memref<1x768xf32, #tpu.memory_space<vmem>>
      %756 = tpu.memref_slice %arg7[%11] : memref<2x!tpu.dma_semaphore, #tpu.memory_space<semaphore_mem>> -> memref<1x!tpu.dma_semaphore, #tpu.memory_space<semaphore_mem>>
      %757 = tpu.memref_squeeze %756 : memref<1x!tpu.dma_semaphore, #tpu.memory_space<semaphore_mem>> -> memref<!tpu.dma_semaphore, #tpu.memory_space<semaphore_mem>>
      tpu.enqueue_dma source(%753 : memref<1x768xf32, #tpu.memory_space<any>>) target(%755 : memref<1x768xf32, #tpu.memory_space<vmem>>) target_semaphore(%757 : memref<!tpu.dma_semaphore, #tpu.memory_space<semaphore_mem>>)
      %c51_i32_413 = arith.constant 51 : i32
      %758 = arith.addi %349, %c51_i32_413 : i32
      %759 = arith.index_cast %758 : i32 to index
      %760 = memref.load %arg2[%759] : memref<64xi32, #tpu.memory_space<smem>>
      %c0_i32_414 = arith.constant 0 : i32
      %761 = tpu.memref_slice %arg4[%760, %c0_i32_414] : memref<128x768xf32, #tpu.memory_space<any>> -> memref<1x768xf32, #tpu.memory_space<any>>
      %c51_i32_415 = arith.constant 51 : i32
      %c0_i32_416 = arith.constant 0 : i32
      %762 = tpu.memref_slice %arg6[%11, %c51_i32_415, %c0_i32_416] : memref<2x64x768xf32, #tpu.memory_space<vmem>> -> memref<1x1x768xf32, #tpu.memory_space<vmem>>
      %763 = tpu.memref_squeeze %762 : memref<1x1x768xf32, #tpu.memory_space<vmem>> -> memref<1x768xf32, #tpu.memory_space<vmem>>
      %764 = tpu.memref_slice %arg7[%11] : memref<2x!tpu.dma_semaphore, #tpu.memory_space<semaphore_mem>> -> memref<1x!tpu.dma_semaphore, #tpu.memory_space<semaphore_mem>>
      %765 = tpu.memref_squeeze %764 : memref<1x!tpu.dma_semaphore, #tpu.memory_space<semaphore_mem>> -> memref<!tpu.dma_semaphore, #tpu.memory_space<semaphore_mem>>
      tpu.enqueue_dma source(%761 : memref<1x768xf32, #tpu.memory_space<any>>) target(%763 : memref<1x768xf32, #tpu.memory_space<vmem>>) target_semaphore(%765 : memref<!tpu.dma_semaphore, #tpu.memory_space<semaphore_mem>>)
      %c52_i32_417 = arith.constant 52 : i32
      %766 = arith.addi %349, %c52_i32_417 : i32
      %767 = arith.index_cast %766 : i32 to index
      %768 = memref.load %arg2[%767] : memref<64xi32, #tpu.memory_space<smem>>
      %c0_i32_418 = arith.constant 0 : i32
      %769 = tpu.memref_slice %arg4[%768, %c0_i32_418] : memref<128x768xf32, #tpu.memory_space<any>> -> memref<1x768xf32, #tpu.memory_space<any>>
      %c52_i32_419 = arith.constant 52 : i32
      %c0_i32_420 = arith.constant 0 : i32
      %770 = tpu.memref_slice %arg6[%11, %c52_i32_419, %c0_i32_420] : memref<2x64x768xf32, #tpu.memory_space<vmem>> -> memref<1x1x768xf32, #tpu.memory_space<vmem>>
      %771 = tpu.memref_squeeze %770 : memref<1x1x768xf32, #tpu.memory_space<vmem>> -> memref<1x768xf32, #tpu.memory_space<vmem>>
      %772 = tpu.memref_slice %arg7[%11] : memref<2x!tpu.dma_semaphore, #tpu.memory_space<semaphore_mem>> -> memref<1x!tpu.dma_semaphore, #tpu.memory_space<semaphore_mem>>
      %773 = tpu.memref_squeeze %772 : memref<1x!tpu.dma_semaphore, #tpu.memory_space<semaphore_mem>> -> memref<!tpu.dma_semaphore, #tpu.memory_space<semaphore_mem>>
      tpu.enqueue_dma source(%769 : memref<1x768xf32, #tpu.memory_space<any>>) target(%771 : memref<1x768xf32, #tpu.memory_space<vmem>>) target_semaphore(%773 : memref<!tpu.dma_semaphore, #tpu.memory_space<semaphore_mem>>)
      %c53_i32_421 = arith.constant 53 : i32
      %774 = arith.addi %349, %c53_i32_421 : i32
      %775 = arith.index_cast %774 : i32 to index
      %776 = memref.load %arg2[%775] : memref<64xi32, #tpu.memory_space<smem>>
      %c0_i32_422 = arith.constant 0 : i32
      %777 = tpu.memref_slice %arg4[%776, %c0_i32_422] : memref<128x768xf32, #tpu.memory_space<any>> -> memref<1x768xf32, #tpu.memory_space<any>>
      %c53_i32_423 = arith.constant 53 : i32
      %c0_i32_424 = arith.constant 0 : i32
      %778 = tpu.memref_slice %arg6[%11, %c53_i32_423, %c0_i32_424] : memref<2x64x768xf32, #tpu.memory_space<vmem>> -> memref<1x1x768xf32, #tpu.memory_space<vmem>>
      %779 = tpu.memref_squeeze %778 : memref<1x1x768xf32, #tpu.memory_space<vmem>> -> memref<1x768xf32, #tpu.memory_space<vmem>>
      %780 = tpu.memref_slice %arg7[%11] : memref<2x!tpu.dma_semaphore, #tpu.memory_space<semaphore_mem>> -> memref<1x!tpu.dma_semaphore, #tpu.memory_space<semaphore_mem>>
      %781 = tpu.memref_squeeze %780 : memref<1x!tpu.dma_semaphore, #tpu.memory_space<semaphore_mem>> -> memref<!tpu.dma_semaphore, #tpu.memory_space<semaphore_mem>>
      tpu.enqueue_dma source(%777 : memref<1x768xf32, #tpu.memory_space<any>>) target(%779 : memref<1x768xf32, #tpu.memory_space<vmem>>) target_semaphore(%781 : memref<!tpu.dma_semaphore, #tpu.memory_space<semaphore_mem>>)
      %c54_i32_425 = arith.constant 54 : i32
      %782 = arith.addi %349, %c54_i32_425 : i32
      %783 = arith.index_cast %782 : i32 to index
      %784 = memref.load %arg2[%783] : memref<64xi32, #tpu.memory_space<smem>>
      %c0_i32_426 = arith.constant 0 : i32
      %785 = tpu.memref_slice %arg4[%784, %c0_i32_426] : memref<128x768xf32, #tpu.memory_space<any>> -> memref<1x768xf32, #tpu.memory_space<any>>
      %c54_i32_427 = arith.constant 54 : i32
      %c0_i32_428 = arith.constant 0 : i32
      %786 = tpu.memref_slice %arg6[%11, %c54_i32_427, %c0_i32_428] : memref<2x64x768xf32, #tpu.memory_space<vmem>> -> memref<1x1x768xf32, #tpu.memory_space<vmem>>
      %787 = tpu.memref_squeeze %786 : memref<1x1x768xf32, #tpu.memory_space<vmem>> -> memref<1x768xf32, #tpu.memory_space<vmem>>
      %788 = tpu.memref_slice %arg7[%11] : memref<2x!tpu.dma_semaphore, #tpu.memory_space<semaphore_mem>> -> memref<1x!tpu.dma_semaphore, #tpu.memory_space<semaphore_mem>>
      %789 = tpu.memref_squeeze %788 : memref<1x!tpu.dma_semaphore, #tpu.memory_space<semaphore_mem>> -> memref<!tpu.dma_semaphore, #tpu.memory_space<semaphore_mem>>
      tpu.enqueue_dma source(%785 : memref<1x768xf32, #tpu.memory_space<any>>) target(%787 : memref<1x768xf32, #tpu.memory_space<vmem>>) target_semaphore(%789 : memref<!tpu.dma_semaphore, #tpu.memory_space<semaphore_mem>>)
      %c55_i32_429 = arith.constant 55 : i32
      %790 = arith.addi %349, %c55_i32_429 : i32
      %791 = arith.index_cast %790 : i32 to index
      %792 = memref.load %arg2[%791] : memref<64xi32, #tpu.memory_space<smem>>
      %c0_i32_430 = arith.constant 0 : i32
      %793 = tpu.memref_slice %arg4[%792, %c0_i32_430] : memref<128x768xf32, #tpu.memory_space<any>> -> memref<1x768xf32, #tpu.memory_space<any>>
      %c55_i32_431 = arith.constant 55 : i32
      %c0_i32_432 = arith.constant 0 : i32
      %794 = tpu.memref_slice %arg6[%11, %c55_i32_431, %c0_i32_432] : memref<2x64x768xf32, #tpu.memory_space<vmem>> -> memref<1x1x768xf32, #tpu.memory_space<vmem>>
      %795 = tpu.memref_squeeze %794 : memref<1x1x768xf32, #tpu.memory_space<vmem>> -> memref<1x768xf32, #tpu.memory_space<vmem>>
      %796 = tpu.memref_slice %arg7[%11] : memref<2x!tpu.dma_semaphore, #tpu.memory_space<semaphore_mem>> -> memref<1x!tpu.dma_semaphore, #tpu.memory_space<semaphore_mem>>
      %797 = tpu.memref_squeeze %796 : memref<1x!tpu.dma_semaphore, #tpu.memory_space<semaphore_mem>> -> memref<!tpu.dma_semaphore, #tpu.memory_space<semaphore_mem>>
      tpu.enqueue_dma source(%793 : memref<1x768xf32, #tpu.memory_space<any>>) target(%795 : memref<1x768xf32, #tpu.memory_space<vmem>>) target_semaphore(%797 : memref<!tpu.dma_semaphore, #tpu.memory_space<semaphore_mem>>)
      %c56_i32_433 = arith.constant 56 : i32
      %798 = arith.addi %349, %c56_i32_433 : i32
      %799 = arith.index_cast %798 : i32 to index
      %800 = memref.load %arg2[%799] : memref<64xi32, #tpu.memory_space<smem>>
      %c0_i32_434 = arith.constant 0 : i32
      %801 = tpu.memref_slice %arg4[%800, %c0_i32_434] : memref<128x768xf32, #tpu.memory_space<any>> -> memref<1x768xf32, #tpu.memory_space<any>>
      %c56_i32_435 = arith.constant 56 : i32
      %c0_i32_436 = arith.constant 0 : i32
      %802 = tpu.memref_slice %arg6[%11, %c56_i32_435, %c0_i32_436] : memref<2x64x768xf32, #tpu.memory_space<vmem>> -> memref<1x1x768xf32, #tpu.memory_space<vmem>>
      %803 = tpu.memref_squeeze %802 : memref<1x1x768xf32, #tpu.memory_space<vmem>> -> memref<1x768xf32, #tpu.memory_space<vmem>>
      %804 = tpu.memref_slice %arg7[%11] : memref<2x!tpu.dma_semaphore, #tpu.memory_space<semaphore_mem>> -> memref<1x!tpu.dma_semaphore, #tpu.memory_space<semaphore_mem>>
      %805 = tpu.memref_squeeze %804 : memref<1x!tpu.dma_semaphore, #tpu.memory_space<semaphore_mem>> -> memref<!tpu.dma_semaphore, #tpu.memory_space<semaphore_mem>>
      tpu.enqueue_dma source(%801 : memref<1x768xf32, #tpu.memory_space<any>>) target(%803 : memref<1x768xf32, #tpu.memory_space<vmem>>) target_semaphore(%805 : memref<!tpu.dma_semaphore, #tpu.memory_space<semaphore_mem>>)
      %c57_i32_437 = arith.constant 57 : i32
      %806 = arith.addi %349, %c57_i32_437 : i32
      %807 = arith.index_cast %806 : i32 to index
      %808 = memref.load %arg2[%807] : memref<64xi32, #tpu.memory_space<smem>>
      %c0_i32_438 = arith.constant 0 : i32
      %809 = tpu.memref_slice %arg4[%808, %c0_i32_438] : memref<128x768xf32, #tpu.memory_space<any>> -> memref<1x768xf32, #tpu.memory_space<any>>
      %c57_i32_439 = arith.constant 57 : i32
      %c0_i32_440 = arith.constant 0 : i32
      %810 = tpu.memref_slice %arg6[%11, %c57_i32_439, %c0_i32_440] : memref<2x64x768xf32, #tpu.memory_space<vmem>> -> memref<1x1x768xf32, #tpu.memory_space<vmem>>
      %811 = tpu.memref_squeeze %810 : memref<1x1x768xf32, #tpu.memory_space<vmem>> -> memref<1x768xf32, #tpu.memory_space<vmem>>
      %812 = tpu.memref_slice %arg7[%11] : memref<2x!tpu.dma_semaphore, #tpu.memory_space<semaphore_mem>> -> memref<1x!tpu.dma_semaphore, #tpu.memory_space<semaphore_mem>>
      %813 = tpu.memref_squeeze %812 : memref<1x!tpu.dma_semaphore, #tpu.memory_space<semaphore_mem>> -> memref<!tpu.dma_semaphore, #tpu.memory_space<semaphore_mem>>
      tpu.enqueue_dma source(%809 : memref<1x768xf32, #tpu.memory_space<any>>) target(%811 : memref<1x768xf32, #tpu.memory_space<vmem>>) target_semaphore(%813 : memref<!tpu.dma_semaphore, #tpu.memory_space<semaphore_mem>>)
      %c58_i32_441 = arith.constant 58 : i32
      %814 = arith.addi %349, %c58_i32_441 : i32
      %815 = arith.index_cast %814 : i32 to index
      %816 = memref.load %arg2[%815] : memref<64xi32, #tpu.memory_space<smem>>
      %c0_i32_442 = arith.constant 0 : i32
      %817 = tpu.memref_slice %arg4[%816, %c0_i32_442] : memref<128x768xf32, #tpu.memory_space<any>> -> memref<1x768xf32, #tpu.memory_space<any>>
      %c58_i32_443 = arith.constant 58 : i32
      %c0_i32_444 = arith.constant 0 : i32
      %818 = tpu.memref_slice %arg6[%11, %c58_i32_443, %c0_i32_444] : memref<2x64x768xf32, #tpu.memory_space<vmem>> -> memref<1x1x768xf32, #tpu.memory_space<vmem>>
      %819 = tpu.memref_squeeze %818 : memref<1x1x768xf32, #tpu.memory_space<vmem>> -> memref<1x768xf32, #tpu.memory_space<vmem>>
      %820 = tpu.memref_slice %arg7[%11] : memref<2x!tpu.dma_semaphore, #tpu.memory_space<semaphore_mem>> -> memref<1x!tpu.dma_semaphore, #tpu.memory_space<semaphore_mem>>
      %821 = tpu.memref_squeeze %820 : memref<1x!tpu.dma_semaphore, #tpu.memory_space<semaphore_mem>> -> memref<!tpu.dma_semaphore, #tpu.memory_space<semaphore_mem>>
      tpu.enqueue_dma source(%817 : memref<1x768xf32, #tpu.memory_space<any>>) target(%819 : memref<1x768xf32, #tpu.memory_space<vmem>>) target_semaphore(%821 : memref<!tpu.dma_semaphore, #tpu.memory_space<semaphore_mem>>)
      %c59_i32_445 = arith.constant 59 : i32
      %822 = arith.addi %349, %c59_i32_445 : i32
      %823 = arith.index_cast %822 : i32 to index
      %824 = memref.load %arg2[%823] : memref<64xi32, #tpu.memory_space<smem>>
      %c0_i32_446 = arith.constant 0 : i32
      %825 = tpu.memref_slice %arg4[%824, %c0_i32_446] : memref<128x768xf32, #tpu.memory_space<any>> -> memref<1x768xf32, #tpu.memory_space<any>>
      %c59_i32_447 = arith.constant 59 : i32
      %c0_i32_448 = arith.constant 0 : i32
      %826 = tpu.memref_slice %arg6[%11, %c59_i32_447, %c0_i32_448] : memref<2x64x768xf32, #tpu.memory_space<vmem>> -> memref<1x1x768xf32, #tpu.memory_space<vmem>>
      %827 = tpu.memref_squeeze %826 : memref<1x1x768xf32, #tpu.memory_space<vmem>> -> memref<1x768xf32, #tpu.memory_space<vmem>>
      %828 = tpu.memref_slice %arg7[%11] : memref<2x!tpu.dma_semaphore, #tpu.memory_space<semaphore_mem>> -> memref<1x!tpu.dma_semaphore, #tpu.memory_space<semaphore_mem>>
      %829 = tpu.memref_squeeze %828 : memref<1x!tpu.dma_semaphore, #tpu.memory_space<semaphore_mem>> -> memref<!tpu.dma_semaphore, #tpu.memory_space<semaphore_mem>>
      tpu.enqueue_dma source(%825 : memref<1x768xf32, #tpu.memory_space<any>>) target(%827 : memref<1x768xf32, #tpu.memory_space<vmem>>) target_semaphore(%829 : memref<!tpu.dma_semaphore, #tpu.memory_space<semaphore_mem>>)
      %c60_i32_449 = arith.constant 60 : i32
      %830 = arith.addi %349, %c60_i32_449 : i32
      %831 = arith.index_cast %830 : i32 to index
      %832 = memref.load %arg2[%831] : memref<64xi32, #tpu.memory_space<smem>>
      %c0_i32_450 = arith.constant 0 : i32
      %833 = tpu.memref_slice %arg4[%832, %c0_i32_450] : memref<128x768xf32, #tpu.memory_space<any>> -> memref<1x768xf32, #tpu.memory_space<any>>
      %c60_i32_451 = arith.constant 60 : i32
      %c0_i32_452 = arith.constant 0 : i32
      %834 = tpu.memref_slice %arg6[%11, %c60_i32_451, %c0_i32_452] : memref<2x64x768xf32, #tpu.memory_space<vmem>> -> memref<1x1x768xf32, #tpu.memory_space<vmem>>
      %835 = tpu.memref_squeeze %834 : memref<1x1x768xf32, #tpu.memory_space<vmem>> -> memref<1x768xf32, #tpu.memory_space<vmem>>
      %836 = tpu.memref_slice %arg7[%11] : memref<2x!tpu.dma_semaphore, #tpu.memory_space<semaphore_mem>> -> memref<1x!tpu.dma_semaphore, #tpu.memory_space<semaphore_mem>>
      %837 = tpu.memref_squeeze %836 : memref<1x!tpu.dma_semaphore, #tpu.memory_space<semaphore_mem>> -> memref<!tpu.dma_semaphore, #tpu.memory_space<semaphore_mem>>
      tpu.enqueue_dma source(%833 : memref<1x768xf32, #tpu.memory_space<any>>) target(%835 : memref<1x768xf32, #tpu.memory_space<vmem>>) target_semaphore(%837 : memref<!tpu.dma_semaphore, #tpu.memory_space<semaphore_mem>>)
      %c61_i32_453 = arith.constant 61 : i32
      %838 = arith.addi %349, %c61_i32_453 : i32
      %839 = arith.index_cast %838 : i32 to index
      %840 = memref.load %arg2[%839] : memref<64xi32, #tpu.memory_space<smem>>
      %c0_i32_454 = arith.constant 0 : i32
      %841 = tpu.memref_slice %arg4[%840, %c0_i32_454] : memref<128x768xf32, #tpu.memory_space<any>> -> memref<1x768xf32, #tpu.memory_space<any>>
      %c61_i32_455 = arith.constant 61 : i32
      %c0_i32_456 = arith.constant 0 : i32
      %842 = tpu.memref_slice %arg6[%11, %c61_i32_455, %c0_i32_456] : memref<2x64x768xf32, #tpu.memory_space<vmem>> -> memref<1x1x768xf32, #tpu.memory_space<vmem>>
      %843 = tpu.memref_squeeze %842 : memref<1x1x768xf32, #tpu.memory_space<vmem>> -> memref<1x768xf32, #tpu.memory_space<vmem>>
      %844 = tpu.memref_slice %arg7[%11] : memref<2x!tpu.dma_semaphore, #tpu.memory_space<semaphore_mem>> -> memref<1x!tpu.dma_semaphore, #tpu.memory_space<semaphore_mem>>
      %845 = tpu.memref_squeeze %844 : memref<1x!tpu.dma_semaphore, #tpu.memory_space<semaphore_mem>> -> memref<!tpu.dma_semaphore, #tpu.memory_space<semaphore_mem>>
      tpu.enqueue_dma source(%841 : memref<1x768xf32, #tpu.memory_space<any>>) target(%843 : memref<1x768xf32, #tpu.memory_space<vmem>>) target_semaphore(%845 : memref<!tpu.dma_semaphore, #tpu.memory_space<semaphore_mem>>)
      %c62_i32_457 = arith.constant 62 : i32
      %846 = arith.addi %349, %c62_i32_457 : i32
      %847 = arith.index_cast %846 : i32 to index
      %848 = memref.load %arg2[%847] : memref<64xi32, #tpu.memory_space<smem>>
      %c0_i32_458 = arith.constant 0 : i32
      %849 = tpu.memref_slice %arg4[%848, %c0_i32_458] : memref<128x768xf32, #tpu.memory_space<any>> -> memref<1x768xf32, #tpu.memory_space<any>>
      %c62_i32_459 = arith.constant 62 : i32
      %c0_i32_460 = arith.constant 0 : i32
      %850 = tpu.memref_slice %arg6[%11, %c62_i32_459, %c0_i32_460] : memref<2x64x768xf32, #tpu.memory_space<vmem>> -> memref<1x1x768xf32, #tpu.memory_space<vmem>>
      %851 = tpu.memref_squeeze %850 : memref<1x1x768xf32, #tpu.memory_space<vmem>> -> memref<1x768xf32, #tpu.memory_space<vmem>>
      %852 = tpu.memref_slice %arg7[%11] : memref<2x!tpu.dma_semaphore, #tpu.memory_space<semaphore_mem>> -> memref<1x!tpu.dma_semaphore, #tpu.memory_space<semaphore_mem>>
      %853 = tpu.memref_squeeze %852 : memref<1x!tpu.dma_semaphore, #tpu.memory_space<semaphore_mem>> -> memref<!tpu.dma_semaphore, #tpu.memory_space<semaphore_mem>>
      tpu.enqueue_dma source(%849 : memref<1x768xf32, #tpu.memory_space<any>>) target(%851 : memref<1x768xf32, #tpu.memory_space<vmem>>) target_semaphore(%853 : memref<!tpu.dma_semaphore, #tpu.memory_space<semaphore_mem>>)
      %c63_i32_461 = arith.constant 63 : i32
      %854 = arith.addi %349, %c63_i32_461 : i32
      %855 = arith.index_cast %854 : i32 to index
      %856 = memref.load %arg2[%855] : memref<64xi32, #tpu.memory_space<smem>>
      %c0_i32_462 = arith.constant 0 : i32
      %857 = tpu.memref_slice %arg4[%856, %c0_i32_462] : memref<128x768xf32, #tpu.memory_space<any>> -> memref<1x768xf32, #tpu.memory_space<any>>
      %c63_i32_463 = arith.constant 63 : i32
      %c0_i32_464 = arith.constant 0 : i32
      %858 = tpu.memref_slice %arg6[%11, %c63_i32_463, %c0_i32_464] : memref<2x64x768xf32, #tpu.memory_space<vmem>> -> memref<1x1x768xf32, #tpu.memory_space<vmem>>
      %859 = tpu.memref_squeeze %858 : memref<1x1x768xf32, #tpu.memory_space<vmem>> -> memref<1x768xf32, #tpu.memory_space<vmem>>
      %860 = tpu.memref_slice %arg7[%11] : memref<2x!tpu.dma_semaphore, #tpu.memory_space<semaphore_mem>> -> memref<1x!tpu.dma_semaphore, #tpu.memory_space<semaphore_mem>>
      %861 = tpu.memref_squeeze %860 : memref<1x!tpu.dma_semaphore, #tpu.memory_space<semaphore_mem>> -> memref<!tpu.dma_semaphore, #tpu.memory_space<semaphore_mem>>
      tpu.enqueue_dma source(%857 : memref<1x768xf32, #tpu.memory_space<any>>) target(%859 : memref<1x768xf32, #tpu.memory_space<vmem>>) target_semaphore(%861 : memref<!tpu.dma_semaphore, #tpu.memory_space<semaphore_mem>>)
    } else {
    }
    %c1_i32_6 = arith.constant 1 : i32
    %15 = arith.addi %arg1, %c1_i32_6 : i32
    %c1_i32_7 = arith.constant 1 : i32
    %16 = arith.cmpi slt, %15, %c1_i32_7 : i32
    %17 = arith.extui %16 : i1 to i32
    %c0_i32_8 = arith.constant 0 : i32
    %18 = arith.cmpi ne, %17, %c0_i32_8 : i32
    scf.if %18 {
      %c1_i32_209 = arith.constant 1 : i32
      %349 = arith.addi %1, %c1_i32_209 : i32
      %c1_i32_210 = arith.constant 1 : i32
      %350 = arith.subi %c1_i32_210, %11 : i32
      %c64_i32 = arith.constant 64 : i32
      %351 = arith.muli %349, %c64_i32 : i32
      %c0_i32_211 = arith.constant 0 : i32
      %352 = arith.addi %351, %c0_i32_211 : i32
      %353 = arith.index_cast %352 : i32 to index
      %354 = memref.load %arg2[%353] : memref<64xi32, #tpu.memory_space<smem>>
      %c0_i32_212 = arith.constant 0 : i32
      %355 = tpu.memref_slice %arg4[%354, %c0_i32_212] : memref<128x768xf32, #tpu.memory_space<any>> -> memref<1x768xf32, #tpu.memory_space<any>>
      %c0_i32_213 = arith.constant 0 : i32
      %c0_i32_214 = arith.constant 0 : i32
      %356 = tpu.memref_slice %arg6[%350, %c0_i32_213, %c0_i32_214] : memref<2x64x768xf32, #tpu.memory_space<vmem>> -> memref<1x1x768xf32, #tpu.memory_space<vmem>>
      %357 = tpu.memref_squeeze %356 : memref<1x1x768xf32, #tpu.memory_space<vmem>> -> memref<1x768xf32, #tpu.memory_space<vmem>>
      %358 = tpu.memref_slice %arg7[%350] : memref<2x!tpu.dma_semaphore, #tpu.memory_space<semaphore_mem>> -> memref<1x!tpu.dma_semaphore, #tpu.memory_space<semaphore_mem>>
      %359 = tpu.memref_squeeze %358 : memref<1x!tpu.dma_semaphore, #tpu.memory_space<semaphore_mem>> -> memref<!tpu.dma_semaphore, #tpu.memory_space<semaphore_mem>>
      tpu.enqueue_dma source(%355 : memref<1x768xf32, #tpu.memory_space<any>>) target(%357 : memref<1x768xf32, #tpu.memory_space<vmem>>) target_semaphore(%359 : memref<!tpu.dma_semaphore, #tpu.memory_space<semaphore_mem>>)
      %c1_i32_215 = arith.constant 1 : i32
      %360 = arith.addi %351, %c1_i32_215 : i32
      %361 = arith.index_cast %360 : i32 to index
      %362 = memref.load %arg2[%361] : memref<64xi32, #tpu.memory_space<smem>>
      %c0_i32_216 = arith.constant 0 : i32
      %363 = tpu.memref_slice %arg4[%362, %c0_i32_216] : memref<128x768xf32, #tpu.memory_space<any>> -> memref<1x768xf32, #tpu.memory_space<any>>
      %c1_i32_217 = arith.constant 1 : i32
      %c0_i32_218 = arith.constant 0 : i32
      %364 = tpu.memref_slice %arg6[%350, %c1_i32_217, %c0_i32_218] : memref<2x64x768xf32, #tpu.memory_space<vmem>> -> memref<1x1x768xf32, #tpu.memory_space<vmem>>
      %365 = tpu.memref_squeeze %364 : memref<1x1x768xf32, #tpu.memory_space<vmem>> -> memref<1x768xf32, #tpu.memory_space<vmem>>
      %366 = tpu.memref_slice %arg7[%350] : memref<2x!tpu.dma_semaphore, #tpu.memory_space<semaphore_mem>> -> memref<1x!tpu.dma_semaphore, #tpu.memory_space<semaphore_mem>>
      %367 = tpu.memref_squeeze %366 : memref<1x!tpu.dma_semaphore, #tpu.memory_space<semaphore_mem>> -> memref<!tpu.dma_semaphore, #tpu.memory_space<semaphore_mem>>
      tpu.enqueue_dma source(%363 : memref<1x768xf32, #tpu.memory_space<any>>) target(%365 : memref<1x768xf32, #tpu.memory_space<vmem>>) target_semaphore(%367 : memref<!tpu.dma_semaphore, #tpu.memory_space<semaphore_mem>>)
      %c2_i32_219 = arith.constant 2 : i32
      %368 = arith.addi %351, %c2_i32_219 : i32
      %369 = arith.index_cast %368 : i32 to index
      %370 = memref.load %arg2[%369] : memref<64xi32, #tpu.memory_space<smem>>
      %c0_i32_220 = arith.constant 0 : i32
      %371 = tpu.memref_slice %arg4[%370, %c0_i32_220] : memref<128x768xf32, #tpu.memory_space<any>> -> memref<1x768xf32, #tpu.memory_space<any>>
      %c2_i32_221 = arith.constant 2 : i32
      %c0_i32_222 = arith.constant 0 : i32
      %372 = tpu.memref_slice %arg6[%350, %c2_i32_221, %c0_i32_222] : memref<2x64x768xf32, #tpu.memory_space<vmem>> -> memref<1x1x768xf32, #tpu.memory_space<vmem>>
      %373 = tpu.memref_squeeze %372 : memref<1x1x768xf32, #tpu.memory_space<vmem>> -> memref<1x768xf32, #tpu.memory_space<vmem>>
      %374 = tpu.memref_slice %arg7[%350] : memref<2x!tpu.dma_semaphore, #tpu.memory_space<semaphore_mem>> -> memref<1x!tpu.dma_semaphore, #tpu.memory_space<semaphore_mem>>
      %375 = tpu.memref_squeeze %374 : memref<1x!tpu.dma_semaphore, #tpu.memory_space<semaphore_mem>> -> memref<!tpu.dma_semaphore, #tpu.memory_space<semaphore_mem>>
      tpu.enqueue_dma source(%371 : memref<1x768xf32, #tpu.memory_space<any>>) target(%373 : memref<1x768xf32, #tpu.memory_space<vmem>>) target_semaphore(%375 : memref<!tpu.dma_semaphore, #tpu.memory_space<semaphore_mem>>)
      %c3_i32_223 = arith.constant 3 : i32
      %376 = arith.addi %351, %c3_i32_223 : i32
      %377 = arith.index_cast %376 : i32 to index
      %378 = memref.load %arg2[%377] : memref<64xi32, #tpu.memory_space<smem>>
      %c0_i32_224 = arith.constant 0 : i32
      %379 = tpu.memref_slice %arg4[%378, %c0_i32_224] : memref<128x768xf32, #tpu.memory_space<any>> -> memref<1x768xf32, #tpu.memory_space<any>>
      %c3_i32_225 = arith.constant 3 : i32
      %c0_i32_226 = arith.constant 0 : i32
      %380 = tpu.memref_slice %arg6[%350, %c3_i32_225, %c0_i32_226] : memref<2x64x768xf32, #tpu.memory_space<vmem>> -> memref<1x1x768xf32, #tpu.memory_space<vmem>>
      %381 = tpu.memref_squeeze %380 : memref<1x1x768xf32, #tpu.memory_space<vmem>> -> memref<1x768xf32, #tpu.memory_space<vmem>>
      %382 = tpu.memref_slice %arg7[%350] : memref<2x!tpu.dma_semaphore, #tpu.memory_space<semaphore_mem>> -> memref<1x!tpu.dma_semaphore, #tpu.memory_space<semaphore_mem>>
      %383 = tpu.memref_squeeze %382 : memref<1x!tpu.dma_semaphore, #tpu.memory_space<semaphore_mem>> -> memref<!tpu.dma_semaphore, #tpu.memory_space<semaphore_mem>>
      tpu.enqueue_dma source(%379 : memref<1x768xf32, #tpu.memory_space<any>>) target(%381 : memref<1x768xf32, #tpu.memory_space<vmem>>) target_semaphore(%383 : memref<!tpu.dma_semaphore, #tpu.memory_space<semaphore_mem>>)
      %c4_i32_227 = arith.constant 4 : i32
      %384 = arith.addi %351, %c4_i32_227 : i32
      %385 = arith.index_cast %384 : i32 to index
      %386 = memref.load %arg2[%385] : memref<64xi32, #tpu.memory_space<smem>>
      %c0_i32_228 = arith.constant 0 : i32
      %387 = tpu.memref_slice %arg4[%386, %c0_i32_228] : memref<128x768xf32, #tpu.memory_space<any>> -> memref<1x768xf32, #tpu.memory_space<any>>
      %c4_i32_229 = arith.constant 4 : i32
      %c0_i32_230 = arith.constant 0 : i32
      %388 = tpu.memref_slice %arg6[%350, %c4_i32_229, %c0_i32_230] : memref<2x64x768xf32, #tpu.memory_space<vmem>> -> memref<1x1x768xf32, #tpu.memory_space<vmem>>
      %389 = tpu.memref_squeeze %388 : memref<1x1x768xf32, #tpu.memory_space<vmem>> -> memref<1x768xf32, #tpu.memory_space<vmem>>
      %390 = tpu.memref_slice %arg7[%350] : memref<2x!tpu.dma_semaphore, #tpu.memory_space<semaphore_mem>> -> memref<1x!tpu.dma_semaphore, #tpu.memory_space<semaphore_mem>>
      %391 = tpu.memref_squeeze %390 : memref<1x!tpu.dma_semaphore, #tpu.memory_space<semaphore_mem>> -> memref<!tpu.dma_semaphore, #tpu.memory_space<semaphore_mem>>
      tpu.enqueue_dma source(%387 : memref<1x768xf32, #tpu.memory_space<any>>) target(%389 : memref<1x768xf32, #tpu.memory_space<vmem>>) target_semaphore(%391 : memref<!tpu.dma_semaphore, #tpu.memory_space<semaphore_mem>>)
      %c5_i32_231 = arith.constant 5 : i32
      %392 = arith.addi %351, %c5_i32_231 : i32
      %393 = arith.index_cast %392 : i32 to index
      %394 = memref.load %arg2[%393] : memref<64xi32, #tpu.memory_space<smem>>
      %c0_i32_232 = arith.constant 0 : i32
      %395 = tpu.memref_slice %arg4[%394, %c0_i32_232] : memref<128x768xf32, #tpu.memory_space<any>> -> memref<1x768xf32, #tpu.memory_space<any>>
      %c5_i32_233 = arith.constant 5 : i32
      %c0_i32_234 = arith.constant 0 : i32
      %396 = tpu.memref_slice %arg6[%350, %c5_i32_233, %c0_i32_234] : memref<2x64x768xf32, #tpu.memory_space<vmem>> -> memref<1x1x768xf32, #tpu.memory_space<vmem>>
      %397 = tpu.memref_squeeze %396 : memref<1x1x768xf32, #tpu.memory_space<vmem>> -> memref<1x768xf32, #tpu.memory_space<vmem>>
      %398 = tpu.memref_slice %arg7[%350] : memref<2x!tpu.dma_semaphore, #tpu.memory_space<semaphore_mem>> -> memref<1x!tpu.dma_semaphore, #tpu.memory_space<semaphore_mem>>
      %399 = tpu.memref_squeeze %398 : memref<1x!tpu.dma_semaphore, #tpu.memory_space<semaphore_mem>> -> memref<!tpu.dma_semaphore, #tpu.memory_space<semaphore_mem>>
      tpu.enqueue_dma source(%395 : memref<1x768xf32, #tpu.memory_space<any>>) target(%397 : memref<1x768xf32, #tpu.memory_space<vmem>>) target_semaphore(%399 : memref<!tpu.dma_semaphore, #tpu.memory_space<semaphore_mem>>)
      %c6_i32_235 = arith.constant 6 : i32
      %400 = arith.addi %351, %c6_i32_235 : i32
      %401 = arith.index_cast %400 : i32 to index
      %402 = memref.load %arg2[%401] : memref<64xi32, #tpu.memory_space<smem>>
      %c0_i32_236 = arith.constant 0 : i32
      %403 = tpu.memref_slice %arg4[%402, %c0_i32_236] : memref<128x768xf32, #tpu.memory_space<any>> -> memref<1x768xf32, #tpu.memory_space<any>>
      %c6_i32_237 = arith.constant 6 : i32
      %c0_i32_238 = arith.constant 0 : i32
      %404 = tpu.memref_slice %arg6[%350, %c6_i32_237, %c0_i32_238] : memref<2x64x768xf32, #tpu.memory_space<vmem>> -> memref<1x1x768xf32, #tpu.memory_space<vmem>>
      %405 = tpu.memref_squeeze %404 : memref<1x1x768xf32, #tpu.memory_space<vmem>> -> memref<1x768xf32, #tpu.memory_space<vmem>>
      %406 = tpu.memref_slice %arg7[%350] : memref<2x!tpu.dma_semaphore, #tpu.memory_space<semaphore_mem>> -> memref<1x!tpu.dma_semaphore, #tpu.memory_space<semaphore_mem>>
      %407 = tpu.memref_squeeze %406 : memref<1x!tpu.dma_semaphore, #tpu.memory_space<semaphore_mem>> -> memref<!tpu.dma_semaphore, #tpu.memory_space<semaphore_mem>>
      tpu.enqueue_dma source(%403 : memref<1x768xf32, #tpu.memory_space<any>>) target(%405 : memref<1x768xf32, #tpu.memory_space<vmem>>) target_semaphore(%407 : memref<!tpu.dma_semaphore, #tpu.memory_space<semaphore_mem>>)
      %c7_i32_239 = arith.constant 7 : i32
      %408 = arith.addi %351, %c7_i32_239 : i32
      %409 = arith.index_cast %408 : i32 to index
      %410 = memref.load %arg2[%409] : memref<64xi32, #tpu.memory_space<smem>>
      %c0_i32_240 = arith.constant 0 : i32
      %411 = tpu.memref_slice %arg4[%410, %c0_i32_240] : memref<128x768xf32, #tpu.memory_space<any>> -> memref<1x768xf32, #tpu.memory_space<any>>
      %c7_i32_241 = arith.constant 7 : i32
      %c0_i32_242 = arith.constant 0 : i32
      %412 = tpu.memref_slice %arg6[%350, %c7_i32_241, %c0_i32_242] : memref<2x64x768xf32, #tpu.memory_space<vmem>> -> memref<1x1x768xf32, #tpu.memory_space<vmem>>
      %413 = tpu.memref_squeeze %412 : memref<1x1x768xf32, #tpu.memory_space<vmem>> -> memref<1x768xf32, #tpu.memory_space<vmem>>
      %414 = tpu.memref_slice %arg7[%350] : memref<2x!tpu.dma_semaphore, #tpu.memory_space<semaphore_mem>> -> memref<1x!tpu.dma_semaphore, #tpu.memory_space<semaphore_mem>>
      %415 = tpu.memref_squeeze %414 : memref<1x!tpu.dma_semaphore, #tpu.memory_space<semaphore_mem>> -> memref<!tpu.dma_semaphore, #tpu.memory_space<semaphore_mem>>
      tpu.enqueue_dma source(%411 : memref<1x768xf32, #tpu.memory_space<any>>) target(%413 : memref<1x768xf32, #tpu.memory_space<vmem>>) target_semaphore(%415 : memref<!tpu.dma_semaphore, #tpu.memory_space<semaphore_mem>>)
      %c8_i32_243 = arith.constant 8 : i32
      %416 = arith.addi %351, %c8_i32_243 : i32
      %417 = arith.index_cast %416 : i32 to index
      %418 = memref.load %arg2[%417] : memref<64xi32, #tpu.memory_space<smem>>
      %c0_i32_244 = arith.constant 0 : i32
      %419 = tpu.memref_slice %arg4[%418, %c0_i32_244] : memref<128x768xf32, #tpu.memory_space<any>> -> memref<1x768xf32, #tpu.memory_space<any>>
      %c8_i32_245 = arith.constant 8 : i32
      %c0_i32_246 = arith.constant 0 : i32
      %420 = tpu.memref_slice %arg6[%350, %c8_i32_245, %c0_i32_246] : memref<2x64x768xf32, #tpu.memory_space<vmem>> -> memref<1x1x768xf32, #tpu.memory_space<vmem>>
      %421 = tpu.memref_squeeze %420 : memref<1x1x768xf32, #tpu.memory_space<vmem>> -> memref<1x768xf32, #tpu.memory_space<vmem>>
      %422 = tpu.memref_slice %arg7[%350] : memref<2x!tpu.dma_semaphore, #tpu.memory_space<semaphore_mem>> -> memref<1x!tpu.dma_semaphore, #tpu.memory_space<semaphore_mem>>
      %423 = tpu.memref_squeeze %422 : memref<1x!tpu.dma_semaphore, #tpu.memory_space<semaphore_mem>> -> memref<!tpu.dma_semaphore, #tpu.memory_space<semaphore_mem>>
      tpu.enqueue_dma source(%419 : memref<1x768xf32, #tpu.memory_space<any>>) target(%421 : memref<1x768xf32, #tpu.memory_space<vmem>>) target_semaphore(%423 : memref<!tpu.dma_semaphore, #tpu.memory_space<semaphore_mem>>)
      %c9_i32_247 = arith.constant 9 : i32
      %424 = arith.addi %351, %c9_i32_247 : i32
      %425 = arith.index_cast %424 : i32 to index
      %426 = memref.load %arg2[%425] : memref<64xi32, #tpu.memory_space<smem>>
      %c0_i32_248 = arith.constant 0 : i32
      %427 = tpu.memref_slice %arg4[%426, %c0_i32_248] : memref<128x768xf32, #tpu.memory_space<any>> -> memref<1x768xf32, #tpu.memory_space<any>>
      %c9_i32_249 = arith.constant 9 : i32
      %c0_i32_250 = arith.constant 0 : i32
      %428 = tpu.memref_slice %arg6[%350, %c9_i32_249, %c0_i32_250] : memref<2x64x768xf32, #tpu.memory_space<vmem>> -> memref<1x1x768xf32, #tpu.memory_space<vmem>>
      %429 = tpu.memref_squeeze %428 : memref<1x1x768xf32, #tpu.memory_space<vmem>> -> memref<1x768xf32, #tpu.memory_space<vmem>>
      %430 = tpu.memref_slice %arg7[%350] : memref<2x!tpu.dma_semaphore, #tpu.memory_space<semaphore_mem>> -> memref<1x!tpu.dma_semaphore, #tpu.memory_space<semaphore_mem>>
      %431 = tpu.memref_squeeze %430 : memref<1x!tpu.dma_semaphore, #tpu.memory_space<semaphore_mem>> -> memref<!tpu.dma_semaphore, #tpu.memory_space<semaphore_mem>>
      tpu.enqueue_dma source(%427 : memref<1x768xf32, #tpu.memory_space<any>>) target(%429 : memref<1x768xf32, #tpu.memory_space<vmem>>) target_semaphore(%431 : memref<!tpu.dma_semaphore, #tpu.memory_space<semaphore_mem>>)
      %c10_i32_251 = arith.constant 10 : i32
      %432 = arith.addi %351, %c10_i32_251 : i32
      %433 = arith.index_cast %432 : i32 to index
      %434 = memref.load %arg2[%433] : memref<64xi32, #tpu.memory_space<smem>>
      %c0_i32_252 = arith.constant 0 : i32
      %435 = tpu.memref_slice %arg4[%434, %c0_i32_252] : memref<128x768xf32, #tpu.memory_space<any>> -> memref<1x768xf32, #tpu.memory_space<any>>
      %c10_i32_253 = arith.constant 10 : i32
      %c0_i32_254 = arith.constant 0 : i32
      %436 = tpu.memref_slice %arg6[%350, %c10_i32_253, %c0_i32_254] : memref<2x64x768xf32, #tpu.memory_space<vmem>> -> memref<1x1x768xf32, #tpu.memory_space<vmem>>
      %437 = tpu.memref_squeeze %436 : memref<1x1x768xf32, #tpu.memory_space<vmem>> -> memref<1x768xf32, #tpu.memory_space<vmem>>
      %438 = tpu.memref_slice %arg7[%350] : memref<2x!tpu.dma_semaphore, #tpu.memory_space<semaphore_mem>> -> memref<1x!tpu.dma_semaphore, #tpu.memory_space<semaphore_mem>>
      %439 = tpu.memref_squeeze %438 : memref<1x!tpu.dma_semaphore, #tpu.memory_space<semaphore_mem>> -> memref<!tpu.dma_semaphore, #tpu.memory_space<semaphore_mem>>
      tpu.enqueue_dma source(%435 : memref<1x768xf32, #tpu.memory_space<any>>) target(%437 : memref<1x768xf32, #tpu.memory_space<vmem>>) target_semaphore(%439 : memref<!tpu.dma_semaphore, #tpu.memory_space<semaphore_mem>>)
      %c11_i32_255 = arith.constant 11 : i32
      %440 = arith.addi %351, %c11_i32_255 : i32
      %441 = arith.index_cast %440 : i32 to index
      %442 = memref.load %arg2[%441] : memref<64xi32, #tpu.memory_space<smem>>
      %c0_i32_256 = arith.constant 0 : i32
      %443 = tpu.memref_slice %arg4[%442, %c0_i32_256] : memref<128x768xf32, #tpu.memory_space<any>> -> memref<1x768xf32, #tpu.memory_space<any>>
      %c11_i32_257 = arith.constant 11 : i32
      %c0_i32_258 = arith.constant 0 : i32
      %444 = tpu.memref_slice %arg6[%350, %c11_i32_257, %c0_i32_258] : memref<2x64x768xf32, #tpu.memory_space<vmem>> -> memref<1x1x768xf32, #tpu.memory_space<vmem>>
      %445 = tpu.memref_squeeze %444 : memref<1x1x768xf32, #tpu.memory_space<vmem>> -> memref<1x768xf32, #tpu.memory_space<vmem>>
      %446 = tpu.memref_slice %arg7[%350] : memref<2x!tpu.dma_semaphore, #tpu.memory_space<semaphore_mem>> -> memref<1x!tpu.dma_semaphore, #tpu.memory_space<semaphore_mem>>
      %447 = tpu.memref_squeeze %446 : memref<1x!tpu.dma_semaphore, #tpu.memory_space<semaphore_mem>> -> memref<!tpu.dma_semaphore, #tpu.memory_space<semaphore_mem>>
      tpu.enqueue_dma source(%443 : memref<1x768xf32, #tpu.memory_space<any>>) target(%445 : memref<1x768xf32, #tpu.memory_space<vmem>>) target_semaphore(%447 : memref<!tpu.dma_semaphore, #tpu.memory_space<semaphore_mem>>)
      %c12_i32_259 = arith.constant 12 : i32
      %448 = arith.addi %351, %c12_i32_259 : i32
      %449 = arith.index_cast %448 : i32 to index
      %450 = memref.load %arg2[%449] : memref<64xi32, #tpu.memory_space<smem>>
      %c0_i32_260 = arith.constant 0 : i32
      %451 = tpu.memref_slice %arg4[%450, %c0_i32_260] : memref<128x768xf32, #tpu.memory_space<any>> -> memref<1x768xf32, #tpu.memory_space<any>>
      %c12_i32_261 = arith.constant 12 : i32
      %c0_i32_262 = arith.constant 0 : i32
      %452 = tpu.memref_slice %arg6[%350, %c12_i32_261, %c0_i32_262] : memref<2x64x768xf32, #tpu.memory_space<vmem>> -> memref<1x1x768xf32, #tpu.memory_space<vmem>>
      %453 = tpu.memref_squeeze %452 : memref<1x1x768xf32, #tpu.memory_space<vmem>> -> memref<1x768xf32, #tpu.memory_space<vmem>>
      %454 = tpu.memref_slice %arg7[%350] : memref<2x!tpu.dma_semaphore, #tpu.memory_space<semaphore_mem>> -> memref<1x!tpu.dma_semaphore, #tpu.memory_space<semaphore_mem>>
      %455 = tpu.memref_squeeze %454 : memref<1x!tpu.dma_semaphore, #tpu.memory_space<semaphore_mem>> -> memref<!tpu.dma_semaphore, #tpu.memory_space<semaphore_mem>>
      tpu.enqueue_dma source(%451 : memref<1x768xf32, #tpu.memory_space<any>>) target(%453 : memref<1x768xf32, #tpu.memory_space<vmem>>) target_semaphore(%455 : memref<!tpu.dma_semaphore, #tpu.memory_space<semaphore_mem>>)
      %c13_i32_263 = arith.constant 13 : i32
      %456 = arith.addi %351, %c13_i32_263 : i32
      %457 = arith.index_cast %456 : i32 to index
      %458 = memref.load %arg2[%457] : memref<64xi32, #tpu.memory_space<smem>>
      %c0_i32_264 = arith.constant 0 : i32
      %459 = tpu.memref_slice %arg4[%458, %c0_i32_264] : memref<128x768xf32, #tpu.memory_space<any>> -> memref<1x768xf32, #tpu.memory_space<any>>
      %c13_i32_265 = arith.constant 13 : i32
      %c0_i32_266 = arith.constant 0 : i32
      %460 = tpu.memref_slice %arg6[%350, %c13_i32_265, %c0_i32_266] : memref<2x64x768xf32, #tpu.memory_space<vmem>> -> memref<1x1x768xf32, #tpu.memory_space<vmem>>
      %461 = tpu.memref_squeeze %460 : memref<1x1x768xf32, #tpu.memory_space<vmem>> -> memref<1x768xf32, #tpu.memory_space<vmem>>
      %462 = tpu.memref_slice %arg7[%350] : memref<2x!tpu.dma_semaphore, #tpu.memory_space<semaphore_mem>> -> memref<1x!tpu.dma_semaphore, #tpu.memory_space<semaphore_mem>>
      %463 = tpu.memref_squeeze %462 : memref<1x!tpu.dma_semaphore, #tpu.memory_space<semaphore_mem>> -> memref<!tpu.dma_semaphore, #tpu.memory_space<semaphore_mem>>
      tpu.enqueue_dma source(%459 : memref<1x768xf32, #tpu.memory_space<any>>) target(%461 : memref<1x768xf32, #tpu.memory_space<vmem>>) target_semaphore(%463 : memref<!tpu.dma_semaphore, #tpu.memory_space<semaphore_mem>>)
      %c14_i32_267 = arith.constant 14 : i32
      %464 = arith.addi %351, %c14_i32_267 : i32
      %465 = arith.index_cast %464 : i32 to index
      %466 = memref.load %arg2[%465] : memref<64xi32, #tpu.memory_space<smem>>
      %c0_i32_268 = arith.constant 0 : i32
      %467 = tpu.memref_slice %arg4[%466, %c0_i32_268] : memref<128x768xf32, #tpu.memory_space<any>> -> memref<1x768xf32, #tpu.memory_space<any>>
      %c14_i32_269 = arith.constant 14 : i32
      %c0_i32_270 = arith.constant 0 : i32
      %468 = tpu.memref_slice %arg6[%350, %c14_i32_269, %c0_i32_270] : memref<2x64x768xf32, #tpu.memory_space<vmem>> -> memref<1x1x768xf32, #tpu.memory_space<vmem>>
      %469 = tpu.memref_squeeze %468 : memref<1x1x768xf32, #tpu.memory_space<vmem>> -> memref<1x768xf32, #tpu.memory_space<vmem>>
      %470 = tpu.memref_slice %arg7[%350] : memref<2x!tpu.dma_semaphore, #tpu.memory_space<semaphore_mem>> -> memref<1x!tpu.dma_semaphore, #tpu.memory_space<semaphore_mem>>
      %471 = tpu.memref_squeeze %470 : memref<1x!tpu.dma_semaphore, #tpu.memory_space<semaphore_mem>> -> memref<!tpu.dma_semaphore, #tpu.memory_space<semaphore_mem>>
      tpu.enqueue_dma source(%467 : memref<1x768xf32, #tpu.memory_space<any>>) target(%469 : memref<1x768xf32, #tpu.memory_space<vmem>>) target_semaphore(%471 : memref<!tpu.dma_semaphore, #tpu.memory_space<semaphore_mem>>)
      %c15_i32_271 = arith.constant 15 : i32
      %472 = arith.addi %351, %c15_i32_271 : i32
      %473 = arith.index_cast %472 : i32 to index
      %474 = memref.load %arg2[%473] : memref<64xi32, #tpu.memory_space<smem>>
      %c0_i32_272 = arith.constant 0 : i32
      %475 = tpu.memref_slice %arg4[%474, %c0_i32_272] : memref<128x768xf32, #tpu.memory_space<any>> -> memref<1x768xf32, #tpu.memory_space<any>>
      %c15_i32_273 = arith.constant 15 : i32
      %c0_i32_274 = arith.constant 0 : i32
      %476 = tpu.memref_slice %arg6[%350, %c15_i32_273, %c0_i32_274] : memref<2x64x768xf32, #tpu.memory_space<vmem>> -> memref<1x1x768xf32, #tpu.memory_space<vmem>>
      %477 = tpu.memref_squeeze %476 : memref<1x1x768xf32, #tpu.memory_space<vmem>> -> memref<1x768xf32, #tpu.memory_space<vmem>>
      %478 = tpu.memref_slice %arg7[%350] : memref<2x!tpu.dma_semaphore, #tpu.memory_space<semaphore_mem>> -> memref<1x!tpu.dma_semaphore, #tpu.memory_space<semaphore_mem>>
      %479 = tpu.memref_squeeze %478 : memref<1x!tpu.dma_semaphore, #tpu.memory_space<semaphore_mem>> -> memref<!tpu.dma_semaphore, #tpu.memory_space<semaphore_mem>>
      tpu.enqueue_dma source(%475 : memref<1x768xf32, #tpu.memory_space<any>>) target(%477 : memref<1x768xf32, #tpu.memory_space<vmem>>) target_semaphore(%479 : memref<!tpu.dma_semaphore, #tpu.memory_space<semaphore_mem>>)
      %c16_i32_275 = arith.constant 16 : i32
      %480 = arith.addi %351, %c16_i32_275 : i32
      %481 = arith.index_cast %480 : i32 to index
      %482 = memref.load %arg2[%481] : memref<64xi32, #tpu.memory_space<smem>>
      %c0_i32_276 = arith.constant 0 : i32
      %483 = tpu.memref_slice %arg4[%482, %c0_i32_276] : memref<128x768xf32, #tpu.memory_space<any>> -> memref<1x768xf32, #tpu.memory_space<any>>
      %c16_i32_277 = arith.constant 16 : i32
      %c0_i32_278 = arith.constant 0 : i32
      %484 = tpu.memref_slice %arg6[%350, %c16_i32_277, %c0_i32_278] : memref<2x64x768xf32, #tpu.memory_space<vmem>> -> memref<1x1x768xf32, #tpu.memory_space<vmem>>
      %485 = tpu.memref_squeeze %484 : memref<1x1x768xf32, #tpu.memory_space<vmem>> -> memref<1x768xf32, #tpu.memory_space<vmem>>
      %486 = tpu.memref_slice %arg7[%350] : memref<2x!tpu.dma_semaphore, #tpu.memory_space<semaphore_mem>> -> memref<1x!tpu.dma_semaphore, #tpu.memory_space<semaphore_mem>>
      %487 = tpu.memref_squeeze %486 : memref<1x!tpu.dma_semaphore, #tpu.memory_space<semaphore_mem>> -> memref<!tpu.dma_semaphore, #tpu.memory_space<semaphore_mem>>
      tpu.enqueue_dma source(%483 : memref<1x768xf32, #tpu.memory_space<any>>) target(%485 : memref<1x768xf32, #tpu.memory_space<vmem>>) target_semaphore(%487 : memref<!tpu.dma_semaphore, #tpu.memory_space<semaphore_mem>>)
      %c17_i32_279 = arith.constant 17 : i32
      %488 = arith.addi %351, %c17_i32_279 : i32
      %489 = arith.index_cast %488 : i32 to index
      %490 = memref.load %arg2[%489] : memref<64xi32, #tpu.memory_space<smem>>
      %c0_i32_280 = arith.constant 0 : i32
      %491 = tpu.memref_slice %arg4[%490, %c0_i32_280] : memref<128x768xf32, #tpu.memory_space<any>> -> memref<1x768xf32, #tpu.memory_space<any>>
      %c17_i32_281 = arith.constant 17 : i32
      %c0_i32_282 = arith.constant 0 : i32
      %492 = tpu.memref_slice %arg6[%350, %c17_i32_281, %c0_i32_282] : memref<2x64x768xf32, #tpu.memory_space<vmem>> -> memref<1x1x768xf32, #tpu.memory_space<vmem>>
      %493 = tpu.memref_squeeze %492 : memref<1x1x768xf32, #tpu.memory_space<vmem>> -> memref<1x768xf32, #tpu.memory_space<vmem>>
      %494 = tpu.memref_slice %arg7[%350] : memref<2x!tpu.dma_semaphore, #tpu.memory_space<semaphore_mem>> -> memref<1x!tpu.dma_semaphore, #tpu.memory_space<semaphore_mem>>
      %495 = tpu.memref_squeeze %494 : memref<1x!tpu.dma_semaphore, #tpu.memory_space<semaphore_mem>> -> memref<!tpu.dma_semaphore, #tpu.memory_space<semaphore_mem>>
      tpu.enqueue_dma source(%491 : memref<1x768xf32, #tpu.memory_space<any>>) target(%493 : memref<1x768xf32, #tpu.memory_space<vmem>>) target_semaphore(%495 : memref<!tpu.dma_semaphore, #tpu.memory_space<semaphore_mem>>)
      %c18_i32_283 = arith.constant 18 : i32
      %496 = arith.addi %351, %c18_i32_283 : i32
      %497 = arith.index_cast %496 : i32 to index
      %498 = memref.load %arg2[%497] : memref<64xi32, #tpu.memory_space<smem>>
      %c0_i32_284 = arith.constant 0 : i32
      %499 = tpu.memref_slice %arg4[%498, %c0_i32_284] : memref<128x768xf32, #tpu.memory_space<any>> -> memref<1x768xf32, #tpu.memory_space<any>>
      %c18_i32_285 = arith.constant 18 : i32
      %c0_i32_286 = arith.constant 0 : i32
      %500 = tpu.memref_slice %arg6[%350, %c18_i32_285, %c0_i32_286] : memref<2x64x768xf32, #tpu.memory_space<vmem>> -> memref<1x1x768xf32, #tpu.memory_space<vmem>>
      %501 = tpu.memref_squeeze %500 : memref<1x1x768xf32, #tpu.memory_space<vmem>> -> memref<1x768xf32, #tpu.memory_space<vmem>>
      %502 = tpu.memref_slice %arg7[%350] : memref<2x!tpu.dma_semaphore, #tpu.memory_space<semaphore_mem>> -> memref<1x!tpu.dma_semaphore, #tpu.memory_space<semaphore_mem>>
      %503 = tpu.memref_squeeze %502 : memref<1x!tpu.dma_semaphore, #tpu.memory_space<semaphore_mem>> -> memref<!tpu.dma_semaphore, #tpu.memory_space<semaphore_mem>>
      tpu.enqueue_dma source(%499 : memref<1x768xf32, #tpu.memory_space<any>>) target(%501 : memref<1x768xf32, #tpu.memory_space<vmem>>) target_semaphore(%503 : memref<!tpu.dma_semaphore, #tpu.memory_space<semaphore_mem>>)
      %c19_i32_287 = arith.constant 19 : i32
      %504 = arith.addi %351, %c19_i32_287 : i32
      %505 = arith.index_cast %504 : i32 to index
      %506 = memref.load %arg2[%505] : memref<64xi32, #tpu.memory_space<smem>>
      %c0_i32_288 = arith.constant 0 : i32
      %507 = tpu.memref_slice %arg4[%506, %c0_i32_288] : memref<128x768xf32, #tpu.memory_space<any>> -> memref<1x768xf32, #tpu.memory_space<any>>
      %c19_i32_289 = arith.constant 19 : i32
      %c0_i32_290 = arith.constant 0 : i32
      %508 = tpu.memref_slice %arg6[%350, %c19_i32_289, %c0_i32_290] : memref<2x64x768xf32, #tpu.memory_space<vmem>> -> memref<1x1x768xf32, #tpu.memory_space<vmem>>
      %509 = tpu.memref_squeeze %508 : memref<1x1x768xf32, #tpu.memory_space<vmem>> -> memref<1x768xf32, #tpu.memory_space<vmem>>
      %510 = tpu.memref_slice %arg7[%350] : memref<2x!tpu.dma_semaphore, #tpu.memory_space<semaphore_mem>> -> memref<1x!tpu.dma_semaphore, #tpu.memory_space<semaphore_mem>>
      %511 = tpu.memref_squeeze %510 : memref<1x!tpu.dma_semaphore, #tpu.memory_space<semaphore_mem>> -> memref<!tpu.dma_semaphore, #tpu.memory_space<semaphore_mem>>
      tpu.enqueue_dma source(%507 : memref<1x768xf32, #tpu.memory_space<any>>) target(%509 : memref<1x768xf32, #tpu.memory_space<vmem>>) target_semaphore(%511 : memref<!tpu.dma_semaphore, #tpu.memory_space<semaphore_mem>>)
      %c20_i32_291 = arith.constant 20 : i32
      %512 = arith.addi %351, %c20_i32_291 : i32
      %513 = arith.index_cast %512 : i32 to index
      %514 = memref.load %arg2[%513] : memref<64xi32, #tpu.memory_space<smem>>
      %c0_i32_292 = arith.constant 0 : i32
      %515 = tpu.memref_slice %arg4[%514, %c0_i32_292] : memref<128x768xf32, #tpu.memory_space<any>> -> memref<1x768xf32, #tpu.memory_space<any>>
      %c20_i32_293 = arith.constant 20 : i32
      %c0_i32_294 = arith.constant 0 : i32
      %516 = tpu.memref_slice %arg6[%350, %c20_i32_293, %c0_i32_294] : memref<2x64x768xf32, #tpu.memory_space<vmem>> -> memref<1x1x768xf32, #tpu.memory_space<vmem>>
      %517 = tpu.memref_squeeze %516 : memref<1x1x768xf32, #tpu.memory_space<vmem>> -> memref<1x768xf32, #tpu.memory_space<vmem>>
      %518 = tpu.memref_slice %arg7[%350] : memref<2x!tpu.dma_semaphore, #tpu.memory_space<semaphore_mem>> -> memref<1x!tpu.dma_semaphore, #tpu.memory_space<semaphore_mem>>
      %519 = tpu.memref_squeeze %518 : memref<1x!tpu.dma_semaphore, #tpu.memory_space<semaphore_mem>> -> memref<!tpu.dma_semaphore, #tpu.memory_space<semaphore_mem>>
      tpu.enqueue_dma source(%515 : memref<1x768xf32, #tpu.memory_space<any>>) target(%517 : memref<1x768xf32, #tpu.memory_space<vmem>>) target_semaphore(%519 : memref<!tpu.dma_semaphore, #tpu.memory_space<semaphore_mem>>)
      %c21_i32_295 = arith.constant 21 : i32
      %520 = arith.addi %351, %c21_i32_295 : i32
      %521 = arith.index_cast %520 : i32 to index
      %522 = memref.load %arg2[%521] : memref<64xi32, #tpu.memory_space<smem>>
      %c0_i32_296 = arith.constant 0 : i32
      %523 = tpu.memref_slice %arg4[%522, %c0_i32_296] : memref<128x768xf32, #tpu.memory_space<any>> -> memref<1x768xf32, #tpu.memory_space<any>>
      %c21_i32_297 = arith.constant 21 : i32
      %c0_i32_298 = arith.constant 0 : i32
      %524 = tpu.memref_slice %arg6[%350, %c21_i32_297, %c0_i32_298] : memref<2x64x768xf32, #tpu.memory_space<vmem>> -> memref<1x1x768xf32, #tpu.memory_space<vmem>>
      %525 = tpu.memref_squeeze %524 : memref<1x1x768xf32, #tpu.memory_space<vmem>> -> memref<1x768xf32, #tpu.memory_space<vmem>>
      %526 = tpu.memref_slice %arg7[%350] : memref<2x!tpu.dma_semaphore, #tpu.memory_space<semaphore_mem>> -> memref<1x!tpu.dma_semaphore, #tpu.memory_space<semaphore_mem>>
      %527 = tpu.memref_squeeze %526 : memref<1x!tpu.dma_semaphore, #tpu.memory_space<semaphore_mem>> -> memref<!tpu.dma_semaphore, #tpu.memory_space<semaphore_mem>>
      tpu.enqueue_dma source(%523 : memref<1x768xf32, #tpu.memory_space<any>>) target(%525 : memref<1x768xf32, #tpu.memory_space<vmem>>) target_semaphore(%527 : memref<!tpu.dma_semaphore, #tpu.memory_space<semaphore_mem>>)
      %c22_i32_299 = arith.constant 22 : i32
      %528 = arith.addi %351, %c22_i32_299 : i32
      %529 = arith.index_cast %528 : i32 to index
      %530 = memref.load %arg2[%529] : memref<64xi32, #tpu.memory_space<smem>>
      %c0_i32_300 = arith.constant 0 : i32
      %531 = tpu.memref_slice %arg4[%530, %c0_i32_300] : memref<128x768xf32, #tpu.memory_space<any>> -> memref<1x768xf32, #tpu.memory_space<any>>
      %c22_i32_301 = arith.constant 22 : i32
      %c0_i32_302 = arith.constant 0 : i32
      %532 = tpu.memref_slice %arg6[%350, %c22_i32_301, %c0_i32_302] : memref<2x64x768xf32, #tpu.memory_space<vmem>> -> memref<1x1x768xf32, #tpu.memory_space<vmem>>
      %533 = tpu.memref_squeeze %532 : memref<1x1x768xf32, #tpu.memory_space<vmem>> -> memref<1x768xf32, #tpu.memory_space<vmem>>
      %534 = tpu.memref_slice %arg7[%350] : memref<2x!tpu.dma_semaphore, #tpu.memory_space<semaphore_mem>> -> memref<1x!tpu.dma_semaphore, #tpu.memory_space<semaphore_mem>>
      %535 = tpu.memref_squeeze %534 : memref<1x!tpu.dma_semaphore, #tpu.memory_space<semaphore_mem>> -> memref<!tpu.dma_semaphore, #tpu.memory_space<semaphore_mem>>
      tpu.enqueue_dma source(%531 : memref<1x768xf32, #tpu.memory_space<any>>) target(%533 : memref<1x768xf32, #tpu.memory_space<vmem>>) target_semaphore(%535 : memref<!tpu.dma_semaphore, #tpu.memory_space<semaphore_mem>>)
      %c23_i32_303 = arith.constant 23 : i32
      %536 = arith.addi %351, %c23_i32_303 : i32
      %537 = arith.index_cast %536 : i32 to index
      %538 = memref.load %arg2[%537] : memref<64xi32, #tpu.memory_space<smem>>
      %c0_i32_304 = arith.constant 0 : i32
      %539 = tpu.memref_slice %arg4[%538, %c0_i32_304] : memref<128x768xf32, #tpu.memory_space<any>> -> memref<1x768xf32, #tpu.memory_space<any>>
      %c23_i32_305 = arith.constant 23 : i32
      %c0_i32_306 = arith.constant 0 : i32
      %540 = tpu.memref_slice %arg6[%350, %c23_i32_305, %c0_i32_306] : memref<2x64x768xf32, #tpu.memory_space<vmem>> -> memref<1x1x768xf32, #tpu.memory_space<vmem>>
      %541 = tpu.memref_squeeze %540 : memref<1x1x768xf32, #tpu.memory_space<vmem>> -> memref<1x768xf32, #tpu.memory_space<vmem>>
      %542 = tpu.memref_slice %arg7[%350] : memref<2x!tpu.dma_semaphore, #tpu.memory_space<semaphore_mem>> -> memref<1x!tpu.dma_semaphore, #tpu.memory_space<semaphore_mem>>
      %543 = tpu.memref_squeeze %542 : memref<1x!tpu.dma_semaphore, #tpu.memory_space<semaphore_mem>> -> memref<!tpu.dma_semaphore, #tpu.memory_space<semaphore_mem>>
      tpu.enqueue_dma source(%539 : memref<1x768xf32, #tpu.memory_space<any>>) target(%541 : memref<1x768xf32, #tpu.memory_space<vmem>>) target_semaphore(%543 : memref<!tpu.dma_semaphore, #tpu.memory_space<semaphore_mem>>)
      %c24_i32_307 = arith.constant 24 : i32
      %544 = arith.addi %351, %c24_i32_307 : i32
      %545 = arith.index_cast %544 : i32 to index
      %546 = memref.load %arg2[%545] : memref<64xi32, #tpu.memory_space<smem>>
      %c0_i32_308 = arith.constant 0 : i32
      %547 = tpu.memref_slice %arg4[%546, %c0_i32_308] : memref<128x768xf32, #tpu.memory_space<any>> -> memref<1x768xf32, #tpu.memory_space<any>>
      %c24_i32_309 = arith.constant 24 : i32
      %c0_i32_310 = arith.constant 0 : i32
      %548 = tpu.memref_slice %arg6[%350, %c24_i32_309, %c0_i32_310] : memref<2x64x768xf32, #tpu.memory_space<vmem>> -> memref<1x1x768xf32, #tpu.memory_space<vmem>>
      %549 = tpu.memref_squeeze %548 : memref<1x1x768xf32, #tpu.memory_space<vmem>> -> memref<1x768xf32, #tpu.memory_space<vmem>>
      %550 = tpu.memref_slice %arg7[%350] : memref<2x!tpu.dma_semaphore, #tpu.memory_space<semaphore_mem>> -> memref<1x!tpu.dma_semaphore, #tpu.memory_space<semaphore_mem>>
      %551 = tpu.memref_squeeze %550 : memref<1x!tpu.dma_semaphore, #tpu.memory_space<semaphore_mem>> -> memref<!tpu.dma_semaphore, #tpu.memory_space<semaphore_mem>>
      tpu.enqueue_dma source(%547 : memref<1x768xf32, #tpu.memory_space<any>>) target(%549 : memref<1x768xf32, #tpu.memory_space<vmem>>) target_semaphore(%551 : memref<!tpu.dma_semaphore, #tpu.memory_space<semaphore_mem>>)
      %c25_i32_311 = arith.constant 25 : i32
      %552 = arith.addi %351, %c25_i32_311 : i32
      %553 = arith.index_cast %552 : i32 to index
      %554 = memref.load %arg2[%553] : memref<64xi32, #tpu.memory_space<smem>>
      %c0_i32_312 = arith.constant 0 : i32
      %555 = tpu.memref_slice %arg4[%554, %c0_i32_312] : memref<128x768xf32, #tpu.memory_space<any>> -> memref<1x768xf32, #tpu.memory_space<any>>
      %c25_i32_313 = arith.constant 25 : i32
      %c0_i32_314 = arith.constant 0 : i32
      %556 = tpu.memref_slice %arg6[%350, %c25_i32_313, %c0_i32_314] : memref<2x64x768xf32, #tpu.memory_space<vmem>> -> memref<1x1x768xf32, #tpu.memory_space<vmem>>
      %557 = tpu.memref_squeeze %556 : memref<1x1x768xf32, #tpu.memory_space<vmem>> -> memref<1x768xf32, #tpu.memory_space<vmem>>
      %558 = tpu.memref_slice %arg7[%350] : memref<2x!tpu.dma_semaphore, #tpu.memory_space<semaphore_mem>> -> memref<1x!tpu.dma_semaphore, #tpu.memory_space<semaphore_mem>>
      %559 = tpu.memref_squeeze %558 : memref<1x!tpu.dma_semaphore, #tpu.memory_space<semaphore_mem>> -> memref<!tpu.dma_semaphore, #tpu.memory_space<semaphore_mem>>
      tpu.enqueue_dma source(%555 : memref<1x768xf32, #tpu.memory_space<any>>) target(%557 : memref<1x768xf32, #tpu.memory_space<vmem>>) target_semaphore(%559 : memref<!tpu.dma_semaphore, #tpu.memory_space<semaphore_mem>>)
      %c26_i32_315 = arith.constant 26 : i32
      %560 = arith.addi %351, %c26_i32_315 : i32
      %561 = arith.index_cast %560 : i32 to index
      %562 = memref.load %arg2[%561] : memref<64xi32, #tpu.memory_space<smem>>
      %c0_i32_316 = arith.constant 0 : i32
      %563 = tpu.memref_slice %arg4[%562, %c0_i32_316] : memref<128x768xf32, #tpu.memory_space<any>> -> memref<1x768xf32, #tpu.memory_space<any>>
      %c26_i32_317 = arith.constant 26 : i32
      %c0_i32_318 = arith.constant 0 : i32
      %564 = tpu.memref_slice %arg6[%350, %c26_i32_317, %c0_i32_318] : memref<2x64x768xf32, #tpu.memory_space<vmem>> -> memref<1x1x768xf32, #tpu.memory_space<vmem>>
      %565 = tpu.memref_squeeze %564 : memref<1x1x768xf32, #tpu.memory_space<vmem>> -> memref<1x768xf32, #tpu.memory_space<vmem>>
      %566 = tpu.memref_slice %arg7[%350] : memref<2x!tpu.dma_semaphore, #tpu.memory_space<semaphore_mem>> -> memref<1x!tpu.dma_semaphore, #tpu.memory_space<semaphore_mem>>
      %567 = tpu.memref_squeeze %566 : memref<1x!tpu.dma_semaphore, #tpu.memory_space<semaphore_mem>> -> memref<!tpu.dma_semaphore, #tpu.memory_space<semaphore_mem>>
      tpu.enqueue_dma source(%563 : memref<1x768xf32, #tpu.memory_space<any>>) target(%565 : memref<1x768xf32, #tpu.memory_space<vmem>>) target_semaphore(%567 : memref<!tpu.dma_semaphore, #tpu.memory_space<semaphore_mem>>)
      %c27_i32_319 = arith.constant 27 : i32
      %568 = arith.addi %351, %c27_i32_319 : i32
      %569 = arith.index_cast %568 : i32 to index
      %570 = memref.load %arg2[%569] : memref<64xi32, #tpu.memory_space<smem>>
      %c0_i32_320 = arith.constant 0 : i32
      %571 = tpu.memref_slice %arg4[%570, %c0_i32_320] : memref<128x768xf32, #tpu.memory_space<any>> -> memref<1x768xf32, #tpu.memory_space<any>>
      %c27_i32_321 = arith.constant 27 : i32
      %c0_i32_322 = arith.constant 0 : i32
      %572 = tpu.memref_slice %arg6[%350, %c27_i32_321, %c0_i32_322] : memref<2x64x768xf32, #tpu.memory_space<vmem>> -> memref<1x1x768xf32, #tpu.memory_space<vmem>>
      %573 = tpu.memref_squeeze %572 : memref<1x1x768xf32, #tpu.memory_space<vmem>> -> memref<1x768xf32, #tpu.memory_space<vmem>>
      %574 = tpu.memref_slice %arg7[%350] : memref<2x!tpu.dma_semaphore, #tpu.memory_space<semaphore_mem>> -> memref<1x!tpu.dma_semaphore, #tpu.memory_space<semaphore_mem>>
      %575 = tpu.memref_squeeze %574 : memref<1x!tpu.dma_semaphore, #tpu.memory_space<semaphore_mem>> -> memref<!tpu.dma_semaphore, #tpu.memory_space<semaphore_mem>>
      tpu.enqueue_dma source(%571 : memref<1x768xf32, #tpu.memory_space<any>>) target(%573 : memref<1x768xf32, #tpu.memory_space<vmem>>) target_semaphore(%575 : memref<!tpu.dma_semaphore, #tpu.memory_space<semaphore_mem>>)
      %c28_i32_323 = arith.constant 28 : i32
      %576 = arith.addi %351, %c28_i32_323 : i32
      %577 = arith.index_cast %576 : i32 to index
      %578 = memref.load %arg2[%577] : memref<64xi32, #tpu.memory_space<smem>>
      %c0_i32_324 = arith.constant 0 : i32
      %579 = tpu.memref_slice %arg4[%578, %c0_i32_324] : memref<128x768xf32, #tpu.memory_space<any>> -> memref<1x768xf32, #tpu.memory_space<any>>
      %c28_i32_325 = arith.constant 28 : i32
      %c0_i32_326 = arith.constant 0 : i32
      %580 = tpu.memref_slice %arg6[%350, %c28_i32_325, %c0_i32_326] : memref<2x64x768xf32, #tpu.memory_space<vmem>> -> memref<1x1x768xf32, #tpu.memory_space<vmem>>
      %581 = tpu.memref_squeeze %580 : memref<1x1x768xf32, #tpu.memory_space<vmem>> -> memref<1x768xf32, #tpu.memory_space<vmem>>
      %582 = tpu.memref_slice %arg7[%350] : memref<2x!tpu.dma_semaphore, #tpu.memory_space<semaphore_mem>> -> memref<1x!tpu.dma_semaphore, #tpu.memory_space<semaphore_mem>>
      %583 = tpu.memref_squeeze %582 : memref<1x!tpu.dma_semaphore, #tpu.memory_space<semaphore_mem>> -> memref<!tpu.dma_semaphore, #tpu.memory_space<semaphore_mem>>
      tpu.enqueue_dma source(%579 : memref<1x768xf32, #tpu.memory_space<any>>) target(%581 : memref<1x768xf32, #tpu.memory_space<vmem>>) target_semaphore(%583 : memref<!tpu.dma_semaphore, #tpu.memory_space<semaphore_mem>>)
      %c29_i32_327 = arith.constant 29 : i32
      %584 = arith.addi %351, %c29_i32_327 : i32
      %585 = arith.index_cast %584 : i32 to index
      %586 = memref.load %arg2[%585] : memref<64xi32, #tpu.memory_space<smem>>
      %c0_i32_328 = arith.constant 0 : i32
      %587 = tpu.memref_slice %arg4[%586, %c0_i32_328] : memref<128x768xf32, #tpu.memory_space<any>> -> memref<1x768xf32, #tpu.memory_space<any>>
      %c29_i32_329 = arith.constant 29 : i32
      %c0_i32_330 = arith.constant 0 : i32
      %588 = tpu.memref_slice %arg6[%350, %c29_i32_329, %c0_i32_330] : memref<2x64x768xf32, #tpu.memory_space<vmem>> -> memref<1x1x768xf32, #tpu.memory_space<vmem>>
      %589 = tpu.memref_squeeze %588 : memref<1x1x768xf32, #tpu.memory_space<vmem>> -> memref<1x768xf32, #tpu.memory_space<vmem>>
      %590 = tpu.memref_slice %arg7[%350] : memref<2x!tpu.dma_semaphore, #tpu.memory_space<semaphore_mem>> -> memref<1x!tpu.dma_semaphore, #tpu.memory_space<semaphore_mem>>
      %591 = tpu.memref_squeeze %590 : memref<1x!tpu.dma_semaphore, #tpu.memory_space<semaphore_mem>> -> memref<!tpu.dma_semaphore, #tpu.memory_space<semaphore_mem>>
      tpu.enqueue_dma source(%587 : memref<1x768xf32, #tpu.memory_space<any>>) target(%589 : memref<1x768xf32, #tpu.memory_space<vmem>>) target_semaphore(%591 : memref<!tpu.dma_semaphore, #tpu.memory_space<semaphore_mem>>)
      %c30_i32_331 = arith.constant 30 : i32
      %592 = arith.addi %351, %c30_i32_331 : i32
      %593 = arith.index_cast %592 : i32 to index
      %594 = memref.load %arg2[%593] : memref<64xi32, #tpu.memory_space<smem>>
      %c0_i32_332 = arith.constant 0 : i32
      %595 = tpu.memref_slice %arg4[%594, %c0_i32_332] : memref<128x768xf32, #tpu.memory_space<any>> -> memref<1x768xf32, #tpu.memory_space<any>>
      %c30_i32_333 = arith.constant 30 : i32
      %c0_i32_334 = arith.constant 0 : i32
      %596 = tpu.memref_slice %arg6[%350, %c30_i32_333, %c0_i32_334] : memref<2x64x768xf32, #tpu.memory_space<vmem>> -> memref<1x1x768xf32, #tpu.memory_space<vmem>>
      %597 = tpu.memref_squeeze %596 : memref<1x1x768xf32, #tpu.memory_space<vmem>> -> memref<1x768xf32, #tpu.memory_space<vmem>>
      %598 = tpu.memref_slice %arg7[%350] : memref<2x!tpu.dma_semaphore, #tpu.memory_space<semaphore_mem>> -> memref<1x!tpu.dma_semaphore, #tpu.memory_space<semaphore_mem>>
      %599 = tpu.memref_squeeze %598 : memref<1x!tpu.dma_semaphore, #tpu.memory_space<semaphore_mem>> -> memref<!tpu.dma_semaphore, #tpu.memory_space<semaphore_mem>>
      tpu.enqueue_dma source(%595 : memref<1x768xf32, #tpu.memory_space<any>>) target(%597 : memref<1x768xf32, #tpu.memory_space<vmem>>) target_semaphore(%599 : memref<!tpu.dma_semaphore, #tpu.memory_space<semaphore_mem>>)
      %c31_i32_335 = arith.constant 31 : i32
      %600 = arith.addi %351, %c31_i32_335 : i32
      %601 = arith.index_cast %600 : i32 to index
      %602 = memref.load %arg2[%601] : memref<64xi32, #tpu.memory_space<smem>>
      %c0_i32_336 = arith.constant 0 : i32
      %603 = tpu.memref_slice %arg4[%602, %c0_i32_336] : memref<128x768xf32, #tpu.memory_space<any>> -> memref<1x768xf32, #tpu.memory_space<any>>
      %c31_i32_337 = arith.constant 31 : i32
      %c0_i32_338 = arith.constant 0 : i32
      %604 = tpu.memref_slice %arg6[%350, %c31_i32_337, %c0_i32_338] : memref<2x64x768xf32, #tpu.memory_space<vmem>> -> memref<1x1x768xf32, #tpu.memory_space<vmem>>
      %605 = tpu.memref_squeeze %604 : memref<1x1x768xf32, #tpu.memory_space<vmem>> -> memref<1x768xf32, #tpu.memory_space<vmem>>
      %606 = tpu.memref_slice %arg7[%350] : memref<2x!tpu.dma_semaphore, #tpu.memory_space<semaphore_mem>> -> memref<1x!tpu.dma_semaphore, #tpu.memory_space<semaphore_mem>>
      %607 = tpu.memref_squeeze %606 : memref<1x!tpu.dma_semaphore, #tpu.memory_space<semaphore_mem>> -> memref<!tpu.dma_semaphore, #tpu.memory_space<semaphore_mem>>
      tpu.enqueue_dma source(%603 : memref<1x768xf32, #tpu.memory_space<any>>) target(%605 : memref<1x768xf32, #tpu.memory_space<vmem>>) target_semaphore(%607 : memref<!tpu.dma_semaphore, #tpu.memory_space<semaphore_mem>>)
      %c32_i32_339 = arith.constant 32 : i32
      %608 = arith.addi %351, %c32_i32_339 : i32
      %609 = arith.index_cast %608 : i32 to index
      %610 = memref.load %arg2[%609] : memref<64xi32, #tpu.memory_space<smem>>
      %c0_i32_340 = arith.constant 0 : i32
      %611 = tpu.memref_slice %arg4[%610, %c0_i32_340] : memref<128x768xf32, #tpu.memory_space<any>> -> memref<1x768xf32, #tpu.memory_space<any>>
      %c32_i32_341 = arith.constant 32 : i32
      %c0_i32_342 = arith.constant 0 : i32
      %612 = tpu.memref_slice %arg6[%350, %c32_i32_341, %c0_i32_342] : memref<2x64x768xf32, #tpu.memory_space<vmem>> -> memref<1x1x768xf32, #tpu.memory_space<vmem>>
      %613 = tpu.memref_squeeze %612 : memref<1x1x768xf32, #tpu.memory_space<vmem>> -> memref<1x768xf32, #tpu.memory_space<vmem>>
      %614 = tpu.memref_slice %arg7[%350] : memref<2x!tpu.dma_semaphore, #tpu.memory_space<semaphore_mem>> -> memref<1x!tpu.dma_semaphore, #tpu.memory_space<semaphore_mem>>
      %615 = tpu.memref_squeeze %614 : memref<1x!tpu.dma_semaphore, #tpu.memory_space<semaphore_mem>> -> memref<!tpu.dma_semaphore, #tpu.memory_space<semaphore_mem>>
      tpu.enqueue_dma source(%611 : memref<1x768xf32, #tpu.memory_space<any>>) target(%613 : memref<1x768xf32, #tpu.memory_space<vmem>>) target_semaphore(%615 : memref<!tpu.dma_semaphore, #tpu.memory_space<semaphore_mem>>)
      %c33_i32_343 = arith.constant 33 : i32
      %616 = arith.addi %351, %c33_i32_343 : i32
      %617 = arith.index_cast %616 : i32 to index
      %618 = memref.load %arg2[%617] : memref<64xi32, #tpu.memory_space<smem>>
      %c0_i32_344 = arith.constant 0 : i32
      %619 = tpu.memref_slice %arg4[%618, %c0_i32_344] : memref<128x768xf32, #tpu.memory_space<any>> -> memref<1x768xf32, #tpu.memory_space<any>>
      %c33_i32_345 = arith.constant 33 : i32
      %c0_i32_346 = arith.constant 0 : i32
      %620 = tpu.memref_slice %arg6[%350, %c33_i32_345, %c0_i32_346] : memref<2x64x768xf32, #tpu.memory_space<vmem>> -> memref<1x1x768xf32, #tpu.memory_space<vmem>>
      %621 = tpu.memref_squeeze %620 : memref<1x1x768xf32, #tpu.memory_space<vmem>> -> memref<1x768xf32, #tpu.memory_space<vmem>>
      %622 = tpu.memref_slice %arg7[%350] : memref<2x!tpu.dma_semaphore, #tpu.memory_space<semaphore_mem>> -> memref<1x!tpu.dma_semaphore, #tpu.memory_space<semaphore_mem>>
      %623 = tpu.memref_squeeze %622 : memref<1x!tpu.dma_semaphore, #tpu.memory_space<semaphore_mem>> -> memref<!tpu.dma_semaphore, #tpu.memory_space<semaphore_mem>>
      tpu.enqueue_dma source(%619 : memref<1x768xf32, #tpu.memory_space<any>>) target(%621 : memref<1x768xf32, #tpu.memory_space<vmem>>) target_semaphore(%623 : memref<!tpu.dma_semaphore, #tpu.memory_space<semaphore_mem>>)
      %c34_i32_347 = arith.constant 34 : i32
      %624 = arith.addi %351, %c34_i32_347 : i32
      %625 = arith.index_cast %624 : i32 to index
      %626 = memref.load %arg2[%625] : memref<64xi32, #tpu.memory_space<smem>>
      %c0_i32_348 = arith.constant 0 : i32
      %627 = tpu.memref_slice %arg4[%626, %c0_i32_348] : memref<128x768xf32, #tpu.memory_space<any>> -> memref<1x768xf32, #tpu.memory_space<any>>
      %c34_i32_349 = arith.constant 34 : i32
      %c0_i32_350 = arith.constant 0 : i32
      %628 = tpu.memref_slice %arg6[%350, %c34_i32_349, %c0_i32_350] : memref<2x64x768xf32, #tpu.memory_space<vmem>> -> memref<1x1x768xf32, #tpu.memory_space<vmem>>
      %629 = tpu.memref_squeeze %628 : memref<1x1x768xf32, #tpu.memory_space<vmem>> -> memref<1x768xf32, #tpu.memory_space<vmem>>
      %630 = tpu.memref_slice %arg7[%350] : memref<2x!tpu.dma_semaphore, #tpu.memory_space<semaphore_mem>> -> memref<1x!tpu.dma_semaphore, #tpu.memory_space<semaphore_mem>>
      %631 = tpu.memref_squeeze %630 : memref<1x!tpu.dma_semaphore, #tpu.memory_space<semaphore_mem>> -> memref<!tpu.dma_semaphore, #tpu.memory_space<semaphore_mem>>
      tpu.enqueue_dma source(%627 : memref<1x768xf32, #tpu.memory_space<any>>) target(%629 : memref<1x768xf32, #tpu.memory_space<vmem>>) target_semaphore(%631 : memref<!tpu.dma_semaphore, #tpu.memory_space<semaphore_mem>>)
      %c35_i32_351 = arith.constant 35 : i32
      %632 = arith.addi %351, %c35_i32_351 : i32
      %633 = arith.index_cast %632 : i32 to index
      %634 = memref.load %arg2[%633] : memref<64xi32, #tpu.memory_space<smem>>
      %c0_i32_352 = arith.constant 0 : i32
      %635 = tpu.memref_slice %arg4[%634, %c0_i32_352] : memref<128x768xf32, #tpu.memory_space<any>> -> memref<1x768xf32, #tpu.memory_space<any>>
      %c35_i32_353 = arith.constant 35 : i32
      %c0_i32_354 = arith.constant 0 : i32
      %636 = tpu.memref_slice %arg6[%350, %c35_i32_353, %c0_i32_354] : memref<2x64x768xf32, #tpu.memory_space<vmem>> -> memref<1x1x768xf32, #tpu.memory_space<vmem>>
      %637 = tpu.memref_squeeze %636 : memref<1x1x768xf32, #tpu.memory_space<vmem>> -> memref<1x768xf32, #tpu.memory_space<vmem>>
      %638 = tpu.memref_slice %arg7[%350] : memref<2x!tpu.dma_semaphore, #tpu.memory_space<semaphore_mem>> -> memref<1x!tpu.dma_semaphore, #tpu.memory_space<semaphore_mem>>
      %639 = tpu.memref_squeeze %638 : memref<1x!tpu.dma_semaphore, #tpu.memory_space<semaphore_mem>> -> memref<!tpu.dma_semaphore, #tpu.memory_space<semaphore_mem>>
      tpu.enqueue_dma source(%635 : memref<1x768xf32, #tpu.memory_space<any>>) target(%637 : memref<1x768xf32, #tpu.memory_space<vmem>>) target_semaphore(%639 : memref<!tpu.dma_semaphore, #tpu.memory_space<semaphore_mem>>)
      %c36_i32_355 = arith.constant 36 : i32
      %640 = arith.addi %351, %c36_i32_355 : i32
      %641 = arith.index_cast %640 : i32 to index
      %642 = memref.load %arg2[%641] : memref<64xi32, #tpu.memory_space<smem>>
      %c0_i32_356 = arith.constant 0 : i32
      %643 = tpu.memref_slice %arg4[%642, %c0_i32_356] : memref<128x768xf32, #tpu.memory_space<any>> -> memref<1x768xf32, #tpu.memory_space<any>>
      %c36_i32_357 = arith.constant 36 : i32
      %c0_i32_358 = arith.constant 0 : i32
      %644 = tpu.memref_slice %arg6[%350, %c36_i32_357, %c0_i32_358] : memref<2x64x768xf32, #tpu.memory_space<vmem>> -> memref<1x1x768xf32, #tpu.memory_space<vmem>>
      %645 = tpu.memref_squeeze %644 : memref<1x1x768xf32, #tpu.memory_space<vmem>> -> memref<1x768xf32, #tpu.memory_space<vmem>>
      %646 = tpu.memref_slice %arg7[%350] : memref<2x!tpu.dma_semaphore, #tpu.memory_space<semaphore_mem>> -> memref<1x!tpu.dma_semaphore, #tpu.memory_space<semaphore_mem>>
      %647 = tpu.memref_squeeze %646 : memref<1x!tpu.dma_semaphore, #tpu.memory_space<semaphore_mem>> -> memref<!tpu.dma_semaphore, #tpu.memory_space<semaphore_mem>>
      tpu.enqueue_dma source(%643 : memref<1x768xf32, #tpu.memory_space<any>>) target(%645 : memref<1x768xf32, #tpu.memory_space<vmem>>) target_semaphore(%647 : memref<!tpu.dma_semaphore, #tpu.memory_space<semaphore_mem>>)
      %c37_i32_359 = arith.constant 37 : i32
      %648 = arith.addi %351, %c37_i32_359 : i32
      %649 = arith.index_cast %648 : i32 to index
      %650 = memref.load %arg2[%649] : memref<64xi32, #tpu.memory_space<smem>>
      %c0_i32_360 = arith.constant 0 : i32
      %651 = tpu.memref_slice %arg4[%650, %c0_i32_360] : memref<128x768xf32, #tpu.memory_space<any>> -> memref<1x768xf32, #tpu.memory_space<any>>
      %c37_i32_361 = arith.constant 37 : i32
      %c0_i32_362 = arith.constant 0 : i32
      %652 = tpu.memref_slice %arg6[%350, %c37_i32_361, %c0_i32_362] : memref<2x64x768xf32, #tpu.memory_space<vmem>> -> memref<1x1x768xf32, #tpu.memory_space<vmem>>
      %653 = tpu.memref_squeeze %652 : memref<1x1x768xf32, #tpu.memory_space<vmem>> -> memref<1x768xf32, #tpu.memory_space<vmem>>
      %654 = tpu.memref_slice %arg7[%350] : memref<2x!tpu.dma_semaphore, #tpu.memory_space<semaphore_mem>> -> memref<1x!tpu.dma_semaphore, #tpu.memory_space<semaphore_mem>>
      %655 = tpu.memref_squeeze %654 : memref<1x!tpu.dma_semaphore, #tpu.memory_space<semaphore_mem>> -> memref<!tpu.dma_semaphore, #tpu.memory_space<semaphore_mem>>
      tpu.enqueue_dma source(%651 : memref<1x768xf32, #tpu.memory_space<any>>) target(%653 : memref<1x768xf32, #tpu.memory_space<vmem>>) target_semaphore(%655 : memref<!tpu.dma_semaphore, #tpu.memory_space<semaphore_mem>>)
      %c38_i32_363 = arith.constant 38 : i32
      %656 = arith.addi %351, %c38_i32_363 : i32
      %657 = arith.index_cast %656 : i32 to index
      %658 = memref.load %arg2[%657] : memref<64xi32, #tpu.memory_space<smem>>
      %c0_i32_364 = arith.constant 0 : i32
      %659 = tpu.memref_slice %arg4[%658, %c0_i32_364] : memref<128x768xf32, #tpu.memory_space<any>> -> memref<1x768xf32, #tpu.memory_space<any>>
      %c38_i32_365 = arith.constant 38 : i32
      %c0_i32_366 = arith.constant 0 : i32
      %660 = tpu.memref_slice %arg6[%350, %c38_i32_365, %c0_i32_366] : memref<2x64x768xf32, #tpu.memory_space<vmem>> -> memref<1x1x768xf32, #tpu.memory_space<vmem>>
      %661 = tpu.memref_squeeze %660 : memref<1x1x768xf32, #tpu.memory_space<vmem>> -> memref<1x768xf32, #tpu.memory_space<vmem>>
      %662 = tpu.memref_slice %arg7[%350] : memref<2x!tpu.dma_semaphore, #tpu.memory_space<semaphore_mem>> -> memref<1x!tpu.dma_semaphore, #tpu.memory_space<semaphore_mem>>
      %663 = tpu.memref_squeeze %662 : memref<1x!tpu.dma_semaphore, #tpu.memory_space<semaphore_mem>> -> memref<!tpu.dma_semaphore, #tpu.memory_space<semaphore_mem>>
      tpu.enqueue_dma source(%659 : memref<1x768xf32, #tpu.memory_space<any>>) target(%661 : memref<1x768xf32, #tpu.memory_space<vmem>>) target_semaphore(%663 : memref<!tpu.dma_semaphore, #tpu.memory_space<semaphore_mem>>)
      %c39_i32_367 = arith.constant 39 : i32
      %664 = arith.addi %351, %c39_i32_367 : i32
      %665 = arith.index_cast %664 : i32 to index
      %666 = memref.load %arg2[%665] : memref<64xi32, #tpu.memory_space<smem>>
      %c0_i32_368 = arith.constant 0 : i32
      %667 = tpu.memref_slice %arg4[%666, %c0_i32_368] : memref<128x768xf32, #tpu.memory_space<any>> -> memref<1x768xf32, #tpu.memory_space<any>>
      %c39_i32_369 = arith.constant 39 : i32
      %c0_i32_370 = arith.constant 0 : i32
      %668 = tpu.memref_slice %arg6[%350, %c39_i32_369, %c0_i32_370] : memref<2x64x768xf32, #tpu.memory_space<vmem>> -> memref<1x1x768xf32, #tpu.memory_space<vmem>>
      %669 = tpu.memref_squeeze %668 : memref<1x1x768xf32, #tpu.memory_space<vmem>> -> memref<1x768xf32, #tpu.memory_space<vmem>>
      %670 = tpu.memref_slice %arg7[%350] : memref<2x!tpu.dma_semaphore, #tpu.memory_space<semaphore_mem>> -> memref<1x!tpu.dma_semaphore, #tpu.memory_space<semaphore_mem>>
      %671 = tpu.memref_squeeze %670 : memref<1x!tpu.dma_semaphore, #tpu.memory_space<semaphore_mem>> -> memref<!tpu.dma_semaphore, #tpu.memory_space<semaphore_mem>>
      tpu.enqueue_dma source(%667 : memref<1x768xf32, #tpu.memory_space<any>>) target(%669 : memref<1x768xf32, #tpu.memory_space<vmem>>) target_semaphore(%671 : memref<!tpu.dma_semaphore, #tpu.memory_space<semaphore_mem>>)
      %c40_i32_371 = arith.constant 40 : i32
      %672 = arith.addi %351, %c40_i32_371 : i32
      %673 = arith.index_cast %672 : i32 to index
      %674 = memref.load %arg2[%673] : memref<64xi32, #tpu.memory_space<smem>>
      %c0_i32_372 = arith.constant 0 : i32
      %675 = tpu.memref_slice %arg4[%674, %c0_i32_372] : memref<128x768xf32, #tpu.memory_space<any>> -> memref<1x768xf32, #tpu.memory_space<any>>
      %c40_i32_373 = arith.constant 40 : i32
      %c0_i32_374 = arith.constant 0 : i32
      %676 = tpu.memref_slice %arg6[%350, %c40_i32_373, %c0_i32_374] : memref<2x64x768xf32, #tpu.memory_space<vmem>> -> memref<1x1x768xf32, #tpu.memory_space<vmem>>
      %677 = tpu.memref_squeeze %676 : memref<1x1x768xf32, #tpu.memory_space<vmem>> -> memref<1x768xf32, #tpu.memory_space<vmem>>
      %678 = tpu.memref_slice %arg7[%350] : memref<2x!tpu.dma_semaphore, #tpu.memory_space<semaphore_mem>> -> memref<1x!tpu.dma_semaphore, #tpu.memory_space<semaphore_mem>>
      %679 = tpu.memref_squeeze %678 : memref<1x!tpu.dma_semaphore, #tpu.memory_space<semaphore_mem>> -> memref<!tpu.dma_semaphore, #tpu.memory_space<semaphore_mem>>
      tpu.enqueue_dma source(%675 : memref<1x768xf32, #tpu.memory_space<any>>) target(%677 : memref<1x768xf32, #tpu.memory_space<vmem>>) target_semaphore(%679 : memref<!tpu.dma_semaphore, #tpu.memory_space<semaphore_mem>>)
      %c41_i32_375 = arith.constant 41 : i32
      %680 = arith.addi %351, %c41_i32_375 : i32
      %681 = arith.index_cast %680 : i32 to index
      %682 = memref.load %arg2[%681] : memref<64xi32, #tpu.memory_space<smem>>
      %c0_i32_376 = arith.constant 0 : i32
      %683 = tpu.memref_slice %arg4[%682, %c0_i32_376] : memref<128x768xf32, #tpu.memory_space<any>> -> memref<1x768xf32, #tpu.memory_space<any>>
      %c41_i32_377 = arith.constant 41 : i32
      %c0_i32_378 = arith.constant 0 : i32
      %684 = tpu.memref_slice %arg6[%350, %c41_i32_377, %c0_i32_378] : memref<2x64x768xf32, #tpu.memory_space<vmem>> -> memref<1x1x768xf32, #tpu.memory_space<vmem>>
      %685 = tpu.memref_squeeze %684 : memref<1x1x768xf32, #tpu.memory_space<vmem>> -> memref<1x768xf32, #tpu.memory_space<vmem>>
      %686 = tpu.memref_slice %arg7[%350] : memref<2x!tpu.dma_semaphore, #tpu.memory_space<semaphore_mem>> -> memref<1x!tpu.dma_semaphore, #tpu.memory_space<semaphore_mem>>
      %687 = tpu.memref_squeeze %686 : memref<1x!tpu.dma_semaphore, #tpu.memory_space<semaphore_mem>> -> memref<!tpu.dma_semaphore, #tpu.memory_space<semaphore_mem>>
      tpu.enqueue_dma source(%683 : memref<1x768xf32, #tpu.memory_space<any>>) target(%685 : memref<1x768xf32, #tpu.memory_space<vmem>>) target_semaphore(%687 : memref<!tpu.dma_semaphore, #tpu.memory_space<semaphore_mem>>)
      %c42_i32_379 = arith.constant 42 : i32
      %688 = arith.addi %351, %c42_i32_379 : i32
      %689 = arith.index_cast %688 : i32 to index
      %690 = memref.load %arg2[%689] : memref<64xi32, #tpu.memory_space<smem>>
      %c0_i32_380 = arith.constant 0 : i32
      %691 = tpu.memref_slice %arg4[%690, %c0_i32_380] : memref<128x768xf32, #tpu.memory_space<any>> -> memref<1x768xf32, #tpu.memory_space<any>>
      %c42_i32_381 = arith.constant 42 : i32
      %c0_i32_382 = arith.constant 0 : i32
      %692 = tpu.memref_slice %arg6[%350, %c42_i32_381, %c0_i32_382] : memref<2x64x768xf32, #tpu.memory_space<vmem>> -> memref<1x1x768xf32, #tpu.memory_space<vmem>>
      %693 = tpu.memref_squeeze %692 : memref<1x1x768xf32, #tpu.memory_space<vmem>> -> memref<1x768xf32, #tpu.memory_space<vmem>>
      %694 = tpu.memref_slice %arg7[%350] : memref<2x!tpu.dma_semaphore, #tpu.memory_space<semaphore_mem>> -> memref<1x!tpu.dma_semaphore, #tpu.memory_space<semaphore_mem>>
      %695 = tpu.memref_squeeze %694 : memref<1x!tpu.dma_semaphore, #tpu.memory_space<semaphore_mem>> -> memref<!tpu.dma_semaphore, #tpu.memory_space<semaphore_mem>>
      tpu.enqueue_dma source(%691 : memref<1x768xf32, #tpu.memory_space<any>>) target(%693 : memref<1x768xf32, #tpu.memory_space<vmem>>) target_semaphore(%695 : memref<!tpu.dma_semaphore, #tpu.memory_space<semaphore_mem>>)
      %c43_i32_383 = arith.constant 43 : i32
      %696 = arith.addi %351, %c43_i32_383 : i32
      %697 = arith.index_cast %696 : i32 to index
      %698 = memref.load %arg2[%697] : memref<64xi32, #tpu.memory_space<smem>>
      %c0_i32_384 = arith.constant 0 : i32
      %699 = tpu.memref_slice %arg4[%698, %c0_i32_384] : memref<128x768xf32, #tpu.memory_space<any>> -> memref<1x768xf32, #tpu.memory_space<any>>
      %c43_i32_385 = arith.constant 43 : i32
      %c0_i32_386 = arith.constant 0 : i32
      %700 = tpu.memref_slice %arg6[%350, %c43_i32_385, %c0_i32_386] : memref<2x64x768xf32, #tpu.memory_space<vmem>> -> memref<1x1x768xf32, #tpu.memory_space<vmem>>
      %701 = tpu.memref_squeeze %700 : memref<1x1x768xf32, #tpu.memory_space<vmem>> -> memref<1x768xf32, #tpu.memory_space<vmem>>
      %702 = tpu.memref_slice %arg7[%350] : memref<2x!tpu.dma_semaphore, #tpu.memory_space<semaphore_mem>> -> memref<1x!tpu.dma_semaphore, #tpu.memory_space<semaphore_mem>>
      %703 = tpu.memref_squeeze %702 : memref<1x!tpu.dma_semaphore, #tpu.memory_space<semaphore_mem>> -> memref<!tpu.dma_semaphore, #tpu.memory_space<semaphore_mem>>
      tpu.enqueue_dma source(%699 : memref<1x768xf32, #tpu.memory_space<any>>) target(%701 : memref<1x768xf32, #tpu.memory_space<vmem>>) target_semaphore(%703 : memref<!tpu.dma_semaphore, #tpu.memory_space<semaphore_mem>>)
      %c44_i32_387 = arith.constant 44 : i32
      %704 = arith.addi %351, %c44_i32_387 : i32
      %705 = arith.index_cast %704 : i32 to index
      %706 = memref.load %arg2[%705] : memref<64xi32, #tpu.memory_space<smem>>
      %c0_i32_388 = arith.constant 0 : i32
      %707 = tpu.memref_slice %arg4[%706, %c0_i32_388] : memref<128x768xf32, #tpu.memory_space<any>> -> memref<1x768xf32, #tpu.memory_space<any>>
      %c44_i32_389 = arith.constant 44 : i32
      %c0_i32_390 = arith.constant 0 : i32
      %708 = tpu.memref_slice %arg6[%350, %c44_i32_389, %c0_i32_390] : memref<2x64x768xf32, #tpu.memory_space<vmem>> -> memref<1x1x768xf32, #tpu.memory_space<vmem>>
      %709 = tpu.memref_squeeze %708 : memref<1x1x768xf32, #tpu.memory_space<vmem>> -> memref<1x768xf32, #tpu.memory_space<vmem>>
      %710 = tpu.memref_slice %arg7[%350] : memref<2x!tpu.dma_semaphore, #tpu.memory_space<semaphore_mem>> -> memref<1x!tpu.dma_semaphore, #tpu.memory_space<semaphore_mem>>
      %711 = tpu.memref_squeeze %710 : memref<1x!tpu.dma_semaphore, #tpu.memory_space<semaphore_mem>> -> memref<!tpu.dma_semaphore, #tpu.memory_space<semaphore_mem>>
      tpu.enqueue_dma source(%707 : memref<1x768xf32, #tpu.memory_space<any>>) target(%709 : memref<1x768xf32, #tpu.memory_space<vmem>>) target_semaphore(%711 : memref<!tpu.dma_semaphore, #tpu.memory_space<semaphore_mem>>)
      %c45_i32_391 = arith.constant 45 : i32
      %712 = arith.addi %351, %c45_i32_391 : i32
      %713 = arith.index_cast %712 : i32 to index
      %714 = memref.load %arg2[%713] : memref<64xi32, #tpu.memory_space<smem>>
      %c0_i32_392 = arith.constant 0 : i32
      %715 = tpu.memref_slice %arg4[%714, %c0_i32_392] : memref<128x768xf32, #tpu.memory_space<any>> -> memref<1x768xf32, #tpu.memory_space<any>>
      %c45_i32_393 = arith.constant 45 : i32
      %c0_i32_394 = arith.constant 0 : i32
      %716 = tpu.memref_slice %arg6[%350, %c45_i32_393, %c0_i32_394] : memref<2x64x768xf32, #tpu.memory_space<vmem>> -> memref<1x1x768xf32, #tpu.memory_space<vmem>>
      %717 = tpu.memref_squeeze %716 : memref<1x1x768xf32, #tpu.memory_space<vmem>> -> memref<1x768xf32, #tpu.memory_space<vmem>>
      %718 = tpu.memref_slice %arg7[%350] : memref<2x!tpu.dma_semaphore, #tpu.memory_space<semaphore_mem>> -> memref<1x!tpu.dma_semaphore, #tpu.memory_space<semaphore_mem>>
      %719 = tpu.memref_squeeze %718 : memref<1x!tpu.dma_semaphore, #tpu.memory_space<semaphore_mem>> -> memref<!tpu.dma_semaphore, #tpu.memory_space<semaphore_mem>>
      tpu.enqueue_dma source(%715 : memref<1x768xf32, #tpu.memory_space<any>>) target(%717 : memref<1x768xf32, #tpu.memory_space<vmem>>) target_semaphore(%719 : memref<!tpu.dma_semaphore, #tpu.memory_space<semaphore_mem>>)
      %c46_i32_395 = arith.constant 46 : i32
      %720 = arith.addi %351, %c46_i32_395 : i32
      %721 = arith.index_cast %720 : i32 to index
      %722 = memref.load %arg2[%721] : memref<64xi32, #tpu.memory_space<smem>>
      %c0_i32_396 = arith.constant 0 : i32
      %723 = tpu.memref_slice %arg4[%722, %c0_i32_396] : memref<128x768xf32, #tpu.memory_space<any>> -> memref<1x768xf32, #tpu.memory_space<any>>
      %c46_i32_397 = arith.constant 46 : i32
      %c0_i32_398 = arith.constant 0 : i32
      %724 = tpu.memref_slice %arg6[%350, %c46_i32_397, %c0_i32_398] : memref<2x64x768xf32, #tpu.memory_space<vmem>> -> memref<1x1x768xf32, #tpu.memory_space<vmem>>
      %725 = tpu.memref_squeeze %724 : memref<1x1x768xf32, #tpu.memory_space<vmem>> -> memref<1x768xf32, #tpu.memory_space<vmem>>
      %726 = tpu.memref_slice %arg7[%350] : memref<2x!tpu.dma_semaphore, #tpu.memory_space<semaphore_mem>> -> memref<1x!tpu.dma_semaphore, #tpu.memory_space<semaphore_mem>>
      %727 = tpu.memref_squeeze %726 : memref<1x!tpu.dma_semaphore, #tpu.memory_space<semaphore_mem>> -> memref<!tpu.dma_semaphore, #tpu.memory_space<semaphore_mem>>
      tpu.enqueue_dma source(%723 : memref<1x768xf32, #tpu.memory_space<any>>) target(%725 : memref<1x768xf32, #tpu.memory_space<vmem>>) target_semaphore(%727 : memref<!tpu.dma_semaphore, #tpu.memory_space<semaphore_mem>>)
      %c47_i32_399 = arith.constant 47 : i32
      %728 = arith.addi %351, %c47_i32_399 : i32
      %729 = arith.index_cast %728 : i32 to index
      %730 = memref.load %arg2[%729] : memref<64xi32, #tpu.memory_space<smem>>
      %c0_i32_400 = arith.constant 0 : i32
      %731 = tpu.memref_slice %arg4[%730, %c0_i32_400] : memref<128x768xf32, #tpu.memory_space<any>> -> memref<1x768xf32, #tpu.memory_space<any>>
      %c47_i32_401 = arith.constant 47 : i32
      %c0_i32_402 = arith.constant 0 : i32
      %732 = tpu.memref_slice %arg6[%350, %c47_i32_401, %c0_i32_402] : memref<2x64x768xf32, #tpu.memory_space<vmem>> -> memref<1x1x768xf32, #tpu.memory_space<vmem>>
      %733 = tpu.memref_squeeze %732 : memref<1x1x768xf32, #tpu.memory_space<vmem>> -> memref<1x768xf32, #tpu.memory_space<vmem>>
      %734 = tpu.memref_slice %arg7[%350] : memref<2x!tpu.dma_semaphore, #tpu.memory_space<semaphore_mem>> -> memref<1x!tpu.dma_semaphore, #tpu.memory_space<semaphore_mem>>
      %735 = tpu.memref_squeeze %734 : memref<1x!tpu.dma_semaphore, #tpu.memory_space<semaphore_mem>> -> memref<!tpu.dma_semaphore, #tpu.memory_space<semaphore_mem>>
      tpu.enqueue_dma source(%731 : memref<1x768xf32, #tpu.memory_space<any>>) target(%733 : memref<1x768xf32, #tpu.memory_space<vmem>>) target_semaphore(%735 : memref<!tpu.dma_semaphore, #tpu.memory_space<semaphore_mem>>)
      %c48_i32_403 = arith.constant 48 : i32
      %736 = arith.addi %351, %c48_i32_403 : i32
      %737 = arith.index_cast %736 : i32 to index
      %738 = memref.load %arg2[%737] : memref<64xi32, #tpu.memory_space<smem>>
      %c0_i32_404 = arith.constant 0 : i32
      %739 = tpu.memref_slice %arg4[%738, %c0_i32_404] : memref<128x768xf32, #tpu.memory_space<any>> -> memref<1x768xf32, #tpu.memory_space<any>>
      %c48_i32_405 = arith.constant 48 : i32
      %c0_i32_406 = arith.constant 0 : i32
      %740 = tpu.memref_slice %arg6[%350, %c48_i32_405, %c0_i32_406] : memref<2x64x768xf32, #tpu.memory_space<vmem>> -> memref<1x1x768xf32, #tpu.memory_space<vmem>>
      %741 = tpu.memref_squeeze %740 : memref<1x1x768xf32, #tpu.memory_space<vmem>> -> memref<1x768xf32, #tpu.memory_space<vmem>>
      %742 = tpu.memref_slice %arg7[%350] : memref<2x!tpu.dma_semaphore, #tpu.memory_space<semaphore_mem>> -> memref<1x!tpu.dma_semaphore, #tpu.memory_space<semaphore_mem>>
      %743 = tpu.memref_squeeze %742 : memref<1x!tpu.dma_semaphore, #tpu.memory_space<semaphore_mem>> -> memref<!tpu.dma_semaphore, #tpu.memory_space<semaphore_mem>>
      tpu.enqueue_dma source(%739 : memref<1x768xf32, #tpu.memory_space<any>>) target(%741 : memref<1x768xf32, #tpu.memory_space<vmem>>) target_semaphore(%743 : memref<!tpu.dma_semaphore, #tpu.memory_space<semaphore_mem>>)
      %c49_i32_407 = arith.constant 49 : i32
      %744 = arith.addi %351, %c49_i32_407 : i32
      %745 = arith.index_cast %744 : i32 to index
      %746 = memref.load %arg2[%745] : memref<64xi32, #tpu.memory_space<smem>>
      %c0_i32_408 = arith.constant 0 : i32
      %747 = tpu.memref_slice %arg4[%746, %c0_i32_408] : memref<128x768xf32, #tpu.memory_space<any>> -> memref<1x768xf32, #tpu.memory_space<any>>
      %c49_i32_409 = arith.constant 49 : i32
      %c0_i32_410 = arith.constant 0 : i32
      %748 = tpu.memref_slice %arg6[%350, %c49_i32_409, %c0_i32_410] : memref<2x64x768xf32, #tpu.memory_space<vmem>> -> memref<1x1x768xf32, #tpu.memory_space<vmem>>
      %749 = tpu.memref_squeeze %748 : memref<1x1x768xf32, #tpu.memory_space<vmem>> -> memref<1x768xf32, #tpu.memory_space<vmem>>
      %750 = tpu.memref_slice %arg7[%350] : memref<2x!tpu.dma_semaphore, #tpu.memory_space<semaphore_mem>> -> memref<1x!tpu.dma_semaphore, #tpu.memory_space<semaphore_mem>>
      %751 = tpu.memref_squeeze %750 : memref<1x!tpu.dma_semaphore, #tpu.memory_space<semaphore_mem>> -> memref<!tpu.dma_semaphore, #tpu.memory_space<semaphore_mem>>
      tpu.enqueue_dma source(%747 : memref<1x768xf32, #tpu.memory_space<any>>) target(%749 : memref<1x768xf32, #tpu.memory_space<vmem>>) target_semaphore(%751 : memref<!tpu.dma_semaphore, #tpu.memory_space<semaphore_mem>>)
      %c50_i32_411 = arith.constant 50 : i32
      %752 = arith.addi %351, %c50_i32_411 : i32
      %753 = arith.index_cast %752 : i32 to index
      %754 = memref.load %arg2[%753] : memref<64xi32, #tpu.memory_space<smem>>
      %c0_i32_412 = arith.constant 0 : i32
      %755 = tpu.memref_slice %arg4[%754, %c0_i32_412] : memref<128x768xf32, #tpu.memory_space<any>> -> memref<1x768xf32, #tpu.memory_space<any>>
      %c50_i32_413 = arith.constant 50 : i32
      %c0_i32_414 = arith.constant 0 : i32
      %756 = tpu.memref_slice %arg6[%350, %c50_i32_413, %c0_i32_414] : memref<2x64x768xf32, #tpu.memory_space<vmem>> -> memref<1x1x768xf32, #tpu.memory_space<vmem>>
      %757 = tpu.memref_squeeze %756 : memref<1x1x768xf32, #tpu.memory_space<vmem>> -> memref<1x768xf32, #tpu.memory_space<vmem>>
      %758 = tpu.memref_slice %arg7[%350] : memref<2x!tpu.dma_semaphore, #tpu.memory_space<semaphore_mem>> -> memref<1x!tpu.dma_semaphore, #tpu.memory_space<semaphore_mem>>
      %759 = tpu.memref_squeeze %758 : memref<1x!tpu.dma_semaphore, #tpu.memory_space<semaphore_mem>> -> memref<!tpu.dma_semaphore, #tpu.memory_space<semaphore_mem>>
      tpu.enqueue_dma source(%755 : memref<1x768xf32, #tpu.memory_space<any>>) target(%757 : memref<1x768xf32, #tpu.memory_space<vmem>>) target_semaphore(%759 : memref<!tpu.dma_semaphore, #tpu.memory_space<semaphore_mem>>)
      %c51_i32_415 = arith.constant 51 : i32
      %760 = arith.addi %351, %c51_i32_415 : i32
      %761 = arith.index_cast %760 : i32 to index
      %762 = memref.load %arg2[%761] : memref<64xi32, #tpu.memory_space<smem>>
      %c0_i32_416 = arith.constant 0 : i32
      %763 = tpu.memref_slice %arg4[%762, %c0_i32_416] : memref<128x768xf32, #tpu.memory_space<any>> -> memref<1x768xf32, #tpu.memory_space<any>>
      %c51_i32_417 = arith.constant 51 : i32
      %c0_i32_418 = arith.constant 0 : i32
      %764 = tpu.memref_slice %arg6[%350, %c51_i32_417, %c0_i32_418] : memref<2x64x768xf32, #tpu.memory_space<vmem>> -> memref<1x1x768xf32, #tpu.memory_space<vmem>>
      %765 = tpu.memref_squeeze %764 : memref<1x1x768xf32, #tpu.memory_space<vmem>> -> memref<1x768xf32, #tpu.memory_space<vmem>>
      %766 = tpu.memref_slice %arg7[%350] : memref<2x!tpu.dma_semaphore, #tpu.memory_space<semaphore_mem>> -> memref<1x!tpu.dma_semaphore, #tpu.memory_space<semaphore_mem>>
      %767 = tpu.memref_squeeze %766 : memref<1x!tpu.dma_semaphore, #tpu.memory_space<semaphore_mem>> -> memref<!tpu.dma_semaphore, #tpu.memory_space<semaphore_mem>>
      tpu.enqueue_dma source(%763 : memref<1x768xf32, #tpu.memory_space<any>>) target(%765 : memref<1x768xf32, #tpu.memory_space<vmem>>) target_semaphore(%767 : memref<!tpu.dma_semaphore, #tpu.memory_space<semaphore_mem>>)
      %c52_i32_419 = arith.constant 52 : i32
      %768 = arith.addi %351, %c52_i32_419 : i32
      %769 = arith.index_cast %768 : i32 to index
      %770 = memref.load %arg2[%769] : memref<64xi32, #tpu.memory_space<smem>>
      %c0_i32_420 = arith.constant 0 : i32
      %771 = tpu.memref_slice %arg4[%770, %c0_i32_420] : memref<128x768xf32, #tpu.memory_space<any>> -> memref<1x768xf32, #tpu.memory_space<any>>
      %c52_i32_421 = arith.constant 52 : i32
      %c0_i32_422 = arith.constant 0 : i32
      %772 = tpu.memref_slice %arg6[%350, %c52_i32_421, %c0_i32_422] : memref<2x64x768xf32, #tpu.memory_space<vmem>> -> memref<1x1x768xf32, #tpu.memory_space<vmem>>
      %773 = tpu.memref_squeeze %772 : memref<1x1x768xf32, #tpu.memory_space<vmem>> -> memref<1x768xf32, #tpu.memory_space<vmem>>
      %774 = tpu.memref_slice %arg7[%350] : memref<2x!tpu.dma_semaphore, #tpu.memory_space<semaphore_mem>> -> memref<1x!tpu.dma_semaphore, #tpu.memory_space<semaphore_mem>>
      %775 = tpu.memref_squeeze %774 : memref<1x!tpu.dma_semaphore, #tpu.memory_space<semaphore_mem>> -> memref<!tpu.dma_semaphore, #tpu.memory_space<semaphore_mem>>
      tpu.enqueue_dma source(%771 : memref<1x768xf32, #tpu.memory_space<any>>) target(%773 : memref<1x768xf32, #tpu.memory_space<vmem>>) target_semaphore(%775 : memref<!tpu.dma_semaphore, #tpu.memory_space<semaphore_mem>>)
      %c53_i32_423 = arith.constant 53 : i32
      %776 = arith.addi %351, %c53_i32_423 : i32
      %777 = arith.index_cast %776 : i32 to index
      %778 = memref.load %arg2[%777] : memref<64xi32, #tpu.memory_space<smem>>
      %c0_i32_424 = arith.constant 0 : i32
      %779 = tpu.memref_slice %arg4[%778, %c0_i32_424] : memref<128x768xf32, #tpu.memory_space<any>> -> memref<1x768xf32, #tpu.memory_space<any>>
      %c53_i32_425 = arith.constant 53 : i32
      %c0_i32_426 = arith.constant 0 : i32
      %780 = tpu.memref_slice %arg6[%350, %c53_i32_425, %c0_i32_426] : memref<2x64x768xf32, #tpu.memory_space<vmem>> -> memref<1x1x768xf32, #tpu.memory_space<vmem>>
      %781 = tpu.memref_squeeze %780 : memref<1x1x768xf32, #tpu.memory_space<vmem>> -> memref<1x768xf32, #tpu.memory_space<vmem>>
      %782 = tpu.memref_slice %arg7[%350] : memref<2x!tpu.dma_semaphore, #tpu.memory_space<semaphore_mem>> -> memref<1x!tpu.dma_semaphore, #tpu.memory_space<semaphore_mem>>
      %783 = tpu.memref_squeeze %782 : memref<1x!tpu.dma_semaphore, #tpu.memory_space<semaphore_mem>> -> memref<!tpu.dma_semaphore, #tpu.memory_space<semaphore_mem>>
      tpu.enqueue_dma source(%779 : memref<1x768xf32, #tpu.memory_space<any>>) target(%781 : memref<1x768xf32, #tpu.memory_space<vmem>>) target_semaphore(%783 : memref<!tpu.dma_semaphore, #tpu.memory_space<semaphore_mem>>)
      %c54_i32_427 = arith.constant 54 : i32
      %784 = arith.addi %351, %c54_i32_427 : i32
      %785 = arith.index_cast %784 : i32 to index
      %786 = memref.load %arg2[%785] : memref<64xi32, #tpu.memory_space<smem>>
      %c0_i32_428 = arith.constant 0 : i32
      %787 = tpu.memref_slice %arg4[%786, %c0_i32_428] : memref<128x768xf32, #tpu.memory_space<any>> -> memref<1x768xf32, #tpu.memory_space<any>>
      %c54_i32_429 = arith.constant 54 : i32
      %c0_i32_430 = arith.constant 0 : i32
      %788 = tpu.memref_slice %arg6[%350, %c54_i32_429, %c0_i32_430] : memref<2x64x768xf32, #tpu.memory_space<vmem>> -> memref<1x1x768xf32, #tpu.memory_space<vmem>>
      %789 = tpu.memref_squeeze %788 : memref<1x1x768xf32, #tpu.memory_space<vmem>> -> memref<1x768xf32, #tpu.memory_space<vmem>>
      %790 = tpu.memref_slice %arg7[%350] : memref<2x!tpu.dma_semaphore, #tpu.memory_space<semaphore_mem>> -> memref<1x!tpu.dma_semaphore, #tpu.memory_space<semaphore_mem>>
      %791 = tpu.memref_squeeze %790 : memref<1x!tpu.dma_semaphore, #tpu.memory_space<semaphore_mem>> -> memref<!tpu.dma_semaphore, #tpu.memory_space<semaphore_mem>>
      tpu.enqueue_dma source(%787 : memref<1x768xf32, #tpu.memory_space<any>>) target(%789 : memref<1x768xf32, #tpu.memory_space<vmem>>) target_semaphore(%791 : memref<!tpu.dma_semaphore, #tpu.memory_space<semaphore_mem>>)
      %c55_i32_431 = arith.constant 55 : i32
      %792 = arith.addi %351, %c55_i32_431 : i32
      %793 = arith.index_cast %792 : i32 to index
      %794 = memref.load %arg2[%793] : memref<64xi32, #tpu.memory_space<smem>>
      %c0_i32_432 = arith.constant 0 : i32
      %795 = tpu.memref_slice %arg4[%794, %c0_i32_432] : memref<128x768xf32, #tpu.memory_space<any>> -> memref<1x768xf32, #tpu.memory_space<any>>
      %c55_i32_433 = arith.constant 55 : i32
      %c0_i32_434 = arith.constant 0 : i32
      %796 = tpu.memref_slice %arg6[%350, %c55_i32_433, %c0_i32_434] : memref<2x64x768xf32, #tpu.memory_space<vmem>> -> memref<1x1x768xf32, #tpu.memory_space<vmem>>
      %797 = tpu.memref_squeeze %796 : memref<1x1x768xf32, #tpu.memory_space<vmem>> -> memref<1x768xf32, #tpu.memory_space<vmem>>
      %798 = tpu.memref_slice %arg7[%350] : memref<2x!tpu.dma_semaphore, #tpu.memory_space<semaphore_mem>> -> memref<1x!tpu.dma_semaphore, #tpu.memory_space<semaphore_mem>>
      %799 = tpu.memref_squeeze %798 : memref<1x!tpu.dma_semaphore, #tpu.memory_space<semaphore_mem>> -> memref<!tpu.dma_semaphore, #tpu.memory_space<semaphore_mem>>
      tpu.enqueue_dma source(%795 : memref<1x768xf32, #tpu.memory_space<any>>) target(%797 : memref<1x768xf32, #tpu.memory_space<vmem>>) target_semaphore(%799 : memref<!tpu.dma_semaphore, #tpu.memory_space<semaphore_mem>>)
      %c56_i32_435 = arith.constant 56 : i32
      %800 = arith.addi %351, %c56_i32_435 : i32
      %801 = arith.index_cast %800 : i32 to index
      %802 = memref.load %arg2[%801] : memref<64xi32, #tpu.memory_space<smem>>
      %c0_i32_436 = arith.constant 0 : i32
      %803 = tpu.memref_slice %arg4[%802, %c0_i32_436] : memref<128x768xf32, #tpu.memory_space<any>> -> memref<1x768xf32, #tpu.memory_space<any>>
      %c56_i32_437 = arith.constant 56 : i32
      %c0_i32_438 = arith.constant 0 : i32
      %804 = tpu.memref_slice %arg6[%350, %c56_i32_437, %c0_i32_438] : memref<2x64x768xf32, #tpu.memory_space<vmem>> -> memref<1x1x768xf32, #tpu.memory_space<vmem>>
      %805 = tpu.memref_squeeze %804 : memref<1x1x768xf32, #tpu.memory_space<vmem>> -> memref<1x768xf32, #tpu.memory_space<vmem>>
      %806 = tpu.memref_slice %arg7[%350] : memref<2x!tpu.dma_semaphore, #tpu.memory_space<semaphore_mem>> -> memref<1x!tpu.dma_semaphore, #tpu.memory_space<semaphore_mem>>
      %807 = tpu.memref_squeeze %806 : memref<1x!tpu.dma_semaphore, #tpu.memory_space<semaphore_mem>> -> memref<!tpu.dma_semaphore, #tpu.memory_space<semaphore_mem>>
      tpu.enqueue_dma source(%803 : memref<1x768xf32, #tpu.memory_space<any>>) target(%805 : memref<1x768xf32, #tpu.memory_space<vmem>>) target_semaphore(%807 : memref<!tpu.dma_semaphore, #tpu.memory_space<semaphore_mem>>)
      %c57_i32_439 = arith.constant 57 : i32
      %808 = arith.addi %351, %c57_i32_439 : i32
      %809 = arith.index_cast %808 : i32 to index
      %810 = memref.load %arg2[%809] : memref<64xi32, #tpu.memory_space<smem>>
      %c0_i32_440 = arith.constant 0 : i32
      %811 = tpu.memref_slice %arg4[%810, %c0_i32_440] : memref<128x768xf32, #tpu.memory_space<any>> -> memref<1x768xf32, #tpu.memory_space<any>>
      %c57_i32_441 = arith.constant 57 : i32
      %c0_i32_442 = arith.constant 0 : i32
      %812 = tpu.memref_slice %arg6[%350, %c57_i32_441, %c0_i32_442] : memref<2x64x768xf32, #tpu.memory_space<vmem>> -> memref<1x1x768xf32, #tpu.memory_space<vmem>>
      %813 = tpu.memref_squeeze %812 : memref<1x1x768xf32, #tpu.memory_space<vmem>> -> memref<1x768xf32, #tpu.memory_space<vmem>>
      %814 = tpu.memref_slice %arg7[%350] : memref<2x!tpu.dma_semaphore, #tpu.memory_space<semaphore_mem>> -> memref<1x!tpu.dma_semaphore, #tpu.memory_space<semaphore_mem>>
      %815 = tpu.memref_squeeze %814 : memref<1x!tpu.dma_semaphore, #tpu.memory_space<semaphore_mem>> -> memref<!tpu.dma_semaphore, #tpu.memory_space<semaphore_mem>>
      tpu.enqueue_dma source(%811 : memref<1x768xf32, #tpu.memory_space<any>>) target(%813 : memref<1x768xf32, #tpu.memory_space<vmem>>) target_semaphore(%815 : memref<!tpu.dma_semaphore, #tpu.memory_space<semaphore_mem>>)
      %c58_i32_443 = arith.constant 58 : i32
      %816 = arith.addi %351, %c58_i32_443 : i32
      %817 = arith.index_cast %816 : i32 to index
      %818 = memref.load %arg2[%817] : memref<64xi32, #tpu.memory_space<smem>>
      %c0_i32_444 = arith.constant 0 : i32
      %819 = tpu.memref_slice %arg4[%818, %c0_i32_444] : memref<128x768xf32, #tpu.memory_space<any>> -> memref<1x768xf32, #tpu.memory_space<any>>
      %c58_i32_445 = arith.constant 58 : i32
      %c0_i32_446 = arith.constant 0 : i32
      %820 = tpu.memref_slice %arg6[%350, %c58_i32_445, %c0_i32_446] : memref<2x64x768xf32, #tpu.memory_space<vmem>> -> memref<1x1x768xf32, #tpu.memory_space<vmem>>
      %821 = tpu.memref_squeeze %820 : memref<1x1x768xf32, #tpu.memory_space<vmem>> -> memref<1x768xf32, #tpu.memory_space<vmem>>
      %822 = tpu.memref_slice %arg7[%350] : memref<2x!tpu.dma_semaphore, #tpu.memory_space<semaphore_mem>> -> memref<1x!tpu.dma_semaphore, #tpu.memory_space<semaphore_mem>>
      %823 = tpu.memref_squeeze %822 : memref<1x!tpu.dma_semaphore, #tpu.memory_space<semaphore_mem>> -> memref<!tpu.dma_semaphore, #tpu.memory_space<semaphore_mem>>
      tpu.enqueue_dma source(%819 : memref<1x768xf32, #tpu.memory_space<any>>) target(%821 : memref<1x768xf32, #tpu.memory_space<vmem>>) target_semaphore(%823 : memref<!tpu.dma_semaphore, #tpu.memory_space<semaphore_mem>>)
      %c59_i32_447 = arith.constant 59 : i32
      %824 = arith.addi %351, %c59_i32_447 : i32
      %825 = arith.index_cast %824 : i32 to index
      %826 = memref.load %arg2[%825] : memref<64xi32, #tpu.memory_space<smem>>
      %c0_i32_448 = arith.constant 0 : i32
      %827 = tpu.memref_slice %arg4[%826, %c0_i32_448] : memref<128x768xf32, #tpu.memory_space<any>> -> memref<1x768xf32, #tpu.memory_space<any>>
      %c59_i32_449 = arith.constant 59 : i32
      %c0_i32_450 = arith.constant 0 : i32
      %828 = tpu.memref_slice %arg6[%350, %c59_i32_449, %c0_i32_450] : memref<2x64x768xf32, #tpu.memory_space<vmem>> -> memref<1x1x768xf32, #tpu.memory_space<vmem>>
      %829 = tpu.memref_squeeze %828 : memref<1x1x768xf32, #tpu.memory_space<vmem>> -> memref<1x768xf32, #tpu.memory_space<vmem>>
      %830 = tpu.memref_slice %arg7[%350] : memref<2x!tpu.dma_semaphore, #tpu.memory_space<semaphore_mem>> -> memref<1x!tpu.dma_semaphore, #tpu.memory_space<semaphore_mem>>
      %831 = tpu.memref_squeeze %830 : memref<1x!tpu.dma_semaphore, #tpu.memory_space<semaphore_mem>> -> memref<!tpu.dma_semaphore, #tpu.memory_space<semaphore_mem>>
      tpu.enqueue_dma source(%827 : memref<1x768xf32, #tpu.memory_space<any>>) target(%829 : memref<1x768xf32, #tpu.memory_space<vmem>>) target_semaphore(%831 : memref<!tpu.dma_semaphore, #tpu.memory_space<semaphore_mem>>)
      %c60_i32_451 = arith.constant 60 : i32
      %832 = arith.addi %351, %c60_i32_451 : i32
      %833 = arith.index_cast %832 : i32 to index
      %834 = memref.load %arg2[%833] : memref<64xi32, #tpu.memory_space<smem>>
      %c0_i32_452 = arith.constant 0 : i32
      %835 = tpu.memref_slice %arg4[%834, %c0_i32_452] : memref<128x768xf32, #tpu.memory_space<any>> -> memref<1x768xf32, #tpu.memory_space<any>>
      %c60_i32_453 = arith.constant 60 : i32
      %c0_i32_454 = arith.constant 0 : i32
      %836 = tpu.memref_slice %arg6[%350, %c60_i32_453, %c0_i32_454] : memref<2x64x768xf32, #tpu.memory_space<vmem>> -> memref<1x1x768xf32, #tpu.memory_space<vmem>>
      %837 = tpu.memref_squeeze %836 : memref<1x1x768xf32, #tpu.memory_space<vmem>> -> memref<1x768xf32, #tpu.memory_space<vmem>>
      %838 = tpu.memref_slice %arg7[%350] : memref<2x!tpu.dma_semaphore, #tpu.memory_space<semaphore_mem>> -> memref<1x!tpu.dma_semaphore, #tpu.memory_space<semaphore_mem>>
      %839 = tpu.memref_squeeze %838 : memref<1x!tpu.dma_semaphore, #tpu.memory_space<semaphore_mem>> -> memref<!tpu.dma_semaphore, #tpu.memory_space<semaphore_mem>>
      tpu.enqueue_dma source(%835 : memref<1x768xf32, #tpu.memory_space<any>>) target(%837 : memref<1x768xf32, #tpu.memory_space<vmem>>) target_semaphore(%839 : memref<!tpu.dma_semaphore, #tpu.memory_space<semaphore_mem>>)
      %c61_i32_455 = arith.constant 61 : i32
      %840 = arith.addi %351, %c61_i32_455 : i32
      %841 = arith.index_cast %840 : i32 to index
      %842 = memref.load %arg2[%841] : memref<64xi32, #tpu.memory_space<smem>>
      %c0_i32_456 = arith.constant 0 : i32
      %843 = tpu.memref_slice %arg4[%842, %c0_i32_456] : memref<128x768xf32, #tpu.memory_space<any>> -> memref<1x768xf32, #tpu.memory_space<any>>
      %c61_i32_457 = arith.constant 61 : i32
      %c0_i32_458 = arith.constant 0 : i32
      %844 = tpu.memref_slice %arg6[%350, %c61_i32_457, %c0_i32_458] : memref<2x64x768xf32, #tpu.memory_space<vmem>> -> memref<1x1x768xf32, #tpu.memory_space<vmem>>
      %845 = tpu.memref_squeeze %844 : memref<1x1x768xf32, #tpu.memory_space<vmem>> -> memref<1x768xf32, #tpu.memory_space<vmem>>
      %846 = tpu.memref_slice %arg7[%350] : memref<2x!tpu.dma_semaphore, #tpu.memory_space<semaphore_mem>> -> memref<1x!tpu.dma_semaphore, #tpu.memory_space<semaphore_mem>>
      %847 = tpu.memref_squeeze %846 : memref<1x!tpu.dma_semaphore, #tpu.memory_space<semaphore_mem>> -> memref<!tpu.dma_semaphore, #tpu.memory_space<semaphore_mem>>
      tpu.enqueue_dma source(%843 : memref<1x768xf32, #tpu.memory_space<any>>) target(%845 : memref<1x768xf32, #tpu.memory_space<vmem>>) target_semaphore(%847 : memref<!tpu.dma_semaphore, #tpu.memory_space<semaphore_mem>>)
      %c62_i32_459 = arith.constant 62 : i32
      %848 = arith.addi %351, %c62_i32_459 : i32
      %849 = arith.index_cast %848 : i32 to index
      %850 = memref.load %arg2[%849] : memref<64xi32, #tpu.memory_space<smem>>
      %c0_i32_460 = arith.constant 0 : i32
      %851 = tpu.memref_slice %arg4[%850, %c0_i32_460] : memref<128x768xf32, #tpu.memory_space<any>> -> memref<1x768xf32, #tpu.memory_space<any>>
      %c62_i32_461 = arith.constant 62 : i32
      %c0_i32_462 = arith.constant 0 : i32
      %852 = tpu.memref_slice %arg6[%350, %c62_i32_461, %c0_i32_462] : memref<2x64x768xf32, #tpu.memory_space<vmem>> -> memref<1x1x768xf32, #tpu.memory_space<vmem>>
      %853 = tpu.memref_squeeze %852 : memref<1x1x768xf32, #tpu.memory_space<vmem>> -> memref<1x768xf32, #tpu.memory_space<vmem>>
      %854 = tpu.memref_slice %arg7[%350] : memref<2x!tpu.dma_semaphore, #tpu.memory_space<semaphore_mem>> -> memref<1x!tpu.dma_semaphore, #tpu.memory_space<semaphore_mem>>
      %855 = tpu.memref_squeeze %854 : memref<1x!tpu.dma_semaphore, #tpu.memory_space<semaphore_mem>> -> memref<!tpu.dma_semaphore, #tpu.memory_space<semaphore_mem>>
      tpu.enqueue_dma source(%851 : memref<1x768xf32, #tpu.memory_space<any>>) target(%853 : memref<1x768xf32, #tpu.memory_space<vmem>>) target_semaphore(%855 : memref<!tpu.dma_semaphore, #tpu.memory_space<semaphore_mem>>)
      %c63_i32_463 = arith.constant 63 : i32
      %856 = arith.addi %351, %c63_i32_463 : i32
      %857 = arith.index_cast %856 : i32 to index
      %858 = memref.load %arg2[%857] : memref<64xi32, #tpu.memory_space<smem>>
      %c0_i32_464 = arith.constant 0 : i32
      %859 = tpu.memref_slice %arg4[%858, %c0_i32_464] : memref<128x768xf32, #tpu.memory_space<any>> -> memref<1x768xf32, #tpu.memory_space<any>>
      %c63_i32_465 = arith.constant 63 : i32
      %c0_i32_466 = arith.constant 0 : i32
      %860 = tpu.memref_slice %arg6[%350, %c63_i32_465, %c0_i32_466] : memref<2x64x768xf32, #tpu.memory_space<vmem>> -> memref<1x1x768xf32, #tpu.memory_space<vmem>>
      %861 = tpu.memref_squeeze %860 : memref<1x1x768xf32, #tpu.memory_space<vmem>> -> memref<1x768xf32, #tpu.memory_space<vmem>>
      %862 = tpu.memref_slice %arg7[%350] : memref<2x!tpu.dma_semaphore, #tpu.memory_space<semaphore_mem>> -> memref<1x!tpu.dma_semaphore, #tpu.memory_space<semaphore_mem>>
      %863 = tpu.memref_squeeze %862 : memref<1x!tpu.dma_semaphore, #tpu.memory_space<semaphore_mem>> -> memref<!tpu.dma_semaphore, #tpu.memory_space<semaphore_mem>>
      tpu.enqueue_dma source(%859 : memref<1x768xf32, #tpu.memory_space<any>>) target(%861 : memref<1x768xf32, #tpu.memory_space<vmem>>) target_semaphore(%863 : memref<!tpu.dma_semaphore, #tpu.memory_space<semaphore_mem>>)
    } else {
    }
    %c0_i32_9 = arith.constant 0 : i32
    %c0_i32_10 = arith.constant 0 : i32
    %19 = tpu.memref_slice %arg4[%c0_i32_9, %c0_i32_10] : memref<128x768xf32, #tpu.memory_space<any>> -> memref<1x768xf32, #tpu.memory_space<any>>
    %c0_i32_11 = arith.constant 0 : i32
    %c0_i32_12 = arith.constant 0 : i32
    %20 = tpu.memref_slice %arg6[%11, %c0_i32_11, %c0_i32_12] : memref<2x64x768xf32, #tpu.memory_space<vmem>> -> memref<1x1x768xf32, #tpu.memory_space<vmem>>
    %21 = tpu.memref_squeeze %20 : memref<1x1x768xf32, #tpu.memory_space<vmem>> -> memref<1x768xf32, #tpu.memory_space<vmem>>
    %22 = tpu.memref_slice %arg7[%11] : memref<2x!tpu.dma_semaphore, #tpu.memory_space<semaphore_mem>> -> memref<1x!tpu.dma_semaphore, #tpu.memory_space<semaphore_mem>>
    %23 = tpu.memref_squeeze %22 : memref<1x!tpu.dma_semaphore, #tpu.memory_space<semaphore_mem>> -> memref<!tpu.dma_semaphore, #tpu.memory_space<semaphore_mem>>
    tpu.wait_dma2 semaphore(%23 : memref<!tpu.dma_semaphore, #tpu.memory_space<semaphore_mem>>) src(%19 : memref<1x768xf32, #tpu.memory_space<any>>) dst(%21 : memref<1x768xf32, #tpu.memory_space<vmem>>)
    %c0_i32_13 = arith.constant 0 : i32
    %c0_i32_14 = arith.constant 0 : i32
    %24 = tpu.memref_slice %arg4[%c0_i32_13, %c0_i32_14] : memref<128x768xf32, #tpu.memory_space<any>> -> memref<1x768xf32, #tpu.memory_space<any>>
    %c1_i32_15 = arith.constant 1 : i32
    %c0_i32_16 = arith.constant 0 : i32
    %25 = tpu.memref_slice %arg6[%11, %c1_i32_15, %c0_i32_16] : memref<2x64x768xf32, #tpu.memory_space<vmem>> -> memref<1x1x768xf32, #tpu.memory_space<vmem>>
    %26 = tpu.memref_squeeze %25 : memref<1x1x768xf32, #tpu.memory_space<vmem>> -> memref<1x768xf32, #tpu.memory_space<vmem>>
    %27 = tpu.memref_slice %arg7[%11] : memref<2x!tpu.dma_semaphore, #tpu.memory_space<semaphore_mem>> -> memref<1x!tpu.dma_semaphore, #tpu.memory_space<semaphore_mem>>
    %28 = tpu.memref_squeeze %27 : memref<1x!tpu.dma_semaphore, #tpu.memory_space<semaphore_mem>> -> memref<!tpu.dma_semaphore, #tpu.memory_space<semaphore_mem>>
    tpu.wait_dma2 semaphore(%28 : memref<!tpu.dma_semaphore, #tpu.memory_space<semaphore_mem>>) src(%24 : memref<1x768xf32, #tpu.memory_space<any>>) dst(%26 : memref<1x768xf32, #tpu.memory_space<vmem>>)
    %c0_i32_17 = arith.constant 0 : i32
    %c0_i32_18 = arith.constant 0 : i32
    %29 = tpu.memref_slice %arg4[%c0_i32_17, %c0_i32_18] : memref<128x768xf32, #tpu.memory_space<any>> -> memref<1x768xf32, #tpu.memory_space<any>>
    %c2_i32_19 = arith.constant 2 : i32
    %c0_i32_20 = arith.constant 0 : i32
    %30 = tpu.memref_slice %arg6[%11, %c2_i32_19, %c0_i32_20] : memref<2x64x768xf32, #tpu.memory_space<vmem>> -> memref<1x1x768xf32, #tpu.memory_space<vmem>>
    %31 = tpu.memref_squeeze %30 : memref<1x1x768xf32, #tpu.memory_space<vmem>> -> memref<1x768xf32, #tpu.memory_space<vmem>>
    %32 = tpu.memref_slice %arg7[%11] : memref<2x!tpu.dma_semaphore, #tpu.memory_space<semaphore_mem>> -> memref<1x!tpu.dma_semaphore, #tpu.memory_space<semaphore_mem>>
    %33 = tpu.memref_squeeze %32 : memref<1x!tpu.dma_semaphore, #tpu.memory_space<semaphore_mem>> -> memref<!tpu.dma_semaphore, #tpu.memory_space<semaphore_mem>>
    tpu.wait_dma2 semaphore(%33 : memref<!tpu.dma_semaphore, #tpu.memory_space<semaphore_mem>>) src(%29 : memref<1x768xf32, #tpu.memory_space<any>>) dst(%31 : memref<1x768xf32, #tpu.memory_space<vmem>>)
    %c0_i32_21 = arith.constant 0 : i32
    %c0_i32_22 = arith.constant 0 : i32
    %34 = tpu.memref_slice %arg4[%c0_i32_21, %c0_i32_22] : memref<128x768xf32, #tpu.memory_space<any>> -> memref<1x768xf32, #tpu.memory_space<any>>
    %c3_i32 = arith.constant 3 : i32
    %c0_i32_23 = arith.constant 0 : i32
    %35 = tpu.memref_slice %arg6[%11, %c3_i32, %c0_i32_23] : memref<2x64x768xf32, #tpu.memory_space<vmem>> -> memref<1x1x768xf32, #tpu.memory_space<vmem>>
    %36 = tpu.memref_squeeze %35 : memref<1x1x768xf32, #tpu.memory_space<vmem>> -> memref<1x768xf32, #tpu.memory_space<vmem>>
    %37 = tpu.memref_slice %arg7[%11] : memref<2x!tpu.dma_semaphore, #tpu.memory_space<semaphore_mem>> -> memref<1x!tpu.dma_semaphore, #tpu.memory_space<semaphore_mem>>
    %38 = tpu.memref_squeeze %37 : memref<1x!tpu.dma_semaphore, #tpu.memory_space<semaphore_mem>> -> memref<!tpu.dma_semaphore, #tpu.memory_space<semaphore_mem>>
    tpu.wait_dma2 semaphore(%38 : memref<!tpu.dma_semaphore, #tpu.memory_space<semaphore_mem>>) src(%34 : memref<1x768xf32, #tpu.memory_space<any>>) dst(%36 : memref<1x768xf32, #tpu.memory_space<vmem>>)
    %c0_i32_24 = arith.constant 0 : i32
    %c0_i32_25 = arith.constant 0 : i32
    %39 = tpu.memref_slice %arg4[%c0_i32_24, %c0_i32_25] : memref<128x768xf32, #tpu.memory_space<any>> -> memref<1x768xf32, #tpu.memory_space<any>>
    %c4_i32 = arith.constant 4 : i32
    %c0_i32_26 = arith.constant 0 : i32
    %40 = tpu.memref_slice %arg6[%11, %c4_i32, %c0_i32_26] : memref<2x64x768xf32, #tpu.memory_space<vmem>> -> memref<1x1x768xf32, #tpu.memory_space<vmem>>
    %41 = tpu.memref_squeeze %40 : memref<1x1x768xf32, #tpu.memory_space<vmem>> -> memref<1x768xf32, #tpu.memory_space<vmem>>
    %42 = tpu.memref_slice %arg7[%11] : memref<2x!tpu.dma_semaphore, #tpu.memory_space<semaphore_mem>> -> memref<1x!tpu.dma_semaphore, #tpu.memory_space<semaphore_mem>>
    %43 = tpu.memref_squeeze %42 : memref<1x!tpu.dma_semaphore, #tpu.memory_space<semaphore_mem>> -> memref<!tpu.dma_semaphore, #tpu.memory_space<semaphore_mem>>
    tpu.wait_dma2 semaphore(%43 : memref<!tpu.dma_semaphore, #tpu.memory_space<semaphore_mem>>) src(%39 : memref<1x768xf32, #tpu.memory_space<any>>) dst(%41 : memref<1x768xf32, #tpu.memory_space<vmem>>)
    %c0_i32_27 = arith.constant 0 : i32
    %c0_i32_28 = arith.constant 0 : i32
    %44 = tpu.memref_slice %arg4[%c0_i32_27, %c0_i32_28] : memref<128x768xf32, #tpu.memory_space<any>> -> memref<1x768xf32, #tpu.memory_space<any>>
    %c5_i32 = arith.constant 5 : i32
    %c0_i32_29 = arith.constant 0 : i32
    %45 = tpu.memref_slice %arg6[%11, %c5_i32, %c0_i32_29] : memref<2x64x768xf32, #tpu.memory_space<vmem>> -> memref<1x1x768xf32, #tpu.memory_space<vmem>>
    %46 = tpu.memref_squeeze %45 : memref<1x1x768xf32, #tpu.memory_space<vmem>> -> memref<1x768xf32, #tpu.memory_space<vmem>>
    %47 = tpu.memref_slice %arg7[%11] : memref<2x!tpu.dma_semaphore, #tpu.memory_space<semaphore_mem>> -> memref<1x!tpu.dma_semaphore, #tpu.memory_space<semaphore_mem>>
    %48 = tpu.memref_squeeze %47 : memref<1x!tpu.dma_semaphore, #tpu.memory_space<semaphore_mem>> -> memref<!tpu.dma_semaphore, #tpu.memory_space<semaphore_mem>>
    tpu.wait_dma2 semaphore(%48 : memref<!tpu.dma_semaphore, #tpu.memory_space<semaphore_mem>>) src(%44 : memref<1x768xf32, #tpu.memory_space<any>>) dst(%46 : memref<1x768xf32, #tpu.memory_space<vmem>>)
    %c0_i32_30 = arith.constant 0 : i32
    %c0_i32_31 = arith.constant 0 : i32
    %49 = tpu.memref_slice %arg4[%c0_i32_30, %c0_i32_31] : memref<128x768xf32, #tpu.memory_space<any>> -> memref<1x768xf32, #tpu.memory_space<any>>
    %c6_i32 = arith.constant 6 : i32
    %c0_i32_32 = arith.constant 0 : i32
    %50 = tpu.memref_slice %arg6[%11, %c6_i32, %c0_i32_32] : memref<2x64x768xf32, #tpu.memory_space<vmem>> -> memref<1x1x768xf32, #tpu.memory_space<vmem>>
    %51 = tpu.memref_squeeze %50 : memref<1x1x768xf32, #tpu.memory_space<vmem>> -> memref<1x768xf32, #tpu.memory_space<vmem>>
    %52 = tpu.memref_slice %arg7[%11] : memref<2x!tpu.dma_semaphore, #tpu.memory_space<semaphore_mem>> -> memref<1x!tpu.dma_semaphore, #tpu.memory_space<semaphore_mem>>
    %53 = tpu.memref_squeeze %52 : memref<1x!tpu.dma_semaphore, #tpu.memory_space<semaphore_mem>> -> memref<!tpu.dma_semaphore, #tpu.memory_space<semaphore_mem>>
    tpu.wait_dma2 semaphore(%53 : memref<!tpu.dma_semaphore, #tpu.memory_space<semaphore_mem>>) src(%49 : memref<1x768xf32, #tpu.memory_space<any>>) dst(%51 : memref<1x768xf32, #tpu.memory_space<vmem>>)
    %c0_i32_33 = arith.constant 0 : i32
    %c0_i32_34 = arith.constant 0 : i32
    %54 = tpu.memref_slice %arg4[%c0_i32_33, %c0_i32_34] : memref<128x768xf32, #tpu.memory_space<any>> -> memref<1x768xf32, #tpu.memory_space<any>>
    %c7_i32 = arith.constant 7 : i32
    %c0_i32_35 = arith.constant 0 : i32
    %55 = tpu.memref_slice %arg6[%11, %c7_i32, %c0_i32_35] : memref<2x64x768xf32, #tpu.memory_space<vmem>> -> memref<1x1x768xf32, #tpu.memory_space<vmem>>
    %56 = tpu.memref_squeeze %55 : memref<1x1x768xf32, #tpu.memory_space<vmem>> -> memref<1x768xf32, #tpu.memory_space<vmem>>
    %57 = tpu.memref_slice %arg7[%11] : memref<2x!tpu.dma_semaphore, #tpu.memory_space<semaphore_mem>> -> memref<1x!tpu.dma_semaphore, #tpu.memory_space<semaphore_mem>>
    %58 = tpu.memref_squeeze %57 : memref<1x!tpu.dma_semaphore, #tpu.memory_space<semaphore_mem>> -> memref<!tpu.dma_semaphore, #tpu.memory_space<semaphore_mem>>
    tpu.wait_dma2 semaphore(%58 : memref<!tpu.dma_semaphore, #tpu.memory_space<semaphore_mem>>) src(%54 : memref<1x768xf32, #tpu.memory_space<any>>) dst(%56 : memref<1x768xf32, #tpu.memory_space<vmem>>)
    %c0_i32_36 = arith.constant 0 : i32
    %c0_i32_37 = arith.constant 0 : i32
    %59 = tpu.memref_slice %arg4[%c0_i32_36, %c0_i32_37] : memref<128x768xf32, #tpu.memory_space<any>> -> memref<1x768xf32, #tpu.memory_space<any>>
    %c8_i32 = arith.constant 8 : i32
    %c0_i32_38 = arith.constant 0 : i32
    %60 = tpu.memref_slice %arg6[%11, %c8_i32, %c0_i32_38] : memref<2x64x768xf32, #tpu.memory_space<vmem>> -> memref<1x1x768xf32, #tpu.memory_space<vmem>>
    %61 = tpu.memref_squeeze %60 : memref<1x1x768xf32, #tpu.memory_space<vmem>> -> memref<1x768xf32, #tpu.memory_space<vmem>>
    %62 = tpu.memref_slice %arg7[%11] : memref<2x!tpu.dma_semaphore, #tpu.memory_space<semaphore_mem>> -> memref<1x!tpu.dma_semaphore, #tpu.memory_space<semaphore_mem>>
    %63 = tpu.memref_squeeze %62 : memref<1x!tpu.dma_semaphore, #tpu.memory_space<semaphore_mem>> -> memref<!tpu.dma_semaphore, #tpu.memory_space<semaphore_mem>>
    tpu.wait_dma2 semaphore(%63 : memref<!tpu.dma_semaphore, #tpu.memory_space<semaphore_mem>>) src(%59 : memref<1x768xf32, #tpu.memory_space<any>>) dst(%61 : memref<1x768xf32, #tpu.memory_space<vmem>>)
    %c0_i32_39 = arith.constant 0 : i32
    %c0_i32_40 = arith.constant 0 : i32
    %64 = tpu.memref_slice %arg4[%c0_i32_39, %c0_i32_40] : memref<128x768xf32, #tpu.memory_space<any>> -> memref<1x768xf32, #tpu.memory_space<any>>
    %c9_i32 = arith.constant 9 : i32
    %c0_i32_41 = arith.constant 0 : i32
    %65 = tpu.memref_slice %arg6[%11, %c9_i32, %c0_i32_41] : memref<2x64x768xf32, #tpu.memory_space<vmem>> -> memref<1x1x768xf32, #tpu.memory_space<vmem>>
    %66 = tpu.memref_squeeze %65 : memref<1x1x768xf32, #tpu.memory_space<vmem>> -> memref<1x768xf32, #tpu.memory_space<vmem>>
    %67 = tpu.memref_slice %arg7[%11] : memref<2x!tpu.dma_semaphore, #tpu.memory_space<semaphore_mem>> -> memref<1x!tpu.dma_semaphore, #tpu.memory_space<semaphore_mem>>
    %68 = tpu.memref_squeeze %67 : memref<1x!tpu.dma_semaphore, #tpu.memory_space<semaphore_mem>> -> memref<!tpu.dma_semaphore, #tpu.memory_space<semaphore_mem>>
    tpu.wait_dma2 semaphore(%68 : memref<!tpu.dma_semaphore, #tpu.memory_space<semaphore_mem>>) src(%64 : memref<1x768xf32, #tpu.memory_space<any>>) dst(%66 : memref<1x768xf32, #tpu.memory_space<vmem>>)
    %c0_i32_42 = arith.constant 0 : i32
    %c0_i32_43 = arith.constant 0 : i32
    %69 = tpu.memref_slice %arg4[%c0_i32_42, %c0_i32_43] : memref<128x768xf32, #tpu.memory_space<any>> -> memref<1x768xf32, #tpu.memory_space<any>>
    %c10_i32 = arith.constant 10 : i32
    %c0_i32_44 = arith.constant 0 : i32
    %70 = tpu.memref_slice %arg6[%11, %c10_i32, %c0_i32_44] : memref<2x64x768xf32, #tpu.memory_space<vmem>> -> memref<1x1x768xf32, #tpu.memory_space<vmem>>
    %71 = tpu.memref_squeeze %70 : memref<1x1x768xf32, #tpu.memory_space<vmem>> -> memref<1x768xf32, #tpu.memory_space<vmem>>
    %72 = tpu.memref_slice %arg7[%11] : memref<2x!tpu.dma_semaphore, #tpu.memory_space<semaphore_mem>> -> memref<1x!tpu.dma_semaphore, #tpu.memory_space<semaphore_mem>>
    %73 = tpu.memref_squeeze %72 : memref<1x!tpu.dma_semaphore, #tpu.memory_space<semaphore_mem>> -> memref<!tpu.dma_semaphore, #tpu.memory_space<semaphore_mem>>
    tpu.wait_dma2 semaphore(%73 : memref<!tpu.dma_semaphore, #tpu.memory_space<semaphore_mem>>) src(%69 : memref<1x768xf32, #tpu.memory_space<any>>) dst(%71 : memref<1x768xf32, #tpu.memory_space<vmem>>)
    %c0_i32_45 = arith.constant 0 : i32
    %c0_i32_46 = arith.constant 0 : i32
    %74 = tpu.memref_slice %arg4[%c0_i32_45, %c0_i32_46] : memref<128x768xf32, #tpu.memory_space<any>> -> memref<1x768xf32, #tpu.memory_space<any>>
    %c11_i32 = arith.constant 11 : i32
    %c0_i32_47 = arith.constant 0 : i32
    %75 = tpu.memref_slice %arg6[%11, %c11_i32, %c0_i32_47] : memref<2x64x768xf32, #tpu.memory_space<vmem>> -> memref<1x1x768xf32, #tpu.memory_space<vmem>>
    %76 = tpu.memref_squeeze %75 : memref<1x1x768xf32, #tpu.memory_space<vmem>> -> memref<1x768xf32, #tpu.memory_space<vmem>>
    %77 = tpu.memref_slice %arg7[%11] : memref<2x!tpu.dma_semaphore, #tpu.memory_space<semaphore_mem>> -> memref<1x!tpu.dma_semaphore, #tpu.memory_space<semaphore_mem>>
    %78 = tpu.memref_squeeze %77 : memref<1x!tpu.dma_semaphore, #tpu.memory_space<semaphore_mem>> -> memref<!tpu.dma_semaphore, #tpu.memory_space<semaphore_mem>>
    tpu.wait_dma2 semaphore(%78 : memref<!tpu.dma_semaphore, #tpu.memory_space<semaphore_mem>>) src(%74 : memref<1x768xf32, #tpu.memory_space<any>>) dst(%76 : memref<1x768xf32, #tpu.memory_space<vmem>>)
    %c0_i32_48 = arith.constant 0 : i32
    %c0_i32_49 = arith.constant 0 : i32
    %79 = tpu.memref_slice %arg4[%c0_i32_48, %c0_i32_49] : memref<128x768xf32, #tpu.memory_space<any>> -> memref<1x768xf32, #tpu.memory_space<any>>
    %c12_i32 = arith.constant 12 : i32
    %c0_i32_50 = arith.constant 0 : i32
    %80 = tpu.memref_slice %arg6[%11, %c12_i32, %c0_i32_50] : memref<2x64x768xf32, #tpu.memory_space<vmem>> -> memref<1x1x768xf32, #tpu.memory_space<vmem>>
    %81 = tpu.memref_squeeze %80 : memref<1x1x768xf32, #tpu.memory_space<vmem>> -> memref<1x768xf32, #tpu.memory_space<vmem>>
    %82 = tpu.memref_slice %arg7[%11] : memref<2x!tpu.dma_semaphore, #tpu.memory_space<semaphore_mem>> -> memref<1x!tpu.dma_semaphore, #tpu.memory_space<semaphore_mem>>
    %83 = tpu.memref_squeeze %82 : memref<1x!tpu.dma_semaphore, #tpu.memory_space<semaphore_mem>> -> memref<!tpu.dma_semaphore, #tpu.memory_space<semaphore_mem>>
    tpu.wait_dma2 semaphore(%83 : memref<!tpu.dma_semaphore, #tpu.memory_space<semaphore_mem>>) src(%79 : memref<1x768xf32, #tpu.memory_space<any>>) dst(%81 : memref<1x768xf32, #tpu.memory_space<vmem>>)
    %c0_i32_51 = arith.constant 0 : i32
    %c0_i32_52 = arith.constant 0 : i32
    %84 = tpu.memref_slice %arg4[%c0_i32_51, %c0_i32_52] : memref<128x768xf32, #tpu.memory_space<any>> -> memref<1x768xf32, #tpu.memory_space<any>>
    %c13_i32 = arith.constant 13 : i32
    %c0_i32_53 = arith.constant 0 : i32
    %85 = tpu.memref_slice %arg6[%11, %c13_i32, %c0_i32_53] : memref<2x64x768xf32, #tpu.memory_space<vmem>> -> memref<1x1x768xf32, #tpu.memory_space<vmem>>
    %86 = tpu.memref_squeeze %85 : memref<1x1x768xf32, #tpu.memory_space<vmem>> -> memref<1x768xf32, #tpu.memory_space<vmem>>
    %87 = tpu.memref_slice %arg7[%11] : memref<2x!tpu.dma_semaphore, #tpu.memory_space<semaphore_mem>> -> memref<1x!tpu.dma_semaphore, #tpu.memory_space<semaphore_mem>>
    %88 = tpu.memref_squeeze %87 : memref<1x!tpu.dma_semaphore, #tpu.memory_space<semaphore_mem>> -> memref<!tpu.dma_semaphore, #tpu.memory_space<semaphore_mem>>
    tpu.wait_dma2 semaphore(%88 : memref<!tpu.dma_semaphore, #tpu.memory_space<semaphore_mem>>) src(%84 : memref<1x768xf32, #tpu.memory_space<any>>) dst(%86 : memref<1x768xf32, #tpu.memory_space<vmem>>)
    %c0_i32_54 = arith.constant 0 : i32
    %c0_i32_55 = arith.constant 0 : i32
    %89 = tpu.memref_slice %arg4[%c0_i32_54, %c0_i32_55] : memref<128x768xf32, #tpu.memory_space<any>> -> memref<1x768xf32, #tpu.memory_space<any>>
    %c14_i32 = arith.constant 14 : i32
    %c0_i32_56 = arith.constant 0 : i32
    %90 = tpu.memref_slice %arg6[%11, %c14_i32, %c0_i32_56] : memref<2x64x768xf32, #tpu.memory_space<vmem>> -> memref<1x1x768xf32, #tpu.memory_space<vmem>>
    %91 = tpu.memref_squeeze %90 : memref<1x1x768xf32, #tpu.memory_space<vmem>> -> memref<1x768xf32, #tpu.memory_space<vmem>>
    %92 = tpu.memref_slice %arg7[%11] : memref<2x!tpu.dma_semaphore, #tpu.memory_space<semaphore_mem>> -> memref<1x!tpu.dma_semaphore, #tpu.memory_space<semaphore_mem>>
    %93 = tpu.memref_squeeze %92 : memref<1x!tpu.dma_semaphore, #tpu.memory_space<semaphore_mem>> -> memref<!tpu.dma_semaphore, #tpu.memory_space<semaphore_mem>>
    tpu.wait_dma2 semaphore(%93 : memref<!tpu.dma_semaphore, #tpu.memory_space<semaphore_mem>>) src(%89 : memref<1x768xf32, #tpu.memory_space<any>>) dst(%91 : memref<1x768xf32, #tpu.memory_space<vmem>>)
    %c0_i32_57 = arith.constant 0 : i32
    %c0_i32_58 = arith.constant 0 : i32
    %94 = tpu.memref_slice %arg4[%c0_i32_57, %c0_i32_58] : memref<128x768xf32, #tpu.memory_space<any>> -> memref<1x768xf32, #tpu.memory_space<any>>
    %c15_i32 = arith.constant 15 : i32
    %c0_i32_59 = arith.constant 0 : i32
    %95 = tpu.memref_slice %arg6[%11, %c15_i32, %c0_i32_59] : memref<2x64x768xf32, #tpu.memory_space<vmem>> -> memref<1x1x768xf32, #tpu.memory_space<vmem>>
    %96 = tpu.memref_squeeze %95 : memref<1x1x768xf32, #tpu.memory_space<vmem>> -> memref<1x768xf32, #tpu.memory_space<vmem>>
    %97 = tpu.memref_slice %arg7[%11] : memref<2x!tpu.dma_semaphore, #tpu.memory_space<semaphore_mem>> -> memref<1x!tpu.dma_semaphore, #tpu.memory_space<semaphore_mem>>
    %98 = tpu.memref_squeeze %97 : memref<1x!tpu.dma_semaphore, #tpu.memory_space<semaphore_mem>> -> memref<!tpu.dma_semaphore, #tpu.memory_space<semaphore_mem>>
    tpu.wait_dma2 semaphore(%98 : memref<!tpu.dma_semaphore, #tpu.memory_space<semaphore_mem>>) src(%94 : memref<1x768xf32, #tpu.memory_space<any>>) dst(%96 : memref<1x768xf32, #tpu.memory_space<vmem>>)
    %c0_i32_60 = arith.constant 0 : i32
    %c0_i32_61 = arith.constant 0 : i32
    %99 = tpu.memref_slice %arg4[%c0_i32_60, %c0_i32_61] : memref<128x768xf32, #tpu.memory_space<any>> -> memref<1x768xf32, #tpu.memory_space<any>>
    %c16_i32 = arith.constant 16 : i32
    %c0_i32_62 = arith.constant 0 : i32
    %100 = tpu.memref_slice %arg6[%11, %c16_i32, %c0_i32_62] : memref<2x64x768xf32, #tpu.memory_space<vmem>> -> memref<1x1x768xf32, #tpu.memory_space<vmem>>
    %101 = tpu.memref_squeeze %100 : memref<1x1x768xf32, #tpu.memory_space<vmem>> -> memref<1x768xf32, #tpu.memory_space<vmem>>
    %102 = tpu.memref_slice %arg7[%11] : memref<2x!tpu.dma_semaphore, #tpu.memory_space<semaphore_mem>> -> memref<1x!tpu.dma_semaphore, #tpu.memory_space<semaphore_mem>>
    %103 = tpu.memref_squeeze %102 : memref<1x!tpu.dma_semaphore, #tpu.memory_space<semaphore_mem>> -> memref<!tpu.dma_semaphore, #tpu.memory_space<semaphore_mem>>
    tpu.wait_dma2 semaphore(%103 : memref<!tpu.dma_semaphore, #tpu.memory_space<semaphore_mem>>) src(%99 : memref<1x768xf32, #tpu.memory_space<any>>) dst(%101 : memref<1x768xf32, #tpu.memory_space<vmem>>)
    %c0_i32_63 = arith.constant 0 : i32
    %c0_i32_64 = arith.constant 0 : i32
    %104 = tpu.memref_slice %arg4[%c0_i32_63, %c0_i32_64] : memref<128x768xf32, #tpu.memory_space<any>> -> memref<1x768xf32, #tpu.memory_space<any>>
    %c17_i32 = arith.constant 17 : i32
    %c0_i32_65 = arith.constant 0 : i32
    %105 = tpu.memref_slice %arg6[%11, %c17_i32, %c0_i32_65] : memref<2x64x768xf32, #tpu.memory_space<vmem>> -> memref<1x1x768xf32, #tpu.memory_space<vmem>>
    %106 = tpu.memref_squeeze %105 : memref<1x1x768xf32, #tpu.memory_space<vmem>> -> memref<1x768xf32, #tpu.memory_space<vmem>>
    %107 = tpu.memref_slice %arg7[%11] : memref<2x!tpu.dma_semaphore, #tpu.memory_space<semaphore_mem>> -> memref<1x!tpu.dma_semaphore, #tpu.memory_space<semaphore_mem>>
    %108 = tpu.memref_squeeze %107 : memref<1x!tpu.dma_semaphore, #tpu.memory_space<semaphore_mem>> -> memref<!tpu.dma_semaphore, #tpu.memory_space<semaphore_mem>>
    tpu.wait_dma2 semaphore(%108 : memref<!tpu.dma_semaphore, #tpu.memory_space<semaphore_mem>>) src(%104 : memref<1x768xf32, #tpu.memory_space<any>>) dst(%106 : memref<1x768xf32, #tpu.memory_space<vmem>>)
    %c0_i32_66 = arith.constant 0 : i32
    %c0_i32_67 = arith.constant 0 : i32
    %109 = tpu.memref_slice %arg4[%c0_i32_66, %c0_i32_67] : memref<128x768xf32, #tpu.memory_space<any>> -> memref<1x768xf32, #tpu.memory_space<any>>
    %c18_i32 = arith.constant 18 : i32
    %c0_i32_68 = arith.constant 0 : i32
    %110 = tpu.memref_slice %arg6[%11, %c18_i32, %c0_i32_68] : memref<2x64x768xf32, #tpu.memory_space<vmem>> -> memref<1x1x768xf32, #tpu.memory_space<vmem>>
    %111 = tpu.memref_squeeze %110 : memref<1x1x768xf32, #tpu.memory_space<vmem>> -> memref<1x768xf32, #tpu.memory_space<vmem>>
    %112 = tpu.memref_slice %arg7[%11] : memref<2x!tpu.dma_semaphore, #tpu.memory_space<semaphore_mem>> -> memref<1x!tpu.dma_semaphore, #tpu.memory_space<semaphore_mem>>
    %113 = tpu.memref_squeeze %112 : memref<1x!tpu.dma_semaphore, #tpu.memory_space<semaphore_mem>> -> memref<!tpu.dma_semaphore, #tpu.memory_space<semaphore_mem>>
    tpu.wait_dma2 semaphore(%113 : memref<!tpu.dma_semaphore, #tpu.memory_space<semaphore_mem>>) src(%109 : memref<1x768xf32, #tpu.memory_space<any>>) dst(%111 : memref<1x768xf32, #tpu.memory_space<vmem>>)
    %c0_i32_69 = arith.constant 0 : i32
    %c0_i32_70 = arith.constant 0 : i32
    %114 = tpu.memref_slice %arg4[%c0_i32_69, %c0_i32_70] : memref<128x768xf32, #tpu.memory_space<any>> -> memref<1x768xf32, #tpu.memory_space<any>>
    %c19_i32 = arith.constant 19 : i32
    %c0_i32_71 = arith.constant 0 : i32
    %115 = tpu.memref_slice %arg6[%11, %c19_i32, %c0_i32_71] : memref<2x64x768xf32, #tpu.memory_space<vmem>> -> memref<1x1x768xf32, #tpu.memory_space<vmem>>
    %116 = tpu.memref_squeeze %115 : memref<1x1x768xf32, #tpu.memory_space<vmem>> -> memref<1x768xf32, #tpu.memory_space<vmem>>
    %117 = tpu.memref_slice %arg7[%11] : memref<2x!tpu.dma_semaphore, #tpu.memory_space<semaphore_mem>> -> memref<1x!tpu.dma_semaphore, #tpu.memory_space<semaphore_mem>>
    %118 = tpu.memref_squeeze %117 : memref<1x!tpu.dma_semaphore, #tpu.memory_space<semaphore_mem>> -> memref<!tpu.dma_semaphore, #tpu.memory_space<semaphore_mem>>
    tpu.wait_dma2 semaphore(%118 : memref<!tpu.dma_semaphore, #tpu.memory_space<semaphore_mem>>) src(%114 : memref<1x768xf32, #tpu.memory_space<any>>) dst(%116 : memref<1x768xf32, #tpu.memory_space<vmem>>)
    %c0_i32_72 = arith.constant 0 : i32
    %c0_i32_73 = arith.constant 0 : i32
    %119 = tpu.memref_slice %arg4[%c0_i32_72, %c0_i32_73] : memref<128x768xf32, #tpu.memory_space<any>> -> memref<1x768xf32, #tpu.memory_space<any>>
    %c20_i32 = arith.constant 20 : i32
    %c0_i32_74 = arith.constant 0 : i32
    %120 = tpu.memref_slice %arg6[%11, %c20_i32, %c0_i32_74] : memref<2x64x768xf32, #tpu.memory_space<vmem>> -> memref<1x1x768xf32, #tpu.memory_space<vmem>>
    %121 = tpu.memref_squeeze %120 : memref<1x1x768xf32, #tpu.memory_space<vmem>> -> memref<1x768xf32, #tpu.memory_space<vmem>>
    %122 = tpu.memref_slice %arg7[%11] : memref<2x!tpu.dma_semaphore, #tpu.memory_space<semaphore_mem>> -> memref<1x!tpu.dma_semaphore, #tpu.memory_space<semaphore_mem>>
    %123 = tpu.memref_squeeze %122 : memref<1x!tpu.dma_semaphore, #tpu.memory_space<semaphore_mem>> -> memref<!tpu.dma_semaphore, #tpu.memory_space<semaphore_mem>>
    tpu.wait_dma2 semaphore(%123 : memref<!tpu.dma_semaphore, #tpu.memory_space<semaphore_mem>>) src(%119 : memref<1x768xf32, #tpu.memory_space<any>>) dst(%121 : memref<1x768xf32, #tpu.memory_space<vmem>>)
    %c0_i32_75 = arith.constant 0 : i32
    %c0_i32_76 = arith.constant 0 : i32
    %124 = tpu.memref_slice %arg4[%c0_i32_75, %c0_i32_76] : memref<128x768xf32, #tpu.memory_space<any>> -> memref<1x768xf32, #tpu.memory_space<any>>
    %c21_i32 = arith.constant 21 : i32
    %c0_i32_77 = arith.constant 0 : i32
    %125 = tpu.memref_slice %arg6[%11, %c21_i32, %c0_i32_77] : memref<2x64x768xf32, #tpu.memory_space<vmem>> -> memref<1x1x768xf32, #tpu.memory_space<vmem>>
    %126 = tpu.memref_squeeze %125 : memref<1x1x768xf32, #tpu.memory_space<vmem>> -> memref<1x768xf32, #tpu.memory_space<vmem>>
    %127 = tpu.memref_slice %arg7[%11] : memref<2x!tpu.dma_semaphore, #tpu.memory_space<semaphore_mem>> -> memref<1x!tpu.dma_semaphore, #tpu.memory_space<semaphore_mem>>
    %128 = tpu.memref_squeeze %127 : memref<1x!tpu.dma_semaphore, #tpu.memory_space<semaphore_mem>> -> memref<!tpu.dma_semaphore, #tpu.memory_space<semaphore_mem>>
    tpu.wait_dma2 semaphore(%128 : memref<!tpu.dma_semaphore, #tpu.memory_space<semaphore_mem>>) src(%124 : memref<1x768xf32, #tpu.memory_space<any>>) dst(%126 : memref<1x768xf32, #tpu.memory_space<vmem>>)
    %c0_i32_78 = arith.constant 0 : i32
    %c0_i32_79 = arith.constant 0 : i32
    %129 = tpu.memref_slice %arg4[%c0_i32_78, %c0_i32_79] : memref<128x768xf32, #tpu.memory_space<any>> -> memref<1x768xf32, #tpu.memory_space<any>>
    %c22_i32 = arith.constant 22 : i32
    %c0_i32_80 = arith.constant 0 : i32
    %130 = tpu.memref_slice %arg6[%11, %c22_i32, %c0_i32_80] : memref<2x64x768xf32, #tpu.memory_space<vmem>> -> memref<1x1x768xf32, #tpu.memory_space<vmem>>
    %131 = tpu.memref_squeeze %130 : memref<1x1x768xf32, #tpu.memory_space<vmem>> -> memref<1x768xf32, #tpu.memory_space<vmem>>
    %132 = tpu.memref_slice %arg7[%11] : memref<2x!tpu.dma_semaphore, #tpu.memory_space<semaphore_mem>> -> memref<1x!tpu.dma_semaphore, #tpu.memory_space<semaphore_mem>>
    %133 = tpu.memref_squeeze %132 : memref<1x!tpu.dma_semaphore, #tpu.memory_space<semaphore_mem>> -> memref<!tpu.dma_semaphore, #tpu.memory_space<semaphore_mem>>
    tpu.wait_dma2 semaphore(%133 : memref<!tpu.dma_semaphore, #tpu.memory_space<semaphore_mem>>) src(%129 : memref<1x768xf32, #tpu.memory_space<any>>) dst(%131 : memref<1x768xf32, #tpu.memory_space<vmem>>)
    %c0_i32_81 = arith.constant 0 : i32
    %c0_i32_82 = arith.constant 0 : i32
    %134 = tpu.memref_slice %arg4[%c0_i32_81, %c0_i32_82] : memref<128x768xf32, #tpu.memory_space<any>> -> memref<1x768xf32, #tpu.memory_space<any>>
    %c23_i32 = arith.constant 23 : i32
    %c0_i32_83 = arith.constant 0 : i32
    %135 = tpu.memref_slice %arg6[%11, %c23_i32, %c0_i32_83] : memref<2x64x768xf32, #tpu.memory_space<vmem>> -> memref<1x1x768xf32, #tpu.memory_space<vmem>>
    %136 = tpu.memref_squeeze %135 : memref<1x1x768xf32, #tpu.memory_space<vmem>> -> memref<1x768xf32, #tpu.memory_space<vmem>>
    %137 = tpu.memref_slice %arg7[%11] : memref<2x!tpu.dma_semaphore, #tpu.memory_space<semaphore_mem>> -> memref<1x!tpu.dma_semaphore, #tpu.memory_space<semaphore_mem>>
    %138 = tpu.memref_squeeze %137 : memref<1x!tpu.dma_semaphore, #tpu.memory_space<semaphore_mem>> -> memref<!tpu.dma_semaphore, #tpu.memory_space<semaphore_mem>>
    tpu.wait_dma2 semaphore(%138 : memref<!tpu.dma_semaphore, #tpu.memory_space<semaphore_mem>>) src(%134 : memref<1x768xf32, #tpu.memory_space<any>>) dst(%136 : memref<1x768xf32, #tpu.memory_space<vmem>>)
    %c0_i32_84 = arith.constant 0 : i32
    %c0_i32_85 = arith.constant 0 : i32
    %139 = tpu.memref_slice %arg4[%c0_i32_84, %c0_i32_85] : memref<128x768xf32, #tpu.memory_space<any>> -> memref<1x768xf32, #tpu.memory_space<any>>
    %c24_i32 = arith.constant 24 : i32
    %c0_i32_86 = arith.constant 0 : i32
    %140 = tpu.memref_slice %arg6[%11, %c24_i32, %c0_i32_86] : memref<2x64x768xf32, #tpu.memory_space<vmem>> -> memref<1x1x768xf32, #tpu.memory_space<vmem>>
    %141 = tpu.memref_squeeze %140 : memref<1x1x768xf32, #tpu.memory_space<vmem>> -> memref<1x768xf32, #tpu.memory_space<vmem>>
    %142 = tpu.memref_slice %arg7[%11] : memref<2x!tpu.dma_semaphore, #tpu.memory_space<semaphore_mem>> -> memref<1x!tpu.dma_semaphore, #tpu.memory_space<semaphore_mem>>
    %143 = tpu.memref_squeeze %142 : memref<1x!tpu.dma_semaphore, #tpu.memory_space<semaphore_mem>> -> memref<!tpu.dma_semaphore, #tpu.memory_space<semaphore_mem>>
    tpu.wait_dma2 semaphore(%143 : memref<!tpu.dma_semaphore, #tpu.memory_space<semaphore_mem>>) src(%139 : memref<1x768xf32, #tpu.memory_space<any>>) dst(%141 : memref<1x768xf32, #tpu.memory_space<vmem>>)
    %c0_i32_87 = arith.constant 0 : i32
    %c0_i32_88 = arith.constant 0 : i32
    %144 = tpu.memref_slice %arg4[%c0_i32_87, %c0_i32_88] : memref<128x768xf32, #tpu.memory_space<any>> -> memref<1x768xf32, #tpu.memory_space<any>>
    %c25_i32 = arith.constant 25 : i32
    %c0_i32_89 = arith.constant 0 : i32
    %145 = tpu.memref_slice %arg6[%11, %c25_i32, %c0_i32_89] : memref<2x64x768xf32, #tpu.memory_space<vmem>> -> memref<1x1x768xf32, #tpu.memory_space<vmem>>
    %146 = tpu.memref_squeeze %145 : memref<1x1x768xf32, #tpu.memory_space<vmem>> -> memref<1x768xf32, #tpu.memory_space<vmem>>
    %147 = tpu.memref_slice %arg7[%11] : memref<2x!tpu.dma_semaphore, #tpu.memory_space<semaphore_mem>> -> memref<1x!tpu.dma_semaphore, #tpu.memory_space<semaphore_mem>>
    %148 = tpu.memref_squeeze %147 : memref<1x!tpu.dma_semaphore, #tpu.memory_space<semaphore_mem>> -> memref<!tpu.dma_semaphore, #tpu.memory_space<semaphore_mem>>
    tpu.wait_dma2 semaphore(%148 : memref<!tpu.dma_semaphore, #tpu.memory_space<semaphore_mem>>) src(%144 : memref<1x768xf32, #tpu.memory_space<any>>) dst(%146 : memref<1x768xf32, #tpu.memory_space<vmem>>)
    %c0_i32_90 = arith.constant 0 : i32
    %c0_i32_91 = arith.constant 0 : i32
    %149 = tpu.memref_slice %arg4[%c0_i32_90, %c0_i32_91] : memref<128x768xf32, #tpu.memory_space<any>> -> memref<1x768xf32, #tpu.memory_space<any>>
    %c26_i32 = arith.constant 26 : i32
    %c0_i32_92 = arith.constant 0 : i32
    %150 = tpu.memref_slice %arg6[%11, %c26_i32, %c0_i32_92] : memref<2x64x768xf32, #tpu.memory_space<vmem>> -> memref<1x1x768xf32, #tpu.memory_space<vmem>>
    %151 = tpu.memref_squeeze %150 : memref<1x1x768xf32, #tpu.memory_space<vmem>> -> memref<1x768xf32, #tpu.memory_space<vmem>>
    %152 = tpu.memref_slice %arg7[%11] : memref<2x!tpu.dma_semaphore, #tpu.memory_space<semaphore_mem>> -> memref<1x!tpu.dma_semaphore, #tpu.memory_space<semaphore_mem>>
    %153 = tpu.memref_squeeze %152 : memref<1x!tpu.dma_semaphore, #tpu.memory_space<semaphore_mem>> -> memref<!tpu.dma_semaphore, #tpu.memory_space<semaphore_mem>>
    tpu.wait_dma2 semaphore(%153 : memref<!tpu.dma_semaphore, #tpu.memory_space<semaphore_mem>>) src(%149 : memref<1x768xf32, #tpu.memory_space<any>>) dst(%151 : memref<1x768xf32, #tpu.memory_space<vmem>>)
    %c0_i32_93 = arith.constant 0 : i32
    %c0_i32_94 = arith.constant 0 : i32
    %154 = tpu.memref_slice %arg4[%c0_i32_93, %c0_i32_94] : memref<128x768xf32, #tpu.memory_space<any>> -> memref<1x768xf32, #tpu.memory_space<any>>
    %c27_i32 = arith.constant 27 : i32
    %c0_i32_95 = arith.constant 0 : i32
    %155 = tpu.memref_slice %arg6[%11, %c27_i32, %c0_i32_95] : memref<2x64x768xf32, #tpu.memory_space<vmem>> -> memref<1x1x768xf32, #tpu.memory_space<vmem>>
    %156 = tpu.memref_squeeze %155 : memref<1x1x768xf32, #tpu.memory_space<vmem>> -> memref<1x768xf32, #tpu.memory_space<vmem>>
    %157 = tpu.memref_slice %arg7[%11] : memref<2x!tpu.dma_semaphore, #tpu.memory_space<semaphore_mem>> -> memref<1x!tpu.dma_semaphore, #tpu.memory_space<semaphore_mem>>
    %158 = tpu.memref_squeeze %157 : memref<1x!tpu.dma_semaphore, #tpu.memory_space<semaphore_mem>> -> memref<!tpu.dma_semaphore, #tpu.memory_space<semaphore_mem>>
    tpu.wait_dma2 semaphore(%158 : memref<!tpu.dma_semaphore, #tpu.memory_space<semaphore_mem>>) src(%154 : memref<1x768xf32, #tpu.memory_space<any>>) dst(%156 : memref<1x768xf32, #tpu.memory_space<vmem>>)
    %c0_i32_96 = arith.constant 0 : i32
    %c0_i32_97 = arith.constant 0 : i32
    %159 = tpu.memref_slice %arg4[%c0_i32_96, %c0_i32_97] : memref<128x768xf32, #tpu.memory_space<any>> -> memref<1x768xf32, #tpu.memory_space<any>>
    %c28_i32 = arith.constant 28 : i32
    %c0_i32_98 = arith.constant 0 : i32
    %160 = tpu.memref_slice %arg6[%11, %c28_i32, %c0_i32_98] : memref<2x64x768xf32, #tpu.memory_space<vmem>> -> memref<1x1x768xf32, #tpu.memory_space<vmem>>
    %161 = tpu.memref_squeeze %160 : memref<1x1x768xf32, #tpu.memory_space<vmem>> -> memref<1x768xf32, #tpu.memory_space<vmem>>
    %162 = tpu.memref_slice %arg7[%11] : memref<2x!tpu.dma_semaphore, #tpu.memory_space<semaphore_mem>> -> memref<1x!tpu.dma_semaphore, #tpu.memory_space<semaphore_mem>>
    %163 = tpu.memref_squeeze %162 : memref<1x!tpu.dma_semaphore, #tpu.memory_space<semaphore_mem>> -> memref<!tpu.dma_semaphore, #tpu.memory_space<semaphore_mem>>
    tpu.wait_dma2 semaphore(%163 : memref<!tpu.dma_semaphore, #tpu.memory_space<semaphore_mem>>) src(%159 : memref<1x768xf32, #tpu.memory_space<any>>) dst(%161 : memref<1x768xf32, #tpu.memory_space<vmem>>)
    %c0_i32_99 = arith.constant 0 : i32
    %c0_i32_100 = arith.constant 0 : i32
    %164 = tpu.memref_slice %arg4[%c0_i32_99, %c0_i32_100] : memref<128x768xf32, #tpu.memory_space<any>> -> memref<1x768xf32, #tpu.memory_space<any>>
    %c29_i32 = arith.constant 29 : i32
    %c0_i32_101 = arith.constant 0 : i32
    %165 = tpu.memref_slice %arg6[%11, %c29_i32, %c0_i32_101] : memref<2x64x768xf32, #tpu.memory_space<vmem>> -> memref<1x1x768xf32, #tpu.memory_space<vmem>>
    %166 = tpu.memref_squeeze %165 : memref<1x1x768xf32, #tpu.memory_space<vmem>> -> memref<1x768xf32, #tpu.memory_space<vmem>>
    %167 = tpu.memref_slice %arg7[%11] : memref<2x!tpu.dma_semaphore, #tpu.memory_space<semaphore_mem>> -> memref<1x!tpu.dma_semaphore, #tpu.memory_space<semaphore_mem>>
    %168 = tpu.memref_squeeze %167 : memref<1x!tpu.dma_semaphore, #tpu.memory_space<semaphore_mem>> -> memref<!tpu.dma_semaphore, #tpu.memory_space<semaphore_mem>>
    tpu.wait_dma2 semaphore(%168 : memref<!tpu.dma_semaphore, #tpu.memory_space<semaphore_mem>>) src(%164 : memref<1x768xf32, #tpu.memory_space<any>>) dst(%166 : memref<1x768xf32, #tpu.memory_space<vmem>>)
    %c0_i32_102 = arith.constant 0 : i32
    %c0_i32_103 = arith.constant 0 : i32
    %169 = tpu.memref_slice %arg4[%c0_i32_102, %c0_i32_103] : memref<128x768xf32, #tpu.memory_space<any>> -> memref<1x768xf32, #tpu.memory_space<any>>
    %c30_i32 = arith.constant 30 : i32
    %c0_i32_104 = arith.constant 0 : i32
    %170 = tpu.memref_slice %arg6[%11, %c30_i32, %c0_i32_104] : memref<2x64x768xf32, #tpu.memory_space<vmem>> -> memref<1x1x768xf32, #tpu.memory_space<vmem>>
    %171 = tpu.memref_squeeze %170 : memref<1x1x768xf32, #tpu.memory_space<vmem>> -> memref<1x768xf32, #tpu.memory_space<vmem>>
    %172 = tpu.memref_slice %arg7[%11] : memref<2x!tpu.dma_semaphore, #tpu.memory_space<semaphore_mem>> -> memref<1x!tpu.dma_semaphore, #tpu.memory_space<semaphore_mem>>
    %173 = tpu.memref_squeeze %172 : memref<1x!tpu.dma_semaphore, #tpu.memory_space<semaphore_mem>> -> memref<!tpu.dma_semaphore, #tpu.memory_space<semaphore_mem>>
    tpu.wait_dma2 semaphore(%173 : memref<!tpu.dma_semaphore, #tpu.memory_space<semaphore_mem>>) src(%169 : memref<1x768xf32, #tpu.memory_space<any>>) dst(%171 : memref<1x768xf32, #tpu.memory_space<vmem>>)
    %c0_i32_105 = arith.constant 0 : i32
    %c0_i32_106 = arith.constant 0 : i32
    %174 = tpu.memref_slice %arg4[%c0_i32_105, %c0_i32_106] : memref<128x768xf32, #tpu.memory_space<any>> -> memref<1x768xf32, #tpu.memory_space<any>>
    %c31_i32 = arith.constant 31 : i32
    %c0_i32_107 = arith.constant 0 : i32
    %175 = tpu.memref_slice %arg6[%11, %c31_i32, %c0_i32_107] : memref<2x64x768xf32, #tpu.memory_space<vmem>> -> memref<1x1x768xf32, #tpu.memory_space<vmem>>
    %176 = tpu.memref_squeeze %175 : memref<1x1x768xf32, #tpu.memory_space<vmem>> -> memref<1x768xf32, #tpu.memory_space<vmem>>
    %177 = tpu.memref_slice %arg7[%11] : memref<2x!tpu.dma_semaphore, #tpu.memory_space<semaphore_mem>> -> memref<1x!tpu.dma_semaphore, #tpu.memory_space<semaphore_mem>>
    %178 = tpu.memref_squeeze %177 : memref<1x!tpu.dma_semaphore, #tpu.memory_space<semaphore_mem>> -> memref<!tpu.dma_semaphore, #tpu.memory_space<semaphore_mem>>
    tpu.wait_dma2 semaphore(%178 : memref<!tpu.dma_semaphore, #tpu.memory_space<semaphore_mem>>) src(%174 : memref<1x768xf32, #tpu.memory_space<any>>) dst(%176 : memref<1x768xf32, #tpu.memory_space<vmem>>)
    %c0_i32_108 = arith.constant 0 : i32
    %c0_i32_109 = arith.constant 0 : i32
    %179 = tpu.memref_slice %arg4[%c0_i32_108, %c0_i32_109] : memref<128x768xf32, #tpu.memory_space<any>> -> memref<1x768xf32, #tpu.memory_space<any>>
    %c32_i32 = arith.constant 32 : i32
    %c0_i32_110 = arith.constant 0 : i32
    %180 = tpu.memref_slice %arg6[%11, %c32_i32, %c0_i32_110] : memref<2x64x768xf32, #tpu.memory_space<vmem>> -> memref<1x1x768xf32, #tpu.memory_space<vmem>>
    %181 = tpu.memref_squeeze %180 : memref<1x1x768xf32, #tpu.memory_space<vmem>> -> memref<1x768xf32, #tpu.memory_space<vmem>>
    %182 = tpu.memref_slice %arg7[%11] : memref<2x!tpu.dma_semaphore, #tpu.memory_space<semaphore_mem>> -> memref<1x!tpu.dma_semaphore, #tpu.memory_space<semaphore_mem>>
    %183 = tpu.memref_squeeze %182 : memref<1x!tpu.dma_semaphore, #tpu.memory_space<semaphore_mem>> -> memref<!tpu.dma_semaphore, #tpu.memory_space<semaphore_mem>>
    tpu.wait_dma2 semaphore(%183 : memref<!tpu.dma_semaphore, #tpu.memory_space<semaphore_mem>>) src(%179 : memref<1x768xf32, #tpu.memory_space<any>>) dst(%181 : memref<1x768xf32, #tpu.memory_space<vmem>>)
    %c0_i32_111 = arith.constant 0 : i32
    %c0_i32_112 = arith.constant 0 : i32
    %184 = tpu.memref_slice %arg4[%c0_i32_111, %c0_i32_112] : memref<128x768xf32, #tpu.memory_space<any>> -> memref<1x768xf32, #tpu.memory_space<any>>
    %c33_i32 = arith.constant 33 : i32
    %c0_i32_113 = arith.constant 0 : i32
    %185 = tpu.memref_slice %arg6[%11, %c33_i32, %c0_i32_113] : memref<2x64x768xf32, #tpu.memory_space<vmem>> -> memref<1x1x768xf32, #tpu.memory_space<vmem>>
    %186 = tpu.memref_squeeze %185 : memref<1x1x768xf32, #tpu.memory_space<vmem>> -> memref<1x768xf32, #tpu.memory_space<vmem>>
    %187 = tpu.memref_slice %arg7[%11] : memref<2x!tpu.dma_semaphore, #tpu.memory_space<semaphore_mem>> -> memref<1x!tpu.dma_semaphore, #tpu.memory_space<semaphore_mem>>
    %188 = tpu.memref_squeeze %187 : memref<1x!tpu.dma_semaphore, #tpu.memory_space<semaphore_mem>> -> memref<!tpu.dma_semaphore, #tpu.memory_space<semaphore_mem>>
    tpu.wait_dma2 semaphore(%188 : memref<!tpu.dma_semaphore, #tpu.memory_space<semaphore_mem>>) src(%184 : memref<1x768xf32, #tpu.memory_space<any>>) dst(%186 : memref<1x768xf32, #tpu.memory_space<vmem>>)
    %c0_i32_114 = arith.constant 0 : i32
    %c0_i32_115 = arith.constant 0 : i32
    %189 = tpu.memref_slice %arg4[%c0_i32_114, %c0_i32_115] : memref<128x768xf32, #tpu.memory_space<any>> -> memref<1x768xf32, #tpu.memory_space<any>>
    %c34_i32 = arith.constant 34 : i32
    %c0_i32_116 = arith.constant 0 : i32
    %190 = tpu.memref_slice %arg6[%11, %c34_i32, %c0_i32_116] : memref<2x64x768xf32, #tpu.memory_space<vmem>> -> memref<1x1x768xf32, #tpu.memory_space<vmem>>
    %191 = tpu.memref_squeeze %190 : memref<1x1x768xf32, #tpu.memory_space<vmem>> -> memref<1x768xf32, #tpu.memory_space<vmem>>
    %192 = tpu.memref_slice %arg7[%11] : memref<2x!tpu.dma_semaphore, #tpu.memory_space<semaphore_mem>> -> memref<1x!tpu.dma_semaphore, #tpu.memory_space<semaphore_mem>>
    %193 = tpu.memref_squeeze %192 : memref<1x!tpu.dma_semaphore, #tpu.memory_space<semaphore_mem>> -> memref<!tpu.dma_semaphore, #tpu.memory_space<semaphore_mem>>
    tpu.wait_dma2 semaphore(%193 : memref<!tpu.dma_semaphore, #tpu.memory_space<semaphore_mem>>) src(%189 : memref<1x768xf32, #tpu.memory_space<any>>) dst(%191 : memref<1x768xf32, #tpu.memory_space<vmem>>)
    %c0_i32_117 = arith.constant 0 : i32
    %c0_i32_118 = arith.constant 0 : i32
    %194 = tpu.memref_slice %arg4[%c0_i32_117, %c0_i32_118] : memref<128x768xf32, #tpu.memory_space<any>> -> memref<1x768xf32, #tpu.memory_space<any>>
    %c35_i32 = arith.constant 35 : i32
    %c0_i32_119 = arith.constant 0 : i32
    %195 = tpu.memref_slice %arg6[%11, %c35_i32, %c0_i32_119] : memref<2x64x768xf32, #tpu.memory_space<vmem>> -> memref<1x1x768xf32, #tpu.memory_space<vmem>>
    %196 = tpu.memref_squeeze %195 : memref<1x1x768xf32, #tpu.memory_space<vmem>> -> memref<1x768xf32, #tpu.memory_space<vmem>>
    %197 = tpu.memref_slice %arg7[%11] : memref<2x!tpu.dma_semaphore, #tpu.memory_space<semaphore_mem>> -> memref<1x!tpu.dma_semaphore, #tpu.memory_space<semaphore_mem>>
    %198 = tpu.memref_squeeze %197 : memref<1x!tpu.dma_semaphore, #tpu.memory_space<semaphore_mem>> -> memref<!tpu.dma_semaphore, #tpu.memory_space<semaphore_mem>>
    tpu.wait_dma2 semaphore(%198 : memref<!tpu.dma_semaphore, #tpu.memory_space<semaphore_mem>>) src(%194 : memref<1x768xf32, #tpu.memory_space<any>>) dst(%196 : memref<1x768xf32, #tpu.memory_space<vmem>>)
    %c0_i32_120 = arith.constant 0 : i32
    %c0_i32_121 = arith.constant 0 : i32
    %199 = tpu.memref_slice %arg4[%c0_i32_120, %c0_i32_121] : memref<128x768xf32, #tpu.memory_space<any>> -> memref<1x768xf32, #tpu.memory_space<any>>
    %c36_i32 = arith.constant 36 : i32
    %c0_i32_122 = arith.constant 0 : i32
    %200 = tpu.memref_slice %arg6[%11, %c36_i32, %c0_i32_122] : memref<2x64x768xf32, #tpu.memory_space<vmem>> -> memref<1x1x768xf32, #tpu.memory_space<vmem>>
    %201 = tpu.memref_squeeze %200 : memref<1x1x768xf32, #tpu.memory_space<vmem>> -> memref<1x768xf32, #tpu.memory_space<vmem>>
    %202 = tpu.memref_slice %arg7[%11] : memref<2x!tpu.dma_semaphore, #tpu.memory_space<semaphore_mem>> -> memref<1x!tpu.dma_semaphore, #tpu.memory_space<semaphore_mem>>
    %203 = tpu.memref_squeeze %202 : memref<1x!tpu.dma_semaphore, #tpu.memory_space<semaphore_mem>> -> memref<!tpu.dma_semaphore, #tpu.memory_space<semaphore_mem>>
    tpu.wait_dma2 semaphore(%203 : memref<!tpu.dma_semaphore, #tpu.memory_space<semaphore_mem>>) src(%199 : memref<1x768xf32, #tpu.memory_space<any>>) dst(%201 : memref<1x768xf32, #tpu.memory_space<vmem>>)
    %c0_i32_123 = arith.constant 0 : i32
    %c0_i32_124 = arith.constant 0 : i32
    %204 = tpu.memref_slice %arg4[%c0_i32_123, %c0_i32_124] : memref<128x768xf32, #tpu.memory_space<any>> -> memref<1x768xf32, #tpu.memory_space<any>>
    %c37_i32 = arith.constant 37 : i32
    %c0_i32_125 = arith.constant 0 : i32
    %205 = tpu.memref_slice %arg6[%11, %c37_i32, %c0_i32_125] : memref<2x64x768xf32, #tpu.memory_space<vmem>> -> memref<1x1x768xf32, #tpu.memory_space<vmem>>
    %206 = tpu.memref_squeeze %205 : memref<1x1x768xf32, #tpu.memory_space<vmem>> -> memref<1x768xf32, #tpu.memory_space<vmem>>
    %207 = tpu.memref_slice %arg7[%11] : memref<2x!tpu.dma_semaphore, #tpu.memory_space<semaphore_mem>> -> memref<1x!tpu.dma_semaphore, #tpu.memory_space<semaphore_mem>>
    %208 = tpu.memref_squeeze %207 : memref<1x!tpu.dma_semaphore, #tpu.memory_space<semaphore_mem>> -> memref<!tpu.dma_semaphore, #tpu.memory_space<semaphore_mem>>
    tpu.wait_dma2 semaphore(%208 : memref<!tpu.dma_semaphore, #tpu.memory_space<semaphore_mem>>) src(%204 : memref<1x768xf32, #tpu.memory_space<any>>) dst(%206 : memref<1x768xf32, #tpu.memory_space<vmem>>)
    %c0_i32_126 = arith.constant 0 : i32
    %c0_i32_127 = arith.constant 0 : i32
    %209 = tpu.memref_slice %arg4[%c0_i32_126, %c0_i32_127] : memref<128x768xf32, #tpu.memory_space<any>> -> memref<1x768xf32, #tpu.memory_space<any>>
    %c38_i32 = arith.constant 38 : i32
    %c0_i32_128 = arith.constant 0 : i32
    %210 = tpu.memref_slice %arg6[%11, %c38_i32, %c0_i32_128] : memref<2x64x768xf32, #tpu.memory_space<vmem>> -> memref<1x1x768xf32, #tpu.memory_space<vmem>>
    %211 = tpu.memref_squeeze %210 : memref<1x1x768xf32, #tpu.memory_space<vmem>> -> memref<1x768xf32, #tpu.memory_space<vmem>>
    %212 = tpu.memref_slice %arg7[%11] : memref<2x!tpu.dma_semaphore, #tpu.memory_space<semaphore_mem>> -> memref<1x!tpu.dma_semaphore, #tpu.memory_space<semaphore_mem>>
    %213 = tpu.memref_squeeze %212 : memref<1x!tpu.dma_semaphore, #tpu.memory_space<semaphore_mem>> -> memref<!tpu.dma_semaphore, #tpu.memory_space<semaphore_mem>>
    tpu.wait_dma2 semaphore(%213 : memref<!tpu.dma_semaphore, #tpu.memory_space<semaphore_mem>>) src(%209 : memref<1x768xf32, #tpu.memory_space<any>>) dst(%211 : memref<1x768xf32, #tpu.memory_space<vmem>>)
    %c0_i32_129 = arith.constant 0 : i32
    %c0_i32_130 = arith.constant 0 : i32
    %214 = tpu.memref_slice %arg4[%c0_i32_129, %c0_i32_130] : memref<128x768xf32, #tpu.memory_space<any>> -> memref<1x768xf32, #tpu.memory_space<any>>
    %c39_i32 = arith.constant 39 : i32
    %c0_i32_131 = arith.constant 0 : i32
    %215 = tpu.memref_slice %arg6[%11, %c39_i32, %c0_i32_131] : memref<2x64x768xf32, #tpu.memory_space<vmem>> -> memref<1x1x768xf32, #tpu.memory_space<vmem>>
    %216 = tpu.memref_squeeze %215 : memref<1x1x768xf32, #tpu.memory_space<vmem>> -> memref<1x768xf32, #tpu.memory_space<vmem>>
    %217 = tpu.memref_slice %arg7[%11] : memref<2x!tpu.dma_semaphore, #tpu.memory_space<semaphore_mem>> -> memref<1x!tpu.dma_semaphore, #tpu.memory_space<semaphore_mem>>
    %218 = tpu.memref_squeeze %217 : memref<1x!tpu.dma_semaphore, #tpu.memory_space<semaphore_mem>> -> memref<!tpu.dma_semaphore, #tpu.memory_space<semaphore_mem>>
    tpu.wait_dma2 semaphore(%218 : memref<!tpu.dma_semaphore, #tpu.memory_space<semaphore_mem>>) src(%214 : memref<1x768xf32, #tpu.memory_space<any>>) dst(%216 : memref<1x768xf32, #tpu.memory_space<vmem>>)
    %c0_i32_132 = arith.constant 0 : i32
    %c0_i32_133 = arith.constant 0 : i32
    %219 = tpu.memref_slice %arg4[%c0_i32_132, %c0_i32_133] : memref<128x768xf32, #tpu.memory_space<any>> -> memref<1x768xf32, #tpu.memory_space<any>>
    %c40_i32 = arith.constant 40 : i32
    %c0_i32_134 = arith.constant 0 : i32
    %220 = tpu.memref_slice %arg6[%11, %c40_i32, %c0_i32_134] : memref<2x64x768xf32, #tpu.memory_space<vmem>> -> memref<1x1x768xf32, #tpu.memory_space<vmem>>
    %221 = tpu.memref_squeeze %220 : memref<1x1x768xf32, #tpu.memory_space<vmem>> -> memref<1x768xf32, #tpu.memory_space<vmem>>
    %222 = tpu.memref_slice %arg7[%11] : memref<2x!tpu.dma_semaphore, #tpu.memory_space<semaphore_mem>> -> memref<1x!tpu.dma_semaphore, #tpu.memory_space<semaphore_mem>>
    %223 = tpu.memref_squeeze %222 : memref<1x!tpu.dma_semaphore, #tpu.memory_space<semaphore_mem>> -> memref<!tpu.dma_semaphore, #tpu.memory_space<semaphore_mem>>
    tpu.wait_dma2 semaphore(%223 : memref<!tpu.dma_semaphore, #tpu.memory_space<semaphore_mem>>) src(%219 : memref<1x768xf32, #tpu.memory_space<any>>) dst(%221 : memref<1x768xf32, #tpu.memory_space<vmem>>)
    %c0_i32_135 = arith.constant 0 : i32
    %c0_i32_136 = arith.constant 0 : i32
    %224 = tpu.memref_slice %arg4[%c0_i32_135, %c0_i32_136] : memref<128x768xf32, #tpu.memory_space<any>> -> memref<1x768xf32, #tpu.memory_space<any>>
    %c41_i32 = arith.constant 41 : i32
    %c0_i32_137 = arith.constant 0 : i32
    %225 = tpu.memref_slice %arg6[%11, %c41_i32, %c0_i32_137] : memref<2x64x768xf32, #tpu.memory_space<vmem>> -> memref<1x1x768xf32, #tpu.memory_space<vmem>>
    %226 = tpu.memref_squeeze %225 : memref<1x1x768xf32, #tpu.memory_space<vmem>> -> memref<1x768xf32, #tpu.memory_space<vmem>>
    %227 = tpu.memref_slice %arg7[%11] : memref<2x!tpu.dma_semaphore, #tpu.memory_space<semaphore_mem>> -> memref<1x!tpu.dma_semaphore, #tpu.memory_space<semaphore_mem>>
    %228 = tpu.memref_squeeze %227 : memref<1x!tpu.dma_semaphore, #tpu.memory_space<semaphore_mem>> -> memref<!tpu.dma_semaphore, #tpu.memory_space<semaphore_mem>>
    tpu.wait_dma2 semaphore(%228 : memref<!tpu.dma_semaphore, #tpu.memory_space<semaphore_mem>>) src(%224 : memref<1x768xf32, #tpu.memory_space<any>>) dst(%226 : memref<1x768xf32, #tpu.memory_space<vmem>>)
    %c0_i32_138 = arith.constant 0 : i32
    %c0_i32_139 = arith.constant 0 : i32
    %229 = tpu.memref_slice %arg4[%c0_i32_138, %c0_i32_139] : memref<128x768xf32, #tpu.memory_space<any>> -> memref<1x768xf32, #tpu.memory_space<any>>
    %c42_i32 = arith.constant 42 : i32
    %c0_i32_140 = arith.constant 0 : i32
    %230 = tpu.memref_slice %arg6[%11, %c42_i32, %c0_i32_140] : memref<2x64x768xf32, #tpu.memory_space<vmem>> -> memref<1x1x768xf32, #tpu.memory_space<vmem>>
    %231 = tpu.memref_squeeze %230 : memref<1x1x768xf32, #tpu.memory_space<vmem>> -> memref<1x768xf32, #tpu.memory_space<vmem>>
    %232 = tpu.memref_slice %arg7[%11] : memref<2x!tpu.dma_semaphore, #tpu.memory_space<semaphore_mem>> -> memref<1x!tpu.dma_semaphore, #tpu.memory_space<semaphore_mem>>
    %233 = tpu.memref_squeeze %232 : memref<1x!tpu.dma_semaphore, #tpu.memory_space<semaphore_mem>> -> memref<!tpu.dma_semaphore, #tpu.memory_space<semaphore_mem>>
    tpu.wait_dma2 semaphore(%233 : memref<!tpu.dma_semaphore, #tpu.memory_space<semaphore_mem>>) src(%229 : memref<1x768xf32, #tpu.memory_space<any>>) dst(%231 : memref<1x768xf32, #tpu.memory_space<vmem>>)
    %c0_i32_141 = arith.constant 0 : i32
    %c0_i32_142 = arith.constant 0 : i32
    %234 = tpu.memref_slice %arg4[%c0_i32_141, %c0_i32_142] : memref<128x768xf32, #tpu.memory_space<any>> -> memref<1x768xf32, #tpu.memory_space<any>>
    %c43_i32 = arith.constant 43 : i32
    %c0_i32_143 = arith.constant 0 : i32
    %235 = tpu.memref_slice %arg6[%11, %c43_i32, %c0_i32_143] : memref<2x64x768xf32, #tpu.memory_space<vmem>> -> memref<1x1x768xf32, #tpu.memory_space<vmem>>
    %236 = tpu.memref_squeeze %235 : memref<1x1x768xf32, #tpu.memory_space<vmem>> -> memref<1x768xf32, #tpu.memory_space<vmem>>
    %237 = tpu.memref_slice %arg7[%11] : memref<2x!tpu.dma_semaphore, #tpu.memory_space<semaphore_mem>> -> memref<1x!tpu.dma_semaphore, #tpu.memory_space<semaphore_mem>>
    %238 = tpu.memref_squeeze %237 : memref<1x!tpu.dma_semaphore, #tpu.memory_space<semaphore_mem>> -> memref<!tpu.dma_semaphore, #tpu.memory_space<semaphore_mem>>
    tpu.wait_dma2 semaphore(%238 : memref<!tpu.dma_semaphore, #tpu.memory_space<semaphore_mem>>) src(%234 : memref<1x768xf32, #tpu.memory_space<any>>) dst(%236 : memref<1x768xf32, #tpu.memory_space<vmem>>)
    %c0_i32_144 = arith.constant 0 : i32
    %c0_i32_145 = arith.constant 0 : i32
    %239 = tpu.memref_slice %arg4[%c0_i32_144, %c0_i32_145] : memref<128x768xf32, #tpu.memory_space<any>> -> memref<1x768xf32, #tpu.memory_space<any>>
    %c44_i32 = arith.constant 44 : i32
    %c0_i32_146 = arith.constant 0 : i32
    %240 = tpu.memref_slice %arg6[%11, %c44_i32, %c0_i32_146] : memref<2x64x768xf32, #tpu.memory_space<vmem>> -> memref<1x1x768xf32, #tpu.memory_space<vmem>>
    %241 = tpu.memref_squeeze %240 : memref<1x1x768xf32, #tpu.memory_space<vmem>> -> memref<1x768xf32, #tpu.memory_space<vmem>>
    %242 = tpu.memref_slice %arg7[%11] : memref<2x!tpu.dma_semaphore, #tpu.memory_space<semaphore_mem>> -> memref<1x!tpu.dma_semaphore, #tpu.memory_space<semaphore_mem>>
    %243 = tpu.memref_squeeze %242 : memref<1x!tpu.dma_semaphore, #tpu.memory_space<semaphore_mem>> -> memref<!tpu.dma_semaphore, #tpu.memory_space<semaphore_mem>>
    tpu.wait_dma2 semaphore(%243 : memref<!tpu.dma_semaphore, #tpu.memory_space<semaphore_mem>>) src(%239 : memref<1x768xf32, #tpu.memory_space<any>>) dst(%241 : memref<1x768xf32, #tpu.memory_space<vmem>>)
    %c0_i32_147 = arith.constant 0 : i32
    %c0_i32_148 = arith.constant 0 : i32
    %244 = tpu.memref_slice %arg4[%c0_i32_147, %c0_i32_148] : memref<128x768xf32, #tpu.memory_space<any>> -> memref<1x768xf32, #tpu.memory_space<any>>
    %c45_i32 = arith.constant 45 : i32
    %c0_i32_149 = arith.constant 0 : i32
    %245 = tpu.memref_slice %arg6[%11, %c45_i32, %c0_i32_149] : memref<2x64x768xf32, #tpu.memory_space<vmem>> -> memref<1x1x768xf32, #tpu.memory_space<vmem>>
    %246 = tpu.memref_squeeze %245 : memref<1x1x768xf32, #tpu.memory_space<vmem>> -> memref<1x768xf32, #tpu.memory_space<vmem>>
    %247 = tpu.memref_slice %arg7[%11] : memref<2x!tpu.dma_semaphore, #tpu.memory_space<semaphore_mem>> -> memref<1x!tpu.dma_semaphore, #tpu.memory_space<semaphore_mem>>
    %248 = tpu.memref_squeeze %247 : memref<1x!tpu.dma_semaphore, #tpu.memory_space<semaphore_mem>> -> memref<!tpu.dma_semaphore, #tpu.memory_space<semaphore_mem>>
    tpu.wait_dma2 semaphore(%248 : memref<!tpu.dma_semaphore, #tpu.memory_space<semaphore_mem>>) src(%244 : memref<1x768xf32, #tpu.memory_space<any>>) dst(%246 : memref<1x768xf32, #tpu.memory_space<vmem>>)
    %c0_i32_150 = arith.constant 0 : i32
    %c0_i32_151 = arith.constant 0 : i32
    %249 = tpu.memref_slice %arg4[%c0_i32_150, %c0_i32_151] : memref<128x768xf32, #tpu.memory_space<any>> -> memref<1x768xf32, #tpu.memory_space<any>>
    %c46_i32 = arith.constant 46 : i32
    %c0_i32_152 = arith.constant 0 : i32
    %250 = tpu.memref_slice %arg6[%11, %c46_i32, %c0_i32_152] : memref<2x64x768xf32, #tpu.memory_space<vmem>> -> memref<1x1x768xf32, #tpu.memory_space<vmem>>
    %251 = tpu.memref_squeeze %250 : memref<1x1x768xf32, #tpu.memory_space<vmem>> -> memref<1x768xf32, #tpu.memory_space<vmem>>
    %252 = tpu.memref_slice %arg7[%11] : memref<2x!tpu.dma_semaphore, #tpu.memory_space<semaphore_mem>> -> memref<1x!tpu.dma_semaphore, #tpu.memory_space<semaphore_mem>>
    %253 = tpu.memref_squeeze %252 : memref<1x!tpu.dma_semaphore, #tpu.memory_space<semaphore_mem>> -> memref<!tpu.dma_semaphore, #tpu.memory_space<semaphore_mem>>
    tpu.wait_dma2 semaphore(%253 : memref<!tpu.dma_semaphore, #tpu.memory_space<semaphore_mem>>) src(%249 : memref<1x768xf32, #tpu.memory_space<any>>) dst(%251 : memref<1x768xf32, #tpu.memory_space<vmem>>)
    %c0_i32_153 = arith.constant 0 : i32
    %c0_i32_154 = arith.constant 0 : i32
    %254 = tpu.memref_slice %arg4[%c0_i32_153, %c0_i32_154] : memref<128x768xf32, #tpu.memory_space<any>> -> memref<1x768xf32, #tpu.memory_space<any>>
    %c47_i32 = arith.constant 47 : i32
    %c0_i32_155 = arith.constant 0 : i32
    %255 = tpu.memref_slice %arg6[%11, %c47_i32, %c0_i32_155] : memref<2x64x768xf32, #tpu.memory_space<vmem>> -> memref<1x1x768xf32, #tpu.memory_space<vmem>>
    %256 = tpu.memref_squeeze %255 : memref<1x1x768xf32, #tpu.memory_space<vmem>> -> memref<1x768xf32, #tpu.memory_space<vmem>>
    %257 = tpu.memref_slice %arg7[%11] : memref<2x!tpu.dma_semaphore, #tpu.memory_space<semaphore_mem>> -> memref<1x!tpu.dma_semaphore, #tpu.memory_space<semaphore_mem>>
    %258 = tpu.memref_squeeze %257 : memref<1x!tpu.dma_semaphore, #tpu.memory_space<semaphore_mem>> -> memref<!tpu.dma_semaphore, #tpu.memory_space<semaphore_mem>>
    tpu.wait_dma2 semaphore(%258 : memref<!tpu.dma_semaphore, #tpu.memory_space<semaphore_mem>>) src(%254 : memref<1x768xf32, #tpu.memory_space<any>>) dst(%256 : memref<1x768xf32, #tpu.memory_space<vmem>>)
    %c0_i32_156 = arith.constant 0 : i32
    %c0_i32_157 = arith.constant 0 : i32
    %259 = tpu.memref_slice %arg4[%c0_i32_156, %c0_i32_157] : memref<128x768xf32, #tpu.memory_space<any>> -> memref<1x768xf32, #tpu.memory_space<any>>
    %c48_i32 = arith.constant 48 : i32
    %c0_i32_158 = arith.constant 0 : i32
    %260 = tpu.memref_slice %arg6[%11, %c48_i32, %c0_i32_158] : memref<2x64x768xf32, #tpu.memory_space<vmem>> -> memref<1x1x768xf32, #tpu.memory_space<vmem>>
    %261 = tpu.memref_squeeze %260 : memref<1x1x768xf32, #tpu.memory_space<vmem>> -> memref<1x768xf32, #tpu.memory_space<vmem>>
    %262 = tpu.memref_slice %arg7[%11] : memref<2x!tpu.dma_semaphore, #tpu.memory_space<semaphore_mem>> -> memref<1x!tpu.dma_semaphore, #tpu.memory_space<semaphore_mem>>
    %263 = tpu.memref_squeeze %262 : memref<1x!tpu.dma_semaphore, #tpu.memory_space<semaphore_mem>> -> memref<!tpu.dma_semaphore, #tpu.memory_space<semaphore_mem>>
    tpu.wait_dma2 semaphore(%263 : memref<!tpu.dma_semaphore, #tpu.memory_space<semaphore_mem>>) src(%259 : memref<1x768xf32, #tpu.memory_space<any>>) dst(%261 : memref<1x768xf32, #tpu.memory_space<vmem>>)
    %c0_i32_159 = arith.constant 0 : i32
    %c0_i32_160 = arith.constant 0 : i32
    %264 = tpu.memref_slice %arg4[%c0_i32_159, %c0_i32_160] : memref<128x768xf32, #tpu.memory_space<any>> -> memref<1x768xf32, #tpu.memory_space<any>>
    %c49_i32 = arith.constant 49 : i32
    %c0_i32_161 = arith.constant 0 : i32
    %265 = tpu.memref_slice %arg6[%11, %c49_i32, %c0_i32_161] : memref<2x64x768xf32, #tpu.memory_space<vmem>> -> memref<1x1x768xf32, #tpu.memory_space<vmem>>
    %266 = tpu.memref_squeeze %265 : memref<1x1x768xf32, #tpu.memory_space<vmem>> -> memref<1x768xf32, #tpu.memory_space<vmem>>
    %267 = tpu.memref_slice %arg7[%11] : memref<2x!tpu.dma_semaphore, #tpu.memory_space<semaphore_mem>> -> memref<1x!tpu.dma_semaphore, #tpu.memory_space<semaphore_mem>>
    %268 = tpu.memref_squeeze %267 : memref<1x!tpu.dma_semaphore, #tpu.memory_space<semaphore_mem>> -> memref<!tpu.dma_semaphore, #tpu.memory_space<semaphore_mem>>
    tpu.wait_dma2 semaphore(%268 : memref<!tpu.dma_semaphore, #tpu.memory_space<semaphore_mem>>) src(%264 : memref<1x768xf32, #tpu.memory_space<any>>) dst(%266 : memref<1x768xf32, #tpu.memory_space<vmem>>)
    %c0_i32_162 = arith.constant 0 : i32
    %c0_i32_163 = arith.constant 0 : i32
    %269 = tpu.memref_slice %arg4[%c0_i32_162, %c0_i32_163] : memref<128x768xf32, #tpu.memory_space<any>> -> memref<1x768xf32, #tpu.memory_space<any>>
    %c50_i32 = arith.constant 50 : i32
    %c0_i32_164 = arith.constant 0 : i32
    %270 = tpu.memref_slice %arg6[%11, %c50_i32, %c0_i32_164] : memref<2x64x768xf32, #tpu.memory_space<vmem>> -> memref<1x1x768xf32, #tpu.memory_space<vmem>>
    %271 = tpu.memref_squeeze %270 : memref<1x1x768xf32, #tpu.memory_space<vmem>> -> memref<1x768xf32, #tpu.memory_space<vmem>>
    %272 = tpu.memref_slice %arg7[%11] : memref<2x!tpu.dma_semaphore, #tpu.memory_space<semaphore_mem>> -> memref<1x!tpu.dma_semaphore, #tpu.memory_space<semaphore_mem>>
    %273 = tpu.memref_squeeze %272 : memref<1x!tpu.dma_semaphore, #tpu.memory_space<semaphore_mem>> -> memref<!tpu.dma_semaphore, #tpu.memory_space<semaphore_mem>>
    tpu.wait_dma2 semaphore(%273 : memref<!tpu.dma_semaphore, #tpu.memory_space<semaphore_mem>>) src(%269 : memref<1x768xf32, #tpu.memory_space<any>>) dst(%271 : memref<1x768xf32, #tpu.memory_space<vmem>>)
    %c0_i32_165 = arith.constant 0 : i32
    %c0_i32_166 = arith.constant 0 : i32
    %274 = tpu.memref_slice %arg4[%c0_i32_165, %c0_i32_166] : memref<128x768xf32, #tpu.memory_space<any>> -> memref<1x768xf32, #tpu.memory_space<any>>
    %c51_i32 = arith.constant 51 : i32
    %c0_i32_167 = arith.constant 0 : i32
    %275 = tpu.memref_slice %arg6[%11, %c51_i32, %c0_i32_167] : memref<2x64x768xf32, #tpu.memory_space<vmem>> -> memref<1x1x768xf32, #tpu.memory_space<vmem>>
    %276 = tpu.memref_squeeze %275 : memref<1x1x768xf32, #tpu.memory_space<vmem>> -> memref<1x768xf32, #tpu.memory_space<vmem>>
    %277 = tpu.memref_slice %arg7[%11] : memref<2x!tpu.dma_semaphore, #tpu.memory_space<semaphore_mem>> -> memref<1x!tpu.dma_semaphore, #tpu.memory_space<semaphore_mem>>
    %278 = tpu.memref_squeeze %277 : memref<1x!tpu.dma_semaphore, #tpu.memory_space<semaphore_mem>> -> memref<!tpu.dma_semaphore, #tpu.memory_space<semaphore_mem>>
    tpu.wait_dma2 semaphore(%278 : memref<!tpu.dma_semaphore, #tpu.memory_space<semaphore_mem>>) src(%274 : memref<1x768xf32, #tpu.memory_space<any>>) dst(%276 : memref<1x768xf32, #tpu.memory_space<vmem>>)
    %c0_i32_168 = arith.constant 0 : i32
    %c0_i32_169 = arith.constant 0 : i32
    %279 = tpu.memref_slice %arg4[%c0_i32_168, %c0_i32_169] : memref<128x768xf32, #tpu.memory_space<any>> -> memref<1x768xf32, #tpu.memory_space<any>>
    %c52_i32 = arith.constant 52 : i32
    %c0_i32_170 = arith.constant 0 : i32
    %280 = tpu.memref_slice %arg6[%11, %c52_i32, %c0_i32_170] : memref<2x64x768xf32, #tpu.memory_space<vmem>> -> memref<1x1x768xf32, #tpu.memory_space<vmem>>
    %281 = tpu.memref_squeeze %280 : memref<1x1x768xf32, #tpu.memory_space<vmem>> -> memref<1x768xf32, #tpu.memory_space<vmem>>
    %282 = tpu.memref_slice %arg7[%11] : memref<2x!tpu.dma_semaphore, #tpu.memory_space<semaphore_mem>> -> memref<1x!tpu.dma_semaphore, #tpu.memory_space<semaphore_mem>>
    %283 = tpu.memref_squeeze %282 : memref<1x!tpu.dma_semaphore, #tpu.memory_space<semaphore_mem>> -> memref<!tpu.dma_semaphore, #tpu.memory_space<semaphore_mem>>
    tpu.wait_dma2 semaphore(%283 : memref<!tpu.dma_semaphore, #tpu.memory_space<semaphore_mem>>) src(%279 : memref<1x768xf32, #tpu.memory_space<any>>) dst(%281 : memref<1x768xf32, #tpu.memory_space<vmem>>)
    %c0_i32_171 = arith.constant 0 : i32
    %c0_i32_172 = arith.constant 0 : i32
    %284 = tpu.memref_slice %arg4[%c0_i32_171, %c0_i32_172] : memref<128x768xf32, #tpu.memory_space<any>> -> memref<1x768xf32, #tpu.memory_space<any>>
    %c53_i32 = arith.constant 53 : i32
    %c0_i32_173 = arith.constant 0 : i32
    %285 = tpu.memref_slice %arg6[%11, %c53_i32, %c0_i32_173] : memref<2x64x768xf32, #tpu.memory_space<vmem>> -> memref<1x1x768xf32, #tpu.memory_space<vmem>>
    %286 = tpu.memref_squeeze %285 : memref<1x1x768xf32, #tpu.memory_space<vmem>> -> memref<1x768xf32, #tpu.memory_space<vmem>>
    %287 = tpu.memref_slice %arg7[%11] : memref<2x!tpu.dma_semaphore, #tpu.memory_space<semaphore_mem>> -> memref<1x!tpu.dma_semaphore, #tpu.memory_space<semaphore_mem>>
    %288 = tpu.memref_squeeze %287 : memref<1x!tpu.dma_semaphore, #tpu.memory_space<semaphore_mem>> -> memref<!tpu.dma_semaphore, #tpu.memory_space<semaphore_mem>>
    tpu.wait_dma2 semaphore(%288 : memref<!tpu.dma_semaphore, #tpu.memory_space<semaphore_mem>>) src(%284 : memref<1x768xf32, #tpu.memory_space<any>>) dst(%286 : memref<1x768xf32, #tpu.memory_space<vmem>>)
    %c0_i32_174 = arith.constant 0 : i32
    %c0_i32_175 = arith.constant 0 : i32
    %289 = tpu.memref_slice %arg4[%c0_i32_174, %c0_i32_175] : memref<128x768xf32, #tpu.memory_space<any>> -> memref<1x768xf32, #tpu.memory_space<any>>
    %c54_i32 = arith.constant 54 : i32
    %c0_i32_176 = arith.constant 0 : i32
    %290 = tpu.memref_slice %arg6[%11, %c54_i32, %c0_i32_176] : memref<2x64x768xf32, #tpu.memory_space<vmem>> -> memref<1x1x768xf32, #tpu.memory_space<vmem>>
    %291 = tpu.memref_squeeze %290 : memref<1x1x768xf32, #tpu.memory_space<vmem>> -> memref<1x768xf32, #tpu.memory_space<vmem>>
    %292 = tpu.memref_slice %arg7[%11] : memref<2x!tpu.dma_semaphore, #tpu.memory_space<semaphore_mem>> -> memref<1x!tpu.dma_semaphore, #tpu.memory_space<semaphore_mem>>
    %293 = tpu.memref_squeeze %292 : memref<1x!tpu.dma_semaphore, #tpu.memory_space<semaphore_mem>> -> memref<!tpu.dma_semaphore, #tpu.memory_space<semaphore_mem>>
    tpu.wait_dma2 semaphore(%293 : memref<!tpu.dma_semaphore, #tpu.memory_space<semaphore_mem>>) src(%289 : memref<1x768xf32, #tpu.memory_space<any>>) dst(%291 : memref<1x768xf32, #tpu.memory_space<vmem>>)
    %c0_i32_177 = arith.constant 0 : i32
    %c0_i32_178 = arith.constant 0 : i32
    %294 = tpu.memref_slice %arg4[%c0_i32_177, %c0_i32_178] : memref<128x768xf32, #tpu.memory_space<any>> -> memref<1x768xf32, #tpu.memory_space<any>>
    %c55_i32 = arith.constant 55 : i32
    %c0_i32_179 = arith.constant 0 : i32
    %295 = tpu.memref_slice %arg6[%11, %c55_i32, %c0_i32_179] : memref<2x64x768xf32, #tpu.memory_space<vmem>> -> memref<1x1x768xf32, #tpu.memory_space<vmem>>
    %296 = tpu.memref_squeeze %295 : memref<1x1x768xf32, #tpu.memory_space<vmem>> -> memref<1x768xf32, #tpu.memory_space<vmem>>
    %297 = tpu.memref_slice %arg7[%11] : memref<2x!tpu.dma_semaphore, #tpu.memory_space<semaphore_mem>> -> memref<1x!tpu.dma_semaphore, #tpu.memory_space<semaphore_mem>>
    %298 = tpu.memref_squeeze %297 : memref<1x!tpu.dma_semaphore, #tpu.memory_space<semaphore_mem>> -> memref<!tpu.dma_semaphore, #tpu.memory_space<semaphore_mem>>
    tpu.wait_dma2 semaphore(%298 : memref<!tpu.dma_semaphore, #tpu.memory_space<semaphore_mem>>) src(%294 : memref<1x768xf32, #tpu.memory_space<any>>) dst(%296 : memref<1x768xf32, #tpu.memory_space<vmem>>)
    %c0_i32_180 = arith.constant 0 : i32
    %c0_i32_181 = arith.constant 0 : i32
    %299 = tpu.memref_slice %arg4[%c0_i32_180, %c0_i32_181] : memref<128x768xf32, #tpu.memory_space<any>> -> memref<1x768xf32, #tpu.memory_space<any>>
    %c56_i32 = arith.constant 56 : i32
    %c0_i32_182 = arith.constant 0 : i32
    %300 = tpu.memref_slice %arg6[%11, %c56_i32, %c0_i32_182] : memref<2x64x768xf32, #tpu.memory_space<vmem>> -> memref<1x1x768xf32, #tpu.memory_space<vmem>>
    %301 = tpu.memref_squeeze %300 : memref<1x1x768xf32, #tpu.memory_space<vmem>> -> memref<1x768xf32, #tpu.memory_space<vmem>>
    %302 = tpu.memref_slice %arg7[%11] : memref<2x!tpu.dma_semaphore, #tpu.memory_space<semaphore_mem>> -> memref<1x!tpu.dma_semaphore, #tpu.memory_space<semaphore_mem>>
    %303 = tpu.memref_squeeze %302 : memref<1x!tpu.dma_semaphore, #tpu.memory_space<semaphore_mem>> -> memref<!tpu.dma_semaphore, #tpu.memory_space<semaphore_mem>>
    tpu.wait_dma2 semaphore(%303 : memref<!tpu.dma_semaphore, #tpu.memory_space<semaphore_mem>>) src(%299 : memref<1x768xf32, #tpu.memory_space<any>>) dst(%301 : memref<1x768xf32, #tpu.memory_space<vmem>>)
    %c0_i32_183 = arith.constant 0 : i32
    %c0_i32_184 = arith.constant 0 : i32
    %304 = tpu.memref_slice %arg4[%c0_i32_183, %c0_i32_184] : memref<128x768xf32, #tpu.memory_space<any>> -> memref<1x768xf32, #tpu.memory_space<any>>
    %c57_i32 = arith.constant 57 : i32
    %c0_i32_185 = arith.constant 0 : i32
    %305 = tpu.memref_slice %arg6[%11, %c57_i32, %c0_i32_185] : memref<2x64x768xf32, #tpu.memory_space<vmem>> -> memref<1x1x768xf32, #tpu.memory_space<vmem>>
    %306 = tpu.memref_squeeze %305 : memref<1x1x768xf32, #tpu.memory_space<vmem>> -> memref<1x768xf32, #tpu.memory_space<vmem>>
    %307 = tpu.memref_slice %arg7[%11] : memref<2x!tpu.dma_semaphore, #tpu.memory_space<semaphore_mem>> -> memref<1x!tpu.dma_semaphore, #tpu.memory_space<semaphore_mem>>
    %308 = tpu.memref_squeeze %307 : memref<1x!tpu.dma_semaphore, #tpu.memory_space<semaphore_mem>> -> memref<!tpu.dma_semaphore, #tpu.memory_space<semaphore_mem>>
    tpu.wait_dma2 semaphore(%308 : memref<!tpu.dma_semaphore, #tpu.memory_space<semaphore_mem>>) src(%304 : memref<1x768xf32, #tpu.memory_space<any>>) dst(%306 : memref<1x768xf32, #tpu.memory_space<vmem>>)
    %c0_i32_186 = arith.constant 0 : i32
    %c0_i32_187 = arith.constant 0 : i32
    %309 = tpu.memref_slice %arg4[%c0_i32_186, %c0_i32_187] : memref<128x768xf32, #tpu.memory_space<any>> -> memref<1x768xf32, #tpu.memory_space<any>>
    %c58_i32 = arith.constant 58 : i32
    %c0_i32_188 = arith.constant 0 : i32
    %310 = tpu.memref_slice %arg6[%11, %c58_i32, %c0_i32_188] : memref<2x64x768xf32, #tpu.memory_space<vmem>> -> memref<1x1x768xf32, #tpu.memory_space<vmem>>
    %311 = tpu.memref_squeeze %310 : memref<1x1x768xf32, #tpu.memory_space<vmem>> -> memref<1x768xf32, #tpu.memory_space<vmem>>
    %312 = tpu.memref_slice %arg7[%11] : memref<2x!tpu.dma_semaphore, #tpu.memory_space<semaphore_mem>> -> memref<1x!tpu.dma_semaphore, #tpu.memory_space<semaphore_mem>>
    %313 = tpu.memref_squeeze %312 : memref<1x!tpu.dma_semaphore, #tpu.memory_space<semaphore_mem>> -> memref<!tpu.dma_semaphore, #tpu.memory_space<semaphore_mem>>
    tpu.wait_dma2 semaphore(%313 : memref<!tpu.dma_semaphore, #tpu.memory_space<semaphore_mem>>) src(%309 : memref<1x768xf32, #tpu.memory_space<any>>) dst(%311 : memref<1x768xf32, #tpu.memory_space<vmem>>)
    %c0_i32_189 = arith.constant 0 : i32
    %c0_i32_190 = arith.constant 0 : i32
    %314 = tpu.memref_slice %arg4[%c0_i32_189, %c0_i32_190] : memref<128x768xf32, #tpu.memory_space<any>> -> memref<1x768xf32, #tpu.memory_space<any>>
    %c59_i32 = arith.constant 59 : i32
    %c0_i32_191 = arith.constant 0 : i32
    %315 = tpu.memref_slice %arg6[%11, %c59_i32, %c0_i32_191] : memref<2x64x768xf32, #tpu.memory_space<vmem>> -> memref<1x1x768xf32, #tpu.memory_space<vmem>>
    %316 = tpu.memref_squeeze %315 : memref<1x1x768xf32, #tpu.memory_space<vmem>> -> memref<1x768xf32, #tpu.memory_space<vmem>>
    %317 = tpu.memref_slice %arg7[%11] : memref<2x!tpu.dma_semaphore, #tpu.memory_space<semaphore_mem>> -> memref<1x!tpu.dma_semaphore, #tpu.memory_space<semaphore_mem>>
    %318 = tpu.memref_squeeze %317 : memref<1x!tpu.dma_semaphore, #tpu.memory_space<semaphore_mem>> -> memref<!tpu.dma_semaphore, #tpu.memory_space<semaphore_mem>>
    tpu.wait_dma2 semaphore(%318 : memref<!tpu.dma_semaphore, #tpu.memory_space<semaphore_mem>>) src(%314 : memref<1x768xf32, #tpu.memory_space<any>>) dst(%316 : memref<1x768xf32, #tpu.memory_space<vmem>>)
    %c0_i32_192 = arith.constant 0 : i32
    %c0_i32_193 = arith.constant 0 : i32
    %319 = tpu.memref_slice %arg4[%c0_i32_192, %c0_i32_193] : memref<128x768xf32, #tpu.memory_space<any>> -> memref<1x768xf32, #tpu.memory_space<any>>
    %c60_i32 = arith.constant 60 : i32
    %c0_i32_194 = arith.constant 0 : i32
    %320 = tpu.memref_slice %arg6[%11, %c60_i32, %c0_i32_194] : memref<2x64x768xf32, #tpu.memory_space<vmem>> -> memref<1x1x768xf32, #tpu.memory_space<vmem>>
    %321 = tpu.memref_squeeze %320 : memref<1x1x768xf32, #tpu.memory_space<vmem>> -> memref<1x768xf32, #tpu.memory_space<vmem>>
    %322 = tpu.memref_slice %arg7[%11] : memref<2x!tpu.dma_semaphore, #tpu.memory_space<semaphore_mem>> -> memref<1x!tpu.dma_semaphore, #tpu.memory_space<semaphore_mem>>
    %323 = tpu.memref_squeeze %322 : memref<1x!tpu.dma_semaphore, #tpu.memory_space<semaphore_mem>> -> memref<!tpu.dma_semaphore, #tpu.memory_space<semaphore_mem>>
    tpu.wait_dma2 semaphore(%323 : memref<!tpu.dma_semaphore, #tpu.memory_space<semaphore_mem>>) src(%319 : memref<1x768xf32, #tpu.memory_space<any>>) dst(%321 : memref<1x768xf32, #tpu.memory_space<vmem>>)
    %c0_i32_195 = arith.constant 0 : i32
    %c0_i32_196 = arith.constant 0 : i32
    %324 = tpu.memref_slice %arg4[%c0_i32_195, %c0_i32_196] : memref<128x768xf32, #tpu.memory_space<any>> -> memref<1x768xf32, #tpu.memory_space<any>>
    %c61_i32 = arith.constant 61 : i32
    %c0_i32_197 = arith.constant 0 : i32
    %325 = tpu.memref_slice %arg6[%11, %c61_i32, %c0_i32_197] : memref<2x64x768xf32, #tpu.memory_space<vmem>> -> memref<1x1x768xf32, #tpu.memory_space<vmem>>
    %326 = tpu.memref_squeeze %325 : memref<1x1x768xf32, #tpu.memory_space<vmem>> -> memref<1x768xf32, #tpu.memory_space<vmem>>
    %327 = tpu.memref_slice %arg7[%11] : memref<2x!tpu.dma_semaphore, #tpu.memory_space<semaphore_mem>> -> memref<1x!tpu.dma_semaphore, #tpu.memory_space<semaphore_mem>>
    %328 = tpu.memref_squeeze %327 : memref<1x!tpu.dma_semaphore, #tpu.memory_space<semaphore_mem>> -> memref<!tpu.dma_semaphore, #tpu.memory_space<semaphore_mem>>
    tpu.wait_dma2 semaphore(%328 : memref<!tpu.dma_semaphore, #tpu.memory_space<semaphore_mem>>) src(%324 : memref<1x768xf32, #tpu.memory_space<any>>) dst(%326 : memref<1x768xf32, #tpu.memory_space<vmem>>)
    %c0_i32_198 = arith.constant 0 : i32
    %c0_i32_199 = arith.constant 0 : i32
    %329 = tpu.memref_slice %arg4[%c0_i32_198, %c0_i32_199] : memref<128x768xf32, #tpu.memory_space<any>> -> memref<1x768xf32, #tpu.memory_space<any>>
    %c62_i32 = arith.constant 62 : i32
    %c0_i32_200 = arith.constant 0 : i32
    %330 = tpu.memref_slice %arg6[%11, %c62_i32, %c0_i32_200] : memref<2x64x768xf32, #tpu.memory_space<vmem>> -> memref<1x1x768xf32, #tpu.memory_space<vmem>>
    %331 = tpu.memref_squeeze %330 : memref<1x1x768xf32, #tpu.memory_space<vmem>> -> memref<1x768xf32, #tpu.memory_space<vmem>>
    %332 = tpu.memref_slice %arg7[%11] : memref<2x!tpu.dma_semaphore, #tpu.memory_space<semaphore_mem>> -> memref<1x!tpu.dma_semaphore, #tpu.memory_space<semaphore_mem>>
    %333 = tpu.memref_squeeze %332 : memref<1x!tpu.dma_semaphore, #tpu.memory_space<semaphore_mem>> -> memref<!tpu.dma_semaphore, #tpu.memory_space<semaphore_mem>>
    tpu.wait_dma2 semaphore(%333 : memref<!tpu.dma_semaphore, #tpu.memory_space<semaphore_mem>>) src(%329 : memref<1x768xf32, #tpu.memory_space<any>>) dst(%331 : memref<1x768xf32, #tpu.memory_space<vmem>>)
    %c0_i32_201 = arith.constant 0 : i32
    %c0_i32_202 = arith.constant 0 : i32
    %334 = tpu.memref_slice %arg4[%c0_i32_201, %c0_i32_202] : memref<128x768xf32, #tpu.memory_space<any>> -> memref<1x768xf32, #tpu.memory_space<any>>
    %c63_i32 = arith.constant 63 : i32
    %c0_i32_203 = arith.constant 0 : i32
    %335 = tpu.memref_slice %arg6[%11, %c63_i32, %c0_i32_203] : memref<2x64x768xf32, #tpu.memory_space<vmem>> -> memref<1x1x768xf32, #tpu.memory_space<vmem>>
    %336 = tpu.memref_squeeze %335 : memref<1x1x768xf32, #tpu.memory_space<vmem>> -> memref<1x768xf32, #tpu.memory_space<vmem>>
    %337 = tpu.memref_slice %arg7[%11] : memref<2x!tpu.dma_semaphore, #tpu.memory_space<semaphore_mem>> -> memref<1x!tpu.dma_semaphore, #tpu.memory_space<semaphore_mem>>
    %338 = tpu.memref_squeeze %337 : memref<1x!tpu.dma_semaphore, #tpu.memory_space<semaphore_mem>> -> memref<!tpu.dma_semaphore, #tpu.memory_space<semaphore_mem>>
    tpu.wait_dma2 semaphore(%338 : memref<!tpu.dma_semaphore, #tpu.memory_space<semaphore_mem>>) src(%334 : memref<1x768xf32, #tpu.memory_space<any>>) dst(%336 : memref<1x768xf32, #tpu.memory_space<vmem>>)
    %339 = arith.index_cast %11 : i32 to index
    %c0 = arith.constant 0 : index
    %c0_204 = arith.constant 0 : index
    %340 = vector.load %arg6[%339, %c0, %c0_204] : memref<2x64x768xf32, #tpu.memory_space<vmem>>, vector<1x64x768xf32>
    %341 = vector.shape_cast %340 : vector<1x64x768xf32> to vector<64x768xf32>
    %342 = vector.shape_cast %341 : vector<64x768xf32> to vector<8x8x768xf32>
    %c0_205 = arith.constant 0 : index
    %c0_206 = arith.constant 0 : index
    %343 = vector.load %arg3[%c0_205, %c0_206] : memref<8x8xf32, #tpu.memory_space<vmem>>, vector<8x8xf32>
    %344 = vector.shape_cast %343 : vector<8x8xf32> to vector<8x8x1xf32>
    %345 = vector.broadcast %344 : vector<8x8x1xf32> to vector<8x8x768xf32>
    %346 = arith.mulf %342, %345 : vector<8x8x768xf32>
    %cst = arith.constant dense<0.000000e+00> : vector<8x768xf32>
    %347 = vector.multi_reduction <add>, %346, %cst [1] : vector<8x8x768xf32> to vector<8x768xf32>
    %c0_207 = arith.constant 0 : index
    %c0_208 = arith.constant 0 : index
    %348 = vector.load %arg5[%c0_207, %c0_208] : memref<8x768xf32, #tpu.memory_space<vmem>>, vector<8x768xf32>
    tpu.vector_store %arg5[%c0_207, %c0_208], %347 {strides = array<i32>} : memref<8x768xf32, #tpu.memory_space<vmem>>, vector<8x768xf32>,
    return
  }
  func.func @transform_0(%arg0: i32, %arg1: i32, %arg2: memref<64xi32, #tpu.memory_space<smem>>) -> (i32, i32) {
    %c1_i32 = arith.constant 1 : i32
    %0 = arith.muli %arg0, %c1_i32 : i32
    %1 = arith.addi %0, %arg1 : i32
    %c0_i32 = arith.constant 0 : i32
    %c0_i32_0 = arith.constant 0 : i32
    return %1, %c0_i32 : i32, i32
  }
  func.func @transform_2(%arg0: i32, %arg1: i32, %arg2: memref<64xi32, #tpu.memory_space<smem>>) -> (i32, i32) {
    %c1_i32 = arith.constant 1 : i32
    %0 = arith.muli %arg0, %c1_i32 : i32
    %1 = arith.addi %0, %arg1 : i32
    %c0_i32 = arith.constant 0 : i32
    %c0_i32_0 = arith.constant 0 : i32
    return %1, %c0_i32 : i32, i32
  }
}

</mosaic_0001>

<llo_original>
// kernel: tpu_custom_call.1
$region0: #{tpu_custom_call.1}
  #allocation0 [shape = 'u32[]', space=smem, size = 0x4, offset = 0x4, fixed_abs, tag = 'smem constant byte address 0x4 - core index']
  #allocation1 [shape = 'u32[144,128]{1,0:T(1,128)}', space=vmem, size = 0x12000, scoped, tag = 'internal scratch']
  #allocation2 [shape = 'f32[2,64,768]{2,1,0:T(8,128)}', space=vmem, size = 0x60000, scoped, tag = 'scratch operand']
  #allocation3 [shape = 's32[2]{0}', space=sflag, size = 0x8, scoped, tag = 'scratch operand']
  #allocation4 [shape = 's32[1]{0}', space=sflag, size = 0x4, scoped, tag = 'scoped memory for tpu_custom_call.1']
  #allocation5 [shape = 'u8[512]{0}', space=smem, size = 0x200, scoped, tag = 'prefetched SMEM operand 0']
  #allocation10 [shape = 's32[]', space=sflag, size = 0x4, offset = 0, fixed_abs, tag = 'sflag constant byte address 0x0 - dummy sync flag']
  #allocation11 [shape = 's32[]', space=sflag, size = 0x4, offset = 0, fixed_abs, tag = 'sflag constant byte address 0x0 - dummy sync flag']
  #allocation12 [shape = 's32[]', space=sflag, size = 0x4, offset = 0, fixed_abs, tag = 'sflag constant byte address 0x0 - dummy sync flag']
  #allocation13 [shape = 's32[]', space=sflag, size = 0x4, offset = 0, fixed_abs, tag = 'sflag constant byte address 0x0 - dummy sync flag']
  #allocation14 [shape = 's32[]', space=sflag, size = 0x4, offset = 0, fixed_abs, tag = 'sflag constant byte address 0x0 - dummy sync flag']
  #allocation15 [shape = 's32[]', space=sflag, size = 0x4, offset = 0, fixed_abs, tag = 'sflag constant byte address 0x0 - dummy sync flag']
  #allocation16 [shape = 's32[]', space=sflag, size = 0x4, offset = 0, fixed_abs, tag = 'sflag constant byte address 0x0 - dummy sync flag']
  #allocation17 [shape = 's32[]', space=sflag, size = 0x4, offset = 0, fixed_abs, tag = 'sflag constant byte address 0x0 - dummy sync flag']
  #allocation18 [shape = 's32[]', space=sflag, size = 0x4, offset = 0, fixed_abs, tag = 'sflag constant byte address 0x0 - dummy sync flag']
  #allocation19 [shape = 's32[]', space=sflag, size = 0x4, offset = 0, fixed_abs, tag = 'sflag constant byte address 0x0 - dummy sync flag']
  #allocation20 [shape = 's32[]', space=sflag, size = 0x4, offset = 0, fixed_abs, tag = 'sflag constant byte address 0x0 - dummy sync flag']
  #allocation21 [shape = 's32[]', space=sflag, size = 0x4, offset = 0, fixed_abs, tag = 'sflag constant byte address 0x0 - dummy sync flag']
  #allocation22 [shape = 's32[]', space=sflag, size = 0x4, offset = 0, fixed_abs, tag = 'sflag constant byte address 0x0 - dummy sync flag']
  #allocation23 [shape = 's32[]', space=sflag, size = 0x4, offset = 0, fixed_abs, tag = 'sflag constant byte address 0x0 - dummy sync flag']
  #allocation24 [shape = 's32[]', space=sflag, size = 0x4, offset = 0, fixed_abs, tag = 'sflag constant byte address 0x0 - dummy sync flag']
  #allocation25 [shape = 's32[]', space=sflag, size = 0x4, offset = 0, fixed_abs, tag = 'sflag constant byte address 0x0 - dummy sync flag']
  #allocation26 [shape = 's32[]', space=sflag, size = 0x4, offset = 0, fixed_abs, tag = 'sflag constant byte address 0x0 - dummy sync flag']
  #allocation27 [shape = 's32[]', space=sflag, size = 0x4, offset = 0, fixed_abs, tag = 'sflag constant byte address 0x0 - dummy sync flag']
  #allocation28 [shape = 's32[]', space=sflag, size = 0x4, offset = 0, fixed_abs, tag = 'sflag constant byte address 0x0 - dummy sync flag']
  #allocation29 [shape = 's32[]', space=sflag, size = 0x4, offset = 0, fixed_abs, tag = 'sflag constant byte address 0x0 - dummy sync flag']
  #allocation30 [shape = 's32[]', space=sflag, size = 0x4, offset = 0, fixed_abs, tag = 'sflag constant byte address 0x0 - dummy sync flag']
  #allocation31 [shape = 's32[]', space=sflag, size = 0x4, offset = 0, fixed_abs, tag = 'sflag constant byte address 0x0 - dummy sync flag']
  #allocation32 [shape = 's32[]', space=sflag, size = 0x4, offset = 0, fixed_abs, tag = 'sflag constant byte address 0x0 - dummy sync flag']
  #allocation33 [shape = 's32[]', space=sflag, size = 0x4, offset = 0, fixed_abs, tag = 'sflag constant byte address 0x0 - dummy sync flag']
  #allocation34 [shape = 's32[]', space=sflag, size = 0x4, offset = 0, fixed_abs, tag = 'sflag constant byte address 0x0 - dummy sync flag']
  #allocation35 [shape = 's32[]', space=sflag, size = 0x4, offset = 0, fixed_abs, tag = 'sflag constant byte address 0x0 - dummy sync flag']
  #allocation36 [shape = 's32[]', space=sflag, size = 0x4, offset = 0, fixed_abs, tag = 'sflag constant byte address 0x0 - dummy sync flag']
  #allocation37 [shape = 's32[]', space=sflag, size = 0x4, offset = 0, fixed_abs, tag = 'sflag constant byte address 0x0 - dummy sync flag']
  #allocation38 [shape = 's32[]', space=sflag, size = 0x4, offset = 0, fixed_abs, tag = 'sflag constant byte address 0x0 - dummy sync flag']
  #allocation39 [shape = 's32[]', space=sflag, size = 0x4, offset = 0, fixed_abs, tag = 'sflag constant byte address 0x0 - dummy sync flag']
  #allocation40 [shape = 's32[]', space=sflag, size = 0x4, offset = 0, fixed_abs, tag = 'sflag constant byte address 0x0 - dummy sync flag']
  #allocation41 [shape = 's32[]', space=sflag, size = 0x4, offset = 0, fixed_abs, tag = 'sflag constant byte address 0x0 - dummy sync flag']
  #allocation42 [shape = 's32[]', space=sflag, size = 0x4, offset = 0, fixed_abs, tag = 'sflag constant byte address 0x0 - dummy sync flag']
  #allocation43 [shape = 's32[]', space=sflag, size = 0x4, offset = 0, fixed_abs, tag = 'sflag constant byte address 0x0 - dummy sync flag']
  #allocation44 [shape = 's32[]', space=sflag, size = 0x4, offset = 0, fixed_abs, tag = 'sflag constant byte address 0x0 - dummy sync flag']
  #allocation45 [shape = 's32[]', space=sflag, size = 0x4, offset = 0, fixed_abs, tag = 'sflag constant byte address 0x0 - dummy sync flag']
  #allocation46 [shape = 's32[]', space=sflag, size = 0x4, offset = 0, fixed_abs, tag = 'sflag constant byte address 0x0 - dummy sync flag']
  #allocation47 [shape = 's32[]', space=sflag, size = 0x4, offset = 0, fixed_abs, tag = 'sflag constant byte address 0x0 - dummy sync flag']
  #allocation48 [shape = 's32[]', space=sflag, size = 0x4, offset = 0, fixed_abs, tag = 'sflag constant byte address 0x0 - dummy sync flag']
  #allocation49 [shape = 's32[]', space=sflag, size = 0x4, offset = 0, fixed_abs, tag = 'sflag constant byte address 0x0 - dummy sync flag']
  #allocation50 [shape = 's32[]', space=sflag, size = 0x4, offset = 0, fixed_abs, tag = 'sflag constant byte address 0x0 - dummy sync flag']
  #allocation51 [shape = 's32[]', space=sflag, size = 0x4, offset = 0, fixed_abs, tag = 'sflag constant byte address 0x0 - dummy sync flag']
  #allocation52 [shape = 's32[]', space=sflag, size = 0x4, offset = 0, fixed_abs, tag = 'sflag constant byte address 0x0 - dummy sync flag']
  #allocation53 [shape = 's32[]', space=sflag, size = 0x4, offset = 0, fixed_abs, tag = 'sflag constant byte address 0x0 - dummy sync flag']
  #allocation54 [shape = 's32[]', space=sflag, size = 0x4, offset = 0, fixed_abs, tag = 'sflag constant byte address 0x0 - dummy sync flag']
  #allocation55 [shape = 's32[]', space=sflag, size = 0x4, offset = 0, fixed_abs, tag = 'sflag constant byte address 0x0 - dummy sync flag']
  #allocation56 [shape = 's32[]', space=sflag, size = 0x4, offset = 0, fixed_abs, tag = 'sflag constant byte address 0x0 - dummy sync flag']
  #allocation57 [shape = 's32[]', space=sflag, size = 0x4, offset = 0, fixed_abs, tag = 'sflag constant byte address 0x0 - dummy sync flag']
  #allocation58 [shape = 's32[]', space=sflag, size = 0x4, offset = 0, fixed_abs, tag = 'sflag constant byte address 0x0 - dummy sync flag']
  #allocation59 [shape = 's32[]', space=sflag, size = 0x4, offset = 0, fixed_abs, tag = 'sflag constant byte address 0x0 - dummy sync flag']
  #allocation60 [shape = 's32[]', space=sflag, size = 0x4, offset = 0, fixed_abs, tag = 'sflag constant byte address 0x0 - dummy sync flag']
  #allocation61 [shape = 's32[]', space=sflag, size = 0x4, offset = 0, fixed_abs, tag = 'sflag constant byte address 0x0 - dummy sync flag']
  #allocation62 [shape = 's32[]', space=sflag, size = 0x4, offset = 0, fixed_abs, tag = 'sflag constant byte address 0x0 - dummy sync flag']
  #allocation63 [shape = 's32[]', space=sflag, size = 0x4, offset = 0, fixed_abs, tag = 'sflag constant byte address 0x0 - dummy sync flag']
  #allocation64 [shape = 's32[]', space=sflag, size = 0x4, offset = 0, fixed_abs, tag = 'sflag constant byte address 0x0 - dummy sync flag']
  #allocation65 [shape = 's32[]', space=sflag, size = 0x4, offset = 0, fixed_abs, tag = 'sflag constant byte address 0x0 - dummy sync flag']
  #allocation66 [shape = 's32[]', space=sflag, size = 0x4, offset = 0, fixed_abs, tag = 'sflag constant byte address 0x0 - dummy sync flag']
  #allocation67 [shape = 's32[]', space=sflag, size = 0x4, offset = 0, fixed_abs, tag = 'sflag constant byte address 0x0 - dummy sync flag']
  #allocation68 [shape = 's32[]', space=sflag, size = 0x4, offset = 0, fixed_abs, tag = 'sflag constant byte address 0x0 - dummy sync flag']
  #allocation69 [shape = 's32[]', space=sflag, size = 0x4, offset = 0, fixed_abs, tag = 'sflag constant byte address 0x0 - dummy sync flag']
  #allocation70 [shape = 's32[]', space=sflag, size = 0x4, offset = 0, fixed_abs, tag = 'sflag constant byte address 0x0 - dummy sync flag']
  #allocation71 [shape = 's32[]', space=sflag, size = 0x4, offset = 0, fixed_abs, tag = 'sflag constant byte address 0x0 - dummy sync flag']
  #allocation72 [shape = 's32[]', space=sflag, size = 0x4, offset = 0, fixed_abs, tag = 'sflag constant byte address 0x0 - dummy sync flag']
  #allocation73 [shape = 's32[]', space=sflag, size = 0x4, offset = 0, fixed_abs, tag = 'sflag constant byte address 0x0 - dummy sync flag']
  #allocation74 [shape = 's32[]', space=sflag, size = 0x4, offset = 0, fixed_abs, tag = 'sflag constant byte address 0x0 - dummy sync flag']
  #allocation75 [shape = 's32[]', space=sflag, size = 0x4, offset = 0, fixed_abs, tag = 'sflag constant byte address 0x0 - dummy sync flag']
  #allocation76 [shape = 's32[]', space=sflag, size = 0x4, offset = 0, fixed_abs, tag = 'sflag constant byte address 0x0 - dummy sync flag']
  #allocation77 [shape = 's32[]', space=sflag, size = 0x4, offset = 0, fixed_abs, tag = 'sflag constant byte address 0x0 - dummy sync flag']
  #allocation78 [shape = 's32[]', space=sflag, size = 0x4, offset = 0, fixed_abs, tag = 'sflag constant byte address 0x0 - dummy sync flag']
  #allocation79 [shape = 's32[]', space=sflag, size = 0x4, offset = 0, fixed_abs, tag = 'sflag constant byte address 0x0 - dummy sync flag']
  #allocation80 [shape = 's32[]', space=sflag, size = 0x4, offset = 0, fixed_abs, tag = 'sflag constant byte address 0x0 - dummy sync flag']
  #allocation81 [shape = 's32[]', space=sflag, size = 0x4, offset = 0, fixed_abs, tag = 'sflag constant byte address 0x0 - dummy sync flag']
  #allocation82 [shape = 's32[]', space=sflag, size = 0x4, offset = 0, fixed_abs, tag = 'sflag constant byte address 0x0 - dummy sync flag']
  #allocation83 [shape = 's32[]', space=sflag, size = 0x4, offset = 0, fixed_abs, tag = 'sflag constant byte address 0x0 - dummy sync flag']
  #allocation84 [shape = 's32[]', space=sflag, size = 0x4, offset = 0, fixed_abs, tag = 'sflag constant byte address 0x0 - dummy sync flag']
  #allocation85 [shape = 's32[]', space=sflag, size = 0x4, offset = 0, fixed_abs, tag = 'sflag constant byte address 0x0 - dummy sync flag']
  #allocation86 [shape = 's32[]', space=sflag, size = 0x4, offset = 0, fixed_abs, tag = 'sflag constant byte address 0x0 - dummy sync flag']
  #allocation87 [shape = 's32[]', space=sflag, size = 0x4, offset = 0, fixed_abs, tag = 'sflag constant byte address 0x0 - dummy sync flag']
  #allocation88 [shape = 's32[]', space=sflag, size = 0x4, offset = 0, fixed_abs, tag = 'sflag constant byte address 0x0 - dummy sync flag']
  #allocation89 [shape = 's32[]', space=sflag, size = 0x4, offset = 0, fixed_abs, tag = 'sflag constant byte address 0x0 - dummy sync flag']
  #allocation90 [shape = 's32[]', space=sflag, size = 0x4, offset = 0, fixed_abs, tag = 'sflag constant byte address 0x0 - dummy sync flag']
  #allocation91 [shape = 's32[]', space=sflag, size = 0x4, offset = 0, fixed_abs, tag = 'sflag constant byte address 0x0 - dummy sync flag']
  #allocation92 [shape = 's32[]', space=sflag, size = 0x4, offset = 0, fixed_abs, tag = 'sflag constant byte address 0x0 - dummy sync flag']
  #allocation93 [shape = 's32[]', space=sflag, size = 0x4, offset = 0, fixed_abs, tag = 'sflag constant byte address 0x0 - dummy sync flag']
  #allocation94 [shape = 's32[]', space=sflag, size = 0x4, offset = 0, fixed_abs, tag = 'sflag constant byte address 0x0 - dummy sync flag']
  #allocation95 [shape = 's32[]', space=sflag, size = 0x4, offset = 0, fixed_abs, tag = 'sflag constant byte address 0x0 - dummy sync flag']
  #allocation96 [shape = 's32[]', space=sflag, size = 0x4, offset = 0, fixed_abs, tag = 'sflag constant byte address 0x0 - dummy sync flag']
  #allocation97 [shape = 's32[]', space=sflag, size = 0x4, offset = 0, fixed_abs, tag = 'sflag constant byte address 0x0 - dummy sync flag']
  #allocation98 [shape = 's32[]', space=sflag, size = 0x4, offset = 0, fixed_abs, tag = 'sflag constant byte address 0x0 - dummy sync flag']
  #allocation99 [shape = 's32[]', space=sflag, size = 0x4, offset = 0, fixed_abs, tag = 'sflag constant byte address 0x0 - dummy sync flag']
  #allocation100 [shape = 's32[]', space=sflag, size = 0x4, offset = 0, fixed_abs, tag = 'sflag constant byte address 0x0 - dummy sync flag']
  #allocation101 [shape = 's32[]', space=sflag, size = 0x4, offset = 0, fixed_abs, tag = 'sflag constant byte address 0x0 - dummy sync flag']
  #allocation102 [shape = 's32[]', space=sflag, size = 0x4, offset = 0, fixed_abs, tag = 'sflag constant byte address 0x0 - dummy sync flag']
  #allocation103 [shape = 's32[]', space=sflag, size = 0x4, offset = 0, fixed_abs, tag = 'sflag constant byte address 0x0 - dummy sync flag']
  #allocation104 [shape = 's32[]', space=sflag, size = 0x4, offset = 0, fixed_abs, tag = 'sflag constant byte address 0x0 - dummy sync flag']
  #allocation105 [shape = 's32[]', space=sflag, size = 0x4, offset = 0, fixed_abs, tag = 'sflag constant byte address 0x0 - dummy sync flag']
  #allocation106 [shape = 's32[]', space=sflag, size = 0x4, offset = 0, fixed_abs, tag = 'sflag constant byte address 0x0 - dummy sync flag']
  #allocation107 [shape = 's32[]', space=sflag, size = 0x4, offset = 0, fixed_abs, tag = 'sflag constant byte address 0x0 - dummy sync flag']
  #allocation108 [shape = 's32[]', space=sflag, size = 0x4, offset = 0, fixed_abs, tag = 'sflag constant byte address 0x0 - dummy sync flag']
  #allocation109 [shape = 's32[]', space=sflag, size = 0x4, offset = 0, fixed_abs, tag = 'sflag constant byte address 0x0 - dummy sync flag']
  #allocation110 [shape = 's32[]', space=sflag, size = 0x4, offset = 0, fixed_abs, tag = 'sflag constant byte address 0x0 - dummy sync flag']
  #allocation111 [shape = 's32[]', space=sflag, size = 0x4, offset = 0, fixed_abs, tag = 'sflag constant byte address 0x0 - dummy sync flag']
  #allocation112 [shape = 's32[]', space=sflag, size = 0x4, offset = 0, fixed_abs, tag = 'sflag constant byte address 0x0 - dummy sync flag']
  #allocation113 [shape = 's32[]', space=sflag, size = 0x4, offset = 0, fixed_abs, tag = 'sflag constant byte address 0x0 - dummy sync flag']
  #allocation114 [shape = 's32[]', space=sflag, size = 0x4, offset = 0, fixed_abs, tag = 'sflag constant byte address 0x0 - dummy sync flag']
  #allocation115 [shape = 's32[]', space=sflag, size = 0x4, offset = 0, fixed_abs, tag = 'sflag constant byte address 0x0 - dummy sync flag']
  #allocation116 [shape = 's32[]', space=sflag, size = 0x4, offset = 0, fixed_abs, tag = 'sflag constant byte address 0x0 - dummy sync flag']
  #allocation117 [shape = 's32[]', space=sflag, size = 0x4, offset = 0, fixed_abs, tag = 'sflag constant byte address 0x0 - dummy sync flag']
  #allocation118 [shape = 's32[]', space=sflag, size = 0x4, offset = 0, fixed_abs, tag = 'sflag constant byte address 0x0 - dummy sync flag']
  #allocation119 [shape = 's32[]', space=sflag, size = 0x4, offset = 0, fixed_abs, tag = 'sflag constant byte address 0x0 - dummy sync flag']
  #allocation120 [shape = 's32[]', space=sflag, size = 0x4, offset = 0, fixed_abs, tag = 'sflag constant byte address 0x0 - dummy sync flag']
  #allocation121 [shape = 's32[]', space=sflag, size = 0x4, offset = 0, fixed_abs, tag = 'sflag constant byte address 0x0 - dummy sync flag']
  #allocation122 [shape = 's32[]', space=sflag, size = 0x4, offset = 0, fixed_abs, tag = 'sflag constant byte address 0x0 - dummy sync flag']
  #allocation123 [shape = 's32[]', space=sflag, size = 0x4, offset = 0, fixed_abs, tag = 'sflag constant byte address 0x0 - dummy sync flag']
  #allocation124 [shape = 's32[]', space=sflag, size = 0x4, offset = 0, fixed_abs, tag = 'sflag constant byte address 0x0 - dummy sync flag']
  #allocation125 [shape = 's32[]', space=sflag, size = 0x4, offset = 0, fixed_abs, tag = 'sflag constant byte address 0x0 - dummy sync flag']
  #allocation126 [shape = 's32[]', space=sflag, size = 0x4, offset = 0, fixed_abs, tag = 'sflag constant byte address 0x0 - dummy sync flag']
  #allocation127 [shape = 's32[]', space=sflag, size = 0x4, offset = 0, fixed_abs, tag = 'sflag constant byte address 0x0 - dummy sync flag']
  #allocation128 [shape = 's32[]', space=sflag, size = 0x4, offset = 0, fixed_abs, tag = 'sflag constant byte address 0x0 - dummy sync flag']
  #allocation129 [shape = 's32[]', space=sflag, size = 0x4, offset = 0, fixed_abs, tag = 'sflag constant byte address 0x0 - dummy sync flag']
  #allocation130 [shape = 's32[]', space=sflag, size = 0x4, offset = 0, fixed_abs, tag = 'sflag constant byte address 0x0 - dummy sync flag']
  #allocation131 [shape = 's32[]', space=sflag, size = 0x4, offset = 0, fixed_abs, tag = 'sflag constant byte address 0x0 - dummy sync flag']
  #allocation132 [shape = 's32[]', space=sflag, size = 0x4, offset = 0, fixed_abs, tag = 'sflag constant byte address 0x0 - dummy sync flag']
  #allocation133 [shape = 's32[]', space=sflag, size = 0x4, offset = 0, fixed_abs, tag = 'sflag constant byte address 0x0 - dummy sync flag']
  #allocation134 [shape = 's32[]', space=sflag, size = 0x4, offset = 0, fixed_abs, tag = 'sflag constant byte address 0x0 - dummy sync flag']
  #allocation135 [shape = 's32[]', space=sflag, size = 0x4, offset = 0, fixed_abs, tag = 'sflag constant byte address 0x0 - dummy sync flag']
  #allocation136 [shape = 's32[]', space=sflag, size = 0x4, offset = 0, fixed_abs, tag = 'sflag constant byte address 0x0 - dummy sync flag']
  #allocation137 [shape = 's32[]', space=sflag, size = 0x4, offset = 0, fixed_abs, tag = 'sflag constant byte address 0x0 - dummy sync flag']
  %s0 = inlined_call_operand.hbm [shape: s32[64], index: 0, kind: input, shape index: {}]
  %s1 = inlined_call_operand.hbm [shape: f32[8,8], index: 1, kind: input, shape index: {}]
  %s2 = inlined_call_operand.hbm [shape: f32[128,768], index: 2, kind: input, shape index: {}]
  %s3 = inlined_call_operand.hbm [shape: f32[8,768], index: 3, kind: output, shape index: {}]
  %s4 = sld [smem:[#allocation0]]
  $region26: #{tpu_custom_call.1} parent=0
    _
  %s6 = ssub.s32 1, %s4
  %s7 = scalar_select 0, %s6, %s4
  %9 = dma.hbm_to_smem %s0, 16, [#allocation5], [#allocation4]
  %10 = dma.done [#allocation4], 16
  %11 = sfence
  $region1: #{tpu_custom_call.1} parent=0
    #allocation6 [shape = 'u8[4096]{0}', space=vmem, size = 0x1000, scoped, tag = 'input window, operand 1, single buffered']
    #allocation7 [shape = 's32[1]{0}', space=sflag, size = 0x4, scoped, tag = 'scoped memory for tpu_custom_call.1']
    #allocation8 [shape = 's32[1]{0}', space=sflag, size = 0x4, scoped, tag = 'scoped memory for tpu_custom_call.1']
    #allocation9 [shape = 'u8[24576]{0}', space=vmem, size = 0x6000, scoped, tag = 'output window, operand 0, single buffered']
    %12 = vsyncpa [#allocation7], 0
    %13 = vsyncpa [#allocation8], 0
    // Predicated region
    $region2: #{tpu_custom_call.1} parent=1 // pred_check
      _
    $region3: #{tpu_custom_call.1} parent=1 // pred_check_branch
      %15 = sbr.rel (0) target = $region5
    $region4: #{tpu_custom_call.1} parent=1 // pred_region
      %s16 = sadd.s32 0, 0
      %s18 = ssub.s32 128, 128
      %19 = vsyncadd [#allocation7], %s18
      %s20 = smul.addr %s16, 128
      %s21 = scalar_lea.hbm %s1, %s20
      %s23 = sshll.u32 [#allocation6], 4
      %s24 = int_to_ptr.vmem [resolvable:$true] %s23
      %26 = dma.hbm_to_vmem [thread:$0]  %s21, 128, %s24, [#allocation7]
    $region5: #{tpu_custom_call.1} parent=1 // pred_fallthru
      _
    // Predicated region
    $region6: #{tpu_custom_call.1} parent=1 // pred_check
      _
    $region7: #{tpu_custom_call.1} parent=1 // pred_check_branch
      %28 = sbr.rel (0) target = $region9
    $region8: #{tpu_custom_call.1} parent=1 // pred_region
      %29 = dma.done [#allocation7], 128
    $region9: #{tpu_custom_call.1} parent=1 // pred_fallthru
      _
    %s30 = sadd.s32 0, 0
    %s31 = sadd.s32 0, 0
    %s32 = sadd.s32 0, 0
    %s33 = ssub.s32 0, 0
    %s34 = ssub.s32 0, 0
    %p35 = scmp.ne.s32.totalorder 0, 0
    %p36 = scmp.lt.s32.totalorder 0, 0
    %p37 = pnand %p36, %p35
    %p38 = pneg %p37
    %s39 = sadd.s32 0, 2
    %s40 = scalar_select %p38, %s39, 0
    %p41 = scmp.eq.s32.totalorder 0, 0
    // Predicated region
    $region10: #{tpu_custom_call.1} parent=1 // pred_check
      %p42 = pneg %p41
    $region11: #{tpu_custom_call.1} parent=1 // pred_check_branch
      %44 = sbr.rel (%p42) target = $region13
    $region12: #{tpu_custom_call.1} parent=1 // pred_region
      %s45 = smul.u32 %s32, 64
      %s46 = sld [smem:[#allocation5 + %s45]]
      %s47 = sshrl.u32 %s46, 3
      %s48 = sand.u32 %s46, 7
      %s49 = smul.u32 %s47, 48
      %s50 = sadd.s32 %s48, %s49
      %s51 = smul.addr %s50, 16
      %s52 = scalar_lea.hbm %s2, %s51
      %s53 = smul.u32 %s40, 384
      %s54 = scalar_lea.vmem [#allocation2], %s53
      %s55 = scalar_lea.sflag [#allocation3], %s40
      %s57 = sshll.u32 %s54, 4
      %s58 = int_to_ptr.vmem [resolvable:$true] %s57
      %60 = dma.hbm_to_vmem [thread:$0]  %s52, 96, %s58, %s55, 128, 128, 1
      %s61 = sadd.s32 %s45, 1
      %s62 = sld [smem:[#allocation5 + %s61]]
      %s63 = sshrl.u32 %s62, 3
      %s64 = sand.u32 %s62, 7
      %s65 = smul.u32 %s63, 48
      %s66 = sadd.s32 %s64, %s65
      %s67 = smul.addr %s66, 16
      %s68 = scalar_lea.hbm %s2, %s67
      %s69 = sadd.s32 1, %s53
      %s70 = scalar_lea.vmem [#allocation2], %s69
      %s72 = sshll.u32 %s70, 4
      %s73 = int_to_ptr.vmem [resolvable:$true] %s72
      %75 = dma.hbm_to_vmem [thread:$0]  %s68, 96, %s73, %s55, 128, 128, 1
      %s76 = sadd.s32 %s45, 2
      %s77 = sld [smem:[#allocation5 + %s76]]
      %s78 = sshrl.u32 %s77, 3
      %s79 = sand.u32 %s77, 7
      %s80 = smul.u32 %s78, 48
      %s81 = sadd.s32 %s79, %s80
      %s82 = smul.addr %s81, 16
      %s83 = scalar_lea.hbm %s2, %s82
      %s84 = sadd.s32 2, %s53
      %s85 = scalar_lea.vmem [#allocation2], %s84
      %s87 = sshll.u32 %s85, 4
      %s88 = int_to_ptr.vmem [resolvable:$true] %s87
      %90 = dma.hbm_to_vmem [thread:$0]  %s83, 96, %s88, %s55, 128, 128, 1
      %s91 = sadd.s32 %s45, 3
      %s92 = sld [smem:[#allocation5 + %s91]]
      %s93 = sshrl.u32 %s92, 3
      %s94 = sand.u32 %s92, 7
      %s95 = smul.u32 %s93, 48
      %s96 = sadd.s32 %s94, %s95
      %s97 = smul.addr %s96, 16
      %s98 = scalar_lea.hbm %s2, %s97
      %s99 = sadd.s32 3, %s53
      %s100 = scalar_lea.vmem [#allocation2], %s99
      %s102 = sshll.u32 %s100, 4
      %s103 = int_to_ptr.vmem [resolvable:$true] %s102
      %105 = dma.hbm_to_vmem [thread:$0]  %s98, 96, %s103, %s55, 128, 128, 1
      %s106 = sadd.s32 %s45, 4
      %s107 = sld [smem:[#allocation5 + %s106]]
      %s108 = sshrl.u32 %s107, 3
      %s109 = sand.u32 %s107, 7
      %s110 = smul.u32 %s108, 48
      %s111 = sadd.s32 %s109, %s110
      %s112 = smul.addr %s111, 16
      %s113 = scalar_lea.hbm %s2, %s112
      %s114 = sadd.s32 4, %s53
      %s115 = scalar_lea.vmem [#allocation2], %s114
      %s117 = sshll.u32 %s115, 4
      %s118 = int_to_ptr.vmem [resolvable:$true] %s117
      %120 = dma.hbm_to_vmem [thread:$0]  %s113, 96, %s118, %s55, 128, 128, 1
      %s121 = sadd.s32 %s45, 5
      %s122 = sld [smem:[#allocation5 + %s121]]
      %s123 = sshrl.u32 %s122, 3
      %s124 = sand.u32 %s122, 7
      %s125 = smul.u32 %s123, 48
      %s126 = sadd.s32 %s124, %s125
      %s127 = smul.addr %s126, 16
      %s128 = scalar_lea.hbm %s2, %s127
      %s129 = sadd.s32 5, %s53
      %s130 = scalar_lea.vmem [#allocation2], %s129
      %s132 = sshll.u32 %s130, 4
      %s133 = int_to_ptr.vmem [resolvable:$true] %s132
      %135 = dma.hbm_to_vmem [thread:$0]  %s128, 96, %s133, %s55, 128, 128, 1
      %s136 = sadd.s32 %s45, 6
      %s137 = sld [smem:[#allocation5 + %s136]]
      %s138 = sshrl.u32 %s137, 3
      %s139 = sand.u32 %s137, 7
      %s140 = smul.u32 %s138, 48
      %s141 = sadd.s32 %s139, %s140
      %s142 = smul.addr %s141, 16
      %s143 = scalar_lea.hbm %s2, %s142
      %s144 = sadd.s32 6, %s53
      %s145 = scalar_lea.vmem [#allocation2], %s144
      %s147 = sshll.u32 %s145, 4
      %s148 = int_to_ptr.vmem [resolvable:$true] %s147
      %150 = dma.hbm_to_vmem [thread:$0]  %s143, 96, %s148, %s55, 128, 128, 1
      %s151 = sadd.s32 %s45, 7
      %s152 = sld [smem:[#allocation5 + %s151]]
      %s153 = sshrl.u32 %s152, 3
      %s154 = sand.u32 %s152, 7
      %s155 = smul.u32 %s153, 48
      %s156 = sadd.s32 %s154, %s155
      %s157 = smul.addr %s156, 16
      %s158 = scalar_lea.hbm %s2, %s157
      %s159 = sadd.s32 7, %s53
      %s160 = scalar_lea.vmem [#allocation2], %s159
      %s162 = sshll.u32 %s160, 4
      %s163 = int_to_ptr.vmem [resolvable:$true] %s162
      %165 = dma.hbm_to_vmem [thread:$0]  %s158, 96, %s163, %s55, 128, 128, 1
      %s166 = sadd.s32 %s45, 8
      %s167 = sld [smem:[#allocation5 + %s166]]
      %s168 = sshrl.u32 %s167, 3
      %s169 = sand.u32 %s167, 7
      %s170 = smul.u32 %s168, 48
      %s171 = sadd.s32 %s169, %s170
      %s172 = smul.addr %s171, 16
      %s173 = scalar_lea.hbm %s2, %s172
      %s174 = sadd.s32 48, %s53
      %s175 = scalar_lea.vmem [#allocation2], %s174
      %s177 = sshll.u32 %s175, 4
      %s178 = int_to_ptr.vmem [resolvable:$true] %s177
      %180 = dma.hbm_to_vmem [thread:$0]  %s173, 96, %s178, %s55, 128, 128, 1
      %s181 = sadd.s32 %s45, 9
      %s182 = sld [smem:[#allocation5 + %s181]]
      %s183 = sshrl.u32 %s182, 3
      %s184 = sand.u32 %s182, 7
      %s185 = smul.u32 %s183, 48
      %s186 = sadd.s32 %s184, %s185
      %s187 = smul.addr %s186, 16
      %s188 = scalar_lea.hbm %s2, %s187
      %s189 = sadd.s32 49, %s53
      %s190 = scalar_lea.vmem [#allocation2], %s189
      %s192 = sshll.u32 %s190, 4
      %s193 = int_to_ptr.vmem [resolvable:$true] %s192
      %195 = dma.hbm_to_vmem [thread:$0]  %s188, 96, %s193, %s55, 128, 128, 1
      %s196 = sadd.s32 %s45, 10
      %s197 = sld [smem:[#allocation5 + %s196]]
      %s198 = sshrl.u32 %s197, 3
      %s199 = sand.u32 %s197, 7
      %s200 = smul.u32 %s198, 48
      %s201 = sadd.s32 %s199, %s200
      %s202 = smul.addr %s201, 16
      %s203 = scalar_lea.hbm %s2, %s202
      %s204 = sadd.s32 50, %s53
      %s205 = scalar_lea.vmem [#allocation2], %s204
      %s207 = sshll.u32 %s205, 4
      %s208 = int_to_ptr.vmem [resolvable:$true] %s207
      %210 = dma.hbm_to_vmem [thread:$0]  %s203, 96, %s208, %s55, 128, 128, 1
      %s211 = sadd.s32 %s45, 11
      %s212 = sld [smem:[#allocation5 + %s211]]
      %s213 = sshrl.u32 %s212, 3
      %s214 = sand.u32 %s212, 7
      %s215 = smul.u32 %s213, 48
      %s216 = sadd.s32 %s214, %s215
      %s217 = smul.addr %s216, 16
      %s218 = scalar_lea.hbm %s2, %s217
      %s219 = sadd.s32 51, %s53
      %s220 = scalar_lea.vmem [#allocation2], %s219
      %s222 = sshll.u32 %s220, 4
      %s223 = int_to_ptr.vmem [resolvable:$true] %s222
      %225 = dma.hbm_to_vmem [thread:$0]  %s218, 96, %s223, %s55, 128, 128, 1
      %s226 = sadd.s32 %s45, 12
      %s227 = sld [smem:[#allocation5 + %s226]]
      %s228 = sshrl.u32 %s227, 3
      %s229 = sand.u32 %s227, 7
      %s230 = smul.u32 %s228, 48
      %s231 = sadd.s32 %s229, %s230
      %s232 = smul.addr %s231, 16
      %s233 = scalar_lea.hbm %s2, %s232
      %s234 = sadd.s32 52, %s53
      %s235 = scalar_lea.vmem [#allocation2], %s234
      %s237 = sshll.u32 %s235, 4
      %s238 = int_to_ptr.vmem [resolvable:$true] %s237
      %240 = dma.hbm_to_vmem [thread:$0]  %s233, 96, %s238, %s55, 128, 128, 1
      %s241 = sadd.s32 %s45, 13
      %s242 = sld [smem:[#allocation5 + %s241]]
      %s243 = sshrl.u32 %s242, 3
      %s244 = sand.u32 %s242, 7
      %s245 = smul.u32 %s243, 48
      %s246 = sadd.s32 %s244, %s245
      %s247 = smul.addr %s246, 16
      %s248 = scalar_lea.hbm %s2, %s247
      %s249 = sadd.s32 53, %s53
      %s250 = scalar_lea.vmem [#allocation2], %s249
      %s252 = sshll.u32 %s250, 4
      %s253 = int_to_ptr.vmem [resolvable:$true] %s252
      %255 = dma.hbm_to_vmem [thread:$0]  %s248, 96, %s253, %s55, 128, 128, 1
      %s256 = sadd.s32 %s45, 14
      %s257 = sld [smem:[#allocation5 + %s256]]
      %s258 = sshrl.u32 %s257, 3
      %s259 = sand.u32 %s257, 7
      %s260 = smul.u32 %s258, 48
      %s261 = sadd.s32 %s259, %s260
      %s262 = smul.addr %s261, 16
      %s263 = scalar_lea.hbm %s2, %s262
      %s264 = sadd.s32 54, %s53
      %s265 = scalar_lea.vmem [#allocation2], %s264
      %s267 = sshll.u32 %s265, 4
      %s268 = int_to_ptr.vmem [resolvable:$true] %s267
      %270 = dma.hbm_to_vmem [thread:$0]  %s263, 96, %s268, %s55, 128, 128, 1
      %s271 = sadd.s32 %s45, 15
      %s272 = sld [smem:[#allocation5 + %s271]]
      %s273 = sshrl.u32 %s272, 3
      %s274 = sand.u32 %s272, 7
      %s275 = smul.u32 %s273, 48
      %s276 = sadd.s32 %s274, %s275
      %s277 = smul.addr %s276, 16
      %s278 = scalar_lea.hbm %s2, %s277
      %s279 = sadd.s32 55, %s53
      %s280 = scalar_lea.vmem [#allocation2], %s279
      %s282 = sshll.u32 %s280, 4
      %s283 = int_to_ptr.vmem [resolvable:$true] %s282
      %285 = dma.hbm_to_vmem [thread:$0]  %s278, 96, %s283, %s55, 128, 128, 1
      %s286 = sadd.s32 %s45, 16
      %s287 = sld [smem:[#allocation5 + %s286]]
      %s288 = sshrl.u32 %s287, 3
      %s289 = sand.u32 %s287, 7
      %s290 = smul.u32 %s288, 48
      %s291 = sadd.s32 %s289, %s290
      %s292 = smul.addr %s291, 16
      %s293 = scalar_lea.hbm %s2, %s292
      %s294 = sadd.s32 96, %s53
      %s295 = scalar_lea.vmem [#allocation2], %s294
      %s297 = sshll.u32 %s295, 4
      %s298 = int_to_ptr.vmem [resolvable:$true] %s297
      %300 = dma.hbm_to_vmem [thread:$0]  %s293, 96, %s298, %s55, 128, 128, 1
      %s301 = sadd.s32 %s45, 17
      %s302 = sld [smem:[#allocation5 + %s301]]
      %s303 = sshrl.u32 %s302, 3
      %s304 = sand.u32 %s302, 7
      %s305 = smul.u32 %s303, 48
      %s306 = sadd.s32 %s304, %s305
      %s307 = smul.addr %s306, 16
      %s308 = scalar_lea.hbm %s2, %s307
      %s309 = sadd.s32 97, %s53
      %s310 = scalar_lea.vmem [#allocation2], %s309
      %s312 = sshll.u32 %s310, 4
      %s313 = int_to_ptr.vmem [resolvable:$true] %s312
      %315 = dma.hbm_to_vmem [thread:$0]  %s308, 96, %s313, %s55, 128, 128, 1
      %s316 = sadd.s32 %s45, 18
      %s317 = sld [smem:[#allocation5 + %s316]]
      %s318 = sshrl.u32 %s317, 3
      %s319 = sand.u32 %s317, 7
      %s320 = smul.u32 %s318, 48
      %s321 = sadd.s32 %s319, %s320
      %s322 = smul.addr %s321, 16
      %s323 = scalar_lea.hbm %s2, %s322
      %s324 = sadd.s32 98, %s53
      %s325 = scalar_lea.vmem [#allocation2], %s324
      %s327 = sshll.u32 %s325, 4
      %s328 = int_to_ptr.vmem [resolvable:$true] %s327
      %330 = dma.hbm_to_vmem [thread:$0]  %s323, 96, %s328, %s55, 128, 128, 1
      %s331 = sadd.s32 %s45, 19
      %s332 = sld [smem:[#allocation5 + %s331]]
      %s333 = sshrl.u32 %s332, 3
      %s334 = sand.u32 %s332, 7
      %s335 = smul.u32 %s333, 48
      %s336 = sadd.s32 %s334, %s335
      %s337 = smul.addr %s336, 16
      %s338 = scalar_lea.hbm %s2, %s337
      %s339 = sadd.s32 99, %s53
      %s340 = scalar_lea.vmem [#allocation2], %s339
      %s342 = sshll.u32 %s340, 4
      %s343 = int_to_ptr.vmem [resolvable:$true] %s342
      %345 = dma.hbm_to_vmem [thread:$0]  %s338, 96, %s343, %s55, 128, 128, 1
      %s346 = sadd.s32 %s45, 20
      %s347 = sld [smem:[#allocation5 + %s346]]
      %s348 = sshrl.u32 %s347, 3
      %s349 = sand.u32 %s347, 7
      %s350 = smul.u32 %s348, 48
      %s351 = sadd.s32 %s349, %s350
      %s352 = smul.addr %s351, 16
      %s353 = scalar_lea.hbm %s2, %s352
      %s354 = sadd.s32 100, %s53
      %s355 = scalar_lea.vmem [#allocation2], %s354
      %s357 = sshll.u32 %s355, 4
      %s358 = int_to_ptr.vmem [resolvable:$true] %s357
      %360 = dma.hbm_to_vmem [thread:$0]  %s353, 96, %s358, %s55, 128, 128, 1
      %s361 = sadd.s32 %s45, 21
      %s362 = sld [smem:[#allocation5 + %s361]]
      %s363 = sshrl.u32 %s362, 3
      %s364 = sand.u32 %s362, 7
      %s365 = smul.u32 %s363, 48
      %s366 = sadd.s32 %s364, %s365
      %s367 = smul.addr %s366, 16
      %s368 = scalar_lea.hbm %s2, %s367
      %s369 = sadd.s32 101, %s53
      %s370 = scalar_lea.vmem [#allocation2], %s369
      %s372 = sshll.u32 %s370, 4
      %s373 = int_to_ptr.vmem [resolvable:$true] %s372
      %375 = dma.hbm_to_vmem [thread:$0]  %s368, 96, %s373, %s55, 128, 128, 1
      %s376 = sadd.s32 %s45, 22
      %s377 = sld [smem:[#allocation5 + %s376]]
      %s378 = sshrl.u32 %s377, 3
      %s379 = sand.u32 %s377, 7
      %s380 = smul.u32 %s378, 48
      %s381 = sadd.s32 %s379, %s380
      %s382 = smul.addr %s381, 16
      %s383 = scalar_lea.hbm %s2, %s382
      %s384 = sadd.s32 102, %s53
      %s385 = scalar_lea.vmem [#allocation2], %s384
      %s387 = sshll.u32 %s385, 4
      %s388 = int_to_ptr.vmem [resolvable:$true] %s387
      %390 = dma.hbm_to_vmem [thread:$0]  %s383, 96, %s388, %s55, 128, 128, 1
      %s391 = sadd.s32 %s45, 23
      %s392 = sld [smem:[#allocation5 + %s391]]
      %s393 = sshrl.u32 %s392, 3
      %s394 = sand.u32 %s392, 7
      %s395 = smul.u32 %s393, 48
      %s396 = sadd.s32 %s394, %s395
      %s397 = smul.addr %s396, 16
      %s398 = scalar_lea.hbm %s2, %s397
      %s399 = sadd.s32 103, %s53
      %s400 = scalar_lea.vmem [#allocation2], %s399
      %s402 = sshll.u32 %s400, 4
      %s403 = int_to_ptr.vmem [resolvable:$true] %s402
      %405 = dma.hbm_to_vmem [thread:$0]  %s398, 96, %s403, %s55, 128, 128, 1
      %s406 = sadd.s32 %s45, 24
      %s407 = sld [smem:[#allocation5 + %s406]]
      %s408 = sshrl.u32 %s407, 3
      %s409 = sand.u32 %s407, 7
      %s410 = smul.u32 %s408, 48
      %s411 = sadd.s32 %s409, %s410
      %s412 = smul.addr %s411, 16
      %s413 = scalar_lea.hbm %s2, %s412
      %s414 = sadd.s32 144, %s53
      %s415 = scalar_lea.vmem [#allocation2], %s414
      %s417 = sshll.u32 %s415, 4
      %s418 = int_to_ptr.vmem [resolvable:$true] %s417
      %420 = dma.hbm_to_vmem [thread:$0]  %s413, 96, %s418, %s55, 128, 128, 1
      %s421 = sadd.s32 %s45, 25
      %s422 = sld [smem:[#allocation5 + %s421]]
      %s423 = sshrl.u32 %s422, 3
      %s424 = sand.u32 %s422, 7
      %s425 = smul.u32 %s423, 48
      %s426 = sadd.s32 %s424, %s425
      %s427 = smul.addr %s426, 16
      %s428 = scalar_lea.hbm %s2, %s427
      %s429 = sadd.s32 145, %s53
      %s430 = scalar_lea.vmem [#allocation2], %s429
      %s432 = sshll.u32 %s430, 4
      %s433 = int_to_ptr.vmem [resolvable:$true] %s432
      %435 = dma.hbm_to_vmem [thread:$0]  %s428, 96, %s433, %s55, 128, 128, 1
      %s436 = sadd.s32 %s45, 26
      %s437 = sld [smem:[#allocation5 + %s436]]
      %s438 = sshrl.u32 %s437, 3
      %s439 = sand.u32 %s437, 7
      %s440 = smul.u32 %s438, 48
      %s441 = sadd.s32 %s439, %s440
      %s442 = smul.addr %s441, 16
      %s443 = scalar_lea.hbm %s2, %s442
      %s444 = sadd.s32 146, %s53
      %s445 = scalar_lea.vmem [#allocation2], %s444
      %s447 = sshll.u32 %s445, 4
      %s448 = int_to_ptr.vmem [resolvable:$true] %s447
      %450 = dma.hbm_to_vmem [thread:$0]  %s443, 96, %s448, %s55, 128, 128, 1
      %s451 = sadd.s32 %s45, 27
      %s452 = sld [smem:[#allocation5 + %s451]]
      %s453 = sshrl.u32 %s452, 3
      %s454 = sand.u32 %s452, 7
      %s455 = smul.u32 %s453, 48
      %s456 = sadd.s32 %s454, %s455
      %s457 = smul.addr %s456, 16
      %s458 = scalar_lea.hbm %s2, %s457
      %s459 = sadd.s32 147, %s53
      %s460 = scalar_lea.vmem [#allocation2], %s459
      %s462 = sshll.u32 %s460, 4
      %s463 = int_to_ptr.vmem [resolvable:$true] %s462
      %465 = dma.hbm_to_vmem [thread:$0]  %s458, 96, %s463, %s55, 128, 128, 1
      %s466 = sadd.s32 %s45, 28
      %s467 = sld [smem:[#allocation5 + %s466]]
      %s468 = sshrl.u32 %s467, 3
      %s469 = sand.u32 %s467, 7
      %s470 = smul.u32 %s468, 48
      %s471 = sadd.s32 %s469, %s470
      %s472 = smul.addr %s471, 16
      %s473 = scalar_lea.hbm %s2, %s472
      %s474 = sadd.s32 148, %s53
      %s475 = scalar_lea.vmem [#allocation2], %s474
      %s477 = sshll.u32 %s475, 4
      %s478 = int_to_ptr.vmem [resolvable:$true] %s477
      %480 = dma.hbm_to_vmem [thread:$0]  %s473, 96, %s478, %s55, 128, 128, 1
      %s481 = sadd.s32 %s45, 29
      %s482 = sld [smem:[#allocation5 + %s481]]
      %s483 = sshrl.u32 %s482, 3
      %s484 = sand.u32 %s482, 7
      %s485 = smul.u32 %s483, 48
      %s486 = sadd.s32 %s484, %s485
      %s487 = smul.addr %s486, 16
      %s488 = scalar_lea.hbm %s2, %s487
      %s489 = sadd.s32 149, %s53
      %s490 = scalar_lea.vmem [#allocation2], %s489
      %s492 = sshll.u32 %s490, 4
      %s493 = int_to_ptr.vmem [resolvable:$true] %s492
      %495 = dma.hbm_to_vmem [thread:$0]  %s488, 96, %s493, %s55, 128, 128, 1
      %s496 = sadd.s32 %s45, 30
      %s497 = sld [smem:[#allocation5 + %s496]]
      %s498 = sshrl.u32 %s497, 3
      %s499 = sand.u32 %s497, 7
      %s500 = smul.u32 %s498, 48
      %s501 = sadd.s32 %s499, %s500
      %s502 = smul.addr %s501, 16
      %s503 = scalar_lea.hbm %s2, %s502
      %s504 = sadd.s32 150, %s53
      %s505 = scalar_lea.vmem [#allocation2], %s504
      %s507 = sshll.u32 %s505, 4
      %s508 = int_to_ptr.vmem [resolvable:$true] %s507
      %510 = dma.hbm_to_vmem [thread:$0]  %s503, 96, %s508, %s55, 128, 128, 1
      %s511 = sadd.s32 %s45, 31
      %s512 = sld [smem:[#allocation5 + %s511]]
      %s513 = sshrl.u32 %s512, 3
      %s514 = sand.u32 %s512, 7
      %s515 = smul.u32 %s513, 48
      %s516 = sadd.s32 %s514, %s515
      %s517 = smul.addr %s516, 16
      %s518 = scalar_lea.hbm %s2, %s517
      %s519 = sadd.s32 151, %s53
      %s520 = scalar_lea.vmem [#allocation2], %s519
      %s522 = sshll.u32 %s520, 4
      %s523 = int_to_ptr.vmem [resolvable:$true] %s522
      %525 = dma.hbm_to_vmem [thread:$0]  %s518, 96, %s523, %s55, 128, 128, 1
      %s526 = sadd.s32 %s45, 32
      %s527 = sld [smem:[#allocation5 + %s526]]
      %s528 = sshrl.u32 %s527, 3
      %s529 = sand.u32 %s527, 7
      %s530 = smul.u32 %s528, 48
      %s531 = sadd.s32 %s529, %s530
      %s532 = smul.addr %s531, 16
      %s533 = scalar_lea.hbm %s2, %s532
      %s534 = sadd.s32 192, %s53
      %s535 = scalar_lea.vmem [#allocation2], %s534
      %s537 = sshll.u32 %s535, 4
      %s538 = int_to_ptr.vmem [resolvable:$true] %s537
      %540 = dma.hbm_to_vmem [thread:$0]  %s533, 96, %s538, %s55, 128, 128, 1
      %s541 = sadd.s32 %s45, 33
      %s542 = sld [smem:[#allocation5 + %s541]]
      %s543 = sshrl.u32 %s542, 3
      %s544 = sand.u32 %s542, 7
      %s545 = smul.u32 %s543, 48
      %s546 = sadd.s32 %s544, %s545
      %s547 = smul.addr %s546, 16
      %s548 = scalar_lea.hbm %s2, %s547
      %s549 = sadd.s32 193, %s53
      %s550 = scalar_lea.vmem [#allocation2], %s549
      %s552 = sshll.u32 %s550, 4
      %s553 = int_to_ptr.vmem [resolvable:$true] %s552
      %555 = dma.hbm_to_vmem [thread:$0]  %s548, 96, %s553, %s55, 128, 128, 1
      %s556 = sadd.s32 %s45, 34
      %s557 = sld [smem:[#allocation5 + %s556]]
      %s558 = sshrl.u32 %s557, 3
      %s559 = sand.u32 %s557, 7
      %s560 = smul.u32 %s558, 48
      %s561 = sadd.s32 %s559, %s560
      %s562 = smul.addr %s561, 16
      %s563 = scalar_lea.hbm %s2, %s562
      %s564 = sadd.s32 194, %s53
      %s565 = scalar_lea.vmem [#allocation2], %s564
      %s567 = sshll.u32 %s565, 4
      %s568 = int_to_ptr.vmem [resolvable:$true] %s567
      %570 = dma.hbm_to_vmem [thread:$0]  %s563, 96, %s568, %s55, 128, 128, 1
      %s571 = sadd.s32 %s45, 35
      %s572 = sld [smem:[#allocation5 + %s571]]
      %s573 = sshrl.u32 %s572, 3
      %s574 = sand.u32 %s572, 7
      %s575 = smul.u32 %s573, 48
      %s576 = sadd.s32 %s574, %s575
      %s577 = smul.addr %s576, 16
      %s578 = scalar_lea.hbm %s2, %s577
      %s579 = sadd.s32 195, %s53
      %s580 = scalar_lea.vmem [#allocation2], %s579
      %s582 = sshll.u32 %s580, 4
      %s583 = int_to_ptr.vmem [resolvable:$true] %s582
      %585 = dma.hbm_to_vmem [thread:$0]  %s578, 96, %s583, %s55, 128, 128, 1
      %s586 = sadd.s32 %s45, 36
      %s587 = sld [smem:[#allocation5 + %s586]]
      %s588 = sshrl.u32 %s587, 3
      %s589 = sand.u32 %s587, 7
      %s590 = smul.u32 %s588, 48
      %s591 = sadd.s32 %s589, %s590
      %s592 = smul.addr %s591, 16
      %s593 = scalar_lea.hbm %s2, %s592
      %s594 = sadd.s32 196, %s53
      %s595 = scalar_lea.vmem [#allocation2], %s594
      %s597 = sshll.u32 %s595, 4
      %s598 = int_to_ptr.vmem [resolvable:$true] %s597
      %600 = dma.hbm_to_vmem [thread:$0]  %s593, 96, %s598, %s55, 128, 128, 1
      %s601 = sadd.s32 %s45, 37
      %s602 = sld [smem:[#allocation5 + %s601]]
      %s603 = sshrl.u32 %s602, 3
      %s604 = sand.u32 %s602, 7
      %s605 = smul.u32 %s603, 48
      %s606 = sadd.s32 %s604, %s605
      %s607 = smul.addr %s606, 16
      %s608 = scalar_lea.hbm %s2, %s607
      %s609 = sadd.s32 197, %s53
      %s610 = scalar_lea.vmem [#allocation2], %s609
      %s612 = sshll.u32 %s610, 4
      %s613 = int_to_ptr.vmem [resolvable:$true] %s612
      %615 = dma.hbm_to_vmem [thread:$0]  %s608, 96, %s613, %s55, 128, 128, 1
      %s616 = sadd.s32 %s45, 38
      %s617 = sld [smem:[#allocation5 + %s616]]
      %s618 = sshrl.u32 %s617, 3
      %s619 = sand.u32 %s617, 7
      %s620 = smul.u32 %s618, 48
      %s621 = sadd.s32 %s619, %s620
      %s622 = smul.addr %s621, 16
      %s623 = scalar_lea.hbm %s2, %s622
      %s624 = sadd.s32 198, %s53
      %s625 = scalar_lea.vmem [#allocation2], %s624
      %s627 = sshll.u32 %s625, 4
      %s628 = int_to_ptr.vmem [resolvable:$true] %s627
      %630 = dma.hbm_to_vmem [thread:$0]  %s623, 96, %s628, %s55, 128, 128, 1
      %s631 = sadd.s32 %s45, 39
      %s632 = sld [smem:[#allocation5 + %s631]]
      %s633 = sshrl.u32 %s632, 3
      %s634 = sand.u32 %s632, 7
      %s635 = smul.u32 %s633, 48
      %s636 = sadd.s32 %s634, %s635
      %s637 = smul.addr %s636, 16
      %s638 = scalar_lea.hbm %s2, %s637
      %s639 = sadd.s32 199, %s53
      %s640 = scalar_lea.vmem [#allocation2], %s639
      %s642 = sshll.u32 %s640, 4
      %s643 = int_to_ptr.vmem [resolvable:$true] %s642
      %645 = dma.hbm_to_vmem [thread:$0]  %s638, 96, %s643, %s55, 128, 128, 1
      %s646 = sadd.s32 %s45, 40
      %s647 = sld [smem:[#allocation5 + %s646]]
      %s648 = sshrl.u32 %s647, 3
      %s649 = sand.u32 %s647, 7
      %s650 = smul.u32 %s648, 48
      %s651 = sadd.s32 %s649, %s650
      %s652 = smul.addr %s651, 16
      %s653 = scalar_lea.hbm %s2, %s652
      %s654 = sadd.s32 240, %s53
      %s655 = scalar_lea.vmem [#allocation2], %s654
      %s657 = sshll.u32 %s655, 4
      %s658 = int_to_ptr.vmem [resolvable:$true] %s657
      %660 = dma.hbm_to_vmem [thread:$0]  %s653, 96, %s658, %s55, 128, 128, 1
      %s661 = sadd.s32 %s45, 41
      %s662 = sld [smem:[#allocation5 + %s661]]
      %s663 = sshrl.u32 %s662, 3
      %s664 = sand.u32 %s662, 7
      %s665 = smul.u32 %s663, 48
      %s666 = sadd.s32 %s664, %s665
      %s667 = smul.addr %s666, 16
      %s668 = scalar_lea.hbm %s2, %s667
      %s669 = sadd.s32 241, %s53
      %s670 = scalar_lea.vmem [#allocation2], %s669
      %s672 = sshll.u32 %s670, 4
      %s673 = int_to_ptr.vmem [resolvable:$true] %s672
      %675 = dma.hbm_to_vmem [thread:$0]  %s668, 96, %s673, %s55, 128, 128, 1
      %s676 = sadd.s32 %s45, 42
      %s677 = sld [smem:[#allocation5 + %s676]]
      %s678 = sshrl.u32 %s677, 3
      %s679 = sand.u32 %s677, 7
      %s680 = smul.u32 %s678, 48
      %s681 = sadd.s32 %s679, %s680
      %s682 = smul.addr %s681, 16
      %s683 = scalar_lea.hbm %s2, %s682
      %s684 = sadd.s32 242, %s53
      %s685 = scalar_lea.vmem [#allocation2], %s684
      %s687 = sshll.u32 %s685, 4
      %s688 = int_to_ptr.vmem [resolvable:$true] %s687
      %690 = dma.hbm_to_vmem [thread:$0]  %s683, 96, %s688, %s55, 128, 128, 1
      %s691 = sadd.s32 %s45, 43
      %s692 = sld [smem:[#allocation5 + %s691]]
      %s693 = sshrl.u32 %s692, 3
      %s694 = sand.u32 %s692, 7
      %s695 = smul.u32 %s693, 48
      %s696 = sadd.s32 %s694, %s695
      %s697 = smul.addr %s696, 16
      %s698 = scalar_lea.hbm %s2, %s697
      %s699 = sadd.s32 243, %s53
      %s700 = scalar_lea.vmem [#allocation2], %s699
      %s702 = sshll.u32 %s700, 4
      %s703 = int_to_ptr.vmem [resolvable:$true] %s702
      %705 = dma.hbm_to_vmem [thread:$0]  %s698, 96, %s703, %s55, 128, 128, 1
      %s706 = sadd.s32 %s45, 44
      %s707 = sld [smem:[#allocation5 + %s706]]
      %s708 = sshrl.u32 %s707, 3
      %s709 = sand.u32 %s707, 7
      %s710 = smul.u32 %s708, 48
      %s711 = sadd.s32 %s709, %s710
      %s712 = smul.addr %s711, 16
      %s713 = scalar_lea.hbm %s2, %s712
      %s714 = sadd.s32 244, %s53
      %s715 = scalar_lea.vmem [#allocation2], %s714
      %s717 = sshll.u32 %s715, 4
      %s718 = int_to_ptr.vmem [resolvable:$true] %s717
      %720 = dma.hbm_to_vmem [thread:$0]  %s713, 96, %s718, %s55, 128, 128, 1
      %s721 = sadd.s32 %s45, 45
      %s722 = sld [smem:[#allocation5 + %s721]]
      %s723 = sshrl.u32 %s722, 3
      %s724 = sand.u32 %s722, 7
      %s725 = smul.u32 %s723, 48
      %s726 = sadd.s32 %s724, %s725
      %s727 = smul.addr %s726, 16
      %s728 = scalar_lea.hbm %s2, %s727
      %s729 = sadd.s32 245, %s53
      %s730 = scalar_lea.vmem [#allocation2], %s729
      %s732 = sshll.u32 %s730, 4
      %s733 = int_to_ptr.vmem [resolvable:$true] %s732
      %735 = dma.hbm_to_vmem [thread:$0]  %s728, 96, %s733, %s55, 128, 128, 1
      %s736 = sadd.s32 %s45, 46
      %s737 = sld [smem:[#allocation5 + %s736]]
      %s738 = sshrl.u32 %s737, 3
      %s739 = sand.u32 %s737, 7
      %s740 = smul.u32 %s738, 48
      %s741 = sadd.s32 %s739, %s740
      %s742 = smul.addr %s741, 16
      %s743 = scalar_lea.hbm %s2, %s742
      %s744 = sadd.s32 246, %s53
      %s745 = scalar_lea.vmem [#allocation2], %s744
      %s747 = sshll.u32 %s745, 4
      %s748 = int_to_ptr.vmem [resolvable:$true] %s747
      %750 = dma.hbm_to_vmem [thread:$0]  %s743, 96, %s748, %s55, 128, 128, 1
      %s751 = sadd.s32 %s45, 47
      %s752 = sld [smem:[#allocation5 + %s751]]
      %s753 = sshrl.u32 %s752, 3
      %s754 = sand.u32 %s752, 7
      %s755 = smul.u32 %s753, 48
      %s756 = sadd.s32 %s754, %s755
      %s757 = smul.addr %s756, 16
      %s758 = scalar_lea.hbm %s2, %s757
      %s759 = sadd.s32 247, %s53
      %s760 = scalar_lea.vmem [#allocation2], %s759
      %s762 = sshll.u32 %s760, 4
      %s763 = int_to_ptr.vmem [resolvable:$true] %s762
      %765 = dma.hbm_to_vmem [thread:$0]  %s758, 96, %s763, %s55, 128, 128, 1
      %s766 = sadd.s32 %s45, 48
      %s767 = sld [smem:[#allocation5 + %s766]]
      %s768 = sshrl.u32 %s767, 3
      %s769 = sand.u32 %s767, 7
      %s770 = smul.u32 %s768, 48
      %s771 = sadd.s32 %s769, %s770
      %s772 = smul.addr %s771, 16
      %s773 = scalar_lea.hbm %s2, %s772
      %s774 = sadd.s32 288, %s53
      %s775 = scalar_lea.vmem [#allocation2], %s774
      %s777 = sshll.u32 %s775, 4
      %s778 = int_to_ptr.vmem [resolvable:$true] %s777
      %780 = dma.hbm_to_vmem [thread:$0]  %s773, 96, %s778, %s55, 128, 128, 1
      %s781 = sadd.s32 %s45, 49
      %s782 = sld [smem:[#allocation5 + %s781]]
      %s783 = sshrl.u32 %s782, 3
      %s784 = sand.u32 %s782, 7
      %s785 = smul.u32 %s783, 48
      %s786 = sadd.s32 %s784, %s785
      %s787 = smul.addr %s786, 16
      %s788 = scalar_lea.hbm %s2, %s787
      %s789 = sadd.s32 289, %s53
      %s790 = scalar_lea.vmem [#allocation2], %s789
      %s792 = sshll.u32 %s790, 4
      %s793 = int_to_ptr.vmem [resolvable:$true] %s792
      %795 = dma.hbm_to_vmem [thread:$0]  %s788, 96, %s793, %s55, 128, 128, 1
      %s796 = sadd.s32 %s45, 50
      %s797 = sld [smem:[#allocation5 + %s796]]
      %s798 = sshrl.u32 %s797, 3
      %s799 = sand.u32 %s797, 7
      %s800 = smul.u32 %s798, 48
      %s801 = sadd.s32 %s799, %s800
      %s802 = smul.addr %s801, 16
      %s803 = scalar_lea.hbm %s2, %s802
      %s804 = sadd.s32 290, %s53
      %s805 = scalar_lea.vmem [#allocation2], %s804
      %s807 = sshll.u32 %s805, 4
      %s808 = int_to_ptr.vmem [resolvable:$true] %s807
      %810 = dma.hbm_to_vmem [thread:$0]  %s803, 96, %s808, %s55, 128, 128, 1
      %s811 = sadd.s32 %s45, 51
      %s812 = sld [smem:[#allocation5 + %s811]]
      %s813 = sshrl.u32 %s812, 3
      %s814 = sand.u32 %s812, 7
      %s815 = smul.u32 %s813, 48
      %s816 = sadd.s32 %s814, %s815
      %s817 = smul.addr %s816, 16
      %s818 = scalar_lea.hbm %s2, %s817
      %s819 = sadd.s32 291, %s53
      %s820 = scalar_lea.vmem [#allocation2], %s819
      %s822 = sshll.u32 %s820, 4
      %s823 = int_to_ptr.vmem [resolvable:$true] %s822
      %825 = dma.hbm_to_vmem [thread:$0]  %s818, 96, %s823, %s55, 128, 128, 1
      %s826 = sadd.s32 %s45, 52
      %s827 = sld [smem:[#allocation5 + %s826]]
      %s828 = sshrl.u32 %s827, 3
      %s829 = sand.u32 %s827, 7
      %s830 = smul.u32 %s828, 48
      %s831 = sadd.s32 %s829, %s830
      %s832 = smul.addr %s831, 16
      %s833 = scalar_lea.hbm %s2, %s832
      %s834 = sadd.s32 292, %s53
      %s835 = scalar_lea.vmem [#allocation2], %s834
      %s837 = sshll.u32 %s835, 4
      %s838 = int_to_ptr.vmem [resolvable:$true] %s837
      %840 = dma.hbm_to_vmem [thread:$0]  %s833, 96, %s838, %s55, 128, 128, 1
      %s841 = sadd.s32 %s45, 53
      %s842 = sld [smem:[#allocation5 + %s841]]
      %s843 = sshrl.u32 %s842, 3
      %s844 = sand.u32 %s842, 7
      %s845 = smul.u32 %s843, 48
      %s846 = sadd.s32 %s844, %s845
      %s847 = smul.addr %s846, 16
      %s848 = scalar_lea.hbm %s2, %s847
      %s849 = sadd.s32 293, %s53
      %s850 = scalar_lea.vmem [#allocation2], %s849
      %s852 = sshll.u32 %s850, 4
      %s853 = int_to_ptr.vmem [resolvable:$true] %s852
      %855 = dma.hbm_to_vmem [thread:$0]  %s848, 96, %s853, %s55, 128, 128, 1
      %s856 = sadd.s32 %s45, 54
      %s857 = sld [smem:[#allocation5 + %s856]]
      %s858 = sshrl.u32 %s857, 3
      %s859 = sand.u32 %s857, 7
      %s860 = smul.u32 %s858, 48
      %s861 = sadd.s32 %s859, %s860
      %s862 = smul.addr %s861, 16
      %s863 = scalar_lea.hbm %s2, %s862
      %s864 = sadd.s32 294, %s53
      %s865 = scalar_lea.vmem [#allocation2], %s864
      %s867 = sshll.u32 %s865, 4
      %s868 = int_to_ptr.vmem [resolvable:$true] %s867
      %870 = dma.hbm_to_vmem [thread:$0]  %s863, 96, %s868, %s55, 128, 128, 1
      %s871 = sadd.s32 %s45, 55
      %s872 = sld [smem:[#allocation5 + %s871]]
      %s873 = sshrl.u32 %s872, 3
      %s874 = sand.u32 %s872, 7
      %s875 = smul.u32 %s873, 48
      %s876 = sadd.s32 %s874, %s875
      %s877 = smul.addr %s876, 16
      %s878 = scalar_lea.hbm %s2, %s877
      %s879 = sadd.s32 295, %s53
      %s880 = scalar_lea.vmem [#allocation2], %s879
      %s882 = sshll.u32 %s880, 4
      %s883 = int_to_ptr.vmem [resolvable:$true] %s882
      %885 = dma.hbm_to_vmem [thread:$0]  %s878, 96, %s883, %s55, 128, 128, 1
      %s886 = sadd.s32 %s45, 56
      %s887 = sld [smem:[#allocation5 + %s886]]
      %s888 = sshrl.u32 %s887, 3
      %s889 = sand.u32 %s887, 7
      %s890 = smul.u32 %s888, 48
      %s891 = sadd.s32 %s889, %s890
      %s892 = smul.addr %s891, 16
      %s893 = scalar_lea.hbm %s2, %s892
      %s894 = sadd.s32 336, %s53
      %s895 = scalar_lea.vmem [#allocation2], %s894
      %s897 = sshll.u32 %s895, 4
      %s898 = int_to_ptr.vmem [resolvable:$true] %s897
      %900 = dma.hbm_to_vmem [thread:$0]  %s893, 96, %s898, %s55, 128, 128, 1
      %s901 = sadd.s32 %s45, 57
      %s902 = sld [smem:[#allocation5 + %s901]]
      %s903 = sshrl.u32 %s902, 3
      %s904 = sand.u32 %s902, 7
      %s905 = smul.u32 %s903, 48
      %s906 = sadd.s32 %s904, %s905
      %s907 = smul.addr %s906, 16
      %s908 = scalar_lea.hbm %s2, %s907
      %s909 = sadd.s32 337, %s53
      %s910 = scalar_lea.vmem [#allocation2], %s909
      %s912 = sshll.u32 %s910, 4
      %s913 = int_to_ptr.vmem [resolvable:$true] %s912
      %915 = dma.hbm_to_vmem [thread:$0]  %s908, 96, %s913, %s55, 128, 128, 1
      %s916 = sadd.s32 %s45, 58
      %s917 = sld [smem:[#allocation5 + %s916]]
      %s918 = sshrl.u32 %s917, 3
      %s919 = sand.u32 %s917, 7
      %s920 = smul.u32 %s918, 48
      %s921 = sadd.s32 %s919, %s920
      %s922 = smul.addr %s921, 16
      %s923 = scalar_lea.hbm %s2, %s922
      %s924 = sadd.s32 338, %s53
      %s925 = scalar_lea.vmem [#allocation2], %s924
      %s927 = sshll.u32 %s925, 4
      %s928 = int_to_ptr.vmem [resolvable:$true] %s927
      %930 = dma.hbm_to_vmem [thread:$0]  %s923, 96, %s928, %s55, 128, 128, 1
      %s931 = sadd.s32 %s45, 59
      %s932 = sld [smem:[#allocation5 + %s931]]
      %s933 = sshrl.u32 %s932, 3
      %s934 = sand.u32 %s932, 7
      %s935 = smul.u32 %s933, 48
      %s936 = sadd.s32 %s934, %s935
      %s937 = smul.addr %s936, 16
      %s938 = scalar_lea.hbm %s2, %s937
      %s939 = sadd.s32 339, %s53
      %s940 = scalar_lea.vmem [#allocation2], %s939
      %s942 = sshll.u32 %s940, 4
      %s943 = int_to_ptr.vmem [resolvable:$true] %s942
      %945 = dma.hbm_to_vmem [thread:$0]  %s938, 96, %s943, %s55, 128, 128, 1
      %s946 = sadd.s32 %s45, 60
      %s947 = sld [smem:[#allocation5 + %s946]]
      %s948 = sshrl.u32 %s947, 3
      %s949 = sand.u32 %s947, 7
      %s950 = smul.u32 %s948, 48
      %s951 = sadd.s32 %s949, %s950
      %s952 = smul.addr %s951, 16
      %s953 = scalar_lea.hbm %s2, %s952
      %s954 = sadd.s32 340, %s53
      %s955 = scalar_lea.vmem [#allocation2], %s954
      %s957 = sshll.u32 %s955, 4
      %s958 = int_to_ptr.vmem [resolvable:$true] %s957
      %960 = dma.hbm_to_vmem [thread:$0]  %s953, 96, %s958, %s55, 128, 128, 1
      %s961 = sadd.s32 %s45, 61
      %s962 = sld [smem:[#allocation5 + %s961]]
      %s963 = sshrl.u32 %s962, 3
      %s964 = sand.u32 %s962, 7
      %s965 = smul.u32 %s963, 48
      %s966 = sadd.s32 %s964, %s965
      %s967 = smul.addr %s966, 16
      %s968 = scalar_lea.hbm %s2, %s967
      %s969 = sadd.s32 341, %s53
      %s970 = scalar_lea.vmem [#allocation2], %s969
      %s972 = sshll.u32 %s970, 4
      %s973 = int_to_ptr.vmem [resolvable:$true] %s972
      %975 = dma.hbm_to_vmem [thread:$0]  %s968, 96, %s973, %s55, 128, 128, 1
      %s976 = sadd.s32 %s45, 62
      %s977 = sld [smem:[#allocation5 + %s976]]
      %s978 = sshrl.u32 %s977, 3
      %s979 = sand.u32 %s977, 7
      %s980 = smul.u32 %s978, 48
      %s981 = sadd.s32 %s979, %s980
      %s982 = smul.addr %s981, 16
      %s983 = scalar_lea.hbm %s2, %s982
      %s984 = sadd.s32 342, %s53
      %s985 = scalar_lea.vmem [#allocation2], %s984
      %s987 = sshll.u32 %s985, 4
      %s988 = int_to_ptr.vmem [resolvable:$true] %s987
      %990 = dma.hbm_to_vmem [thread:$0]  %s983, 96, %s988, %s55, 128, 128, 1
      %s991 = sadd.s32 %s45, 63
      %s992 = sld [smem:[#allocation5 + %s991]]
      %s993 = sshrl.u32 %s992, 3
      %s994 = sand.u32 %s992, 7
      %s995 = smul.u32 %s993, 48
      %s996 = sadd.s32 %s994, %s995
      %s997 = smul.addr %s996, 16
      %s998 = scalar_lea.hbm %s2, %s997
      %s999 = sadd.s32 343, %s53
      %s1000 = scalar_lea.vmem [#allocation2], %s999
      %s1002 = sshll.u32 %s1000, 4
      %s1003 = int_to_ptr.vmem [resolvable:$true] %s1002
      %1005 = dma.hbm_to_vmem [thread:$0]  %s998, 96, %s1003, %s55, 128, 128, 1
    $region13: #{tpu_custom_call.1} parent=1 // pred_fallthru
      _
    %s1006 = sadd.s32 0, 1
    %p1007 = scmp.lt.s32.totalorder %s1006, 1
    // Predicated region
    $region14: #{tpu_custom_call.1} parent=1 // pred_check
      %p1008 = pneg %p1007
    $region15: #{tpu_custom_call.1} parent=1 // pred_check_branch
      %1010 = sbr.rel (%p1008) target = $region17
    $region16: #{tpu_custom_call.1} parent=1 // pred_region
      %s1011 = sadd.s32 %s32, 1
      %s1012 = ssub.s32 1, %s40
      %s1013 = smul.u32 %s1011, 64
      %s1014 = sld [smem:[#allocation5 + %s1013]]
      %s1015 = sshrl.u32 %s1014, 3
      %s1016 = sand.u32 %s1014, 7
      %s1017 = smul.u32 %s1015, 48
      %s1018 = sadd.s32 %s1016, %s1017
      %s1019 = smul.addr %s1018, 16
      %s1020 = scalar_lea.hbm %s2, %s1019
      %s1021 = smul.u32 %s1012, 384
      %s1022 = scalar_lea.vmem [#allocation2], %s1021
      %s1023 = scalar_lea.sflag [#allocation3], %s1012
      %s1025 = sshll.u32 %s1022, 4
      %s1026 = int_to_ptr.vmem [resolvable:$true] %s1025
      %1028 = dma.hbm_to_vmem [thread:$0]  %s1020, 96, %s1026, %s1023, 128, 128, 1
      %s1029 = sadd.s32 %s1013, 1
      %s1030 = sld [smem:[#allocation5 + %s1029]]
      %s1031 = sshrl.u32 %s1030, 3
      %s1032 = sand.u32 %s1030, 7
      %s1033 = smul.u32 %s1031, 48
      %s1034 = sadd.s32 %s1032, %s1033
      %s1035 = smul.addr %s1034, 16
      %s1036 = scalar_lea.hbm %s2, %s1035
      %s1037 = sadd.s32 1, %s1021
      %s1038 = scalar_lea.vmem [#allocation2], %s1037
      %s1040 = sshll.u32 %s1038, 4
      %s1041 = int_to_ptr.vmem [resolvable:$true] %s1040
      %1043 = dma.hbm_to_vmem [thread:$0]  %s1036, 96, %s1041, %s1023, 128, 128, 1
      %s1044 = sadd.s32 %s1013, 2
      %s1045 = sld [smem:[#allocation5 + %s1044]]
      %s1046 = sshrl.u32 %s1045, 3
      %s1047 = sand.u32 %s1045, 7
      %s1048 = smul.u32 %s1046, 48
      %s1049 = sadd.s32 %s1047, %s1048
      %s1050 = smul.addr %s1049, 16
      %s1051 = scalar_lea.hbm %s2, %s1050
      %s1052 = sadd.s32 2, %s1021
      %s1053 = scalar_lea.vmem [#allocation2], %s1052
      %s1055 = sshll.u32 %s1053, 4
      %s1056 = int_to_ptr.vmem [resolvable:$true] %s1055
      %1058 = dma.hbm_to_vmem [thread:$0]  %s1051, 96, %s1056, %s1023, 128, 128, 1
      %s1059 = sadd.s32 %s1013, 3
      %s1060 = sld [smem:[#allocation5 + %s1059]]
      %s1061 = sshrl.u32 %s1060, 3
      %s1062 = sand.u32 %s1060, 7
      %s1063 = smul.u32 %s1061, 48
      %s1064 = sadd.s32 %s1062, %s1063
      %s1065 = smul.addr %s1064, 16
      %s1066 = scalar_lea.hbm %s2, %s1065
      %s1067 = sadd.s32 3, %s1021
      %s1068 = scalar_lea.vmem [#allocation2], %s1067
      %s1070 = sshll.u32 %s1068, 4
      %s1071 = int_to_ptr.vmem [resolvable:$true] %s1070
      %1073 = dma.hbm_to_vmem [thread:$0]  %s1066, 96, %s1071, %s1023, 128, 128, 1
      %s1074 = sadd.s32 %s1013, 4
      %s1075 = sld [smem:[#allocation5 + %s1074]]
      %s1076 = sshrl.u32 %s1075, 3
      %s1077 = sand.u32 %s1075, 7
      %s1078 = smul.u32 %s1076, 48
      %s1079 = sadd.s32 %s1077, %s1078
      %s1080 = smul.addr %s1079, 16
      %s1081 = scalar_lea.hbm %s2, %s1080
      %s1082 = sadd.s32 4, %s1021
      %s1083 = scalar_lea.vmem [#allocation2], %s1082
      %s1085 = sshll.u32 %s1083, 4
      %s1086 = int_to_ptr.vmem [resolvable:$true] %s1085
      %1088 = dma.hbm_to_vmem [thread:$0]  %s1081, 96, %s1086, %s1023, 128, 128, 1
      %s1089 = sadd.s32 %s1013, 5
      %s1090 = sld [smem:[#allocation5 + %s1089]]
      %s1091 = sshrl.u32 %s1090, 3
      %s1092 = sand.u32 %s1090, 7
      %s1093 = smul.u32 %s1091, 48
      %s1094 = sadd.s32 %s1092, %s1093
      %s1095 = smul.addr %s1094, 16
      %s1096 = scalar_lea.hbm %s2, %s1095
      %s1097 = sadd.s32 5, %s1021
      %s1098 = scalar_lea.vmem [#allocation2], %s1097
      %s1100 = sshll.u32 %s1098, 4
      %s1101 = int_to_ptr.vmem [resolvable:$true] %s1100
      %1103 = dma.hbm_to_vmem [thread:$0]  %s1096, 96, %s1101, %s1023, 128, 128, 1
      %s1104 = sadd.s32 %s1013, 6
      %s1105 = sld [smem:[#allocation5 + %s1104]]
      %s1106 = sshrl.u32 %s1105, 3
      %s1107 = sand.u32 %s1105, 7
      %s1108 = smul.u32 %s1106, 48
      %s1109 = sadd.s32 %s1107, %s1108
      %s1110 = smul.addr %s1109, 16
      %s1111 = scalar_lea.hbm %s2, %s1110
      %s1112 = sadd.s32 6, %s1021
      %s1113 = scalar_lea.vmem [#allocation2], %s1112
      %s1115 = sshll.u32 %s1113, 4
      %s1116 = int_to_ptr.vmem [resolvable:$true] %s1115
      %1118 = dma.hbm_to_vmem [thread:$0]  %s1111, 96, %s1116, %s1023, 128, 128, 1
      %s1119 = sadd.s32 %s1013, 7
      %s1120 = sld [smem:[#allocation5 + %s1119]]
      %s1121 = sshrl.u32 %s1120, 3
      %s1122 = sand.u32 %s1120, 7
      %s1123 = smul.u32 %s1121, 48
      %s1124 = sadd.s32 %s1122, %s1123
      %s1125 = smul.addr %s1124, 16
      %s1126 = scalar_lea.hbm %s2, %s1125
      %s1127 = sadd.s32 7, %s1021
      %s1128 = scalar_lea.vmem [#allocation2], %s1127
      %s1130 = sshll.u32 %s1128, 4
      %s1131 = int_to_ptr.vmem [resolvable:$true] %s1130
      %1133 = dma.hbm_to_vmem [thread:$0]  %s1126, 96, %s1131, %s1023, 128, 128, 1
      %s1134 = sadd.s32 %s1013, 8
      %s1135 = sld [smem:[#allocation5 + %s1134]]
      %s1136 = sshrl.u32 %s1135, 3
      %s1137 = sand.u32 %s1135, 7
      %s1138 = smul.u32 %s1136, 48
      %s1139 = sadd.s32 %s1137, %s1138
      %s1140 = smul.addr %s1139, 16
      %s1141 = scalar_lea.hbm %s2, %s1140
      %s1142 = sadd.s32 48, %s1021
      %s1143 = scalar_lea.vmem [#allocation2], %s1142
      %s1145 = sshll.u32 %s1143, 4
      %s1146 = int_to_ptr.vmem [resolvable:$true] %s1145
      %1148 = dma.hbm_to_vmem [thread:$0]  %s1141, 96, %s1146, %s1023, 128, 128, 1
      %s1149 = sadd.s32 %s1013, 9
      %s1150 = sld [smem:[#allocation5 + %s1149]]
      %s1151 = sshrl.u32 %s1150, 3
      %s1152 = sand.u32 %s1150, 7
      %s1153 = smul.u32 %s1151, 48
      %s1154 = sadd.s32 %s1152, %s1153
      %s1155 = smul.addr %s1154, 16
      %s1156 = scalar_lea.hbm %s2, %s1155
      %s1157 = sadd.s32 49, %s1021
      %s1158 = scalar_lea.vmem [#allocation2], %s1157
      %s1160 = sshll.u32 %s1158, 4
      %s1161 = int_to_ptr.vmem [resolvable:$true] %s1160
      %1163 = dma.hbm_to_vmem [thread:$0]  %s1156, 96, %s1161, %s1023, 128, 128, 1
      %s1164 = sadd.s32 %s1013, 10
      %s1165 = sld [smem:[#allocation5 + %s1164]]
      %s1166 = sshrl.u32 %s1165, 3
      %s1167 = sand.u32 %s1165, 7
      %s1168 = smul.u32 %s1166, 48
      %s1169 = sadd.s32 %s1167, %s1168
      %s1170 = smul.addr %s1169, 16
      %s1171 = scalar_lea.hbm %s2, %s1170
      %s1172 = sadd.s32 50, %s1021
      %s1173 = scalar_lea.vmem [#allocation2], %s1172
      %s1175 = sshll.u32 %s1173, 4
      %s1176 = int_to_ptr.vmem [resolvable:$true] %s1175
      %1178 = dma.hbm_to_vmem [thread:$0]  %s1171, 96, %s1176, %s1023, 128, 128, 1
      %s1179 = sadd.s32 %s1013, 11
      %s1180 = sld [smem:[#allocation5 + %s1179]]
      %s1181 = sshrl.u32 %s1180, 3
      %s1182 = sand.u32 %s1180, 7
      %s1183 = smul.u32 %s1181, 48
      %s1184 = sadd.s32 %s1182, %s1183
      %s1185 = smul.addr %s1184, 16
      %s1186 = scalar_lea.hbm %s2, %s1185
      %s1187 = sadd.s32 51, %s1021
      %s1188 = scalar_lea.vmem [#allocation2], %s1187
      %s1190 = sshll.u32 %s1188, 4
      %s1191 = int_to_ptr.vmem [resolvable:$true] %s1190
      %1193 = dma.hbm_to_vmem [thread:$0]  %s1186, 96, %s1191, %s1023, 128, 128, 1
      %s1194 = sadd.s32 %s1013, 12
      %s1195 = sld [smem:[#allocation5 + %s1194]]
      %s1196 = sshrl.u32 %s1195, 3
      %s1197 = sand.u32 %s1195, 7
      %s1198 = smul.u32 %s1196, 48
      %s1199 = sadd.s32 %s1197, %s1198
      %s1200 = smul.addr %s1199, 16
      %s1201 = scalar_lea.hbm %s2, %s1200
      %s1202 = sadd.s32 52, %s1021
      %s1203 = scalar_lea.vmem [#allocation2], %s1202
      %s1205 = sshll.u32 %s1203, 4
      %s1206 = int_to_ptr.vmem [resolvable:$true] %s1205
      %1208 = dma.hbm_to_vmem [thread:$0]  %s1201, 96, %s1206, %s1023, 128, 128, 1
      %s1209 = sadd.s32 %s1013, 13
      %s1210 = sld [smem:[#allocation5 + %s1209]]
      %s1211 = sshrl.u32 %s1210, 3
      %s1212 = sand.u32 %s1210, 7
      %s1213 = smul.u32 %s1211, 48
      %s1214 = sadd.s32 %s1212, %s1213
      %s1215 = smul.addr %s1214, 16
      %s1216 = scalar_lea.hbm %s2, %s1215
      %s1217 = sadd.s32 53, %s1021
      %s1218 = scalar_lea.vmem [#allocation2], %s1217
      %s1220 = sshll.u32 %s1218, 4
      %s1221 = int_to_ptr.vmem [resolvable:$true] %s1220
      %1223 = dma.hbm_to_vmem [thread:$0]  %s1216, 96, %s1221, %s1023, 128, 128, 1
      %s1224 = sadd.s32 %s1013, 14
      %s1225 = sld [smem:[#allocation5 + %s1224]]
      %s1226 = sshrl.u32 %s1225, 3
      %s1227 = sand.u32 %s1225, 7
      %s1228 = smul.u32 %s1226, 48
      %s1229 = sadd.s32 %s1227, %s1228
      %s1230 = smul.addr %s1229, 16
      %s1231 = scalar_lea.hbm %s2, %s1230
      %s1232 = sadd.s32 54, %s1021
      %s1233 = scalar_lea.vmem [#allocation2], %s1232
      %s1235 = sshll.u32 %s1233, 4
      %s1236 = int_to_ptr.vmem [resolvable:$true] %s1235
      %1238 = dma.hbm_to_vmem [thread:$0]  %s1231, 96, %s1236, %s1023, 128, 128, 1
      %s1239 = sadd.s32 %s1013, 15
      %s1240 = sld [smem:[#allocation5 + %s1239]]
      %s1241 = sshrl.u32 %s1240, 3
      %s1242 = sand.u32 %s1240, 7
      %s1243 = smul.u32 %s1241, 48
      %s1244 = sadd.s32 %s1242, %s1243
      %s1245 = smul.addr %s1244, 16
      %s1246 = scalar_lea.hbm %s2, %s1245
      %s1247 = sadd.s32 55, %s1021
      %s1248 = scalar_lea.vmem [#allocation2], %s1247
      %s1250 = sshll.u32 %s1248, 4
      %s1251 = int_to_ptr.vmem [resolvable:$true] %s1250
      %1253 = dma.hbm_to_vmem [thread:$0]  %s1246, 96, %s1251, %s1023, 128, 128, 1
      %s1254 = sadd.s32 %s1013, 16
      %s1255 = sld [smem:[#allocation5 + %s1254]]
      %s1256 = sshrl.u32 %s1255, 3
      %s1257 = sand.u32 %s1255, 7
      %s1258 = smul.u32 %s1256, 48
      %s1259 = sadd.s32 %s1257, %s1258
      %s1260 = smul.addr %s1259, 16
      %s1261 = scalar_lea.hbm %s2, %s1260
      %s1262 = sadd.s32 96, %s1021
      %s1263 = scalar_lea.vmem [#allocation2], %s1262
      %s1265 = sshll.u32 %s1263, 4
      %s1266 = int_to_ptr.vmem [resolvable:$true] %s1265
      %1268 = dma.hbm_to_vmem [thread:$0]  %s1261, 96, %s1266, %s1023, 128, 128, 1
      %s1269 = sadd.s32 %s1013, 17
      %s1270 = sld [smem:[#allocation5 + %s1269]]
      %s1271 = sshrl.u32 %s1270, 3
      %s1272 = sand.u32 %s1270, 7
      %s1273 = smul.u32 %s1271, 48
      %s1274 = sadd.s32 %s1272, %s1273
      %s1275 = smul.addr %s1274, 16
      %s1276 = scalar_lea.hbm %s2, %s1275
      %s1277 = sadd.s32 97, %s1021
      %s1278 = scalar_lea.vmem [#allocation2], %s1277
      %s1280 = sshll.u32 %s1278, 4
      %s1281 = int_to_ptr.vmem [resolvable:$true] %s1280
      %1283 = dma.hbm_to_vmem [thread:$0]  %s1276, 96, %s1281, %s1023, 128, 128, 1
      %s1284 = sadd.s32 %s1013, 18
      %s1285 = sld [smem:[#allocation5 + %s1284]]
      %s1286 = sshrl.u32 %s1285, 3
      %s1287 = sand.u32 %s1285, 7
      %s1288 = smul.u32 %s1286, 48
      %s1289 = sadd.s32 %s1287, %s1288
      %s1290 = smul.addr %s1289, 16
      %s1291 = scalar_lea.hbm %s2, %s1290
      %s1292 = sadd.s32 98, %s1021
      %s1293 = scalar_lea.vmem [#allocation2], %s1292
      %s1295 = sshll.u32 %s1293, 4
      %s1296 = int_to_ptr.vmem [resolvable:$true] %s1295
      %1298 = dma.hbm_to_vmem [thread:$0]  %s1291, 96, %s1296, %s1023, 128, 128, 1
      %s1299 = sadd.s32 %s1013, 19
      %s1300 = sld [smem:[#allocation5 + %s1299]]
      %s1301 = sshrl.u32 %s1300, 3
      %s1302 = sand.u32 %s1300, 7
      %s1303 = smul.u32 %s1301, 48
      %s1304 = sadd.s32 %s1302, %s1303
      %s1305 = smul.addr %s1304, 16
      %s1306 = scalar_lea.hbm %s2, %s1305
      %s1307 = sadd.s32 99, %s1021
      %s1308 = scalar_lea.vmem [#allocation2], %s1307
      %s1310 = sshll.u32 %s1308, 4
      %s1311 = int_to_ptr.vmem [resolvable:$true] %s1310
      %1313 = dma.hbm_to_vmem [thread:$0]  %s1306, 96, %s1311, %s1023, 128, 128, 1
      %s1314 = sadd.s32 %s1013, 20
      %s1315 = sld [smem:[#allocation5 + %s1314]]
      %s1316 = sshrl.u32 %s1315, 3
      %s1317 = sand.u32 %s1315, 7
      %s1318 = smul.u32 %s1316, 48
      %s1319 = sadd.s32 %s1317, %s1318
      %s1320 = smul.addr %s1319, 16
      %s1321 = scalar_lea.hbm %s2, %s1320
      %s1322 = sadd.s32 100, %s1021
      %s1323 = scalar_lea.vmem [#allocation2], %s1322
      %s1325 = sshll.u32 %s1323, 4
      %s1326 = int_to_ptr.vmem [resolvable:$true] %s1325
      %1328 = dma.hbm_to_vmem [thread:$0]  %s1321, 96, %s1326, %s1023, 128, 128, 1
      %s1329 = sadd.s32 %s1013, 21
      %s1330 = sld [smem:[#allocation5 + %s1329]]
      %s1331 = sshrl.u32 %s1330, 3
      %s1332 = sand.u32 %s1330, 7
      %s1333 = smul.u32 %s1331, 48
      %s1334 = sadd.s32 %s1332, %s1333
      %s1335 = smul.addr %s1334, 16
      %s1336 = scalar_lea.hbm %s2, %s1335
      %s1337 = sadd.s32 101, %s1021
      %s1338 = scalar_lea.vmem [#allocation2], %s1337
      %s1340 = sshll.u32 %s1338, 4
      %s1341 = int_to_ptr.vmem [resolvable:$true] %s1340
      %1343 = dma.hbm_to_vmem [thread:$0]  %s1336, 96, %s1341, %s1023, 128, 128, 1
      %s1344 = sadd.s32 %s1013, 22
      %s1345 = sld [smem:[#allocation5 + %s1344]]
      %s1346 = sshrl.u32 %s1345, 3
      %s1347 = sand.u32 %s1345, 7
      %s1348 = smul.u32 %s1346, 48
      %s1349 = sadd.s32 %s1347, %s1348
      %s1350 = smul.addr %s1349, 16
      %s1351 = scalar_lea.hbm %s2, %s1350
      %s1352 = sadd.s32 102, %s1021
      %s1353 = scalar_lea.vmem [#allocation2], %s1352
      %s1355 = sshll.u32 %s1353, 4
      %s1356 = int_to_ptr.vmem [resolvable:$true] %s1355
      %1358 = dma.hbm_to_vmem [thread:$0]  %s1351, 96, %s1356, %s1023, 128, 128, 1
      %s1359 = sadd.s32 %s1013, 23
      %s1360 = sld [smem:[#allocation5 + %s1359]]
      %s1361 = sshrl.u32 %s1360, 3
      %s1362 = sand.u32 %s1360, 7
      %s1363 = smul.u32 %s1361, 48
      %s1364 = sadd.s32 %s1362, %s1363
      %s1365 = smul.addr %s1364, 16
      %s1366 = scalar_lea.hbm %s2, %s1365
      %s1367 = sadd.s32 103, %s1021
      %s1368 = scalar_lea.vmem [#allocation2], %s1367
      %s1370 = sshll.u32 %s1368, 4
      %s1371 = int_to_ptr.vmem [resolvable:$true] %s1370
      %1373 = dma.hbm_to_vmem [thread:$0]  %s1366, 96, %s1371, %s1023, 128, 128, 1
      %s1374 = sadd.s32 %s1013, 24
      %s1375 = sld [smem:[#allocation5 + %s1374]]
      %s1376 = sshrl.u32 %s1375, 3
      %s1377 = sand.u32 %s1375, 7
      %s1378 = smul.u32 %s1376, 48
      %s1379 = sadd.s32 %s1377, %s1378
      %s1380 = smul.addr %s1379, 16
      %s1381 = scalar_lea.hbm %s2, %s1380
      %s1382 = sadd.s32 144, %s1021
      %s1383 = scalar_lea.vmem [#allocation2], %s1382
      %s1385 = sshll.u32 %s1383, 4
      %s1386 = int_to_ptr.vmem [resolvable:$true] %s1385
      %1388 = dma.hbm_to_vmem [thread:$0]  %s1381, 96, %s1386, %s1023, 128, 128, 1
      %s1389 = sadd.s32 %s1013, 25
      %s1390 = sld [smem:[#allocation5 + %s1389]]
      %s1391 = sshrl.u32 %s1390, 3
      %s1392 = sand.u32 %s1390, 7
      %s1393 = smul.u32 %s1391, 48
      %s1394 = sadd.s32 %s1392, %s1393
      %s1395 = smul.addr %s1394, 16
      %s1396 = scalar_lea.hbm %s2, %s1395
      %s1397 = sadd.s32 145, %s1021
      %s1398 = scalar_lea.vmem [#allocation2], %s1397
      %s1400 = sshll.u32 %s1398, 4
      %s1401 = int_to_ptr.vmem [resolvable:$true] %s1400
      %1403 = dma.hbm_to_vmem [thread:$0]  %s1396, 96, %s1401, %s1023, 128, 128, 1
      %s1404 = sadd.s32 %s1013, 26
      %s1405 = sld [smem:[#allocation5 + %s1404]]
      %s1406 = sshrl.u32 %s1405, 3
      %s1407 = sand.u32 %s1405, 7
      %s1408 = smul.u32 %s1406, 48
      %s1409 = sadd.s32 %s1407, %s1408
      %s1410 = smul.addr %s1409, 16
      %s1411 = scalar_lea.hbm %s2, %s1410
      %s1412 = sadd.s32 146, %s1021
      %s1413 = scalar_lea.vmem [#allocation2], %s1412
      %s1415 = sshll.u32 %s1413, 4
      %s1416 = int_to_ptr.vmem [resolvable:$true] %s1415
      %1418 = dma.hbm_to_vmem [thread:$0]  %s1411, 96, %s1416, %s1023, 128, 128, 1
      %s1419 = sadd.s32 %s1013, 27
      %s1420 = sld [smem:[#allocation5 + %s1419]]
      %s1421 = sshrl.u32 %s1420, 3
      %s1422 = sand.u32 %s1420, 7
      %s1423 = smul.u32 %s1421, 48
      %s1424 = sadd.s32 %s1422, %s1423
      %s1425 = smul.addr %s1424, 16
      %s1426 = scalar_lea.hbm %s2, %s1425
      %s1427 = sadd.s32 147, %s1021
      %s1428 = scalar_lea.vmem [#allocation2], %s1427
      %s1430 = sshll.u32 %s1428, 4
      %s1431 = int_to_ptr.vmem [resolvable:$true] %s1430
      %1433 = dma.hbm_to_vmem [thread:$0]  %s1426, 96, %s1431, %s1023, 128, 128, 1
      %s1434 = sadd.s32 %s1013, 28
      %s1435 = sld [smem:[#allocation5 + %s1434]]
      %s1436 = sshrl.u32 %s1435, 3
      %s1437 = sand.u32 %s1435, 7
      %s1438 = smul.u32 %s1436, 48
      %s1439 = sadd.s32 %s1437, %s1438
      %s1440 = smul.addr %s1439, 16
      %s1441 = scalar_lea.hbm %s2, %s1440
      %s1442 = sadd.s32 148, %s1021
      %s1443 = scalar_lea.vmem [#allocation2], %s1442
      %s1445 = sshll.u32 %s1443, 4
      %s1446 = int_to_ptr.vmem [resolvable:$true] %s1445
      %1448 = dma.hbm_to_vmem [thread:$0]  %s1441, 96, %s1446, %s1023, 128, 128, 1
      %s1449 = sadd.s32 %s1013, 29
      %s1450 = sld [smem:[#allocation5 + %s1449]]
      %s1451 = sshrl.u32 %s1450, 3
      %s1452 = sand.u32 %s1450, 7
      %s1453 = smul.u32 %s1451, 48
      %s1454 = sadd.s32 %s1452, %s1453
      %s1455 = smul.addr %s1454, 16
      %s1456 = scalar_lea.hbm %s2, %s1455
      %s1457 = sadd.s32 149, %s1021
      %s1458 = scalar_lea.vmem [#allocation2], %s1457
      %s1460 = sshll.u32 %s1458, 4
      %s1461 = int_to_ptr.vmem [resolvable:$true] %s1460
      %1463 = dma.hbm_to_vmem [thread:$0]  %s1456, 96, %s1461, %s1023, 128, 128, 1
      %s1464 = sadd.s32 %s1013, 30
      %s1465 = sld [smem:[#allocation5 + %s1464]]
      %s1466 = sshrl.u32 %s1465, 3
      %s1467 = sand.u32 %s1465, 7
      %s1468 = smul.u32 %s1466, 48
      %s1469 = sadd.s32 %s1467, %s1468
      %s1470 = smul.addr %s1469, 16
      %s1471 = scalar_lea.hbm %s2, %s1470
      %s1472 = sadd.s32 150, %s1021
      %s1473 = scalar_lea.vmem [#allocation2], %s1472
      %s1475 = sshll.u32 %s1473, 4
      %s1476 = int_to_ptr.vmem [resolvable:$true] %s1475
      %1478 = dma.hbm_to_vmem [thread:$0]  %s1471, 96, %s1476, %s1023, 128, 128, 1
      %s1479 = sadd.s32 %s1013, 31
      %s1480 = sld [smem:[#allocation5 + %s1479]]
      %s1481 = sshrl.u32 %s1480, 3
      %s1482 = sand.u32 %s1480, 7
      %s1483 = smul.u32 %s1481, 48
      %s1484 = sadd.s32 %s1482, %s1483
      %s1485 = smul.addr %s1484, 16
      %s1486 = scalar_lea.hbm %s2, %s1485
      %s1487 = sadd.s32 151, %s1021
      %s1488 = scalar_lea.vmem [#allocation2], %s1487
      %s1490 = sshll.u32 %s1488, 4
      %s1491 = int_to_ptr.vmem [resolvable:$true] %s1490
      %1493 = dma.hbm_to_vmem [thread:$0]  %s1486, 96, %s1491, %s1023, 128, 128, 1
      %s1494 = sadd.s32 %s1013, 32
      %s1495 = sld [smem:[#allocation5 + %s1494]]
      %s1496 = sshrl.u32 %s1495, 3
      %s1497 = sand.u32 %s1495, 7
      %s1498 = smul.u32 %s1496, 48
      %s1499 = sadd.s32 %s1497, %s1498
      %s1500 = smul.addr %s1499, 16
      %s1501 = scalar_lea.hbm %s2, %s1500
      %s1502 = sadd.s32 192, %s1021
      %s1503 = scalar_lea.vmem [#allocation2], %s1502
      %s1505 = sshll.u32 %s1503, 4
      %s1506 = int_to_ptr.vmem [resolvable:$true] %s1505
      %1508 = dma.hbm_to_vmem [thread:$0]  %s1501, 96, %s1506, %s1023, 128, 128, 1
      %s1509 = sadd.s32 %s1013, 33
      %s1510 = sld [smem:[#allocation5 + %s1509]]
      %s1511 = sshrl.u32 %s1510, 3
      %s1512 = sand.u32 %s1510, 7
      %s1513 = smul.u32 %s1511, 48
      %s1514 = sadd.s32 %s1512, %s1513
      %s1515 = smul.addr %s1514, 16
      %s1516 = scalar_lea.hbm %s2, %s1515
      %s1517 = sadd.s32 193, %s1021
      %s1518 = scalar_lea.vmem [#allocation2], %s1517
      %s1520 = sshll.u32 %s1518, 4
      %s1521 = int_to_ptr.vmem [resolvable:$true] %s1520
      %1523 = dma.hbm_to_vmem [thread:$0]  %s1516, 96, %s1521, %s1023, 128, 128, 1
      %s1524 = sadd.s32 %s1013, 34
      %s1525 = sld [smem:[#allocation5 + %s1524]]
      %s1526 = sshrl.u32 %s1525, 3
      %s1527 = sand.u32 %s1525, 7
      %s1528 = smul.u32 %s1526, 48
      %s1529 = sadd.s32 %s1527, %s1528
      %s1530 = smul.addr %s1529, 16
      %s1531 = scalar_lea.hbm %s2, %s1530
      %s1532 = sadd.s32 194, %s1021
      %s1533 = scalar_lea.vmem [#allocation2], %s1532
      %s1535 = sshll.u32 %s1533, 4
      %s1536 = int_to_ptr.vmem [resolvable:$true] %s1535
      %1538 = dma.hbm_to_vmem [thread:$0]  %s1531, 96, %s1536, %s1023, 128, 128, 1
      %s1539 = sadd.s32 %s1013, 35
      %s1540 = sld [smem:[#allocation5 + %s1539]]
      %s1541 = sshrl.u32 %s1540, 3
      %s1542 = sand.u32 %s1540, 7
      %s1543 = smul.u32 %s1541, 48
      %s1544 = sadd.s32 %s1542, %s1543
      %s1545 = smul.addr %s1544, 16
      %s1546 = scalar_lea.hbm %s2, %s1545
      %s1547 = sadd.s32 195, %s1021
      %s1548 = scalar_lea.vmem [#allocation2], %s1547
      %s1550 = sshll.u32 %s1548, 4
      %s1551 = int_to_ptr.vmem [resolvable:$true] %s1550
      %1553 = dma.hbm_to_vmem [thread:$0]  %s1546, 96, %s1551, %s1023, 128, 128, 1
      %s1554 = sadd.s32 %s1013, 36
      %s1555 = sld [smem:[#allocation5 + %s1554]]
      %s1556 = sshrl.u32 %s1555, 3
      %s1557 = sand.u32 %s1555, 7
      %s1558 = smul.u32 %s1556, 48
      %s1559 = sadd.s32 %s1557, %s1558
      %s1560 = smul.addr %s1559, 16
      %s1561 = scalar_lea.hbm %s2, %s1560
      %s1562 = sadd.s32 196, %s1021
      %s1563 = scalar_lea.vmem [#allocation2], %s1562
      %s1565 = sshll.u32 %s1563, 4
      %s1566 = int_to_ptr.vmem [resolvable:$true] %s1565
      %1568 = dma.hbm_to_vmem [thread:$0]  %s1561, 96, %s1566, %s1023, 128, 128, 1
      %s1569 = sadd.s32 %s1013, 37
      %s1570 = sld [smem:[#allocation5 + %s1569]]
      %s1571 = sshrl.u32 %s1570, 3
      %s1572 = sand.u32 %s1570, 7
      %s1573 = smul.u32 %s1571, 48
      %s1574 = sadd.s32 %s1572, %s1573
      %s1575 = smul.addr %s1574, 16
      %s1576 = scalar_lea.hbm %s2, %s1575
      %s1577 = sadd.s32 197, %s1021
      %s1578 = scalar_lea.vmem [#allocation2], %s1577
      %s1580 = sshll.u32 %s1578, 4
      %s1581 = int_to_ptr.vmem [resolvable:$true] %s1580
      %1583 = dma.hbm_to_vmem [thread:$0]  %s1576, 96, %s1581, %s1023, 128, 128, 1
      %s1584 = sadd.s32 %s1013, 38
      %s1585 = sld [smem:[#allocation5 + %s1584]]
      %s1586 = sshrl.u32 %s1585, 3
      %s1587 = sand.u32 %s1585, 7
      %s1588 = smul.u32 %s1586, 48
      %s1589 = sadd.s32 %s1587, %s1588
      %s1590 = smul.addr %s1589, 16
      %s1591 = scalar_lea.hbm %s2, %s1590
      %s1592 = sadd.s32 198, %s1021
      %s1593 = scalar_lea.vmem [#allocation2], %s1592
      %s1595 = sshll.u32 %s1593, 4
      %s1596 = int_to_ptr.vmem [resolvable:$true] %s1595
      %1598 = dma.hbm_to_vmem [thread:$0]  %s1591, 96, %s1596, %s1023, 128, 128, 1
      %s1599 = sadd.s32 %s1013, 39
      %s1600 = sld [smem:[#allocation5 + %s1599]]
      %s1601 = sshrl.u32 %s1600, 3
      %s1602 = sand.u32 %s1600, 7
      %s1603 = smul.u32 %s1601, 48
      %s1604 = sadd.s32 %s1602, %s1603
      %s1605 = smul.addr %s1604, 16
      %s1606 = scalar_lea.hbm %s2, %s1605
      %s1607 = sadd.s32 199, %s1021
      %s1608 = scalar_lea.vmem [#allocation2], %s1607
      %s1610 = sshll.u32 %s1608, 4
      %s1611 = int_to_ptr.vmem [resolvable:$true] %s1610
      %1613 = dma.hbm_to_vmem [thread:$0]  %s1606, 96, %s1611, %s1023, 128, 128, 1
      %s1614 = sadd.s32 %s1013, 40
      %s1615 = sld [smem:[#allocation5 + %s1614]]
      %s1616 = sshrl.u32 %s1615, 3
      %s1617 = sand.u32 %s1615, 7
      %s1618 = smul.u32 %s1616, 48
      %s1619 = sadd.s32 %s1617, %s1618
      %s1620 = smul.addr %s1619, 16
      %s1621 = scalar_lea.hbm %s2, %s1620
      %s1622 = sadd.s32 240, %s1021
      %s1623 = scalar_lea.vmem [#allocation2], %s1622
      %s1625 = sshll.u32 %s1623, 4
      %s1626 = int_to_ptr.vmem [resolvable:$true] %s1625
      %1628 = dma.hbm_to_vmem [thread:$0]  %s1621, 96, %s1626, %s1023, 128, 128, 1
      %s1629 = sadd.s32 %s1013, 41
      %s1630 = sld [smem:[#allocation5 + %s1629]]
      %s1631 = sshrl.u32 %s1630, 3
      %s1632 = sand.u32 %s1630, 7
      %s1633 = smul.u32 %s1631, 48
      %s1634 = sadd.s32 %s1632, %s1633
      %s1635 = smul.addr %s1634, 16
      %s1636 = scalar_lea.hbm %s2, %s1635
      %s1637 = sadd.s32 241, %s1021
      %s1638 = scalar_lea.vmem [#allocation2], %s1637
      %s1640 = sshll.u32 %s1638, 4
      %s1641 = int_to_ptr.vmem [resolvable:$true] %s1640
      %1643 = dma.hbm_to_vmem [thread:$0]  %s1636, 96, %s1641, %s1023, 128, 128, 1
      %s1644 = sadd.s32 %s1013, 42
      %s1645 = sld [smem:[#allocation5 + %s1644]]
      %s1646 = sshrl.u32 %s1645, 3
      %s1647 = sand.u32 %s1645, 7
      %s1648 = smul.u32 %s1646, 48
      %s1649 = sadd.s32 %s1647, %s1648
      %s1650 = smul.addr %s1649, 16
      %s1651 = scalar_lea.hbm %s2, %s1650
      %s1652 = sadd.s32 242, %s1021
      %s1653 = scalar_lea.vmem [#allocation2], %s1652
      %s1655 = sshll.u32 %s1653, 4
      %s1656 = int_to_ptr.vmem [resolvable:$true] %s1655
      %1658 = dma.hbm_to_vmem [thread:$0]  %s1651, 96, %s1656, %s1023, 128, 128, 1
      %s1659 = sadd.s32 %s1013, 43
      %s1660 = sld [smem:[#allocation5 + %s1659]]
      %s1661 = sshrl.u32 %s1660, 3
      %s1662 = sand.u32 %s1660, 7
      %s1663 = smul.u32 %s1661, 48
      %s1664 = sadd.s32 %s1662, %s1663
      %s1665 = smul.addr %s1664, 16
      %s1666 = scalar_lea.hbm %s2, %s1665
      %s1667 = sadd.s32 243, %s1021
      %s1668 = scalar_lea.vmem [#allocation2], %s1667
      %s1670 = sshll.u32 %s1668, 4
      %s1671 = int_to_ptr.vmem [resolvable:$true] %s1670
      %1673 = dma.hbm_to_vmem [thread:$0]  %s1666, 96, %s1671, %s1023, 128, 128, 1
      %s1674 = sadd.s32 %s1013, 44
      %s1675 = sld [smem:[#allocation5 + %s1674]]
      %s1676 = sshrl.u32 %s1675, 3
      %s1677 = sand.u32 %s1675, 7
      %s1678 = smul.u32 %s1676, 48
      %s1679 = sadd.s32 %s1677, %s1678
      %s1680 = smul.addr %s1679, 16
      %s1681 = scalar_lea.hbm %s2, %s1680
      %s1682 = sadd.s32 244, %s1021
      %s1683 = scalar_lea.vmem [#allocation2], %s1682
      %s1685 = sshll.u32 %s1683, 4
      %s1686 = int_to_ptr.vmem [resolvable:$true] %s1685
      %1688 = dma.hbm_to_vmem [thread:$0]  %s1681, 96, %s1686, %s1023, 128, 128, 1
      %s1689 = sadd.s32 %s1013, 45
      %s1690 = sld [smem:[#allocation5 + %s1689]]
      %s1691 = sshrl.u32 %s1690, 3
      %s1692 = sand.u32 %s1690, 7
      %s1693 = smul.u32 %s1691, 48
      %s1694 = sadd.s32 %s1692, %s1693
      %s1695 = smul.addr %s1694, 16
      %s1696 = scalar_lea.hbm %s2, %s1695
      %s1697 = sadd.s32 245, %s1021
      %s1698 = scalar_lea.vmem [#allocation2], %s1697
      %s1700 = sshll.u32 %s1698, 4
      %s1701 = int_to_ptr.vmem [resolvable:$true] %s1700
      %1703 = dma.hbm_to_vmem [thread:$0]  %s1696, 96, %s1701, %s1023, 128, 128, 1
      %s1704 = sadd.s32 %s1013, 46
      %s1705 = sld [smem:[#allocation5 + %s1704]]
      %s1706 = sshrl.u32 %s1705, 3
      %s1707 = sand.u32 %s1705, 7
      %s1708 = smul.u32 %s1706, 48
      %s1709 = sadd.s32 %s1707, %s1708
      %s1710 = smul.addr %s1709, 16
      %s1711 = scalar_lea.hbm %s2, %s1710
      %s1712 = sadd.s32 246, %s1021
      %s1713 = scalar_lea.vmem [#allocation2], %s1712
      %s1715 = sshll.u32 %s1713, 4
      %s1716 = int_to_ptr.vmem [resolvable:$true] %s1715
      %1718 = dma.hbm_to_vmem [thread:$0]  %s1711, 96, %s1716, %s1023, 128, 128, 1
      %s1719 = sadd.s32 %s1013, 47
      %s1720 = sld [smem:[#allocation5 + %s1719]]
      %s1721 = sshrl.u32 %s1720, 3
      %s1722 = sand.u32 %s1720, 7
      %s1723 = smul.u32 %s1721, 48
      %s1724 = sadd.s32 %s1722, %s1723
      %s1725 = smul.addr %s1724, 16
      %s1726 = scalar_lea.hbm %s2, %s1725
      %s1727 = sadd.s32 247, %s1021
      %s1728 = scalar_lea.vmem [#allocation2], %s1727
      %s1730 = sshll.u32 %s1728, 4
      %s1731 = int_to_ptr.vmem [resolvable:$true] %s1730
      %1733 = dma.hbm_to_vmem [thread:$0]  %s1726, 96, %s1731, %s1023, 128, 128, 1
      %s1734 = sadd.s32 %s1013, 48
      %s1735 = sld [smem:[#allocation5 + %s1734]]
      %s1736 = sshrl.u32 %s1735, 3
      %s1737 = sand.u32 %s1735, 7
      %s1738 = smul.u32 %s1736, 48
      %s1739 = sadd.s32 %s1737, %s1738
      %s1740 = smul.addr %s1739, 16
      %s1741 = scalar_lea.hbm %s2, %s1740
      %s1742 = sadd.s32 288, %s1021
      %s1743 = scalar_lea.vmem [#allocation2], %s1742
      %s1745 = sshll.u32 %s1743, 4
      %s1746 = int_to_ptr.vmem [resolvable:$true] %s1745
      %1748 = dma.hbm_to_vmem [thread:$0]  %s1741, 96, %s1746, %s1023, 128, 128, 1
      %s1749 = sadd.s32 %s1013, 49
      %s1750 = sld [smem:[#allocation5 + %s1749]]
      %s1751 = sshrl.u32 %s1750, 3
      %s1752 = sand.u32 %s1750, 7
      %s1753 = smul.u32 %s1751, 48
      %s1754 = sadd.s32 %s1752, %s1753
      %s1755 = smul.addr %s1754, 16
      %s1756 = scalar_lea.hbm %s2, %s1755
      %s1757 = sadd.s32 289, %s1021
      %s1758 = scalar_lea.vmem [#allocation2], %s1757
      %s1760 = sshll.u32 %s1758, 4
      %s1761 = int_to_ptr.vmem [resolvable:$true] %s1760
      %1763 = dma.hbm_to_vmem [thread:$0]  %s1756, 96, %s1761, %s1023, 128, 128, 1
      %s1764 = sadd.s32 %s1013, 50
      %s1765 = sld [smem:[#allocation5 + %s1764]]
      %s1766 = sshrl.u32 %s1765, 3
      %s1767 = sand.u32 %s1765, 7
      %s1768 = smul.u32 %s1766, 48
      %s1769 = sadd.s32 %s1767, %s1768
      %s1770 = smul.addr %s1769, 16
      %s1771 = scalar_lea.hbm %s2, %s1770
      %s1772 = sadd.s32 290, %s1021
      %s1773 = scalar_lea.vmem [#allocation2], %s1772
      %s1775 = sshll.u32 %s1773, 4
      %s1776 = int_to_ptr.vmem [resolvable:$true] %s1775
      %1778 = dma.hbm_to_vmem [thread:$0]  %s1771, 96, %s1776, %s1023, 128, 128, 1
      %s1779 = sadd.s32 %s1013, 51
      %s1780 = sld [smem:[#allocation5 + %s1779]]
      %s1781 = sshrl.u32 %s1780, 3
      %s1782 = sand.u32 %s1780, 7
      %s1783 = smul.u32 %s1781, 48
      %s1784 = sadd.s32 %s1782, %s1783
      %s1785 = smul.addr %s1784, 16
      %s1786 = scalar_lea.hbm %s2, %s1785
      %s1787 = sadd.s32 291, %s1021
      %s1788 = scalar_lea.vmem [#allocation2], %s1787
      %s1790 = sshll.u32 %s1788, 4
      %s1791 = int_to_ptr.vmem [resolvable:$true] %s1790
      %1793 = dma.hbm_to_vmem [thread:$0]  %s1786, 96, %s1791, %s1023, 128, 128, 1
      %s1794 = sadd.s32 %s1013, 52
      %s1795 = sld [smem:[#allocation5 + %s1794]]
      %s1796 = sshrl.u32 %s1795, 3
      %s1797 = sand.u32 %s1795, 7
      %s1798 = smul.u32 %s1796, 48
      %s1799 = sadd.s32 %s1797, %s1798
      %s1800 = smul.addr %s1799, 16
      %s1801 = scalar_lea.hbm %s2, %s1800
      %s1802 = sadd.s32 292, %s1021
      %s1803 = scalar_lea.vmem [#allocation2], %s1802
      %s1805 = sshll.u32 %s1803, 4
      %s1806 = int_to_ptr.vmem [resolvable:$true] %s1805
      %1808 = dma.hbm_to_vmem [thread:$0]  %s1801, 96, %s1806, %s1023, 128, 128, 1
      %s1809 = sadd.s32 %s1013, 53
      %s1810 = sld [smem:[#allocation5 + %s1809]]
      %s1811 = sshrl.u32 %s1810, 3
      %s1812 = sand.u32 %s1810, 7
      %s1813 = smul.u32 %s1811, 48
      %s1814 = sadd.s32 %s1812, %s1813
      %s1815 = smul.addr %s1814, 16
      %s1816 = scalar_lea.hbm %s2, %s1815
      %s1817 = sadd.s32 293, %s1021
      %s1818 = scalar_lea.vmem [#allocation2], %s1817
      %s1820 = sshll.u32 %s1818, 4
      %s1821 = int_to_ptr.vmem [resolvable:$true] %s1820
      %1823 = dma.hbm_to_vmem [thread:$0]  %s1816, 96, %s1821, %s1023, 128, 128, 1
      %s1824 = sadd.s32 %s1013, 54
      %s1825 = sld [smem:[#allocation5 + %s1824]]
      %s1826 = sshrl.u32 %s1825, 3
      %s1827 = sand.u32 %s1825, 7
      %s1828 = smul.u32 %s1826, 48
      %s1829 = sadd.s32 %s1827, %s1828
      %s1830 = smul.addr %s1829, 16
      %s1831 = scalar_lea.hbm %s2, %s1830
      %s1832 = sadd.s32 294, %s1021
      %s1833 = scalar_lea.vmem [#allocation2], %s1832
      %s1835 = sshll.u32 %s1833, 4
      %s1836 = int_to_ptr.vmem [resolvable:$true] %s1835
      %1838 = dma.hbm_to_vmem [thread:$0]  %s1831, 96, %s1836, %s1023, 128, 128, 1
      %s1839 = sadd.s32 %s1013, 55
      %s1840 = sld [smem:[#allocation5 + %s1839]]
      %s1841 = sshrl.u32 %s1840, 3
      %s1842 = sand.u32 %s1840, 7
      %s1843 = smul.u32 %s1841, 48
      %s1844 = sadd.s32 %s1842, %s1843
      %s1845 = smul.addr %s1844, 16
      %s1846 = scalar_lea.hbm %s2, %s1845
      %s1847 = sadd.s32 295, %s1021
      %s1848 = scalar_lea.vmem [#allocation2], %s1847
      %s1850 = sshll.u32 %s1848, 4
      %s1851 = int_to_ptr.vmem [resolvable:$true] %s1850
      %1853 = dma.hbm_to_vmem [thread:$0]  %s1846, 96, %s1851, %s1023, 128, 128, 1
      %s1854 = sadd.s32 %s1013, 56
      %s1855 = sld [smem:[#allocation5 + %s1854]]
      %s1856 = sshrl.u32 %s1855, 3
      %s1857 = sand.u32 %s1855, 7
      %s1858 = smul.u32 %s1856, 48
      %s1859 = sadd.s32 %s1857, %s1858
      %s1860 = smul.addr %s1859, 16
      %s1861 = scalar_lea.hbm %s2, %s1860
      %s1862 = sadd.s32 336, %s1021
      %s1863 = scalar_lea.vmem [#allocation2], %s1862
      %s1865 = sshll.u32 %s1863, 4
      %s1866 = int_to_ptr.vmem [resolvable:$true] %s1865
      %1868 = dma.hbm_to_vmem [thread:$0]  %s1861, 96, %s1866, %s1023, 128, 128, 1
      %s1869 = sadd.s32 %s1013, 57
      %s1870 = sld [smem:[#allocation5 + %s1869]]
      %s1871 = sshrl.u32 %s1870, 3
      %s1872 = sand.u32 %s1870, 7
      %s1873 = smul.u32 %s1871, 48
      %s1874 = sadd.s32 %s1872, %s1873
      %s1875 = smul.addr %s1874, 16
      %s1876 = scalar_lea.hbm %s2, %s1875
      %s1877 = sadd.s32 337, %s1021
      %s1878 = scalar_lea.vmem [#allocation2], %s1877
      %s1880 = sshll.u32 %s1878, 4
      %s1881 = int_to_ptr.vmem [resolvable:$true] %s1880
      %1883 = dma.hbm_to_vmem [thread:$0]  %s1876, 96, %s1881, %s1023, 128, 128, 1
      %s1884 = sadd.s32 %s1013, 58
      %s1885 = sld [smem:[#allocation5 + %s1884]]
      %s1886 = sshrl.u32 %s1885, 3
      %s1887 = sand.u32 %s1885, 7
      %s1888 = smul.u32 %s1886, 48
      %s1889 = sadd.s32 %s1887, %s1888
      %s1890 = smul.addr %s1889, 16
      %s1891 = scalar_lea.hbm %s2, %s1890
      %s1892 = sadd.s32 338, %s1021
      %s1893 = scalar_lea.vmem [#allocation2], %s1892
      %s1895 = sshll.u32 %s1893, 4
      %s1896 = int_to_ptr.vmem [resolvable:$true] %s1895
      %1898 = dma.hbm_to_vmem [thread:$0]  %s1891, 96, %s1896, %s1023, 128, 128, 1
      %s1899 = sadd.s32 %s1013, 59
      %s1900 = sld [smem:[#allocation5 + %s1899]]
      %s1901 = sshrl.u32 %s1900, 3
      %s1902 = sand.u32 %s1900, 7
      %s1903 = smul.u32 %s1901, 48
      %s1904 = sadd.s32 %s1902, %s1903
      %s1905 = smul.addr %s1904, 16
      %s1906 = scalar_lea.hbm %s2, %s1905
      %s1907 = sadd.s32 339, %s1021
      %s1908 = scalar_lea.vmem [#allocation2], %s1907
      %s1910 = sshll.u32 %s1908, 4
      %s1911 = int_to_ptr.vmem [resolvable:$true] %s1910
      %1913 = dma.hbm_to_vmem [thread:$0]  %s1906, 96, %s1911, %s1023, 128, 128, 1
      %s1914 = sadd.s32 %s1013, 60
      %s1915 = sld [smem:[#allocation5 + %s1914]]
      %s1916 = sshrl.u32 %s1915, 3
      %s1917 = sand.u32 %s1915, 7
      %s1918 = smul.u32 %s1916, 48
      %s1919 = sadd.s32 %s1917, %s1918
      %s1920 = smul.addr %s1919, 16
      %s1921 = scalar_lea.hbm %s2, %s1920
      %s1922 = sadd.s32 340, %s1021
      %s1923 = scalar_lea.vmem [#allocation2], %s1922
      %s1925 = sshll.u32 %s1923, 4
      %s1926 = int_to_ptr.vmem [resolvable:$true] %s1925
      %1928 = dma.hbm_to_vmem [thread:$0]  %s1921, 96, %s1926, %s1023, 128, 128, 1
      %s1929 = sadd.s32 %s1013, 61
      %s1930 = sld [smem:[#allocation5 + %s1929]]
      %s1931 = sshrl.u32 %s1930, 3
      %s1932 = sand.u32 %s1930, 7
      %s1933 = smul.u32 %s1931, 48
      %s1934 = sadd.s32 %s1932, %s1933
      %s1935 = smul.addr %s1934, 16
      %s1936 = scalar_lea.hbm %s2, %s1935
      %s1937 = sadd.s32 341, %s1021
      %s1938 = scalar_lea.vmem [#allocation2], %s1937
      %s1940 = sshll.u32 %s1938, 4
      %s1941 = int_to_ptr.vmem [resolvable:$true] %s1940
      %1943 = dma.hbm_to_vmem [thread:$0]  %s1936, 96, %s1941, %s1023, 128, 128, 1
      %s1944 = sadd.s32 %s1013, 62
      %s1945 = sld [smem:[#allocation5 + %s1944]]
      %s1946 = sshrl.u32 %s1945, 3
      %s1947 = sand.u32 %s1945, 7
      %s1948 = smul.u32 %s1946, 48
      %s1949 = sadd.s32 %s1947, %s1948
      %s1950 = smul.addr %s1949, 16
      %s1951 = scalar_lea.hbm %s2, %s1950
      %s1952 = sadd.s32 342, %s1021
      %s1953 = scalar_lea.vmem [#allocation2], %s1952
      %s1955 = sshll.u32 %s1953, 4
      %s1956 = int_to_ptr.vmem [resolvable:$true] %s1955
      %1958 = dma.hbm_to_vmem [thread:$0]  %s1951, 96, %s1956, %s1023, 128, 128, 1
      %s1959 = sadd.s32 %s1013, 63
      %s1960 = sld [smem:[#allocation5 + %s1959]]
      %s1961 = sshrl.u32 %s1960, 3
      %s1962 = sand.u32 %s1960, 7
      %s1963 = smul.u32 %s1961, 48
      %s1964 = sadd.s32 %s1962, %s1963
      %s1965 = smul.addr %s1964, 16
      %s1966 = scalar_lea.hbm %s2, %s1965
      %s1967 = sadd.s32 343, %s1021
      %s1968 = scalar_lea.vmem [#allocation2], %s1967
      %s1970 = sshll.u32 %s1968, 4
      %s1971 = int_to_ptr.vmem [resolvable:$true] %s1970
      %1973 = dma.hbm_to_vmem [thread:$0]  %s1966, 96, %s1971, %s1023, 128, 128, 1
    $region17: #{tpu_custom_call.1} parent=1 // pred_fallthru
      _
    %s1974 = scalar_lea.sflag [#allocation3], %s40
    %s1975 = smul.u32 1, 6
    %s1976 = sshll.u32 %s1975, 4
    %1977 = dma.done %s1974, %s1976
    %s1978 = sshll.u32 %s1975, 4
    %1979 = dma.done %s1974, %s1978
    %s1980 = sshll.u32 %s1975, 4
    %1981 = dma.done %s1974, %s1980
    %s1982 = sshll.u32 %s1975, 4
    %1983 = dma.done %s1974, %s1982
    %s1984 = sshll.u32 %s1975, 4
    %1985 = dma.done %s1974, %s1984
    %s1986 = sshll.u32 %s1975, 4
    %1987 = dma.done %s1974, %s1986
    %s1988 = sshll.u32 %s1975, 4
    %1989 = dma.done %s1974, %s1988
    %s1990 = sshll.u32 %s1975, 4
    %1991 = dma.done %s1974, %s1990
    %s1992 = sshll.u32 %s1975, 4
    %1993 = dma.done %s1974, %s1992
    %s1994 = sshll.u32 %s1975, 4
    %1995 = dma.done %s1974, %s1994
    %s1996 = sshll.u32 %s1975, 4
    %1997 = dma.done %s1974, %s1996
    %s1998 = sshll.u32 %s1975, 4
    %1999 = dma.done %s1974, %s1998
    %s2000 = sshll.u32 %s1975, 4
    %2001 = dma.done %s1974, %s2000
    %s2002 = sshll.u32 %s1975, 4
    %2003 = dma.done %s1974, %s2002
    %s2004 = sshll.u32 %s1975, 4
    %2005 = dma.done %s1974, %s2004
    %s2006 = sshll.u32 %s1975, 4
    %2007 = dma.done %s1974, %s2006
    %s2008 = sshll.u32 %s1975, 4
    %2009 = dma.done %s1974, %s2008
    %s2010 = sshll.u32 %s1975, 4
    %2011 = dma.done %s1974, %s2010
    %s2012 = sshll.u32 %s1975, 4
    %2013 = dma.done %s1974, %s2012
    %s2014 = sshll.u32 %s1975, 4
    %2015 = dma.done %s1974, %s2014
    %s2016 = sshll.u32 %s1975, 4
    %2017 = dma.done %s1974, %s2016
    %s2018 = sshll.u32 %s1975, 4
    %2019 = dma.done %s1974, %s2018
    %s2020 = sshll.u32 %s1975, 4
    %2021 = dma.done %s1974, %s2020
    %s2022 = sshll.u32 %s1975, 4
    %2023 = dma.done %s1974, %s2022
    %s2024 = sshll.u32 %s1975, 4
    %2025 = dma.done %s1974, %s2024
    %s2026 = sshll.u32 %s1975, 4
    %2027 = dma.done %s1974, %s2026
    %s2028 = sshll.u32 %s1975, 4
    %2029 = dma.done %s1974, %s2028
    %s2030 = sshll.u32 %s1975, 4
    %2031 = dma.done %s1974, %s2030
    %s2032 = sshll.u32 %s1975, 4
    %2033 = dma.done %s1974, %s2032
    %s2034 = sshll.u32 %s1975, 4
    %2035 = dma.done %s1974, %s2034
    %s2036 = sshll.u32 %s1975, 4
    %2037 = dma.done %s1974, %s2036
    %s2038 = sshll.u32 %s1975, 4
    %2039 = dma.done %s1974, %s2038
    %s2040 = sshll.u32 %s1975, 4
    %2041 = dma.done %s1974, %s2040
    %s2042 = sshll.u32 %s1975, 4
    %2043 = dma.done %s1974, %s2042
    %s2044 = sshll.u32 %s1975, 4
    %2045 = dma.done %s1974, %s2044
    %s2046 = sshll.u32 %s1975, 4
    %2047 = dma.done %s1974, %s2046
    %s2048 = sshll.u32 %s1975, 4
    %2049 = dma.done %s1974, %s2048
    %s2050 = sshll.u32 %s1975, 4
    %2051 = dma.done %s1974, %s2050
    %s2052 = sshll.u32 %s1975, 4
    %2053 = dma.done %s1974, %s2052
    %s2054 = sshll.u32 %s1975, 4
    %2055 = dma.done %s1974, %s2054
    %s2056 = sshll.u32 %s1975, 4
    %2057 = dma.done %s1974, %s2056
    %s2058 = sshll.u32 %s1975, 4
    %2059 = dma.done %s1974, %s2058
    %s2060 = sshll.u32 %s1975, 4
    %2061 = dma.done %s1974, %s2060
    %s2062 = sshll.u32 %s1975, 4
    %2063 = dma.done %s1974, %s2062
    %s2064 = sshll.u32 %s1975, 4
    %2065 = dma.done %s1974, %s2064
    %s2066 = sshll.u32 %s1975, 4
    %2067 = dma.done %s1974, %s2066
    %s2068 = sshll.u32 %s1975, 4
    %2069 = dma.done %s1974, %s2068
    %s2070 = sshll.u32 %s1975, 4
    %2071 = dma.done %s1974, %s2070
    %s2072 = sshll.u32 %s1975, 4
    %2073 = dma.done %s1974, %s2072
    %s2074 = sshll.u32 %s1975, 4
    %2075 = dma.done %s1974, %s2074
    %s2076 = sshll.u32 %s1975, 4
    %2077 = dma.done %s1974, %s2076
    %s2078 = sshll.u32 %s1975, 4
    %2079 = dma.done %s1974, %s2078
    %s2080 = sshll.u32 %s1975, 4
    %2081 = dma.done %s1974, %s2080
    %s2082 = sshll.u32 %s1975, 4
    %2083 = dma.done %s1974, %s2082
    %s2084 = sshll.u32 %s1975, 4
    %2085 = dma.done %s1974, %s2084
    %s2086 = sshll.u32 %s1975, 4
    %2087 = dma.done %s1974, %s2086
    %s2088 = sshll.u32 %s1975, 4
    %2089 = dma.done %s1974, %s2088
    %s2090 = sshll.u32 %s1975, 4
    %2091 = dma.done %s1974, %s2090
    %s2092 = sshll.u32 %s1975, 4
    %2093 = dma.done %s1974, %s2092
    %s2094 = sshll.u32 %s1975, 4
    %2095 = dma.done %s1974, %s2094
    %s2096 = sshll.u32 %s1975, 4
    %2097 = dma.done %s1974, %s2096
    %s2098 = sshll.u32 %s1975, 4
    %2099 = dma.done %s1974, %s2098
    %s2100 = sshll.u32 %s1975, 4
    %2101 = dma.done %s1974, %s2100
    %s2102 = sshll.u32 %s1975, 4
    %2103 = dma.done %s1974, %s2102
    %s2104 = smul.u32 %s40, 48
    %s2105 = smul.addr %s2104, 8
    %s2106 = scalar_lea.vmem [#allocation2], %s2105
    %v2107 = vld [vmem:[%s2106] sm:$0xff]
    %v2108 = vld [vmem:[%s2106 + $0x8] sm:$0xff]
    %v2109 = vld [vmem:[%s2106 + $0x10] sm:$0xff]
    %v2110 = vld [vmem:[%s2106 + $0x18] sm:$0xff]
    %v2111 = vld [vmem:[%s2106 + $0x20] sm:$0xff]
    %v2112 = vld [vmem:[%s2106 + $0x28] sm:$0xff]
    %v2113 = vld [vmem:[%s2106 + $0x30] sm:$0xff]
    %v2114 = vld [vmem:[%s2106 + $0x38] sm:$0xff]
    %v2115 = vld [vmem:[%s2106 + $0x40] sm:$0xff]
    %v2116 = vld [vmem:[%s2106 + $0x48] sm:$0xff]
    %v2117 = vld [vmem:[%s2106 + $0x50] sm:$0xff]
    %v2118 = vld [vmem:[%s2106 + $0x58] sm:$0xff]
    %v2119 = vld [vmem:[%s2106 + $0x60] sm:$0xff]
    %v2120 = vld [vmem:[%s2106 + $0x68] sm:$0xff]
    %v2121 = vld [vmem:[%s2106 + $0x70] sm:$0xff]
    %v2122 = vld [vmem:[%s2106 + $0x78] sm:$0xff]
    %v2123 = vld [vmem:[%s2106 + $0x80] sm:$0xff]
    %v2124 = vld [vmem:[%s2106 + $0x88] sm:$0xff]
    %v2125 = vld [vmem:[%s2106 + $0x90] sm:$0xff]
    %v2126 = vld [vmem:[%s2106 + $0x98] sm:$0xff]
    %v2127 = vld [vmem:[%s2106 + $0xa0] sm:$0xff]
    %v2128 = vld [vmem:[%s2106 + $0xa8] sm:$0xff]
    %v2129 = vld [vmem:[%s2106 + $0xb0] sm:$0xff]
    %v2130 = vld [vmem:[%s2106 + $0xb8] sm:$0xff]
    %v2131 = vld [vmem:[%s2106 + $0xc0] sm:$0xff]
    %v2132 = vld [vmem:[%s2106 + $0xc8] sm:$0xff]
    %v2133 = vld [vmem:[%s2106 + $0xd0] sm:$0xff]
    %v2134 = vld [vmem:[%s2106 + $0xd8] sm:$0xff]
    %v2135 = vld [vmem:[%s2106 + $0xe0] sm:$0xff]
    %v2136 = vld [vmem:[%s2106 + $0xe8] sm:$0xff]
    %v2137 = vld [vmem:[%s2106 + $0xf0] sm:$0xff]
    %v2138 = vld [vmem:[%s2106 + $0xf8] sm:$0xff]
    %v2139 = vld [vmem:[%s2106 + $0x100] sm:$0xff]
    %v2140 = vld [vmem:[%s2106 + $0x108] sm:$0xff]
    %v2141 = vld [vmem:[%s2106 + $0x110] sm:$0xff]
    %v2142 = vld [vmem:[%s2106 + $0x118] sm:$0xff]
    %v2143 = vld [vmem:[%s2106 + $0x120] sm:$0xff]
    %v2144 = vld [vmem:[%s2106 + $0x128] sm:$0xff]
    %v2145 = vld [vmem:[%s2106 + $0x130] sm:$0xff]
    %v2146 = vld [vmem:[%s2106 + $0x138] sm:$0xff]
    %v2147 = vld [vmem:[%s2106 + $0x140] sm:$0xff]
    %v2148 = vld [vmem:[%s2106 + $0x148] sm:$0xff]
    %v2149 = vld [vmem:[%s2106 + $0x150] sm:$0xff]
    %v2150 = vld [vmem:[%s2106 + $0x158] sm:$0xff]
    %v2151 = vld [vmem:[%s2106 + $0x160] sm:$0xff]
    %v2152 = vld [vmem:[%s2106 + $0x168] sm:$0xff]
    %v2153 = vld [vmem:[%s2106 + $0x170] sm:$0xff]
    %v2154 = vld [vmem:[%s2106 + $0x178] sm:$0xff]
    %v2155 = vld [vmem:[#allocation6] sm:$0xff]
    %v2156 = vlaneseq
    %v2157 = vshrl.u32 %v2156, 7
    %v2158 = vsub.s32 0, %v2157
    %v2159 = vrot.slane %v2155, %v2158
    %2161 = vbcast.lane.b32.xlu0 %v2159, 256
    %v2162 = vpop.permute.xlu0 %2161
    %v2163 = vlaneseq
    %v2164 = vshrl.u32 %v2163, 7
    %v2165 = vsub.s32 1, %v2164
    %v2166 = vrot.slane %v2155, %v2165
    %2168 = vbcast.lane.b32.xlu0 %v2166, 256
    %v2169 = vpop.permute.xlu0 %2168
    %v2170 = vlaneseq
    %v2171 = vshrl.u32 %v2170, 7
    %v2172 = vsub.s32 2, %v2171
    %v2173 = vrot.slane %v2155, %v2172
    %2175 = vbcast.lane.b32.xlu0 %v2173, 256
    %v2176 = vpop.permute.xlu0 %2175
    %v2177 = vlaneseq
    %v2178 = vshrl.u32 %v2177, 7
    %v2179 = vsub.s32 3, %v2178
    %v2180 = vrot.slane %v2155, %v2179
    %2182 = vbcast.lane.b32.xlu0 %v2180, 256
    %v2183 = vpop.permute.xlu0 %2182
    %v2184 = vlaneseq
    %v2185 = vshrl.u32 %v2184, 7
    %v2186 = vsub.s32 4, %v2185
    %v2187 = vrot.slane %v2155, %v2186
    %2189 = vbcast.lane.b32.xlu0 %v2187, 256
    %v2190 = vpop.permute.xlu0 %2189
    %v2191 = vlaneseq
    %v2192 = vshrl.u32 %v2191, 7
    %v2193 = vsub.s32 5, %v2192
    %v2194 = vrot.slane %v2155, %v2193
    %2196 = vbcast.lane.b32.xlu0 %v2194, 256
    %v2197 = vpop.permute.xlu0 %2196
    %v2198 = vlaneseq
    %v2199 = vshrl.u32 %v2198, 7
    %v2200 = vsub.s32 6, %v2199
    %v2201 = vrot.slane %v2155, %v2200
    %2203 = vbcast.lane.b32.xlu0 %v2201, 256
    %v2204 = vpop.permute.xlu0 %2203
    %v2205 = vlaneseq
    %v2206 = vshrl.u32 %v2205, 7
    %v2207 = vsub.s32 7, %v2206
    %v2208 = vrot.slane %v2155, %v2207
    %2210 = vbcast.lane.b32.xlu0 %v2208, 256
    %v2211 = vpop.permute.xlu0 %2210
    %v2212 = vmul.f32 %v2107, %v2162
    %v2213 = vmul.f32 %v2108, %v2162
    %v2214 = vmul.f32 %v2109, %v2162
    %v2215 = vmul.f32 %v2110, %v2162
    %v2216 = vmul.f32 %v2111, %v2162
    %v2217 = vmul.f32 %v2112, %v2162
    %v2218 = vmul.f32 %v2113, %v2169
    %v2219 = vmul.f32 %v2114, %v2169
    %v2220 = vmul.f32 %v2115, %v2169
    %v2221 = vmul.f32 %v2116, %v2169
    %v2222 = vmul.f32 %v2117, %v2169
    %v2223 = vmul.f32 %v2118, %v2169
    %v2224 = vmul.f32 %v2119, %v2176
    %v2225 = vmul.f32 %v2120, %v2176
    %v2226 = vmul.f32 %v2121, %v2176
    %v2227 = vmul.f32 %v2122, %v2176
    %v2228 = vmul.f32 %v2123, %v2176
    %v2229 = vmul.f32 %v2124, %v2176
    %v2230 = vmul.f32 %v2125, %v2183
    %v2231 = vmul.f32 %v2126, %v2183
    %v2232 = vmul.f32 %v2127, %v2183
    %v2233 = vmul.f32 %v2128, %v2183
    %v2234 = vmul.f32 %v2129, %v2183
    %v2235 = vmul.f32 %v2130, %v2183
    %v2236 = vmul.f32 %v2131, %v2190
    %v2237 = vmul.f32 %v2132, %v2190
    %v2238 = vmul.f32 %v2133, %v2190
    %v2239 = vmul.f32 %v2134, %v2190
    %v2240 = vmul.f32 %v2135, %v2190
    %v2241 = vmul.f32 %v2136, %v2190
    %v2242 = vmul.f32 %v2137, %v2197
    %v2243 = vmul.f32 %v2138, %v2197
    %v2244 = vmul.f32 %v2139, %v2197
    %v2245 = vmul.f32 %v2140, %v2197
    %v2246 = vmul.f32 %v2141, %v2197
    %v2247 = vmul.f32 %v2142, %v2197
    %v2248 = vmul.f32 %v2143, %v2204
    %v2249 = vmul.f32 %v2144, %v2204
    %v2250 = vmul.f32 %v2145, %v2204
    %v2251 = vmul.f32 %v2146, %v2204
    %v2252 = vmul.f32 %v2147, %v2204
    %v2253 = vmul.f32 %v2148, %v2204
    %v2254 = vmul.f32 %v2149, %v2211
    %v2255 = vmul.f32 %v2150, %v2211
    %v2256 = vmul.f32 %v2151, %v2211
    %v2257 = vmul.f32 %v2152, %v2211
    %v2258 = vmul.f32 %v2153, %v2211
    %v2259 = vmul.f32 %v2154, %v2211
    %v2260 = vrot.slane %v2212, 4
    %v2261 = vadd.f32 %v2212, %v2260
    %v2262 = vrot.slane %v2261, 2
    %v2263 = vadd.f32 %v2261, %v2262
    %v2264 = vrot.slane %v2263, 1
    %v2265 = vadd.f32 %v2263, %v2264
    %v2266 = vrot.slane %v2213, 4
    %v2267 = vadd.f32 %v2213, %v2266
    %v2268 = vrot.slane %v2267, 2
    %v2269 = vadd.f32 %v2267, %v2268
    %v2270 = vrot.slane %v2269, 1
    %v2271 = vadd.f32 %v2269, %v2270
    %v2272 = vrot.slane %v2214, 4
    %v2273 = vadd.f32 %v2214, %v2272
    %v2274 = vrot.slane %v2273, 2
    %v2275 = vadd.f32 %v2273, %v2274
    %v2276 = vrot.slane %v2275, 1
    %v2277 = vadd.f32 %v2275, %v2276
    %v2278 = vrot.slane %v2215, 4
    %v2279 = vadd.f32 %v2215, %v2278
    %v2280 = vrot.slane %v2279, 2
    %v2281 = vadd.f32 %v2279, %v2280
    %v2282 = vrot.slane %v2281, 1
    %v2283 = vadd.f32 %v2281, %v2282
    %v2284 = vrot.slane %v2216, 4
    %v2285 = vadd.f32 %v2216, %v2284
    %v2286 = vrot.slane %v2285, 2
    %v2287 = vadd.f32 %v2285, %v2286
    %v2288 = vrot.slane %v2287, 1
    %v2289 = vadd.f32 %v2287, %v2288
    %v2290 = vrot.slane %v2217, 4
    %v2291 = vadd.f32 %v2217, %v2290
    %v2292 = vrot.slane %v2291, 2
    %v2293 = vadd.f32 %v2291, %v2292
    %v2294 = vrot.slane %v2293, 1
    %v2295 = vadd.f32 %v2293, %v2294
    %v2296 = vrot.slane %v2218, 4
    %v2297 = vadd.f32 %v2218, %v2296
    %v2298 = vrot.slane %v2297, 2
    %v2299 = vadd.f32 %v2297, %v2298
    %v2300 = vrot.slane %v2299, 1
    %v2301 = vadd.f32 %v2299, %v2300
    %v2302 = vrot.slane %v2219, 4
    %v2303 = vadd.f32 %v2219, %v2302
    %v2304 = vrot.slane %v2303, 2
    %v2305 = vadd.f32 %v2303, %v2304
    %v2306 = vrot.slane %v2305, 1
    %v2307 = vadd.f32 %v2305, %v2306
    %v2308 = vrot.slane %v2220, 4
    %v2309 = vadd.f32 %v2220, %v2308
    %v2310 = vrot.slane %v2309, 2
    %v2311 = vadd.f32 %v2309, %v2310
    %v2312 = vrot.slane %v2311, 1
    %v2313 = vadd.f32 %v2311, %v2312
    %v2314 = vrot.slane %v2221, 4
    %v2315 = vadd.f32 %v2221, %v2314
    %v2316 = vrot.slane %v2315, 2
    %v2317 = vadd.f32 %v2315, %v2316
    %v2318 = vrot.slane %v2317, 1
    %v2319 = vadd.f32 %v2317, %v2318
    %v2320 = vrot.slane %v2222, 4
    %v2321 = vadd.f32 %v2222, %v2320
    %v2322 = vrot.slane %v2321, 2
    %v2323 = vadd.f32 %v2321, %v2322
    %v2324 = vrot.slane %v2323, 1
    %v2325 = vadd.f32 %v2323, %v2324
    %v2326 = vrot.slane %v2223, 4
    %v2327 = vadd.f32 %v2223, %v2326
    %v2328 = vrot.slane %v2327, 2
    %v2329 = vadd.f32 %v2327, %v2328
    %v2330 = vrot.slane %v2329, 1
    %v2331 = vadd.f32 %v2329, %v2330
    %v2332 = vrot.slane %v2224, 4
    %v2333 = vadd.f32 %v2224, %v2332
    %v2334 = vrot.slane %v2333, 2
    %v2335 = vadd.f32 %v2333, %v2334
    %v2336 = vrot.slane %v2335, 1
    %v2337 = vadd.f32 %v2335, %v2336
    %v2338 = vrot.slane %v2225, 4
    %v2339 = vadd.f32 %v2225, %v2338
    %v2340 = vrot.slane %v2339, 2
    %v2341 = vadd.f32 %v2339, %v2340
    %v2342 = vrot.slane %v2341, 1
    %v2343 = vadd.f32 %v2341, %v2342
    %v2344 = vrot.slane %v2226, 4
    %v2345 = vadd.f32 %v2226, %v2344
    %v2346 = vrot.slane %v2345, 2
    %v2347 = vadd.f32 %v2345, %v2346
    %v2348 = vrot.slane %v2347, 1
    %v2349 = vadd.f32 %v2347, %v2348
    %v2350 = vrot.slane %v2227, 4
    %v2351 = vadd.f32 %v2227, %v2350
    %v2352 = vrot.slane %v2351, 2
    %v2353 = vadd.f32 %v2351, %v2352
    %v2354 = vrot.slane %v2353, 1
    %v2355 = vadd.f32 %v2353, %v2354
    %v2356 = vrot.slane %v2228, 4
    %v2357 = vadd.f32 %v2228, %v2356
    %v2358 = vrot.slane %v2357, 2
    %v2359 = vadd.f32 %v2357, %v2358
    %v2360 = vrot.slane %v2359, 1
    %v2361 = vadd.f32 %v2359, %v2360
    %v2362 = vrot.slane %v2229, 4
    %v2363 = vadd.f32 %v2229, %v2362
    %v2364 = vrot.slane %v2363, 2
    %v2365 = vadd.f32 %v2363, %v2364
    %v2366 = vrot.slane %v2365, 1
    %v2367 = vadd.f32 %v2365, %v2366
    %v2368 = vrot.slane %v2230, 4
    %v2369 = vadd.f32 %v2230, %v2368
    %v2370 = vrot.slane %v2369, 2
    %v2371 = vadd.f32 %v2369, %v2370
    %v2372 = vrot.slane %v2371, 1
    %v2373 = vadd.f32 %v2371, %v2372
    %v2374 = vrot.slane %v2231, 4
    %v2375 = vadd.f32 %v2231, %v2374
    %v2376 = vrot.slane %v2375, 2
    %v2377 = vadd.f32 %v2375, %v2376
    %v2378 = vrot.slane %v2377, 1
    %v2379 = vadd.f32 %v2377, %v2378
    %v2380 = vrot.slane %v2232, 4
    %v2381 = vadd.f32 %v2232, %v2380
    %v2382 = vrot.slane %v2381, 2
    %v2383 = vadd.f32 %v2381, %v2382
    %v2384 = vrot.slane %v2383, 1
    %v2385 = vadd.f32 %v2383, %v2384
    %v2386 = vrot.slane %v2233, 4
    %v2387 = vadd.f32 %v2233, %v2386
    %v2388 = vrot.slane %v2387, 2
    %v2389 = vadd.f32 %v2387, %v2388
    %v2390 = vrot.slane %v2389, 1
    %v2391 = vadd.f32 %v2389, %v2390
    %v2392 = vrot.slane %v2234, 4
    %v2393 = vadd.f32 %v2234, %v2392
    %v2394 = vrot.slane %v2393, 2
    %v2395 = vadd.f32 %v2393, %v2394
    %v2396 = vrot.slane %v2395, 1
    %v2397 = vadd.f32 %v2395, %v2396
    %v2398 = vrot.slane %v2235, 4
    %v2399 = vadd.f32 %v2235, %v2398
    %v2400 = vrot.slane %v2399, 2
    %v2401 = vadd.f32 %v2399, %v2400
    %v2402 = vrot.slane %v2401, 1
    %v2403 = vadd.f32 %v2401, %v2402
    %v2404 = vrot.slane %v2236, 4
    %v2405 = vadd.f32 %v2236, %v2404
    %v2406 = vrot.slane %v2405, 2
    %v2407 = vadd.f32 %v2405, %v2406
    %v2408 = vrot.slane %v2407, 1
    %v2409 = vadd.f32 %v2407, %v2408
    %v2410 = vrot.slane %v2237, 4
    %v2411 = vadd.f32 %v2237, %v2410
    %v2412 = vrot.slane %v2411, 2
    %v2413 = vadd.f32 %v2411, %v2412
    %v2414 = vrot.slane %v2413, 1
    %v2415 = vadd.f32 %v2413, %v2414
    %v2416 = vrot.slane %v2238, 4
    %v2417 = vadd.f32 %v2238, %v2416
    %v2418 = vrot.slane %v2417, 2
    %v2419 = vadd.f32 %v2417, %v2418
    %v2420 = vrot.slane %v2419, 1
    %v2421 = vadd.f32 %v2419, %v2420
    %v2422 = vrot.slane %v2239, 4
    %v2423 = vadd.f32 %v2239, %v2422
    %v2424 = vrot.slane %v2423, 2
    %v2425 = vadd.f32 %v2423, %v2424
    %v2426 = vrot.slane %v2425, 1
    %v2427 = vadd.f32 %v2425, %v2426
    %v2428 = vrot.slane %v2240, 4
    %v2429 = vadd.f32 %v2240, %v2428
    %v2430 = vrot.slane %v2429, 2
    %v2431 = vadd.f32 %v2429, %v2430
    %v2432 = vrot.slane %v2431, 1
    %v2433 = vadd.f32 %v2431, %v2432
    %v2434 = vrot.slane %v2241, 4
    %v2435 = vadd.f32 %v2241, %v2434
    %v2436 = vrot.slane %v2435, 2
    %v2437 = vadd.f32 %v2435, %v2436
    %v2438 = vrot.slane %v2437, 1
    %v2439 = vadd.f32 %v2437, %v2438
    %v2440 = vrot.slane %v2242, 4
    %v2441 = vadd.f32 %v2242, %v2440
    %v2442 = vrot.slane %v2441, 2
    %v2443 = vadd.f32 %v2441, %v2442
    %v2444 = vrot.slane %v2443, 1
    %v2445 = vadd.f32 %v2443, %v2444
    %v2446 = vrot.slane %v2243, 4
    %v2447 = vadd.f32 %v2243, %v2446
    %v2448 = vrot.slane %v2447, 2
    %v2449 = vadd.f32 %v2447, %v2448
    %v2450 = vrot.slane %v2449, 1
    %v2451 = vadd.f32 %v2449, %v2450
    %v2452 = vrot.slane %v2244, 4
    %v2453 = vadd.f32 %v2244, %v2452
    %v2454 = vrot.slane %v2453, 2
    %v2455 = vadd.f32 %v2453, %v2454
    %v2456 = vrot.slane %v2455, 1
    %v2457 = vadd.f32 %v2455, %v2456
    %v2458 = vrot.slane %v2245, 4
    %v2459 = vadd.f32 %v2245, %v2458
    %v2460 = vrot.slane %v2459, 2
    %v2461 = vadd.f32 %v2459, %v2460
    %v2462 = vrot.slane %v2461, 1
    %v2463 = vadd.f32 %v2461, %v2462
    %v2464 = vrot.slane %v2246, 4
    %v2465 = vadd.f32 %v2246, %v2464
    %v2466 = vrot.slane %v2465, 2
    %v2467 = vadd.f32 %v2465, %v2466
    %v2468 = vrot.slane %v2467, 1
    %v2469 = vadd.f32 %v2467, %v2468
    %v2470 = vrot.slane %v2247, 4
    %v2471 = vadd.f32 %v2247, %v2470
    %v2472 = vrot.slane %v2471, 2
    %v2473 = vadd.f32 %v2471, %v2472
    %v2474 = vrot.slane %v2473, 1
    %v2475 = vadd.f32 %v2473, %v2474
    %v2476 = vrot.slane %v2248, 4
    %v2477 = vadd.f32 %v2248, %v2476
    %v2478 = vrot.slane %v2477, 2
    %v2479 = vadd.f32 %v2477, %v2478
    %v2480 = vrot.slane %v2479, 1
    %v2481 = vadd.f32 %v2479, %v2480
    %v2482 = vrot.slane %v2249, 4
    %v2483 = vadd.f32 %v2249, %v2482
    %v2484 = vrot.slane %v2483, 2
    %v2485 = vadd.f32 %v2483, %v2484
    %v2486 = vrot.slane %v2485, 1
    %v2487 = vadd.f32 %v2485, %v2486
    %v2488 = vrot.slane %v2250, 4
    %v2489 = vadd.f32 %v2250, %v2488
    %v2490 = vrot.slane %v2489, 2
    %v2491 = vadd.f32 %v2489, %v2490
    %v2492 = vrot.slane %v2491, 1
    %v2493 = vadd.f32 %v2491, %v2492
    %v2494 = vrot.slane %v2251, 4
    %v2495 = vadd.f32 %v2251, %v2494
    %v2496 = vrot.slane %v2495, 2
    %v2497 = vadd.f32 %v2495, %v2496
    %v2498 = vrot.slane %v2497, 1
    %v2499 = vadd.f32 %v2497, %v2498
    %v2500 = vrot.slane %v2252, 4
    %v2501 = vadd.f32 %v2252, %v2500
    %v2502 = vrot.slane %v2501, 2
    %v2503 = vadd.f32 %v2501, %v2502
    %v2504 = vrot.slane %v2503, 1
    %v2505 = vadd.f32 %v2503, %v2504
    %v2506 = vrot.slane %v2253, 4
    %v2507 = vadd.f32 %v2253, %v2506
    %v2508 = vrot.slane %v2507, 2
    %v2509 = vadd.f32 %v2507, %v2508
    %v2510 = vrot.slane %v2509, 1
    %v2511 = vadd.f32 %v2509, %v2510
    %v2512 = vrot.slane %v2254, 4
    %v2513 = vadd.f32 %v2254, %v2512
    %v2514 = vrot.slane %v2513, 2
    %v2515 = vadd.f32 %v2513, %v2514
    %v2516 = vrot.slane %v2515, 1
    %v2517 = vadd.f32 %v2515, %v2516
    %v2518 = vrot.slane %v2255, 4
    %v2519 = vadd.f32 %v2255, %v2518
    %v2520 = vrot.slane %v2519, 2
    %v2521 = vadd.f32 %v2519, %v2520
    %v2522 = vrot.slane %v2521, 1
    %v2523 = vadd.f32 %v2521, %v2522
    %v2524 = vrot.slane %v2256, 4
    %v2525 = vadd.f32 %v2256, %v2524
    %v2526 = vrot.slane %v2525, 2
    %v2527 = vadd.f32 %v2525, %v2526
    %v2528 = vrot.slane %v2527, 1
    %v2529 = vadd.f32 %v2527, %v2528
    %v2530 = vrot.slane %v2257, 4
    %v2531 = vadd.f32 %v2257, %v2530
    %v2532 = vrot.slane %v2531, 2
    %v2533 = vadd.f32 %v2531, %v2532
    %v2534 = vrot.slane %v2533, 1
    %v2535 = vadd.f32 %v2533, %v2534
    %v2536 = vrot.slane %v2258, 4
    %v2537 = vadd.f32 %v2258, %v2536
    %v2538 = vrot.slane %v2537, 2
    %v2539 = vadd.f32 %v2537, %v2538
    %v2540 = vrot.slane %v2539, 1
    %v2541 = vadd.f32 %v2539, %v2540
    %v2542 = vrot.slane %v2259, 4
    %v2543 = vadd.f32 %v2259, %v2542
    %v2544 = vrot.slane %v2543, 2
    %v2545 = vadd.f32 %v2543, %v2544
    %v2546 = vrot.slane %v2545, 1
    %v2547 = vadd.f32 %v2545, %v2546
    %vm2596 = vcmask 1041409
    %v2597 = vsel %vm2596, %v2301, %v2265
    %vm2598 = vcmask 1042434
    %v2599 = vsel %vm2598, %v2337, %v2597
    %vm2600 = vcmask 1043459
    %v2601 = vsel %vm2600, %v2373, %v2599
    %vm2602 = vcmask 1044484
    %v2603 = vsel %vm2602, %v2409, %v2601
    %vm2604 = vcmask 1045509
    %v2605 = vsel %vm2604, %v2445, %v2603
    %vm2606 = vcmask 1046534
    %v2607 = vsel %vm2606, %v2481, %v2605
    %vm2608 = vcmask 1047559
    %v2609 = vsel %vm2608, %v2517, %v2607
    %v2610 = vsel %vm2596, %v2307, %v2271
    %v2611 = vsel %vm2598, %v2343, %v2610
    %v2612 = vsel %vm2600, %v2379, %v2611
    %v2613 = vsel %vm2602, %v2415, %v2612
    %v2614 = vsel %vm2604, %v2451, %v2613
    %v2615 = vsel %vm2606, %v2487, %v2614
    %v2616 = vsel %vm2608, %v2523, %v2615
    %v2617 = vsel %vm2596, %v2313, %v2277
    %v2618 = vsel %vm2598, %v2349, %v2617
    %v2619 = vsel %vm2600, %v2385, %v2618
    %v2620 = vsel %vm2602, %v2421, %v2619
    %v2621 = vsel %vm2604, %v2457, %v2620
    %v2622 = vsel %vm2606, %v2493, %v2621
    %v2623 = vsel %vm2608, %v2529, %v2622
    %v2624 = vsel %vm2596, %v2319, %v2283
    %v2625 = vsel %vm2598, %v2355, %v2624
    %v2626 = vsel %vm2600, %v2391, %v2625
    %v2627 = vsel %vm2602, %v2427, %v2626
    %v2628 = vsel %vm2604, %v2463, %v2627
    %v2629 = vsel %vm2606, %v2499, %v2628
    %v2630 = vsel %vm2608, %v2535, %v2629
    %v2631 = vsel %vm2596, %v2325, %v2289
    %v2632 = vsel %vm2598, %v2361, %v2631
    %v2633 = vsel %vm2600, %v2397, %v2632
    %v2634 = vsel %vm2602, %v2433, %v2633
    %v2635 = vsel %vm2604, %v2469, %v2634
    %v2636 = vsel %vm2606, %v2505, %v2635
    %v2637 = vsel %vm2608, %v2541, %v2636
    %v2638 = vsel %vm2596, %v2331, %v2295
    %v2639 = vsel %vm2598, %v2367, %v2638
    %v2640 = vsel %vm2600, %v2403, %v2639
    %v2641 = vsel %vm2602, %v2439, %v2640
    %v2642 = vsel %vm2604, %v2475, %v2641
    %v2643 = vsel %vm2606, %v2511, %v2642
    %v2644 = vsel %vm2608, %v2547, %v2643
    %2651 = vst [vmem:[#allocation9] sm:$0xff] %v2609
    %2652 = vst [vmem:[#allocation9 + $0x8] sm:$0xff] %v2616
    %2653 = vst [vmem:[#allocation9 + $0x10] sm:$0xff] %v2623
    %2654 = vst [vmem:[#allocation9 + $0x18] sm:$0xff] %v2630
    %2655 = vst [vmem:[#allocation9 + $0x20] sm:$0xff] %v2637
    %2656 = vst [vmem:[#allocation9 + $0x28] sm:$0xff] %v2644
    // Predicated region
    $region18: #{tpu_custom_call.1} parent=1 // pred_check
      _
    $region19: #{tpu_custom_call.1} parent=1 // pred_check_branch
      %2658 = sbr.rel (0) target = $region21
    $region20: #{tpu_custom_call.1} parent=1 // pred_region
      %s2659 = sadd.s32 0, 0
      %s2661 = ssub.s32 768, 768
      %2662 = vsyncadd [#allocation8], %s2661
      %s2663 = smul.addr %s2659, 6
      %s2664 = smul.addr %s2663, 128
      %s2665 = scalar_lea.hbm %s3, %s2664
      %s2667 = sshll.u32 [#allocation9], 4
      %s2668 = int_to_ptr.vmem [resolvable:$true] %s2667
      %2670 = dma.vmem_to_hbm [thread:$0]  %s2668, 768, %s2665, [#allocation8]
    $region21: #{tpu_custom_call.1} parent=1 // pred_fallthru
      _
    // Predicated region
    $region22: #{tpu_custom_call.1} parent=1 // pred_check
      _
    $region23: #{tpu_custom_call.1} parent=1 // pred_check_branch
      %2672 = sbr.rel (0) target = $region25
    $region24: #{tpu_custom_call.1} parent=1 // pred_region
      %2673 = dma.done [#allocation8], 768
    $region25: #{tpu_custom_call.1} parent=1 // pred_fallthru
      _
    %2674 = vsyncpa [#allocation7], 1
    %2675 = vsyncpa [#allocation8], 1
  %2676 = vsyncmov [#allocation3]
  %s2677 = vpop.sfrf %2676
  %p2678 = scmp.eq.s32.totalorder %s2677, 0
  %p2679 = pneg %p2678
  %2681 = shalt.err (%p2679)
  %s2682 = scalar_lea.sflag [#allocation3], 1
  %2683 = vsyncmov %s2682
  %s2684 = vpop.sfrf %2683
  %p2685 = scmp.eq.s32.totalorder %s2684, 0
  %p2686 = pneg %p2685
  %2688 = shalt.err (%p2686)

</llo_original>
